<compile_context>
chip_gen: v5e
topology: v5e:2x2
jax: 0.10.0
libtpu: 0.0.40
codegen_flags: <defaults>
</compile_context>

<pallas_src>
import math

import jax
import jax.numpy as jnp
from jax.experimental import pallas as pl
from jax.experimental.pallas import tpu as pltpu


def _round_up(x, m):
    return ((x + m - 1) // m) * m


def _upsample_convt_kernel(wt_ref, b_ref, e0_ref, e1_ref, x_ref, o_ref):
    """One grid step: nb batch rows x th input rows -> the matching output tile.

    wt_ref : SMEM (4*C_out, C_in)   rows q = (i*2 + j)*C_out + co  (scalar weights)
    b_ref  : SMEM (4*C_out,)        bias replicated per (i, j) tap
    e0_ref : VMEM (W, 2W)           e0[w, 2w]   = 1  (even output columns)
    e1_ref : VMEM (W, 2W)           e1[w, 2w+1] = 1  (odd  output columns)
    x_ref  : VMEM (nb, C_in, th, W)     NCHW input tile   (sublane = h, lane = w)
    o_ref  : VMEM (nb, C_out, th, 4W)   lanes [0,2W) -> out row 2h, [2W,4W) -> row 2h+1
    """
    nb, C_in, th, W = x_ref.shape
    C_out = o_ref.shape[1]

    e0 = e0_ref[...]
    e1 = e1_ref[...]

    for b in range(nb):
        # Input tiles for this batch row, promoted once to the f32 accumulation dtype.
        xs = [x_ref[b, c].astype(jnp.float32) for c in range(C_in)]
        for co in range(C_out):
            # --- channel contraction on the VPU: results are born in (h, w) layout ---
            accs = []
            for t in range(4):                       # t = 2*i + j
                q = t * C_out + co
                a = xs[0] * wt_ref[q, 0]
                for c in range(1, C_in):
                    a = a + xs[c] * wt_ref[q, c]
                accs.append(a + b_ref[q])
            # --- width interleave on the MXU: all th rows of the tile per matmul ---
            even = (jnp.dot(accs[0], e0, preferred_element_type=jnp.float32) +
                    jnp.dot(accs[1], e1, preferred_element_type=jnp.float32))
            odd = (jnp.dot(accs[2], e0, preferred_element_type=jnp.float32) +
                   jnp.dot(accs[3], e1, preferred_element_type=jnp.float32))
            # --- two dense (th, 2W) stores; sublane axis (h) already matches dest ---
            o_ref[b, co, :, 0:2 * W] = even.astype(o_ref.dtype)
            o_ref[b, co, :, 2 * W:4 * W] = odd.astype(o_ref.dtype)


def _choose_blocks(N, C_in, C_out, H, W, itemsize):
    """Pick (nb, th, vmem_limit): batch rows and input rows processed per grid step."""
    try:
        vmem_cap = int(pltpu.get_tpu_info().vmem_capacity_bytes)
    except Exception:
        vmem_cap = 64 * 1024 * 1024          # v7x per-TensorCore VMEM (safe floor)
    vmem_limit = min(int(0.78 * vmem_cap), 100 * 1024 * 1024)
    budget = vmem_cap // 2                   # for double-buffered blocks + residents

    Wp = _round_up(W, 128)                   # lane padding of (th, W) tiles in VMEM
    W2p = _round_up(2 * W, 128)
    W4p = _round_up(4 * W, 128)

    def block_bytes(nb, th):
        thp = _round_up(th, 8)
        in_blk = nb * C_in * thp * Wp * itemsize
        out_blk = nb * C_out * thp * W4p * itemsize
        resident = 2 * _round_up(W, 8) * W2p * 4                     # e0, e1
        temps = (C_in + 4) * thp * Wp * 4 + 2 * thp * W2p * 4        # xs + accs + even/odd
        return 2 * (in_blk + out_blk) + resident + temps             # x2: double buffering

    # Rows per step: full image if it fits the budget, else largest multiple of 8.
    th = None
    cands = [H] + [t for t in range((H // 8) * 8, 0, -8) if t < H]
    for t in cands:
        if block_bytes(1, t) <= budget:
            th = t
            break
    if th is None:                           # extreme shapes: smallest legal tile
        th = min(8, H)
    h_blocks = pl.cdiv(H, th)

    # Batch rows per step: grow per-step traffic, keep >= 2 grid steps when possible
    # (v7x has 2 TensorCores), and bound the in-kernel unroll over the batch block.
    nb = 1
    for d in range(2, min(N, 8) + 1):
        if N % d != 0:
            continue
        if block_bytes(d, th) > budget:
            break
        if (N // d) * h_blocks < 2 and N * h_blocks >= 2:
            break
        nb = d
    return nb, th, vmem_limit


def upsample_convt(x4, weight, bias):
    """x4: (N, C_in, H, W) NCHW; weight: (C_in, C_out, 2, 2) PyTorch ConvTranspose2d
    layout; bias: (C_out,).  Returns (N, C_out, H, 4W) whose row-major layout equals
    NCHW (N, C_out, 2H, 2W) — the caller's reshape is free."""
    N, C_in, H, W = x4.shape
    C_out = weight.shape[1]

    # Scalar-weight table: rows ordered q = (i*2 + j)*C_out + co, columns = c_in.
    wt = jnp.transpose(weight, (2, 3, 1, 0)).reshape(4 * C_out, C_in).astype(jnp.float32)
    bq = jnp.tile(bias.astype(jnp.float32), 4)                      # (4*C_out,)

    # One-hot width-expansion matrices (built once, resident in VMEM across the grid).
    w_idx = jnp.arange(W)[:, None]
    l_idx = jnp.arange(2 * W)[None, :]
    e0 = (l_idx == 2 * w_idx).astype(jnp.float32)                   # e0[w, 2w]   = 1
    e1 = (l_idx == 2 * w_idx + 1).astype(jnp.float32)               # e1[w, 2w+1] = 1

    nb, th, vmem_limit = _choose_blocks(N, C_in, C_out, H, W,
                                        jnp.dtype(x4.dtype).itemsize)
    grid = (N // nb, pl.cdiv(H, th))

    return pl.pallas_call(
        _upsample_convt_kernel,
        out_shape=jax.ShapeDtypeStruct((N, C_out, H, 4 * W), x4.dtype),
        grid_spec=pltpu.PrefetchScalarGridSpec(
            num_scalar_prefetch=0,
            grid=grid,
            in_specs=[
                pl.BlockSpec(memory_space=pltpu.MemorySpace.SMEM),           # wt
                pl.BlockSpec(memory_space=pltpu.MemorySpace.SMEM),           # bq
                pl.BlockSpec((W, 2 * W), lambda n, ht: (0, 0)),              # e0 (resident)
                pl.BlockSpec((W, 2 * W), lambda n, ht: (0, 0)),              # e1 (resident)
                pl.BlockSpec((nb, C_in, th, W), lambda n, ht: (n, 0, ht, 0)),
            ],
            out_specs=pl.BlockSpec((nb, C_out, th, 4 * W),
                                   lambda n, ht: (n, 0, ht, 0)),
        ),
        compiler_params=pltpu.CompilerParams(
            dimension_semantics=("parallel", "parallel"),
            vmem_limit_bytes=vmem_limit),
    )(wt, bq, e0, e1, x4)


class UpsampleConvT:
    """JAX/Pallas port of Upsample(in_channel, out_channel, up_method='convT')."""

    def __init__(self, in_channel, out_channel, key):
        self.in_channel = in_channel
        self.out_channel = out_channel
        k_w, k_b = jax.random.split(key)
        # PyTorch ConvTranspose2d weight shape: (in_channel, out_channel, kH=2, kW=2)
        fan_in = in_channel * 2 * 2
        bound = 1.0 / math.sqrt(fan_in)
        self.weight = jax.random.uniform(
            k_w, (in_channel, out_channel, 2, 2), jnp.float32, -bound, bound)
        self.bias = jax.random.uniform(
            k_b, (out_channel,), jnp.float32, -bound, bound)

    def __call__(self, x):
        # x: (B, T, C, H, W)  (matches the PyTorch module)
        B, T, C, H, W = x.shape
        Co = self.out_channel
        x4 = x.reshape(B * T, C, H, W)                  # free reshape
        out = upsample_convt(x4, self.weight, self.bias)
        # (N, Co, H, 4W) and (N, Co, 2H, 2W) share a row-major layout -> free reshape.
        return out.reshape(B, T, Co, 2 * H, 2 * W)


def _reference(x, weight, bias):
    """Pure-JAX reference for ConvTranspose2d(k=2, s=2) on (B,T,C,H,W)."""
    B, T, C, H, W = x.shape
    Co = weight.shape[1]
    xf = x.reshape(B * T, C, H, W)
    o = jnp.einsum('nchw,coij->nohwij', xf, weight)
    o = jnp.transpose(o, (0, 1, 2, 4, 3, 5)).reshape(B * T, Co, 2 * H, 2 * W)
    o = o + bias[None, :, None, None]
    return o.reshape(B, T, Co, 2 * H, 2 * W)


if __name__ == "__main__":
    key = jax.random.PRNGKey(0)
    k_mod, k_x = jax.random.split(key)

    B, T, C_in, H, W = 2, 3, 4, 16, 16
    C_out = 8

    mod = UpsampleConvT(C_in, C_out, k_mod)
    x = jax.random.normal(k_x, (B, T, C_in, H, W), jnp.float32)

    out = mod(x)
    out = jax.block_until_ready(out)

    assert out.shape == (B, T, C_out, 2 * H, 2 * W), out.shape

    ref = _reference(x, mod.weight, mod.bias)
    assert jnp.allclose(out, ref, atol=1e-4, rtol=1e-4), "mismatch vs reference"

    print("KERNEL_OK")
</pallas_src>

<mosaic_0001>
module attributes {stable_mosaic.version = 11 : i64} {
  func.func @_upsample_convt_kernel(%arg0: i32, %arg1: i32, %arg2: memref<32x4xf32, #tpu.memory_space<smem>>, %arg3: memref<32xf32, #tpu.memory_space<smem>>, %arg4: memref<16x32xf32, #tpu.memory_space<vmem>>, %arg5: memref<16x32xf32, #tpu.memory_space<vmem>>, %arg6: memref<3x4x16x16xf32, #tpu.memory_space<vmem>>, %arg7: memref<3x8x16x64xf32, #tpu.memory_space<vmem>>) attributes {dimension_semantics = [#tpu.dimension_semantics<parallel>, #tpu.dimension_semantics<parallel>], iteration_bounds = array<i64: 2, 1>, scalar_prefetch = 0 : i64, scratch_operands = 0 : i64, tpu.core_type = #tpu.core_type<tc>, window_params = [{transform_indices = @transform_0, window_bounds = array<i64: 32, 4>}, {transform_indices = @transform_1, window_bounds = array<i64: 32>}, {pipeline_mode = #tpu.pipeline_mode<synchronous>, transform_indices = @transform_2, window_bounds = array<i64: 16, 32>}, {pipeline_mode = #tpu.pipeline_mode<synchronous>, transform_indices = @transform_3, window_bounds = array<i64: 16, 32>}, {transform_indices = @transform_4, window_bounds = array<i64: 3, 4, 16, 16>}, {transform_indices = @transform_5, window_bounds = array<i64: 3, 8, 16, 64>}]} {
    %c0 = arith.constant 0 : index
    %c0_0 = arith.constant 0 : index
    %0 = vector.load %arg4[%c0, %c0_0] : memref<16x32xf32, #tpu.memory_space<vmem>>, vector<16x32xf32>
    %c0_1 = arith.constant 0 : index
    %c0_2 = arith.constant 0 : index
    %1 = vector.load %arg5[%c0_1, %c0_2] : memref<16x32xf32, #tpu.memory_space<vmem>>, vector<16x32xf32>
    %c0_3 = arith.constant 0 : index
    %c0_4 = arith.constant 0 : index
    %c0_5 = arith.constant 0 : index
    %c0_6 = arith.constant 0 : index
    %2 = vector.load %arg6[%c0_3, %c0_4, %c0_5, %c0_6] : memref<3x4x16x16xf32, #tpu.memory_space<vmem>>, vector<1x1x16x16xf32>
    %3 = vector.shape_cast %2 : vector<1x1x16x16xf32> to vector<16x16xf32>
    %c0_7 = arith.constant 0 : index
    %c1 = arith.constant 1 : index
    %c0_8 = arith.constant 0 : index
    %c0_9 = arith.constant 0 : index
    %4 = vector.load %arg6[%c0_7, %c1, %c0_8, %c0_9] : memref<3x4x16x16xf32, #tpu.memory_space<vmem>>, vector<1x1x16x16xf32>
    %5 = vector.shape_cast %4 : vector<1x1x16x16xf32> to vector<16x16xf32>
    %c0_10 = arith.constant 0 : index
    %c2 = arith.constant 2 : index
    %c0_11 = arith.constant 0 : index
    %c0_12 = arith.constant 0 : index
    %6 = vector.load %arg6[%c0_10, %c2, %c0_11, %c0_12] : memref<3x4x16x16xf32, #tpu.memory_space<vmem>>, vector<1x1x16x16xf32>
    %7 = vector.shape_cast %6 : vector<1x1x16x16xf32> to vector<16x16xf32>
    %c0_13 = arith.constant 0 : index
    %c3 = arith.constant 3 : index
    %c0_14 = arith.constant 0 : index
    %c0_15 = arith.constant 0 : index
    %8 = vector.load %arg6[%c0_13, %c3, %c0_14, %c0_15] : memref<3x4x16x16xf32, #tpu.memory_space<vmem>>, vector<1x1x16x16xf32>
    %9 = vector.shape_cast %8 : vector<1x1x16x16xf32> to vector<16x16xf32>
    %c0_16 = arith.constant 0 : index
    %c0_17 = arith.constant 0 : index
    %10 = memref.load %arg2[%c0_16, %c0_17] : memref<32x4xf32, #tpu.memory_space<smem>>
    %11 = vector.broadcast %10 : f32 to vector<16x16xf32>
    %12 = arith.mulf %3, %11 : vector<16x16xf32>
    %c0_18 = arith.constant 0 : index
    %c1_19 = arith.constant 1 : index
    %13 = memref.load %arg2[%c0_18, %c1_19] : memref<32x4xf32, #tpu.memory_space<smem>>
    %14 = vector.broadcast %13 : f32 to vector<16x16xf32>
    %15 = arith.mulf %5, %14 : vector<16x16xf32>
    %16 = arith.addf %12, %15 : vector<16x16xf32>
    %c0_20 = arith.constant 0 : index
    %c2_21 = arith.constant 2 : index
    %17 = memref.load %arg2[%c0_20, %c2_21] : memref<32x4xf32, #tpu.memory_space<smem>>
    %18 = vector.broadcast %17 : f32 to vector<16x16xf32>
    %19 = arith.mulf %7, %18 : vector<16x16xf32>
    %20 = arith.addf %16, %19 : vector<16x16xf32>
    %c0_22 = arith.constant 0 : index
    %c3_23 = arith.constant 3 : index
    %21 = memref.load %arg2[%c0_22, %c3_23] : memref<32x4xf32, #tpu.memory_space<smem>>
    %22 = vector.broadcast %21 : f32 to vector<16x16xf32>
    %23 = arith.mulf %9, %22 : vector<16x16xf32>
    %24 = arith.addf %20, %23 : vector<16x16xf32>
    %c0_24 = arith.constant 0 : index
    %25 = memref.load %arg3[%c0_24] : memref<32xf32, #tpu.memory_space<smem>>
    %26 = vector.broadcast %25 : f32 to vector<16x16xf32>
    %27 = arith.addf %24, %26 : vector<16x16xf32>
    %c8 = arith.constant 8 : index
    %c0_25 = arith.constant 0 : index
    %28 = memref.load %arg2[%c8, %c0_25] : memref<32x4xf32, #tpu.memory_space<smem>>
    %29 = vector.broadcast %28 : f32 to vector<16x16xf32>
    %30 = arith.mulf %3, %29 : vector<16x16xf32>
    %c8_26 = arith.constant 8 : index
    %c1_27 = arith.constant 1 : index
    %31 = memref.load %arg2[%c8_26, %c1_27] : memref<32x4xf32, #tpu.memory_space<smem>>
    %32 = vector.broadcast %31 : f32 to vector<16x16xf32>
    %33 = arith.mulf %5, %32 : vector<16x16xf32>
    %34 = arith.addf %30, %33 : vector<16x16xf32>
    %c8_28 = arith.constant 8 : index
    %c2_29 = arith.constant 2 : index
    %35 = memref.load %arg2[%c8_28, %c2_29] : memref<32x4xf32, #tpu.memory_space<smem>>
    %36 = vector.broadcast %35 : f32 to vector<16x16xf32>
    %37 = arith.mulf %7, %36 : vector<16x16xf32>
    %38 = arith.addf %34, %37 : vector<16x16xf32>
    %c8_30 = arith.constant 8 : index
    %c3_31 = arith.constant 3 : index
    %39 = memref.load %arg2[%c8_30, %c3_31] : memref<32x4xf32, #tpu.memory_space<smem>>
    %40 = vector.broadcast %39 : f32 to vector<16x16xf32>
    %41 = arith.mulf %9, %40 : vector<16x16xf32>
    %42 = arith.addf %38, %41 : vector<16x16xf32>
    %c8_32 = arith.constant 8 : index
    %43 = memref.load %arg3[%c8_32] : memref<32xf32, #tpu.memory_space<smem>>
    %44 = vector.broadcast %43 : f32 to vector<16x16xf32>
    %45 = arith.addf %42, %44 : vector<16x16xf32>
    %c16 = arith.constant 16 : index
    %c0_33 = arith.constant 0 : index
    %46 = memref.load %arg2[%c16, %c0_33] : memref<32x4xf32, #tpu.memory_space<smem>>
    %47 = vector.broadcast %46 : f32 to vector<16x16xf32>
    %48 = arith.mulf %3, %47 : vector<16x16xf32>
    %c16_34 = arith.constant 16 : index
    %c1_35 = arith.constant 1 : index
    %49 = memref.load %arg2[%c16_34, %c1_35] : memref<32x4xf32, #tpu.memory_space<smem>>
    %50 = vector.broadcast %49 : f32 to vector<16x16xf32>
    %51 = arith.mulf %5, %50 : vector<16x16xf32>
    %52 = arith.addf %48, %51 : vector<16x16xf32>
    %c16_36 = arith.constant 16 : index
    %c2_37 = arith.constant 2 : index
    %53 = memref.load %arg2[%c16_36, %c2_37] : memref<32x4xf32, #tpu.memory_space<smem>>
    %54 = vector.broadcast %53 : f32 to vector<16x16xf32>
    %55 = arith.mulf %7, %54 : vector<16x16xf32>
    %56 = arith.addf %52, %55 : vector<16x16xf32>
    %c16_38 = arith.constant 16 : index
    %c3_39 = arith.constant 3 : index
    %57 = memref.load %arg2[%c16_38, %c3_39] : memref<32x4xf32, #tpu.memory_space<smem>>
    %58 = vector.broadcast %57 : f32 to vector<16x16xf32>
    %59 = arith.mulf %9, %58 : vector<16x16xf32>
    %60 = arith.addf %56, %59 : vector<16x16xf32>
    %c16_40 = arith.constant 16 : index
    %61 = memref.load %arg3[%c16_40] : memref<32xf32, #tpu.memory_space<smem>>
    %62 = vector.broadcast %61 : f32 to vector<16x16xf32>
    %63 = arith.addf %60, %62 : vector<16x16xf32>
    %c24 = arith.constant 24 : index
    %c0_41 = arith.constant 0 : index
    %64 = memref.load %arg2[%c24, %c0_41] : memref<32x4xf32, #tpu.memory_space<smem>>
    %65 = vector.broadcast %64 : f32 to vector<16x16xf32>
    %66 = arith.mulf %3, %65 : vector<16x16xf32>
    %c24_42 = arith.constant 24 : index
    %c1_43 = arith.constant 1 : index
    %67 = memref.load %arg2[%c24_42, %c1_43] : memref<32x4xf32, #tpu.memory_space<smem>>
    %68 = vector.broadcast %67 : f32 to vector<16x16xf32>
    %69 = arith.mulf %5, %68 : vector<16x16xf32>
    %70 = arith.addf %66, %69 : vector<16x16xf32>
    %c24_44 = arith.constant 24 : index
    %c2_45 = arith.constant 2 : index
    %71 = memref.load %arg2[%c24_44, %c2_45] : memref<32x4xf32, #tpu.memory_space<smem>>
    %72 = vector.broadcast %71 : f32 to vector<16x16xf32>
    %73 = arith.mulf %7, %72 : vector<16x16xf32>
    %74 = arith.addf %70, %73 : vector<16x16xf32>
    %c24_46 = arith.constant 24 : index
    %c3_47 = arith.constant 3 : index
    %75 = memref.load %arg2[%c24_46, %c3_47] : memref<32x4xf32, #tpu.memory_space<smem>>
    %76 = vector.broadcast %75 : f32 to vector<16x16xf32>
    %77 = arith.mulf %9, %76 : vector<16x16xf32>
    %78 = arith.addf %74, %77 : vector<16x16xf32>
    %c24_48 = arith.constant 24 : index
    %79 = memref.load %arg3[%c24_48] : memref<32xf32, #tpu.memory_space<smem>>
    %80 = vector.broadcast %79 : f32 to vector<16x16xf32>
    %81 = arith.addf %78, %80 : vector<16x16xf32>
    %cst = arith.constant dense<0.000000e+00> : vector<16x32xf32>
    %82 = tpu.matmul %27, %0, %cst {dimension_numbers = #tpu.dot_dimension_numbers<[1], [0], [0], [1], [0, 0, 1, 1], [], []>} : vector<16x16xf32>, vector<16x32xf32>, vector<16x32xf32> -> vector<16x32xf32>
    %cst_49 = arith.constant dense<0.000000e+00> : vector<16x32xf32>
    %83 = tpu.matmul %45, %1, %cst_49 {dimension_numbers = #tpu.dot_dimension_numbers<[1], [0], [0], [1], [0, 0, 1, 1], [], []>} : vector<16x16xf32>, vector<16x32xf32>, vector<16x32xf32> -> vector<16x32xf32>
    %84 = arith.addf %82, %83 : vector<16x32xf32>
    %cst_50 = arith.constant dense<0.000000e+00> : vector<16x32xf32>
    %85 = tpu.matmul %63, %0, %cst_50 {dimension_numbers = #tpu.dot_dimension_numbers<[1], [0], [0], [1], [0, 0, 1, 1], [], []>} : vector<16x16xf32>, vector<16x32xf32>, vector<16x32xf32> -> vector<16x32xf32>
    %cst_51 = arith.constant dense<0.000000e+00> : vector<16x32xf32>
    %86 = tpu.matmul %81, %1, %cst_51 {dimension_numbers = #tpu.dot_dimension_numbers<[1], [0], [0], [1], [0, 0, 1, 1], [], []>} : vector<16x16xf32>, vector<16x32xf32>, vector<16x32xf32> -> vector<16x32xf32>
    %87 = arith.addf %85, %86 : vector<16x32xf32>
    %c0_52 = arith.constant 0 : index
    %c0_53 = arith.constant 0 : index
    %c0_54 = arith.constant 0 : index
    %c0_55 = arith.constant 0 : index
    %88 = vector.load %arg7[%c0_52, %c0_53, %c0_54, %c0_55] : memref<3x8x16x64xf32, #tpu.memory_space<vmem>>, vector<1x1x16x32xf32>
    %89 = vector.shape_cast %88 : vector<1x1x16x32xf32> to vector<16x32xf32>
    %90 = vector.shape_cast %84 : vector<16x32xf32> to vector<1x1x16x32xf32>
    tpu.vector_store %arg7[%c0_52, %c0_53, %c0_54, %c0_55], %90 {strides = array<i32>} : memref<3x8x16x64xf32, #tpu.memory_space<vmem>>, vector<1x1x16x32xf32>,
    %c0_56 = arith.constant 0 : index
    %c0_57 = arith.constant 0 : index
    %c0_58 = arith.constant 0 : index
    %c32 = arith.constant 32 : index
    %91 = vector.load %arg7[%c0_56, %c0_57, %c0_58, %c32] : memref<3x8x16x64xf32, #tpu.memory_space<vmem>>, vector<1x1x16x32xf32>
    %92 = vector.shape_cast %91 : vector<1x1x16x32xf32> to vector<16x32xf32>
    %93 = vector.shape_cast %87 : vector<16x32xf32> to vector<1x1x16x32xf32>
    tpu.vector_store %arg7[%c0_56, %c0_57, %c0_58, %c32], %93 {strides = array<i32>} : memref<3x8x16x64xf32, #tpu.memory_space<vmem>>, vector<1x1x16x32xf32>,
    %c1_59 = arith.constant 1 : index
    %c0_60 = arith.constant 0 : index
    %94 = memref.load %arg2[%c1_59, %c0_60] : memref<32x4xf32, #tpu.memory_space<smem>>
    %95 = vector.broadcast %94 : f32 to vector<16x16xf32>
    %96 = arith.mulf %3, %95 : vector<16x16xf32>
    %c1_61 = arith.constant 1 : index
    %c1_62 = arith.constant 1 : index
    %97 = memref.load %arg2[%c1_61, %c1_62] : memref<32x4xf32, #tpu.memory_space<smem>>
    %98 = vector.broadcast %97 : f32 to vector<16x16xf32>
    %99 = arith.mulf %5, %98 : vector<16x16xf32>
    %100 = arith.addf %96, %99 : vector<16x16xf32>
    %c1_63 = arith.constant 1 : index
    %c2_64 = arith.constant 2 : index
    %101 = memref.load %arg2[%c1_63, %c2_64] : memref<32x4xf32, #tpu.memory_space<smem>>
    %102 = vector.broadcast %101 : f32 to vector<16x16xf32>
    %103 = arith.mulf %7, %102 : vector<16x16xf32>
    %104 = arith.addf %100, %103 : vector<16x16xf32>
    %c1_65 = arith.constant 1 : index
    %c3_66 = arith.constant 3 : index
    %105 = memref.load %arg2[%c1_65, %c3_66] : memref<32x4xf32, #tpu.memory_space<smem>>
    %106 = vector.broadcast %105 : f32 to vector<16x16xf32>
    %107 = arith.mulf %9, %106 : vector<16x16xf32>
    %108 = arith.addf %104, %107 : vector<16x16xf32>
    %c1_67 = arith.constant 1 : index
    %109 = memref.load %arg3[%c1_67] : memref<32xf32, #tpu.memory_space<smem>>
    %110 = vector.broadcast %109 : f32 to vector<16x16xf32>
    %111 = arith.addf %108, %110 : vector<16x16xf32>
    %c9 = arith.constant 9 : index
    %c0_68 = arith.constant 0 : index
    %112 = memref.load %arg2[%c9, %c0_68] : memref<32x4xf32, #tpu.memory_space<smem>>
    %113 = vector.broadcast %112 : f32 to vector<16x16xf32>
    %114 = arith.mulf %3, %113 : vector<16x16xf32>
    %c9_69 = arith.constant 9 : index
    %c1_70 = arith.constant 1 : index
    %115 = memref.load %arg2[%c9_69, %c1_70] : memref<32x4xf32, #tpu.memory_space<smem>>
    %116 = vector.broadcast %115 : f32 to vector<16x16xf32>
    %117 = arith.mulf %5, %116 : vector<16x16xf32>
    %118 = arith.addf %114, %117 : vector<16x16xf32>
    %c9_71 = arith.constant 9 : index
    %c2_72 = arith.constant 2 : index
    %119 = memref.load %arg2[%c9_71, %c2_72] : memref<32x4xf32, #tpu.memory_space<smem>>
    %120 = vector.broadcast %119 : f32 to vector<16x16xf32>
    %121 = arith.mulf %7, %120 : vector<16x16xf32>
    %122 = arith.addf %118, %121 : vector<16x16xf32>
    %c9_73 = arith.constant 9 : index
    %c3_74 = arith.constant 3 : index
    %123 = memref.load %arg2[%c9_73, %c3_74] : memref<32x4xf32, #tpu.memory_space<smem>>
    %124 = vector.broadcast %123 : f32 to vector<16x16xf32>
    %125 = arith.mulf %9, %124 : vector<16x16xf32>
    %126 = arith.addf %122, %125 : vector<16x16xf32>
    %c9_75 = arith.constant 9 : index
    %127 = memref.load %arg3[%c9_75] : memref<32xf32, #tpu.memory_space<smem>>
    %128 = vector.broadcast %127 : f32 to vector<16x16xf32>
    %129 = arith.addf %126, %128 : vector<16x16xf32>
    %c17 = arith.constant 17 : index
    %c0_76 = arith.constant 0 : index
    %130 = memref.load %arg2[%c17, %c0_76] : memref<32x4xf32, #tpu.memory_space<smem>>
    %131 = vector.broadcast %130 : f32 to vector<16x16xf32>
    %132 = arith.mulf %3, %131 : vector<16x16xf32>
    %c17_77 = arith.constant 17 : index
    %c1_78 = arith.constant 1 : index
    %133 = memref.load %arg2[%c17_77, %c1_78] : memref<32x4xf32, #tpu.memory_space<smem>>
    %134 = vector.broadcast %133 : f32 to vector<16x16xf32>
    %135 = arith.mulf %5, %134 : vector<16x16xf32>
    %136 = arith.addf %132, %135 : vector<16x16xf32>
    %c17_79 = arith.constant 17 : index
    %c2_80 = arith.constant 2 : index
    %137 = memref.load %arg2[%c17_79, %c2_80] : memref<32x4xf32, #tpu.memory_space<smem>>
    %138 = vector.broadcast %137 : f32 to vector<16x16xf32>
    %139 = arith.mulf %7, %138 : vector<16x16xf32>
    %140 = arith.addf %136, %139 : vector<16x16xf32>
    %c17_81 = arith.constant 17 : index
    %c3_82 = arith.constant 3 : index
    %141 = memref.load %arg2[%c17_81, %c3_82] : memref<32x4xf32, #tpu.memory_space<smem>>
    %142 = vector.broadcast %141 : f32 to vector<16x16xf32>
    %143 = arith.mulf %9, %142 : vector<16x16xf32>
    %144 = arith.addf %140, %143 : vector<16x16xf32>
    %c17_83 = arith.constant 17 : index
    %145 = memref.load %arg3[%c17_83] : memref<32xf32, #tpu.memory_space<smem>>
    %146 = vector.broadcast %145 : f32 to vector<16x16xf32>
    %147 = arith.addf %144, %146 : vector<16x16xf32>
    %c25 = arith.constant 25 : index
    %c0_84 = arith.constant 0 : index
    %148 = memref.load %arg2[%c25, %c0_84] : memref<32x4xf32, #tpu.memory_space<smem>>
    %149 = vector.broadcast %148 : f32 to vector<16x16xf32>
    %150 = arith.mulf %3, %149 : vector<16x16xf32>
    %c25_85 = arith.constant 25 : index
    %c1_86 = arith.constant 1 : index
    %151 = memref.load %arg2[%c25_85, %c1_86] : memref<32x4xf32, #tpu.memory_space<smem>>
    %152 = vector.broadcast %151 : f32 to vector<16x16xf32>
    %153 = arith.mulf %5, %152 : vector<16x16xf32>
    %154 = arith.addf %150, %153 : vector<16x16xf32>
    %c25_87 = arith.constant 25 : index
    %c2_88 = arith.constant 2 : index
    %155 = memref.load %arg2[%c25_87, %c2_88] : memref<32x4xf32, #tpu.memory_space<smem>>
    %156 = vector.broadcast %155 : f32 to vector<16x16xf32>
    %157 = arith.mulf %7, %156 : vector<16x16xf32>
    %158 = arith.addf %154, %157 : vector<16x16xf32>
    %c25_89 = arith.constant 25 : index
    %c3_90 = arith.constant 3 : index
    %159 = memref.load %arg2[%c25_89, %c3_90] : memref<32x4xf32, #tpu.memory_space<smem>>
    %160 = vector.broadcast %159 : f32 to vector<16x16xf32>
    %161 = arith.mulf %9, %160 : vector<16x16xf32>
    %162 = arith.addf %158, %161 : vector<16x16xf32>
    %c25_91 = arith.constant 25 : index
    %163 = memref.load %arg3[%c25_91] : memref<32xf32, #tpu.memory_space<smem>>
    %164 = vector.broadcast %163 : f32 to vector<16x16xf32>
    %165 = arith.addf %162, %164 : vector<16x16xf32>
    %cst_92 = arith.constant dense<0.000000e+00> : vector<16x32xf32>
    %166 = tpu.matmul %111, %0, %cst_92 {dimension_numbers = #tpu.dot_dimension_numbers<[1], [0], [0], [1], [0, 0, 1, 1], [], []>} : vector<16x16xf32>, vector<16x32xf32>, vector<16x32xf32> -> vector<16x32xf32>
    %cst_93 = arith.constant dense<0.000000e+00> : vector<16x32xf32>
    %167 = tpu.matmul %129, %1, %cst_93 {dimension_numbers = #tpu.dot_dimension_numbers<[1], [0], [0], [1], [0, 0, 1, 1], [], []>} : vector<16x16xf32>, vector<16x32xf32>, vector<16x32xf32> -> vector<16x32xf32>
    %168 = arith.addf %166, %167 : vector<16x32xf32>
    %cst_94 = arith.constant dense<0.000000e+00> : vector<16x32xf32>
    %169 = tpu.matmul %147, %0, %cst_94 {dimension_numbers = #tpu.dot_dimension_numbers<[1], [0], [0], [1], [0, 0, 1, 1], [], []>} : vector<16x16xf32>, vector<16x32xf32>, vector<16x32xf32> -> vector<16x32xf32>
    %cst_95 = arith.constant dense<0.000000e+00> : vector<16x32xf32>
    %170 = tpu.matmul %165, %1, %cst_95 {dimension_numbers = #tpu.dot_dimension_numbers<[1], [0], [0], [1], [0, 0, 1, 1], [], []>} : vector<16x16xf32>, vector<16x32xf32>, vector<16x32xf32> -> vector<16x32xf32>
    %171 = arith.addf %169, %170 : vector<16x32xf32>
    %c0_96 = arith.constant 0 : index
    %c1_97 = arith.constant 1 : index
    %c0_98 = arith.constant 0 : index
    %c0_99 = arith.constant 0 : index
    %172 = vector.load %arg7[%c0_96, %c1_97, %c0_98, %c0_99] : memref<3x8x16x64xf32, #tpu.memory_space<vmem>>, vector<1x1x16x32xf32>
    %173 = vector.shape_cast %172 : vector<1x1x16x32xf32> to vector<16x32xf32>
    %174 = vector.shape_cast %168 : vector<16x32xf32> to vector<1x1x16x32xf32>
    tpu.vector_store %arg7[%c0_96, %c1_97, %c0_98, %c0_99], %174 {strides = array<i32>} : memref<3x8x16x64xf32, #tpu.memory_space<vmem>>, vector<1x1x16x32xf32>,
    %c0_100 = arith.constant 0 : index
    %c1_101 = arith.constant 1 : index
    %c0_102 = arith.constant 0 : index
    %c32_103 = arith.constant 32 : index
    %175 = vector.load %arg7[%c0_100, %c1_101, %c0_102, %c32_103] : memref<3x8x16x64xf32, #tpu.memory_space<vmem>>, vector<1x1x16x32xf32>
    %176 = vector.shape_cast %175 : vector<1x1x16x32xf32> to vector<16x32xf32>
    %177 = vector.shape_cast %171 : vector<16x32xf32> to vector<1x1x16x32xf32>
    tpu.vector_store %arg7[%c0_100, %c1_101, %c0_102, %c32_103], %177 {strides = array<i32>} : memref<3x8x16x64xf32, #tpu.memory_space<vmem>>, vector<1x1x16x32xf32>,
    %c2_104 = arith.constant 2 : index
    %c0_105 = arith.constant 0 : index
    %178 = memref.load %arg2[%c2_104, %c0_105] : memref<32x4xf32, #tpu.memory_space<smem>>
    %179 = vector.broadcast %178 : f32 to vector<16x16xf32>
    %180 = arith.mulf %3, %179 : vector<16x16xf32>
    %c2_106 = arith.constant 2 : index
    %c1_107 = arith.constant 1 : index
    %181 = memref.load %arg2[%c2_106, %c1_107] : memref<32x4xf32, #tpu.memory_space<smem>>
    %182 = vector.broadcast %181 : f32 to vector<16x16xf32>
    %183 = arith.mulf %5, %182 : vector<16x16xf32>
    %184 = arith.addf %180, %183 : vector<16x16xf32>
    %c2_108 = arith.constant 2 : index
    %c2_109 = arith.constant 2 : index
    %185 = memref.load %arg2[%c2_108, %c2_109] : memref<32x4xf32, #tpu.memory_space<smem>>
    %186 = vector.broadcast %185 : f32 to vector<16x16xf32>
    %187 = arith.mulf %7, %186 : vector<16x16xf32>
    %188 = arith.addf %184, %187 : vector<16x16xf32>
    %c2_110 = arith.constant 2 : index
    %c3_111 = arith.constant 3 : index
    %189 = memref.load %arg2[%c2_110, %c3_111] : memref<32x4xf32, #tpu.memory_space<smem>>
    %190 = vector.broadcast %189 : f32 to vector<16x16xf32>
    %191 = arith.mulf %9, %190 : vector<16x16xf32>
    %192 = arith.addf %188, %191 : vector<16x16xf32>
    %c2_112 = arith.constant 2 : index
    %193 = memref.load %arg3[%c2_112] : memref<32xf32, #tpu.memory_space<smem>>
    %194 = vector.broadcast %193 : f32 to vector<16x16xf32>
    %195 = arith.addf %192, %194 : vector<16x16xf32>
    %c10 = arith.constant 10 : index
    %c0_113 = arith.constant 0 : index
    %196 = memref.load %arg2[%c10, %c0_113] : memref<32x4xf32, #tpu.memory_space<smem>>
    %197 = vector.broadcast %196 : f32 to vector<16x16xf32>
    %198 = arith.mulf %3, %197 : vector<16x16xf32>
    %c10_114 = arith.constant 10 : index
    %c1_115 = arith.constant 1 : index
    %199 = memref.load %arg2[%c10_114, %c1_115] : memref<32x4xf32, #tpu.memory_space<smem>>
    %200 = vector.broadcast %199 : f32 to vector<16x16xf32>
    %201 = arith.mulf %5, %200 : vector<16x16xf32>
    %202 = arith.addf %198, %201 : vector<16x16xf32>
    %c10_116 = arith.constant 10 : index
    %c2_117 = arith.constant 2 : index
    %203 = memref.load %arg2[%c10_116, %c2_117] : memref<32x4xf32, #tpu.memory_space<smem>>
    %204 = vector.broadcast %203 : f32 to vector<16x16xf32>
    %205 = arith.mulf %7, %204 : vector<16x16xf32>
    %206 = arith.addf %202, %205 : vector<16x16xf32>
    %c10_118 = arith.constant 10 : index
    %c3_119 = arith.constant 3 : index
    %207 = memref.load %arg2[%c10_118, %c3_119] : memref<32x4xf32, #tpu.memory_space<smem>>
    %208 = vector.broadcast %207 : f32 to vector<16x16xf32>
    %209 = arith.mulf %9, %208 : vector<16x16xf32>
    %210 = arith.addf %206, %209 : vector<16x16xf32>
    %c10_120 = arith.constant 10 : index
    %211 = memref.load %arg3[%c10_120] : memref<32xf32, #tpu.memory_space<smem>>
    %212 = vector.broadcast %211 : f32 to vector<16x16xf32>
    %213 = arith.addf %210, %212 : vector<16x16xf32>
    %c18 = arith.constant 18 : index
    %c0_121 = arith.constant 0 : index
    %214 = memref.load %arg2[%c18, %c0_121] : memref<32x4xf32, #tpu.memory_space<smem>>
    %215 = vector.broadcast %214 : f32 to vector<16x16xf32>
    %216 = arith.mulf %3, %215 : vector<16x16xf32>
    %c18_122 = arith.constant 18 : index
    %c1_123 = arith.constant 1 : index
    %217 = memref.load %arg2[%c18_122, %c1_123] : memref<32x4xf32, #tpu.memory_space<smem>>
    %218 = vector.broadcast %217 : f32 to vector<16x16xf32>
    %219 = arith.mulf %5, %218 : vector<16x16xf32>
    %220 = arith.addf %216, %219 : vector<16x16xf32>
    %c18_124 = arith.constant 18 : index
    %c2_125 = arith.constant 2 : index
    %221 = memref.load %arg2[%c18_124, %c2_125] : memref<32x4xf32, #tpu.memory_space<smem>>
    %222 = vector.broadcast %221 : f32 to vector<16x16xf32>
    %223 = arith.mulf %7, %222 : vector<16x16xf32>
    %224 = arith.addf %220, %223 : vector<16x16xf32>
    %c18_126 = arith.constant 18 : index
    %c3_127 = arith.constant 3 : index
    %225 = memref.load %arg2[%c18_126, %c3_127] : memref<32x4xf32, #tpu.memory_space<smem>>
    %226 = vector.broadcast %225 : f32 to vector<16x16xf32>
    %227 = arith.mulf %9, %226 : vector<16x16xf32>
    %228 = arith.addf %224, %227 : vector<16x16xf32>
    %c18_128 = arith.constant 18 : index
    %229 = memref.load %arg3[%c18_128] : memref<32xf32, #tpu.memory_space<smem>>
    %230 = vector.broadcast %229 : f32 to vector<16x16xf32>
    %231 = arith.addf %228, %230 : vector<16x16xf32>
    %c26 = arith.constant 26 : index
    %c0_129 = arith.constant 0 : index
    %232 = memref.load %arg2[%c26, %c0_129] : memref<32x4xf32, #tpu.memory_space<smem>>
    %233 = vector.broadcast %232 : f32 to vector<16x16xf32>
    %234 = arith.mulf %3, %233 : vector<16x16xf32>
    %c26_130 = arith.constant 26 : index
    %c1_131 = arith.constant 1 : index
    %235 = memref.load %arg2[%c26_130, %c1_131] : memref<32x4xf32, #tpu.memory_space<smem>>
    %236 = vector.broadcast %235 : f32 to vector<16x16xf32>
    %237 = arith.mulf %5, %236 : vector<16x16xf32>
    %238 = arith.addf %234, %237 : vector<16x16xf32>
    %c26_132 = arith.constant 26 : index
    %c2_133 = arith.constant 2 : index
    %239 = memref.load %arg2[%c26_132, %c2_133] : memref<32x4xf32, #tpu.memory_space<smem>>
    %240 = vector.broadcast %239 : f32 to vector<16x16xf32>
    %241 = arith.mulf %7, %240 : vector<16x16xf32>
    %242 = arith.addf %238, %241 : vector<16x16xf32>
    %c26_134 = arith.constant 26 : index
    %c3_135 = arith.constant 3 : index
    %243 = memref.load %arg2[%c26_134, %c3_135] : memref<32x4xf32, #tpu.memory_space<smem>>
    %244 = vector.broadcast %243 : f32 to vector<16x16xf32>
    %245 = arith.mulf %9, %244 : vector<16x16xf32>
    %246 = arith.addf %242, %245 : vector<16x16xf32>
    %c26_136 = arith.constant 26 : index
    %247 = memref.load %arg3[%c26_136] : memref<32xf32, #tpu.memory_space<smem>>
    %248 = vector.broadcast %247 : f32 to vector<16x16xf32>
    %249 = arith.addf %246, %248 : vector<16x16xf32>
    %cst_137 = arith.constant dense<0.000000e+00> : vector<16x32xf32>
    %250 = tpu.matmul %195, %0, %cst_137 {dimension_numbers = #tpu.dot_dimension_numbers<[1], [0], [0], [1], [0, 0, 1, 1], [], []>} : vector<16x16xf32>, vector<16x32xf32>, vector<16x32xf32> -> vector<16x32xf32>
    %cst_138 = arith.constant dense<0.000000e+00> : vector<16x32xf32>
    %251 = tpu.matmul %213, %1, %cst_138 {dimension_numbers = #tpu.dot_dimension_numbers<[1], [0], [0], [1], [0, 0, 1, 1], [], []>} : vector<16x16xf32>, vector<16x32xf32>, vector<16x32xf32> -> vector<16x32xf32>
    %252 = arith.addf %250, %251 : vector<16x32xf32>
    %cst_139 = arith.constant dense<0.000000e+00> : vector<16x32xf32>
    %253 = tpu.matmul %231, %0, %cst_139 {dimension_numbers = #tpu.dot_dimension_numbers<[1], [0], [0], [1], [0, 0, 1, 1], [], []>} : vector<16x16xf32>, vector<16x32xf32>, vector<16x32xf32> -> vector<16x32xf32>
    %cst_140 = arith.constant dense<0.000000e+00> : vector<16x32xf32>
    %254 = tpu.matmul %249, %1, %cst_140 {dimension_numbers = #tpu.dot_dimension_numbers<[1], [0], [0], [1], [0, 0, 1, 1], [], []>} : vector<16x16xf32>, vector<16x32xf32>, vector<16x32xf32> -> vector<16x32xf32>
    %255 = arith.addf %253, %254 : vector<16x32xf32>
    %c0_141 = arith.constant 0 : index
    %c2_142 = arith.constant 2 : index
    %c0_143 = arith.constant 0 : index
    %c0_144 = arith.constant 0 : index
    %256 = vector.load %arg7[%c0_141, %c2_142, %c0_143, %c0_144] : memref<3x8x16x64xf32, #tpu.memory_space<vmem>>, vector<1x1x16x32xf32>
    %257 = vector.shape_cast %256 : vector<1x1x16x32xf32> to vector<16x32xf32>
    %258 = vector.shape_cast %252 : vector<16x32xf32> to vector<1x1x16x32xf32>
    tpu.vector_store %arg7[%c0_141, %c2_142, %c0_143, %c0_144], %258 {strides = array<i32>} : memref<3x8x16x64xf32, #tpu.memory_space<vmem>>, vector<1x1x16x32xf32>,
    %c0_145 = arith.constant 0 : index
    %c2_146 = arith.constant 2 : index
    %c0_147 = arith.constant 0 : index
    %c32_148 = arith.constant 32 : index
    %259 = vector.load %arg7[%c0_145, %c2_146, %c0_147, %c32_148] : memref<3x8x16x64xf32, #tpu.memory_space<vmem>>, vector<1x1x16x32xf32>
    %260 = vector.shape_cast %259 : vector<1x1x16x32xf32> to vector<16x32xf32>
    %261 = vector.shape_cast %255 : vector<16x32xf32> to vector<1x1x16x32xf32>
    tpu.vector_store %arg7[%c0_145, %c2_146, %c0_147, %c32_148], %261 {strides = array<i32>} : memref<3x8x16x64xf32, #tpu.memory_space<vmem>>, vector<1x1x16x32xf32>,
    %c3_149 = arith.constant 3 : index
    %c0_150 = arith.constant 0 : index
    %262 = memref.load %arg2[%c3_149, %c0_150] : memref<32x4xf32, #tpu.memory_space<smem>>
    %263 = vector.broadcast %262 : f32 to vector<16x16xf32>
    %264 = arith.mulf %3, %263 : vector<16x16xf32>
    %c3_151 = arith.constant 3 : index
    %c1_152 = arith.constant 1 : index
    %265 = memref.load %arg2[%c3_151, %c1_152] : memref<32x4xf32, #tpu.memory_space<smem>>
    %266 = vector.broadcast %265 : f32 to vector<16x16xf32>
    %267 = arith.mulf %5, %266 : vector<16x16xf32>
    %268 = arith.addf %264, %267 : vector<16x16xf32>
    %c3_153 = arith.constant 3 : index
    %c2_154 = arith.constant 2 : index
    %269 = memref.load %arg2[%c3_153, %c2_154] : memref<32x4xf32, #tpu.memory_space<smem>>
    %270 = vector.broadcast %269 : f32 to vector<16x16xf32>
    %271 = arith.mulf %7, %270 : vector<16x16xf32>
    %272 = arith.addf %268, %271 : vector<16x16xf32>
    %c3_155 = arith.constant 3 : index
    %c3_156 = arith.constant 3 : index
    %273 = memref.load %arg2[%c3_155, %c3_156] : memref<32x4xf32, #tpu.memory_space<smem>>
    %274 = vector.broadcast %273 : f32 to vector<16x16xf32>
    %275 = arith.mulf %9, %274 : vector<16x16xf32>
    %276 = arith.addf %272, %275 : vector<16x16xf32>
    %c3_157 = arith.constant 3 : index
    %277 = memref.load %arg3[%c3_157] : memref<32xf32, #tpu.memory_space<smem>>
    %278 = vector.broadcast %277 : f32 to vector<16x16xf32>
    %279 = arith.addf %276, %278 : vector<16x16xf32>
    %c11 = arith.constant 11 : index
    %c0_158 = arith.constant 0 : index
    %280 = memref.load %arg2[%c11, %c0_158] : memref<32x4xf32, #tpu.memory_space<smem>>
    %281 = vector.broadcast %280 : f32 to vector<16x16xf32>
    %282 = arith.mulf %3, %281 : vector<16x16xf32>
    %c11_159 = arith.constant 11 : index
    %c1_160 = arith.constant 1 : index
    %283 = memref.load %arg2[%c11_159, %c1_160] : memref<32x4xf32, #tpu.memory_space<smem>>
    %284 = vector.broadcast %283 : f32 to vector<16x16xf32>
    %285 = arith.mulf %5, %284 : vector<16x16xf32>
    %286 = arith.addf %282, %285 : vector<16x16xf32>
    %c11_161 = arith.constant 11 : index
    %c2_162 = arith.constant 2 : index
    %287 = memref.load %arg2[%c11_161, %c2_162] : memref<32x4xf32, #tpu.memory_space<smem>>
    %288 = vector.broadcast %287 : f32 to vector<16x16xf32>
    %289 = arith.mulf %7, %288 : vector<16x16xf32>
    %290 = arith.addf %286, %289 : vector<16x16xf32>
    %c11_163 = arith.constant 11 : index
    %c3_164 = arith.constant 3 : index
    %291 = memref.load %arg2[%c11_163, %c3_164] : memref<32x4xf32, #tpu.memory_space<smem>>
    %292 = vector.broadcast %291 : f32 to vector<16x16xf32>
    %293 = arith.mulf %9, %292 : vector<16x16xf32>
    %294 = arith.addf %290, %293 : vector<16x16xf32>
    %c11_165 = arith.constant 11 : index
    %295 = memref.load %arg3[%c11_165] : memref<32xf32, #tpu.memory_space<smem>>
    %296 = vector.broadcast %295 : f32 to vector<16x16xf32>
    %297 = arith.addf %294, %296 : vector<16x16xf32>
    %c19 = arith.constant 19 : index
    %c0_166 = arith.constant 0 : index
    %298 = memref.load %arg2[%c19, %c0_166] : memref<32x4xf32, #tpu.memory_space<smem>>
    %299 = vector.broadcast %298 : f32 to vector<16x16xf32>
    %300 = arith.mulf %3, %299 : vector<16x16xf32>
    %c19_167 = arith.constant 19 : index
    %c1_168 = arith.constant 1 : index
    %301 = memref.load %arg2[%c19_167, %c1_168] : memref<32x4xf32, #tpu.memory_space<smem>>
    %302 = vector.broadcast %301 : f32 to vector<16x16xf32>
    %303 = arith.mulf %5, %302 : vector<16x16xf32>
    %304 = arith.addf %300, %303 : vector<16x16xf32>
    %c19_169 = arith.constant 19 : index
    %c2_170 = arith.constant 2 : index
    %305 = memref.load %arg2[%c19_169, %c2_170] : memref<32x4xf32, #tpu.memory_space<smem>>
    %306 = vector.broadcast %305 : f32 to vector<16x16xf32>
    %307 = arith.mulf %7, %306 : vector<16x16xf32>
    %308 = arith.addf %304, %307 : vector<16x16xf32>
    %c19_171 = arith.constant 19 : index
    %c3_172 = arith.constant 3 : index
    %309 = memref.load %arg2[%c19_171, %c3_172] : memref<32x4xf32, #tpu.memory_space<smem>>
    %310 = vector.broadcast %309 : f32 to vector<16x16xf32>
    %311 = arith.mulf %9, %310 : vector<16x16xf32>
    %312 = arith.addf %308, %311 : vector<16x16xf32>
    %c19_173 = arith.constant 19 : index
    %313 = memref.load %arg3[%c19_173] : memref<32xf32, #tpu.memory_space<smem>>
    %314 = vector.broadcast %313 : f32 to vector<16x16xf32>
    %315 = arith.addf %312, %314 : vector<16x16xf32>
    %c27 = arith.constant 27 : index
    %c0_174 = arith.constant 0 : index
    %316 = memref.load %arg2[%c27, %c0_174] : memref<32x4xf32, #tpu.memory_space<smem>>
    %317 = vector.broadcast %316 : f32 to vector<16x16xf32>
    %318 = arith.mulf %3, %317 : vector<16x16xf32>
    %c27_175 = arith.constant 27 : index
    %c1_176 = arith.constant 1 : index
    %319 = memref.load %arg2[%c27_175, %c1_176] : memref<32x4xf32, #tpu.memory_space<smem>>
    %320 = vector.broadcast %319 : f32 to vector<16x16xf32>
    %321 = arith.mulf %5, %320 : vector<16x16xf32>
    %322 = arith.addf %318, %321 : vector<16x16xf32>
    %c27_177 = arith.constant 27 : index
    %c2_178 = arith.constant 2 : index
    %323 = memref.load %arg2[%c27_177, %c2_178] : memref<32x4xf32, #tpu.memory_space<smem>>
    %324 = vector.broadcast %323 : f32 to vector<16x16xf32>
    %325 = arith.mulf %7, %324 : vector<16x16xf32>
    %326 = arith.addf %322, %325 : vector<16x16xf32>
    %c27_179 = arith.constant 27 : index
    %c3_180 = arith.constant 3 : index
    %327 = memref.load %arg2[%c27_179, %c3_180] : memref<32x4xf32, #tpu.memory_space<smem>>
    %328 = vector.broadcast %327 : f32 to vector<16x16xf32>
    %329 = arith.mulf %9, %328 : vector<16x16xf32>
    %330 = arith.addf %326, %329 : vector<16x16xf32>
    %c27_181 = arith.constant 27 : index
    %331 = memref.load %arg3[%c27_181] : memref<32xf32, #tpu.memory_space<smem>>
    %332 = vector.broadcast %331 : f32 to vector<16x16xf32>
    %333 = arith.addf %330, %332 : vector<16x16xf32>
    %cst_182 = arith.constant dense<0.000000e+00> : vector<16x32xf32>
    %334 = tpu.matmul %279, %0, %cst_182 {dimension_numbers = #tpu.dot_dimension_numbers<[1], [0], [0], [1], [0, 0, 1, 1], [], []>} : vector<16x16xf32>, vector<16x32xf32>, vector<16x32xf32> -> vector<16x32xf32>
    %cst_183 = arith.constant dense<0.000000e+00> : vector<16x32xf32>
    %335 = tpu.matmul %297, %1, %cst_183 {dimension_numbers = #tpu.dot_dimension_numbers<[1], [0], [0], [1], [0, 0, 1, 1], [], []>} : vector<16x16xf32>, vector<16x32xf32>, vector<16x32xf32> -> vector<16x32xf32>
    %336 = arith.addf %334, %335 : vector<16x32xf32>
    %cst_184 = arith.constant dense<0.000000e+00> : vector<16x32xf32>
    %337 = tpu.matmul %315, %0, %cst_184 {dimension_numbers = #tpu.dot_dimension_numbers<[1], [0], [0], [1], [0, 0, 1, 1], [], []>} : vector<16x16xf32>, vector<16x32xf32>, vector<16x32xf32> -> vector<16x32xf32>
    %cst_185 = arith.constant dense<0.000000e+00> : vector<16x32xf32>
    %338 = tpu.matmul %333, %1, %cst_185 {dimension_numbers = #tpu.dot_dimension_numbers<[1], [0], [0], [1], [0, 0, 1, 1], [], []>} : vector<16x16xf32>, vector<16x32xf32>, vector<16x32xf32> -> vector<16x32xf32>
    %339 = arith.addf %337, %338 : vector<16x32xf32>
    %c0_186 = arith.constant 0 : index
    %c3_187 = arith.constant 3 : index
    %c0_188 = arith.constant 0 : index
    %c0_189 = arith.constant 0 : index
    %340 = vector.load %arg7[%c0_186, %c3_187, %c0_188, %c0_189] : memref<3x8x16x64xf32, #tpu.memory_space<vmem>>, vector<1x1x16x32xf32>
    %341 = vector.shape_cast %340 : vector<1x1x16x32xf32> to vector<16x32xf32>
    %342 = vector.shape_cast %336 : vector<16x32xf32> to vector<1x1x16x32xf32>
    tpu.vector_store %arg7[%c0_186, %c3_187, %c0_188, %c0_189], %342 {strides = array<i32>} : memref<3x8x16x64xf32, #tpu.memory_space<vmem>>, vector<1x1x16x32xf32>,
    %c0_190 = arith.constant 0 : index
    %c3_191 = arith.constant 3 : index
    %c0_192 = arith.constant 0 : index
    %c32_193 = arith.constant 32 : index
    %343 = vector.load %arg7[%c0_190, %c3_191, %c0_192, %c32_193] : memref<3x8x16x64xf32, #tpu.memory_space<vmem>>, vector<1x1x16x32xf32>
    %344 = vector.shape_cast %343 : vector<1x1x16x32xf32> to vector<16x32xf32>
    %345 = vector.shape_cast %339 : vector<16x32xf32> to vector<1x1x16x32xf32>
    tpu.vector_store %arg7[%c0_190, %c3_191, %c0_192, %c32_193], %345 {strides = array<i32>} : memref<3x8x16x64xf32, #tpu.memory_space<vmem>>, vector<1x1x16x32xf32>,
    %c4 = arith.constant 4 : index
    %c0_194 = arith.constant 0 : index
    %346 = memref.load %arg2[%c4, %c0_194] : memref<32x4xf32, #tpu.memory_space<smem>>
    %347 = vector.broadcast %346 : f32 to vector<16x16xf32>
    %348 = arith.mulf %3, %347 : vector<16x16xf32>
    %c4_195 = arith.constant 4 : index
    %c1_196 = arith.constant 1 : index
    %349 = memref.load %arg2[%c4_195, %c1_196] : memref<32x4xf32, #tpu.memory_space<smem>>
    %350 = vector.broadcast %349 : f32 to vector<16x16xf32>
    %351 = arith.mulf %5, %350 : vector<16x16xf32>
    %352 = arith.addf %348, %351 : vector<16x16xf32>
    %c4_197 = arith.constant 4 : index
    %c2_198 = arith.constant 2 : index
    %353 = memref.load %arg2[%c4_197, %c2_198] : memref<32x4xf32, #tpu.memory_space<smem>>
    %354 = vector.broadcast %353 : f32 to vector<16x16xf32>
    %355 = arith.mulf %7, %354 : vector<16x16xf32>
    %356 = arith.addf %352, %355 : vector<16x16xf32>
    %c4_199 = arith.constant 4 : index
    %c3_200 = arith.constant 3 : index
    %357 = memref.load %arg2[%c4_199, %c3_200] : memref<32x4xf32, #tpu.memory_space<smem>>
    %358 = vector.broadcast %357 : f32 to vector<16x16xf32>
    %359 = arith.mulf %9, %358 : vector<16x16xf32>
    %360 = arith.addf %356, %359 : vector<16x16xf32>
    %c4_201 = arith.constant 4 : index
    %361 = memref.load %arg3[%c4_201] : memref<32xf32, #tpu.memory_space<smem>>
    %362 = vector.broadcast %361 : f32 to vector<16x16xf32>
    %363 = arith.addf %360, %362 : vector<16x16xf32>
    %c12 = arith.constant 12 : index
    %c0_202 = arith.constant 0 : index
    %364 = memref.load %arg2[%c12, %c0_202] : memref<32x4xf32, #tpu.memory_space<smem>>
    %365 = vector.broadcast %364 : f32 to vector<16x16xf32>
    %366 = arith.mulf %3, %365 : vector<16x16xf32>
    %c12_203 = arith.constant 12 : index
    %c1_204 = arith.constant 1 : index
    %367 = memref.load %arg2[%c12_203, %c1_204] : memref<32x4xf32, #tpu.memory_space<smem>>
    %368 = vector.broadcast %367 : f32 to vector<16x16xf32>
    %369 = arith.mulf %5, %368 : vector<16x16xf32>
    %370 = arith.addf %366, %369 : vector<16x16xf32>
    %c12_205 = arith.constant 12 : index
    %c2_206 = arith.constant 2 : index
    %371 = memref.load %arg2[%c12_205, %c2_206] : memref<32x4xf32, #tpu.memory_space<smem>>
    %372 = vector.broadcast %371 : f32 to vector<16x16xf32>
    %373 = arith.mulf %7, %372 : vector<16x16xf32>
    %374 = arith.addf %370, %373 : vector<16x16xf32>
    %c12_207 = arith.constant 12 : index
    %c3_208 = arith.constant 3 : index
    %375 = memref.load %arg2[%c12_207, %c3_208] : memref<32x4xf32, #tpu.memory_space<smem>>
    %376 = vector.broadcast %375 : f32 to vector<16x16xf32>
    %377 = arith.mulf %9, %376 : vector<16x16xf32>
    %378 = arith.addf %374, %377 : vector<16x16xf32>
    %c12_209 = arith.constant 12 : index
    %379 = memref.load %arg3[%c12_209] : memref<32xf32, #tpu.memory_space<smem>>
    %380 = vector.broadcast %379 : f32 to vector<16x16xf32>
    %381 = arith.addf %378, %380 : vector<16x16xf32>
    %c20 = arith.constant 20 : index
    %c0_210 = arith.constant 0 : index
    %382 = memref.load %arg2[%c20, %c0_210] : memref<32x4xf32, #tpu.memory_space<smem>>
    %383 = vector.broadcast %382 : f32 to vector<16x16xf32>
    %384 = arith.mulf %3, %383 : vector<16x16xf32>
    %c20_211 = arith.constant 20 : index
    %c1_212 = arith.constant 1 : index
    %385 = memref.load %arg2[%c20_211, %c1_212] : memref<32x4xf32, #tpu.memory_space<smem>>
    %386 = vector.broadcast %385 : f32 to vector<16x16xf32>
    %387 = arith.mulf %5, %386 : vector<16x16xf32>
    %388 = arith.addf %384, %387 : vector<16x16xf32>
    %c20_213 = arith.constant 20 : index
    %c2_214 = arith.constant 2 : index
    %389 = memref.load %arg2[%c20_213, %c2_214] : memref<32x4xf32, #tpu.memory_space<smem>>
    %390 = vector.broadcast %389 : f32 to vector<16x16xf32>
    %391 = arith.mulf %7, %390 : vector<16x16xf32>
    %392 = arith.addf %388, %391 : vector<16x16xf32>
    %c20_215 = arith.constant 20 : index
    %c3_216 = arith.constant 3 : index
    %393 = memref.load %arg2[%c20_215, %c3_216] : memref<32x4xf32, #tpu.memory_space<smem>>
    %394 = vector.broadcast %393 : f32 to vector<16x16xf32>
    %395 = arith.mulf %9, %394 : vector<16x16xf32>
    %396 = arith.addf %392, %395 : vector<16x16xf32>
    %c20_217 = arith.constant 20 : index
    %397 = memref.load %arg3[%c20_217] : memref<32xf32, #tpu.memory_space<smem>>
    %398 = vector.broadcast %397 : f32 to vector<16x16xf32>
    %399 = arith.addf %396, %398 : vector<16x16xf32>
    %c28 = arith.constant 28 : index
    %c0_218 = arith.constant 0 : index
    %400 = memref.load %arg2[%c28, %c0_218] : memref<32x4xf32, #tpu.memory_space<smem>>
    %401 = vector.broadcast %400 : f32 to vector<16x16xf32>
    %402 = arith.mulf %3, %401 : vector<16x16xf32>
    %c28_219 = arith.constant 28 : index
    %c1_220 = arith.constant 1 : index
    %403 = memref.load %arg2[%c28_219, %c1_220] : memref<32x4xf32, #tpu.memory_space<smem>>
    %404 = vector.broadcast %403 : f32 to vector<16x16xf32>
    %405 = arith.mulf %5, %404 : vector<16x16xf32>
    %406 = arith.addf %402, %405 : vector<16x16xf32>
    %c28_221 = arith.constant 28 : index
    %c2_222 = arith.constant 2 : index
    %407 = memref.load %arg2[%c28_221, %c2_222] : memref<32x4xf32, #tpu.memory_space<smem>>
    %408 = vector.broadcast %407 : f32 to vector<16x16xf32>
    %409 = arith.mulf %7, %408 : vector<16x16xf32>
    %410 = arith.addf %406, %409 : vector<16x16xf32>
    %c28_223 = arith.constant 28 : index
    %c3_224 = arith.constant 3 : index
    %411 = memref.load %arg2[%c28_223, %c3_224] : memref<32x4xf32, #tpu.memory_space<smem>>
    %412 = vector.broadcast %411 : f32 to vector<16x16xf32>
    %413 = arith.mulf %9, %412 : vector<16x16xf32>
    %414 = arith.addf %410, %413 : vector<16x16xf32>
    %c28_225 = arith.constant 28 : index
    %415 = memref.load %arg3[%c28_225] : memref<32xf32, #tpu.memory_space<smem>>
    %416 = vector.broadcast %415 : f32 to vector<16x16xf32>
    %417 = arith.addf %414, %416 : vector<16x16xf32>
    %cst_226 = arith.constant dense<0.000000e+00> : vector<16x32xf32>
    %418 = tpu.matmul %363, %0, %cst_226 {dimension_numbers = #tpu.dot_dimension_numbers<[1], [0], [0], [1], [0, 0, 1, 1], [], []>} : vector<16x16xf32>, vector<16x32xf32>, vector<16x32xf32> -> vector<16x32xf32>
    %cst_227 = arith.constant dense<0.000000e+00> : vector<16x32xf32>
    %419 = tpu.matmul %381, %1, %cst_227 {dimension_numbers = #tpu.dot_dimension_numbers<[1], [0], [0], [1], [0, 0, 1, 1], [], []>} : vector<16x16xf32>, vector<16x32xf32>, vector<16x32xf32> -> vector<16x32xf32>
    %420 = arith.addf %418, %419 : vector<16x32xf32>
    %cst_228 = arith.constant dense<0.000000e+00> : vector<16x32xf32>
    %421 = tpu.matmul %399, %0, %cst_228 {dimension_numbers = #tpu.dot_dimension_numbers<[1], [0], [0], [1], [0, 0, 1, 1], [], []>} : vector<16x16xf32>, vector<16x32xf32>, vector<16x32xf32> -> vector<16x32xf32>
    %cst_229 = arith.constant dense<0.000000e+00> : vector<16x32xf32>
    %422 = tpu.matmul %417, %1, %cst_229 {dimension_numbers = #tpu.dot_dimension_numbers<[1], [0], [0], [1], [0, 0, 1, 1], [], []>} : vector<16x16xf32>, vector<16x32xf32>, vector<16x32xf32> -> vector<16x32xf32>
    %423 = arith.addf %421, %422 : vector<16x32xf32>
    %c0_230 = arith.constant 0 : index
    %c4_231 = arith.constant 4 : index
    %c0_232 = arith.constant 0 : index
    %c0_233 = arith.constant 0 : index
    %424 = vector.load %arg7[%c0_230, %c4_231, %c0_232, %c0_233] : memref<3x8x16x64xf32, #tpu.memory_space<vmem>>, vector<1x1x16x32xf32>
    %425 = vector.shape_cast %424 : vector<1x1x16x32xf32> to vector<16x32xf32>
    %426 = vector.shape_cast %420 : vector<16x32xf32> to vector<1x1x16x32xf32>
    tpu.vector_store %arg7[%c0_230, %c4_231, %c0_232, %c0_233], %426 {strides = array<i32>} : memref<3x8x16x64xf32, #tpu.memory_space<vmem>>, vector<1x1x16x32xf32>,
    %c0_234 = arith.constant 0 : index
    %c4_235 = arith.constant 4 : index
    %c0_236 = arith.constant 0 : index
    %c32_237 = arith.constant 32 : index
    %427 = vector.load %arg7[%c0_234, %c4_235, %c0_236, %c32_237] : memref<3x8x16x64xf32, #tpu.memory_space<vmem>>, vector<1x1x16x32xf32>
    %428 = vector.shape_cast %427 : vector<1x1x16x32xf32> to vector<16x32xf32>
    %429 = vector.shape_cast %423 : vector<16x32xf32> to vector<1x1x16x32xf32>
    tpu.vector_store %arg7[%c0_234, %c4_235, %c0_236, %c32_237], %429 {strides = array<i32>} : memref<3x8x16x64xf32, #tpu.memory_space<vmem>>, vector<1x1x16x32xf32>,
    %c5 = arith.constant 5 : index
    %c0_238 = arith.constant 0 : index
    %430 = memref.load %arg2[%c5, %c0_238] : memref<32x4xf32, #tpu.memory_space<smem>>
    %431 = vector.broadcast %430 : f32 to vector<16x16xf32>
    %432 = arith.mulf %3, %431 : vector<16x16xf32>
    %c5_239 = arith.constant 5 : index
    %c1_240 = arith.constant 1 : index
    %433 = memref.load %arg2[%c5_239, %c1_240] : memref<32x4xf32, #tpu.memory_space<smem>>
    %434 = vector.broadcast %433 : f32 to vector<16x16xf32>
    %435 = arith.mulf %5, %434 : vector<16x16xf32>
    %436 = arith.addf %432, %435 : vector<16x16xf32>
    %c5_241 = arith.constant 5 : index
    %c2_242 = arith.constant 2 : index
    %437 = memref.load %arg2[%c5_241, %c2_242] : memref<32x4xf32, #tpu.memory_space<smem>>
    %438 = vector.broadcast %437 : f32 to vector<16x16xf32>
    %439 = arith.mulf %7, %438 : vector<16x16xf32>
    %440 = arith.addf %436, %439 : vector<16x16xf32>
    %c5_243 = arith.constant 5 : index
    %c3_244 = arith.constant 3 : index
    %441 = memref.load %arg2[%c5_243, %c3_244] : memref<32x4xf32, #tpu.memory_space<smem>>
    %442 = vector.broadcast %441 : f32 to vector<16x16xf32>
    %443 = arith.mulf %9, %442 : vector<16x16xf32>
    %444 = arith.addf %440, %443 : vector<16x16xf32>
    %c5_245 = arith.constant 5 : index
    %445 = memref.load %arg3[%c5_245] : memref<32xf32, #tpu.memory_space<smem>>
    %446 = vector.broadcast %445 : f32 to vector<16x16xf32>
    %447 = arith.addf %444, %446 : vector<16x16xf32>
    %c13 = arith.constant 13 : index
    %c0_246 = arith.constant 0 : index
    %448 = memref.load %arg2[%c13, %c0_246] : memref<32x4xf32, #tpu.memory_space<smem>>
    %449 = vector.broadcast %448 : f32 to vector<16x16xf32>
    %450 = arith.mulf %3, %449 : vector<16x16xf32>
    %c13_247 = arith.constant 13 : index
    %c1_248 = arith.constant 1 : index
    %451 = memref.load %arg2[%c13_247, %c1_248] : memref<32x4xf32, #tpu.memory_space<smem>>
    %452 = vector.broadcast %451 : f32 to vector<16x16xf32>
    %453 = arith.mulf %5, %452 : vector<16x16xf32>
    %454 = arith.addf %450, %453 : vector<16x16xf32>
    %c13_249 = arith.constant 13 : index
    %c2_250 = arith.constant 2 : index
    %455 = memref.load %arg2[%c13_249, %c2_250] : memref<32x4xf32, #tpu.memory_space<smem>>
    %456 = vector.broadcast %455 : f32 to vector<16x16xf32>
    %457 = arith.mulf %7, %456 : vector<16x16xf32>
    %458 = arith.addf %454, %457 : vector<16x16xf32>
    %c13_251 = arith.constant 13 : index
    %c3_252 = arith.constant 3 : index
    %459 = memref.load %arg2[%c13_251, %c3_252] : memref<32x4xf32, #tpu.memory_space<smem>>
    %460 = vector.broadcast %459 : f32 to vector<16x16xf32>
    %461 = arith.mulf %9, %460 : vector<16x16xf32>
    %462 = arith.addf %458, %461 : vector<16x16xf32>
    %c13_253 = arith.constant 13 : index
    %463 = memref.load %arg3[%c13_253] : memref<32xf32, #tpu.memory_space<smem>>
    %464 = vector.broadcast %463 : f32 to vector<16x16xf32>
    %465 = arith.addf %462, %464 : vector<16x16xf32>
    %c21 = arith.constant 21 : index
    %c0_254 = arith.constant 0 : index
    %466 = memref.load %arg2[%c21, %c0_254] : memref<32x4xf32, #tpu.memory_space<smem>>
    %467 = vector.broadcast %466 : f32 to vector<16x16xf32>
    %468 = arith.mulf %3, %467 : vector<16x16xf32>
    %c21_255 = arith.constant 21 : index
    %c1_256 = arith.constant 1 : index
    %469 = memref.load %arg2[%c21_255, %c1_256] : memref<32x4xf32, #tpu.memory_space<smem>>
    %470 = vector.broadcast %469 : f32 to vector<16x16xf32>
    %471 = arith.mulf %5, %470 : vector<16x16xf32>
    %472 = arith.addf %468, %471 : vector<16x16xf32>
    %c21_257 = arith.constant 21 : index
    %c2_258 = arith.constant 2 : index
    %473 = memref.load %arg2[%c21_257, %c2_258] : memref<32x4xf32, #tpu.memory_space<smem>>
    %474 = vector.broadcast %473 : f32 to vector<16x16xf32>
    %475 = arith.mulf %7, %474 : vector<16x16xf32>
    %476 = arith.addf %472, %475 : vector<16x16xf32>
    %c21_259 = arith.constant 21 : index
    %c3_260 = arith.constant 3 : index
    %477 = memref.load %arg2[%c21_259, %c3_260] : memref<32x4xf32, #tpu.memory_space<smem>>
    %478 = vector.broadcast %477 : f32 to vector<16x16xf32>
    %479 = arith.mulf %9, %478 : vector<16x16xf32>
    %480 = arith.addf %476, %479 : vector<16x16xf32>
    %c21_261 = arith.constant 21 : index
    %481 = memref.load %arg3[%c21_261] : memref<32xf32, #tpu.memory_space<smem>>
    %482 = vector.broadcast %481 : f32 to vector<16x16xf32>
    %483 = arith.addf %480, %482 : vector<16x16xf32>
    %c29 = arith.constant 29 : index
    %c0_262 = arith.constant 0 : index
    %484 = memref.load %arg2[%c29, %c0_262] : memref<32x4xf32, #tpu.memory_space<smem>>
    %485 = vector.broadcast %484 : f32 to vector<16x16xf32>
    %486 = arith.mulf %3, %485 : vector<16x16xf32>
    %c29_263 = arith.constant 29 : index
    %c1_264 = arith.constant 1 : index
    %487 = memref.load %arg2[%c29_263, %c1_264] : memref<32x4xf32, #tpu.memory_space<smem>>
    %488 = vector.broadcast %487 : f32 to vector<16x16xf32>
    %489 = arith.mulf %5, %488 : vector<16x16xf32>
    %490 = arith.addf %486, %489 : vector<16x16xf32>
    %c29_265 = arith.constant 29 : index
    %c2_266 = arith.constant 2 : index
    %491 = memref.load %arg2[%c29_265, %c2_266] : memref<32x4xf32, #tpu.memory_space<smem>>
    %492 = vector.broadcast %491 : f32 to vector<16x16xf32>
    %493 = arith.mulf %7, %492 : vector<16x16xf32>
    %494 = arith.addf %490, %493 : vector<16x16xf32>
    %c29_267 = arith.constant 29 : index
    %c3_268 = arith.constant 3 : index
    %495 = memref.load %arg2[%c29_267, %c3_268] : memref<32x4xf32, #tpu.memory_space<smem>>
    %496 = vector.broadcast %495 : f32 to vector<16x16xf32>
    %497 = arith.mulf %9, %496 : vector<16x16xf32>
    %498 = arith.addf %494, %497 : vector<16x16xf32>
    %c29_269 = arith.constant 29 : index
    %499 = memref.load %arg3[%c29_269] : memref<32xf32, #tpu.memory_space<smem>>
    %500 = vector.broadcast %499 : f32 to vector<16x16xf32>
    %501 = arith.addf %498, %500 : vector<16x16xf32>
    %cst_270 = arith.constant dense<0.000000e+00> : vector<16x32xf32>
    %502 = tpu.matmul %447, %0, %cst_270 {dimension_numbers = #tpu.dot_dimension_numbers<[1], [0], [0], [1], [0, 0, 1, 1], [], []>} : vector<16x16xf32>, vector<16x32xf32>, vector<16x32xf32> -> vector<16x32xf32>
    %cst_271 = arith.constant dense<0.000000e+00> : vector<16x32xf32>
    %503 = tpu.matmul %465, %1, %cst_271 {dimension_numbers = #tpu.dot_dimension_numbers<[1], [0], [0], [1], [0, 0, 1, 1], [], []>} : vector<16x16xf32>, vector<16x32xf32>, vector<16x32xf32> -> vector<16x32xf32>
    %504 = arith.addf %502, %503 : vector<16x32xf32>
    %cst_272 = arith.constant dense<0.000000e+00> : vector<16x32xf32>
    %505 = tpu.matmul %483, %0, %cst_272 {dimension_numbers = #tpu.dot_dimension_numbers<[1], [0], [0], [1], [0, 0, 1, 1], [], []>} : vector<16x16xf32>, vector<16x32xf32>, vector<16x32xf32> -> vector<16x32xf32>
    %cst_273 = arith.constant dense<0.000000e+00> : vector<16x32xf32>
    %506 = tpu.matmul %501, %1, %cst_273 {dimension_numbers = #tpu.dot_dimension_numbers<[1], [0], [0], [1], [0, 0, 1, 1], [], []>} : vector<16x16xf32>, vector<16x32xf32>, vector<16x32xf32> -> vector<16x32xf32>
    %507 = arith.addf %505, %506 : vector<16x32xf32>
    %c0_274 = arith.constant 0 : index
    %c5_275 = arith.constant 5 : index
    %c0_276 = arith.constant 0 : index
    %c0_277 = arith.constant 0 : index
    %508 = vector.load %arg7[%c0_274, %c5_275, %c0_276, %c0_277] : memref<3x8x16x64xf32, #tpu.memory_space<vmem>>, vector<1x1x16x32xf32>
    %509 = vector.shape_cast %508 : vector<1x1x16x32xf32> to vector<16x32xf32>
    %510 = vector.shape_cast %504 : vector<16x32xf32> to vector<1x1x16x32xf32>
    tpu.vector_store %arg7[%c0_274, %c5_275, %c0_276, %c0_277], %510 {strides = array<i32>} : memref<3x8x16x64xf32, #tpu.memory_space<vmem>>, vector<1x1x16x32xf32>,
    %c0_278 = arith.constant 0 : index
    %c5_279 = arith.constant 5 : index
    %c0_280 = arith.constant 0 : index
    %c32_281 = arith.constant 32 : index
    %511 = vector.load %arg7[%c0_278, %c5_279, %c0_280, %c32_281] : memref<3x8x16x64xf32, #tpu.memory_space<vmem>>, vector<1x1x16x32xf32>
    %512 = vector.shape_cast %511 : vector<1x1x16x32xf32> to vector<16x32xf32>
    %513 = vector.shape_cast %507 : vector<16x32xf32> to vector<1x1x16x32xf32>
    tpu.vector_store %arg7[%c0_278, %c5_279, %c0_280, %c32_281], %513 {strides = array<i32>} : memref<3x8x16x64xf32, #tpu.memory_space<vmem>>, vector<1x1x16x32xf32>,
    %c6 = arith.constant 6 : index
    %c0_282 = arith.constant 0 : index
    %514 = memref.load %arg2[%c6, %c0_282] : memref<32x4xf32, #tpu.memory_space<smem>>
    %515 = vector.broadcast %514 : f32 to vector<16x16xf32>
    %516 = arith.mulf %3, %515 : vector<16x16xf32>
    %c6_283 = arith.constant 6 : index
    %c1_284 = arith.constant 1 : index
    %517 = memref.load %arg2[%c6_283, %c1_284] : memref<32x4xf32, #tpu.memory_space<smem>>
    %518 = vector.broadcast %517 : f32 to vector<16x16xf32>
    %519 = arith.mulf %5, %518 : vector<16x16xf32>
    %520 = arith.addf %516, %519 : vector<16x16xf32>
    %c6_285 = arith.constant 6 : index
    %c2_286 = arith.constant 2 : index
    %521 = memref.load %arg2[%c6_285, %c2_286] : memref<32x4xf32, #tpu.memory_space<smem>>
    %522 = vector.broadcast %521 : f32 to vector<16x16xf32>
    %523 = arith.mulf %7, %522 : vector<16x16xf32>
    %524 = arith.addf %520, %523 : vector<16x16xf32>
    %c6_287 = arith.constant 6 : index
    %c3_288 = arith.constant 3 : index
    %525 = memref.load %arg2[%c6_287, %c3_288] : memref<32x4xf32, #tpu.memory_space<smem>>
    %526 = vector.broadcast %525 : f32 to vector<16x16xf32>
    %527 = arith.mulf %9, %526 : vector<16x16xf32>
    %528 = arith.addf %524, %527 : vector<16x16xf32>
    %c6_289 = arith.constant 6 : index
    %529 = memref.load %arg3[%c6_289] : memref<32xf32, #tpu.memory_space<smem>>
    %530 = vector.broadcast %529 : f32 to vector<16x16xf32>
    %531 = arith.addf %528, %530 : vector<16x16xf32>
    %c14 = arith.constant 14 : index
    %c0_290 = arith.constant 0 : index
    %532 = memref.load %arg2[%c14, %c0_290] : memref<32x4xf32, #tpu.memory_space<smem>>
    %533 = vector.broadcast %532 : f32 to vector<16x16xf32>
    %534 = arith.mulf %3, %533 : vector<16x16xf32>
    %c14_291 = arith.constant 14 : index
    %c1_292 = arith.constant 1 : index
    %535 = memref.load %arg2[%c14_291, %c1_292] : memref<32x4xf32, #tpu.memory_space<smem>>
    %536 = vector.broadcast %535 : f32 to vector<16x16xf32>
    %537 = arith.mulf %5, %536 : vector<16x16xf32>
    %538 = arith.addf %534, %537 : vector<16x16xf32>
    %c14_293 = arith.constant 14 : index
    %c2_294 = arith.constant 2 : index
    %539 = memref.load %arg2[%c14_293, %c2_294] : memref<32x4xf32, #tpu.memory_space<smem>>
    %540 = vector.broadcast %539 : f32 to vector<16x16xf32>
    %541 = arith.mulf %7, %540 : vector<16x16xf32>
    %542 = arith.addf %538, %541 : vector<16x16xf32>
    %c14_295 = arith.constant 14 : index
    %c3_296 = arith.constant 3 : index
    %543 = memref.load %arg2[%c14_295, %c3_296] : memref<32x4xf32, #tpu.memory_space<smem>>
    %544 = vector.broadcast %543 : f32 to vector<16x16xf32>
    %545 = arith.mulf %9, %544 : vector<16x16xf32>
    %546 = arith.addf %542, %545 : vector<16x16xf32>
    %c14_297 = arith.constant 14 : index
    %547 = memref.load %arg3[%c14_297] : memref<32xf32, #tpu.memory_space<smem>>
    %548 = vector.broadcast %547 : f32 to vector<16x16xf32>
    %549 = arith.addf %546, %548 : vector<16x16xf32>
    %c22 = arith.constant 22 : index
    %c0_298 = arith.constant 0 : index
    %550 = memref.load %arg2[%c22, %c0_298] : memref<32x4xf32, #tpu.memory_space<smem>>
    %551 = vector.broadcast %550 : f32 to vector<16x16xf32>
    %552 = arith.mulf %3, %551 : vector<16x16xf32>
    %c22_299 = arith.constant 22 : index
    %c1_300 = arith.constant 1 : index
    %553 = memref.load %arg2[%c22_299, %c1_300] : memref<32x4xf32, #tpu.memory_space<smem>>
    %554 = vector.broadcast %553 : f32 to vector<16x16xf32>
    %555 = arith.mulf %5, %554 : vector<16x16xf32>
    %556 = arith.addf %552, %555 : vector<16x16xf32>
    %c22_301 = arith.constant 22 : index
    %c2_302 = arith.constant 2 : index
    %557 = memref.load %arg2[%c22_301, %c2_302] : memref<32x4xf32, #tpu.memory_space<smem>>
    %558 = vector.broadcast %557 : f32 to vector<16x16xf32>
    %559 = arith.mulf %7, %558 : vector<16x16xf32>
    %560 = arith.addf %556, %559 : vector<16x16xf32>
    %c22_303 = arith.constant 22 : index
    %c3_304 = arith.constant 3 : index
    %561 = memref.load %arg2[%c22_303, %c3_304] : memref<32x4xf32, #tpu.memory_space<smem>>
    %562 = vector.broadcast %561 : f32 to vector<16x16xf32>
    %563 = arith.mulf %9, %562 : vector<16x16xf32>
    %564 = arith.addf %560, %563 : vector<16x16xf32>
    %c22_305 = arith.constant 22 : index
    %565 = memref.load %arg3[%c22_305] : memref<32xf32, #tpu.memory_space<smem>>
    %566 = vector.broadcast %565 : f32 to vector<16x16xf32>
    %567 = arith.addf %564, %566 : vector<16x16xf32>
    %c30 = arith.constant 30 : index
    %c0_306 = arith.constant 0 : index
    %568 = memref.load %arg2[%c30, %c0_306] : memref<32x4xf32, #tpu.memory_space<smem>>
    %569 = vector.broadcast %568 : f32 to vector<16x16xf32>
    %570 = arith.mulf %3, %569 : vector<16x16xf32>
    %c30_307 = arith.constant 30 : index
    %c1_308 = arith.constant 1 : index
    %571 = memref.load %arg2[%c30_307, %c1_308] : memref<32x4xf32, #tpu.memory_space<smem>>
    %572 = vector.broadcast %571 : f32 to vector<16x16xf32>
    %573 = arith.mulf %5, %572 : vector<16x16xf32>
    %574 = arith.addf %570, %573 : vector<16x16xf32>
    %c30_309 = arith.constant 30 : index
    %c2_310 = arith.constant 2 : index
    %575 = memref.load %arg2[%c30_309, %c2_310] : memref<32x4xf32, #tpu.memory_space<smem>>
    %576 = vector.broadcast %575 : f32 to vector<16x16xf32>
    %577 = arith.mulf %7, %576 : vector<16x16xf32>
    %578 = arith.addf %574, %577 : vector<16x16xf32>
    %c30_311 = arith.constant 30 : index
    %c3_312 = arith.constant 3 : index
    %579 = memref.load %arg2[%c30_311, %c3_312] : memref<32x4xf32, #tpu.memory_space<smem>>
    %580 = vector.broadcast %579 : f32 to vector<16x16xf32>
    %581 = arith.mulf %9, %580 : vector<16x16xf32>
    %582 = arith.addf %578, %581 : vector<16x16xf32>
    %c30_313 = arith.constant 30 : index
    %583 = memref.load %arg3[%c30_313] : memref<32xf32, #tpu.memory_space<smem>>
    %584 = vector.broadcast %583 : f32 to vector<16x16xf32>
    %585 = arith.addf %582, %584 : vector<16x16xf32>
    %cst_314 = arith.constant dense<0.000000e+00> : vector<16x32xf32>
    %586 = tpu.matmul %531, %0, %cst_314 {dimension_numbers = #tpu.dot_dimension_numbers<[1], [0], [0], [1], [0, 0, 1, 1], [], []>} : vector<16x16xf32>, vector<16x32xf32>, vector<16x32xf32> -> vector<16x32xf32>
    %cst_315 = arith.constant dense<0.000000e+00> : vector<16x32xf32>
    %587 = tpu.matmul %549, %1, %cst_315 {dimension_numbers = #tpu.dot_dimension_numbers<[1], [0], [0], [1], [0, 0, 1, 1], [], []>} : vector<16x16xf32>, vector<16x32xf32>, vector<16x32xf32> -> vector<16x32xf32>
    %588 = arith.addf %586, %587 : vector<16x32xf32>
    %cst_316 = arith.constant dense<0.000000e+00> : vector<16x32xf32>
    %589 = tpu.matmul %567, %0, %cst_316 {dimension_numbers = #tpu.dot_dimension_numbers<[1], [0], [0], [1], [0, 0, 1, 1], [], []>} : vector<16x16xf32>, vector<16x32xf32>, vector<16x32xf32> -> vector<16x32xf32>
    %cst_317 = arith.constant dense<0.000000e+00> : vector<16x32xf32>
    %590 = tpu.matmul %585, %1, %cst_317 {dimension_numbers = #tpu.dot_dimension_numbers<[1], [0], [0], [1], [0, 0, 1, 1], [], []>} : vector<16x16xf32>, vector<16x32xf32>, vector<16x32xf32> -> vector<16x32xf32>
    %591 = arith.addf %589, %590 : vector<16x32xf32>
    %c0_318 = arith.constant 0 : index
    %c6_319 = arith.constant 6 : index
    %c0_320 = arith.constant 0 : index
    %c0_321 = arith.constant 0 : index
    %592 = vector.load %arg7[%c0_318, %c6_319, %c0_320, %c0_321] : memref<3x8x16x64xf32, #tpu.memory_space<vmem>>, vector<1x1x16x32xf32>
    %593 = vector.shape_cast %592 : vector<1x1x16x32xf32> to vector<16x32xf32>
    %594 = vector.shape_cast %588 : vector<16x32xf32> to vector<1x1x16x32xf32>
    tpu.vector_store %arg7[%c0_318, %c6_319, %c0_320, %c0_321], %594 {strides = array<i32>} : memref<3x8x16x64xf32, #tpu.memory_space<vmem>>, vector<1x1x16x32xf32>,
    %c0_322 = arith.constant 0 : index
    %c6_323 = arith.constant 6 : index
    %c0_324 = arith.constant 0 : index
    %c32_325 = arith.constant 32 : index
    %595 = vector.load %arg7[%c0_322, %c6_323, %c0_324, %c32_325] : memref<3x8x16x64xf32, #tpu.memory_space<vmem>>, vector<1x1x16x32xf32>
    %596 = vector.shape_cast %595 : vector<1x1x16x32xf32> to vector<16x32xf32>
    %597 = vector.shape_cast %591 : vector<16x32xf32> to vector<1x1x16x32xf32>
    tpu.vector_store %arg7[%c0_322, %c6_323, %c0_324, %c32_325], %597 {strides = array<i32>} : memref<3x8x16x64xf32, #tpu.memory_space<vmem>>, vector<1x1x16x32xf32>,
    %c7 = arith.constant 7 : index
    %c0_326 = arith.constant 0 : index
    %598 = memref.load %arg2[%c7, %c0_326] : memref<32x4xf32, #tpu.memory_space<smem>>
    %599 = vector.broadcast %598 : f32 to vector<16x16xf32>
    %600 = arith.mulf %3, %599 : vector<16x16xf32>
    %c7_327 = arith.constant 7 : index
    %c1_328 = arith.constant 1 : index
    %601 = memref.load %arg2[%c7_327, %c1_328] : memref<32x4xf32, #tpu.memory_space<smem>>
    %602 = vector.broadcast %601 : f32 to vector<16x16xf32>
    %603 = arith.mulf %5, %602 : vector<16x16xf32>
    %604 = arith.addf %600, %603 : vector<16x16xf32>
    %c7_329 = arith.constant 7 : index
    %c2_330 = arith.constant 2 : index
    %605 = memref.load %arg2[%c7_329, %c2_330] : memref<32x4xf32, #tpu.memory_space<smem>>
    %606 = vector.broadcast %605 : f32 to vector<16x16xf32>
    %607 = arith.mulf %7, %606 : vector<16x16xf32>
    %608 = arith.addf %604, %607 : vector<16x16xf32>
    %c7_331 = arith.constant 7 : index
    %c3_332 = arith.constant 3 : index
    %609 = memref.load %arg2[%c7_331, %c3_332] : memref<32x4xf32, #tpu.memory_space<smem>>
    %610 = vector.broadcast %609 : f32 to vector<16x16xf32>
    %611 = arith.mulf %9, %610 : vector<16x16xf32>
    %612 = arith.addf %608, %611 : vector<16x16xf32>
    %c7_333 = arith.constant 7 : index
    %613 = memref.load %arg3[%c7_333] : memref<32xf32, #tpu.memory_space<smem>>
    %614 = vector.broadcast %613 : f32 to vector<16x16xf32>
    %615 = arith.addf %612, %614 : vector<16x16xf32>
    %c15 = arith.constant 15 : index
    %c0_334 = arith.constant 0 : index
    %616 = memref.load %arg2[%c15, %c0_334] : memref<32x4xf32, #tpu.memory_space<smem>>
    %617 = vector.broadcast %616 : f32 to vector<16x16xf32>
    %618 = arith.mulf %3, %617 : vector<16x16xf32>
    %c15_335 = arith.constant 15 : index
    %c1_336 = arith.constant 1 : index
    %619 = memref.load %arg2[%c15_335, %c1_336] : memref<32x4xf32, #tpu.memory_space<smem>>
    %620 = vector.broadcast %619 : f32 to vector<16x16xf32>
    %621 = arith.mulf %5, %620 : vector<16x16xf32>
    %622 = arith.addf %618, %621 : vector<16x16xf32>
    %c15_337 = arith.constant 15 : index
    %c2_338 = arith.constant 2 : index
    %623 = memref.load %arg2[%c15_337, %c2_338] : memref<32x4xf32, #tpu.memory_space<smem>>
    %624 = vector.broadcast %623 : f32 to vector<16x16xf32>
    %625 = arith.mulf %7, %624 : vector<16x16xf32>
    %626 = arith.addf %622, %625 : vector<16x16xf32>
    %c15_339 = arith.constant 15 : index
    %c3_340 = arith.constant 3 : index
    %627 = memref.load %arg2[%c15_339, %c3_340] : memref<32x4xf32, #tpu.memory_space<smem>>
    %628 = vector.broadcast %627 : f32 to vector<16x16xf32>
    %629 = arith.mulf %9, %628 : vector<16x16xf32>
    %630 = arith.addf %626, %629 : vector<16x16xf32>
    %c15_341 = arith.constant 15 : index
    %631 = memref.load %arg3[%c15_341] : memref<32xf32, #tpu.memory_space<smem>>
    %632 = vector.broadcast %631 : f32 to vector<16x16xf32>
    %633 = arith.addf %630, %632 : vector<16x16xf32>
    %c23 = arith.constant 23 : index
    %c0_342 = arith.constant 0 : index
    %634 = memref.load %arg2[%c23, %c0_342] : memref<32x4xf32, #tpu.memory_space<smem>>
    %635 = vector.broadcast %634 : f32 to vector<16x16xf32>
    %636 = arith.mulf %3, %635 : vector<16x16xf32>
    %c23_343 = arith.constant 23 : index
    %c1_344 = arith.constant 1 : index
    %637 = memref.load %arg2[%c23_343, %c1_344] : memref<32x4xf32, #tpu.memory_space<smem>>
    %638 = vector.broadcast %637 : f32 to vector<16x16xf32>
    %639 = arith.mulf %5, %638 : vector<16x16xf32>
    %640 = arith.addf %636, %639 : vector<16x16xf32>
    %c23_345 = arith.constant 23 : index
    %c2_346 = arith.constant 2 : index
    %641 = memref.load %arg2[%c23_345, %c2_346] : memref<32x4xf32, #tpu.memory_space<smem>>
    %642 = vector.broadcast %641 : f32 to vector<16x16xf32>
    %643 = arith.mulf %7, %642 : vector<16x16xf32>
    %644 = arith.addf %640, %643 : vector<16x16xf32>
    %c23_347 = arith.constant 23 : index
    %c3_348 = arith.constant 3 : index
    %645 = memref.load %arg2[%c23_347, %c3_348] : memref<32x4xf32, #tpu.memory_space<smem>>
    %646 = vector.broadcast %645 : f32 to vector<16x16xf32>
    %647 = arith.mulf %9, %646 : vector<16x16xf32>
    %648 = arith.addf %644, %647 : vector<16x16xf32>
    %c23_349 = arith.constant 23 : index
    %649 = memref.load %arg3[%c23_349] : memref<32xf32, #tpu.memory_space<smem>>
    %650 = vector.broadcast %649 : f32 to vector<16x16xf32>
    %651 = arith.addf %648, %650 : vector<16x16xf32>
    %c31 = arith.constant 31 : index
    %c0_350 = arith.constant 0 : index
    %652 = memref.load %arg2[%c31, %c0_350] : memref<32x4xf32, #tpu.memory_space<smem>>
    %653 = vector.broadcast %652 : f32 to vector<16x16xf32>
    %654 = arith.mulf %3, %653 : vector<16x16xf32>
    %c31_351 = arith.constant 31 : index
    %c1_352 = arith.constant 1 : index
    %655 = memref.load %arg2[%c31_351, %c1_352] : memref<32x4xf32, #tpu.memory_space<smem>>
    %656 = vector.broadcast %655 : f32 to vector<16x16xf32>
    %657 = arith.mulf %5, %656 : vector<16x16xf32>
    %658 = arith.addf %654, %657 : vector<16x16xf32>
    %c31_353 = arith.constant 31 : index
    %c2_354 = arith.constant 2 : index
    %659 = memref.load %arg2[%c31_353, %c2_354] : memref<32x4xf32, #tpu.memory_space<smem>>
    %660 = vector.broadcast %659 : f32 to vector<16x16xf32>
    %661 = arith.mulf %7, %660 : vector<16x16xf32>
    %662 = arith.addf %658, %661 : vector<16x16xf32>
    %c31_355 = arith.constant 31 : index
    %c3_356 = arith.constant 3 : index
    %663 = memref.load %arg2[%c31_355, %c3_356] : memref<32x4xf32, #tpu.memory_space<smem>>
    %664 = vector.broadcast %663 : f32 to vector<16x16xf32>
    %665 = arith.mulf %9, %664 : vector<16x16xf32>
    %666 = arith.addf %662, %665 : vector<16x16xf32>
    %c31_357 = arith.constant 31 : index
    %667 = memref.load %arg3[%c31_357] : memref<32xf32, #tpu.memory_space<smem>>
    %668 = vector.broadcast %667 : f32 to vector<16x16xf32>
    %669 = arith.addf %666, %668 : vector<16x16xf32>
    %cst_358 = arith.constant dense<0.000000e+00> : vector<16x32xf32>
    %670 = tpu.matmul %615, %0, %cst_358 {dimension_numbers = #tpu.dot_dimension_numbers<[1], [0], [0], [1], [0, 0, 1, 1], [], []>} : vector<16x16xf32>, vector<16x32xf32>, vector<16x32xf32> -> vector<16x32xf32>
    %cst_359 = arith.constant dense<0.000000e+00> : vector<16x32xf32>
    %671 = tpu.matmul %633, %1, %cst_359 {dimension_numbers = #tpu.dot_dimension_numbers<[1], [0], [0], [1], [0, 0, 1, 1], [], []>} : vector<16x16xf32>, vector<16x32xf32>, vector<16x32xf32> -> vector<16x32xf32>
    %672 = arith.addf %670, %671 : vector<16x32xf32>
    %cst_360 = arith.constant dense<0.000000e+00> : vector<16x32xf32>
    %673 = tpu.matmul %651, %0, %cst_360 {dimension_numbers = #tpu.dot_dimension_numbers<[1], [0], [0], [1], [0, 0, 1, 1], [], []>} : vector<16x16xf32>, vector<16x32xf32>, vector<16x32xf32> -> vector<16x32xf32>
    %cst_361 = arith.constant dense<0.000000e+00> : vector<16x32xf32>
    %674 = tpu.matmul %669, %1, %cst_361 {dimension_numbers = #tpu.dot_dimension_numbers<[1], [0], [0], [1], [0, 0, 1, 1], [], []>} : vector<16x16xf32>, vector<16x32xf32>, vector<16x32xf32> -> vector<16x32xf32>
    %675 = arith.addf %673, %674 : vector<16x32xf32>
    %c0_362 = arith.constant 0 : index
    %c7_363 = arith.constant 7 : index
    %c0_364 = arith.constant 0 : index
    %c0_365 = arith.constant 0 : index
    %676 = vector.load %arg7[%c0_362, %c7_363, %c0_364, %c0_365] : memref<3x8x16x64xf32, #tpu.memory_space<vmem>>, vector<1x1x16x32xf32>
    %677 = vector.shape_cast %676 : vector<1x1x16x32xf32> to vector<16x32xf32>
    %678 = vector.shape_cast %672 : vector<16x32xf32> to vector<1x1x16x32xf32>
    tpu.vector_store %arg7[%c0_362, %c7_363, %c0_364, %c0_365], %678 {strides = array<i32>} : memref<3x8x16x64xf32, #tpu.memory_space<vmem>>, vector<1x1x16x32xf32>,
    %c0_366 = arith.constant 0 : index
    %c7_367 = arith.constant 7 : index
    %c0_368 = arith.constant 0 : index
    %c32_369 = arith.constant 32 : index
    %679 = vector.load %arg7[%c0_366, %c7_367, %c0_368, %c32_369] : memref<3x8x16x64xf32, #tpu.memory_space<vmem>>, vector<1x1x16x32xf32>
    %680 = vector.shape_cast %679 : vector<1x1x16x32xf32> to vector<16x32xf32>
    %681 = vector.shape_cast %675 : vector<16x32xf32> to vector<1x1x16x32xf32>
    tpu.vector_store %arg7[%c0_366, %c7_367, %c0_368, %c32_369], %681 {strides = array<i32>} : memref<3x8x16x64xf32, #tpu.memory_space<vmem>>, vector<1x1x16x32xf32>,
    %c1_370 = arith.constant 1 : index
    %c0_371 = arith.constant 0 : index
    %c0_372 = arith.constant 0 : index
    %c0_373 = arith.constant 0 : index
    %682 = vector.load %arg6[%c1_370, %c0_371, %c0_372, %c0_373] : memref<3x4x16x16xf32, #tpu.memory_space<vmem>>, vector<1x1x16x16xf32>
    %683 = vector.shape_cast %682 : vector<1x1x16x16xf32> to vector<16x16xf32>
    %c1_374 = arith.constant 1 : index
    %c1_375 = arith.constant 1 : index
    %c0_376 = arith.constant 0 : index
    %c0_377 = arith.constant 0 : index
    %684 = vector.load %arg6[%c1_374, %c1_375, %c0_376, %c0_377] : memref<3x4x16x16xf32, #tpu.memory_space<vmem>>, vector<1x1x16x16xf32>
    %685 = vector.shape_cast %684 : vector<1x1x16x16xf32> to vector<16x16xf32>
    %c1_378 = arith.constant 1 : index
    %c2_379 = arith.constant 2 : index
    %c0_380 = arith.constant 0 : index
    %c0_381 = arith.constant 0 : index
    %686 = vector.load %arg6[%c1_378, %c2_379, %c0_380, %c0_381] : memref<3x4x16x16xf32, #tpu.memory_space<vmem>>, vector<1x1x16x16xf32>
    %687 = vector.shape_cast %686 : vector<1x1x16x16xf32> to vector<16x16xf32>
    %c1_382 = arith.constant 1 : index
    %c3_383 = arith.constant 3 : index
    %c0_384 = arith.constant 0 : index
    %c0_385 = arith.constant 0 : index
    %688 = vector.load %arg6[%c1_382, %c3_383, %c0_384, %c0_385] : memref<3x4x16x16xf32, #tpu.memory_space<vmem>>, vector<1x1x16x16xf32>
    %689 = vector.shape_cast %688 : vector<1x1x16x16xf32> to vector<16x16xf32>
    %c0_386 = arith.constant 0 : index
    %c0_387 = arith.constant 0 : index
    %690 = memref.load %arg2[%c0_386, %c0_387] : memref<32x4xf32, #tpu.memory_space<smem>>
    %691 = vector.broadcast %690 : f32 to vector<16x16xf32>
    %692 = arith.mulf %683, %691 : vector<16x16xf32>
    %c0_388 = arith.constant 0 : index
    %c1_389 = arith.constant 1 : index
    %693 = memref.load %arg2[%c0_388, %c1_389] : memref<32x4xf32, #tpu.memory_space<smem>>
    %694 = vector.broadcast %693 : f32 to vector<16x16xf32>
    %695 = arith.mulf %685, %694 : vector<16x16xf32>
    %696 = arith.addf %692, %695 : vector<16x16xf32>
    %c0_390 = arith.constant 0 : index
    %c2_391 = arith.constant 2 : index
    %697 = memref.load %arg2[%c0_390, %c2_391] : memref<32x4xf32, #tpu.memory_space<smem>>
    %698 = vector.broadcast %697 : f32 to vector<16x16xf32>
    %699 = arith.mulf %687, %698 : vector<16x16xf32>
    %700 = arith.addf %696, %699 : vector<16x16xf32>
    %c0_392 = arith.constant 0 : index
    %c3_393 = arith.constant 3 : index
    %701 = memref.load %arg2[%c0_392, %c3_393] : memref<32x4xf32, #tpu.memory_space<smem>>
    %702 = vector.broadcast %701 : f32 to vector<16x16xf32>
    %703 = arith.mulf %689, %702 : vector<16x16xf32>
    %704 = arith.addf %700, %703 : vector<16x16xf32>
    %c0_394 = arith.constant 0 : index
    %705 = memref.load %arg3[%c0_394] : memref<32xf32, #tpu.memory_space<smem>>
    %706 = vector.broadcast %705 : f32 to vector<16x16xf32>
    %707 = arith.addf %704, %706 : vector<16x16xf32>
    %c8_395 = arith.constant 8 : index
    %c0_396 = arith.constant 0 : index
    %708 = memref.load %arg2[%c8_395, %c0_396] : memref<32x4xf32, #tpu.memory_space<smem>>
    %709 = vector.broadcast %708 : f32 to vector<16x16xf32>
    %710 = arith.mulf %683, %709 : vector<16x16xf32>
    %c8_397 = arith.constant 8 : index
    %c1_398 = arith.constant 1 : index
    %711 = memref.load %arg2[%c8_397, %c1_398] : memref<32x4xf32, #tpu.memory_space<smem>>
    %712 = vector.broadcast %711 : f32 to vector<16x16xf32>
    %713 = arith.mulf %685, %712 : vector<16x16xf32>
    %714 = arith.addf %710, %713 : vector<16x16xf32>
    %c8_399 = arith.constant 8 : index
    %c2_400 = arith.constant 2 : index
    %715 = memref.load %arg2[%c8_399, %c2_400] : memref<32x4xf32, #tpu.memory_space<smem>>
    %716 = vector.broadcast %715 : f32 to vector<16x16xf32>
    %717 = arith.mulf %687, %716 : vector<16x16xf32>
    %718 = arith.addf %714, %717 : vector<16x16xf32>
    %c8_401 = arith.constant 8 : index
    %c3_402 = arith.constant 3 : index
    %719 = memref.load %arg2[%c8_401, %c3_402] : memref<32x4xf32, #tpu.memory_space<smem>>
    %720 = vector.broadcast %719 : f32 to vector<16x16xf32>
    %721 = arith.mulf %689, %720 : vector<16x16xf32>
    %722 = arith.addf %718, %721 : vector<16x16xf32>
    %c8_403 = arith.constant 8 : index
    %723 = memref.load %arg3[%c8_403] : memref<32xf32, #tpu.memory_space<smem>>
    %724 = vector.broadcast %723 : f32 to vector<16x16xf32>
    %725 = arith.addf %722, %724 : vector<16x16xf32>
    %c16_404 = arith.constant 16 : index
    %c0_405 = arith.constant 0 : index
    %726 = memref.load %arg2[%c16_404, %c0_405] : memref<32x4xf32, #tpu.memory_space<smem>>
    %727 = vector.broadcast %726 : f32 to vector<16x16xf32>
    %728 = arith.mulf %683, %727 : vector<16x16xf32>
    %c16_406 = arith.constant 16 : index
    %c1_407 = arith.constant 1 : index
    %729 = memref.load %arg2[%c16_406, %c1_407] : memref<32x4xf32, #tpu.memory_space<smem>>
    %730 = vector.broadcast %729 : f32 to vector<16x16xf32>
    %731 = arith.mulf %685, %730 : vector<16x16xf32>
    %732 = arith.addf %728, %731 : vector<16x16xf32>
    %c16_408 = arith.constant 16 : index
    %c2_409 = arith.constant 2 : index
    %733 = memref.load %arg2[%c16_408, %c2_409] : memref<32x4xf32, #tpu.memory_space<smem>>
    %734 = vector.broadcast %733 : f32 to vector<16x16xf32>
    %735 = arith.mulf %687, %734 : vector<16x16xf32>
    %736 = arith.addf %732, %735 : vector<16x16xf32>
    %c16_410 = arith.constant 16 : index
    %c3_411 = arith.constant 3 : index
    %737 = memref.load %arg2[%c16_410, %c3_411] : memref<32x4xf32, #tpu.memory_space<smem>>
    %738 = vector.broadcast %737 : f32 to vector<16x16xf32>
    %739 = arith.mulf %689, %738 : vector<16x16xf32>
    %740 = arith.addf %736, %739 : vector<16x16xf32>
    %c16_412 = arith.constant 16 : index
    %741 = memref.load %arg3[%c16_412] : memref<32xf32, #tpu.memory_space<smem>>
    %742 = vector.broadcast %741 : f32 to vector<16x16xf32>
    %743 = arith.addf %740, %742 : vector<16x16xf32>
    %c24_413 = arith.constant 24 : index
    %c0_414 = arith.constant 0 : index
    %744 = memref.load %arg2[%c24_413, %c0_414] : memref<32x4xf32, #tpu.memory_space<smem>>
    %745 = vector.broadcast %744 : f32 to vector<16x16xf32>
    %746 = arith.mulf %683, %745 : vector<16x16xf32>
    %c24_415 = arith.constant 24 : index
    %c1_416 = arith.constant 1 : index
    %747 = memref.load %arg2[%c24_415, %c1_416] : memref<32x4xf32, #tpu.memory_space<smem>>
    %748 = vector.broadcast %747 : f32 to vector<16x16xf32>
    %749 = arith.mulf %685, %748 : vector<16x16xf32>
    %750 = arith.addf %746, %749 : vector<16x16xf32>
    %c24_417 = arith.constant 24 : index
    %c2_418 = arith.constant 2 : index
    %751 = memref.load %arg2[%c24_417, %c2_418] : memref<32x4xf32, #tpu.memory_space<smem>>
    %752 = vector.broadcast %751 : f32 to vector<16x16xf32>
    %753 = arith.mulf %687, %752 : vector<16x16xf32>
    %754 = arith.addf %750, %753 : vector<16x16xf32>
    %c24_419 = arith.constant 24 : index
    %c3_420 = arith.constant 3 : index
    %755 = memref.load %arg2[%c24_419, %c3_420] : memref<32x4xf32, #tpu.memory_space<smem>>
    %756 = vector.broadcast %755 : f32 to vector<16x16xf32>
    %757 = arith.mulf %689, %756 : vector<16x16xf32>
    %758 = arith.addf %754, %757 : vector<16x16xf32>
    %c24_421 = arith.constant 24 : index
    %759 = memref.load %arg3[%c24_421] : memref<32xf32, #tpu.memory_space<smem>>
    %760 = vector.broadcast %759 : f32 to vector<16x16xf32>
    %761 = arith.addf %758, %760 : vector<16x16xf32>
    %cst_422 = arith.constant dense<0.000000e+00> : vector<16x32xf32>
    %762 = tpu.matmul %707, %0, %cst_422 {dimension_numbers = #tpu.dot_dimension_numbers<[1], [0], [0], [1], [0, 0, 1, 1], [], []>} : vector<16x16xf32>, vector<16x32xf32>, vector<16x32xf32> -> vector<16x32xf32>
    %cst_423 = arith.constant dense<0.000000e+00> : vector<16x32xf32>
    %763 = tpu.matmul %725, %1, %cst_423 {dimension_numbers = #tpu.dot_dimension_numbers<[1], [0], [0], [1], [0, 0, 1, 1], [], []>} : vector<16x16xf32>, vector<16x32xf32>, vector<16x32xf32> -> vector<16x32xf32>
    %764 = arith.addf %762, %763 : vector<16x32xf32>
    %cst_424 = arith.constant dense<0.000000e+00> : vector<16x32xf32>
    %765 = tpu.matmul %743, %0, %cst_424 {dimension_numbers = #tpu.dot_dimension_numbers<[1], [0], [0], [1], [0, 0, 1, 1], [], []>} : vector<16x16xf32>, vector<16x32xf32>, vector<16x32xf32> -> vector<16x32xf32>
    %cst_425 = arith.constant dense<0.000000e+00> : vector<16x32xf32>
    %766 = tpu.matmul %761, %1, %cst_425 {dimension_numbers = #tpu.dot_dimension_numbers<[1], [0], [0], [1], [0, 0, 1, 1], [], []>} : vector<16x16xf32>, vector<16x32xf32>, vector<16x32xf32> -> vector<16x32xf32>
    %767 = arith.addf %765, %766 : vector<16x32xf32>
    %c1_426 = arith.constant 1 : index
    %c0_427 = arith.constant 0 : index
    %c0_428 = arith.constant 0 : index
    %c0_429 = arith.constant 0 : index
    %768 = vector.load %arg7[%c1_426, %c0_427, %c0_428, %c0_429] : memref<3x8x16x64xf32, #tpu.memory_space<vmem>>, vector<1x1x16x32xf32>
    %769 = vector.shape_cast %768 : vector<1x1x16x32xf32> to vector<16x32xf32>
    %770 = vector.shape_cast %764 : vector<16x32xf32> to vector<1x1x16x32xf32>
    tpu.vector_store %arg7[%c1_426, %c0_427, %c0_428, %c0_429], %770 {strides = array<i32>} : memref<3x8x16x64xf32, #tpu.memory_space<vmem>>, vector<1x1x16x32xf32>,
    %c1_430 = arith.constant 1 : index
    %c0_431 = arith.constant 0 : index
    %c0_432 = arith.constant 0 : index
    %c32_433 = arith.constant 32 : index
    %771 = vector.load %arg7[%c1_430, %c0_431, %c0_432, %c32_433] : memref<3x8x16x64xf32, #tpu.memory_space<vmem>>, vector<1x1x16x32xf32>
    %772 = vector.shape_cast %771 : vector<1x1x16x32xf32> to vector<16x32xf32>
    %773 = vector.shape_cast %767 : vector<16x32xf32> to vector<1x1x16x32xf32>
    tpu.vector_store %arg7[%c1_430, %c0_431, %c0_432, %c32_433], %773 {strides = array<i32>} : memref<3x8x16x64xf32, #tpu.memory_space<vmem>>, vector<1x1x16x32xf32>,
    %c1_434 = arith.constant 1 : index
    %c0_435 = arith.constant 0 : index
    %774 = memref.load %arg2[%c1_434, %c0_435] : memref<32x4xf32, #tpu.memory_space<smem>>
    %775 = vector.broadcast %774 : f32 to vector<16x16xf32>
    %776 = arith.mulf %683, %775 : vector<16x16xf32>
    %c1_436 = arith.constant 1 : index
    %c1_437 = arith.constant 1 : index
    %777 = memref.load %arg2[%c1_436, %c1_437] : memref<32x4xf32, #tpu.memory_space<smem>>
    %778 = vector.broadcast %777 : f32 to vector<16x16xf32>
    %779 = arith.mulf %685, %778 : vector<16x16xf32>
    %780 = arith.addf %776, %779 : vector<16x16xf32>
    %c1_438 = arith.constant 1 : index
    %c2_439 = arith.constant 2 : index
    %781 = memref.load %arg2[%c1_438, %c2_439] : memref<32x4xf32, #tpu.memory_space<smem>>
    %782 = vector.broadcast %781 : f32 to vector<16x16xf32>
    %783 = arith.mulf %687, %782 : vector<16x16xf32>
    %784 = arith.addf %780, %783 : vector<16x16xf32>
    %c1_440 = arith.constant 1 : index
    %c3_441 = arith.constant 3 : index
    %785 = memref.load %arg2[%c1_440, %c3_441] : memref<32x4xf32, #tpu.memory_space<smem>>
    %786 = vector.broadcast %785 : f32 to vector<16x16xf32>
    %787 = arith.mulf %689, %786 : vector<16x16xf32>
    %788 = arith.addf %784, %787 : vector<16x16xf32>
    %c1_442 = arith.constant 1 : index
    %789 = memref.load %arg3[%c1_442] : memref<32xf32, #tpu.memory_space<smem>>
    %790 = vector.broadcast %789 : f32 to vector<16x16xf32>
    %791 = arith.addf %788, %790 : vector<16x16xf32>
    %c9_443 = arith.constant 9 : index
    %c0_444 = arith.constant 0 : index
    %792 = memref.load %arg2[%c9_443, %c0_444] : memref<32x4xf32, #tpu.memory_space<smem>>
    %793 = vector.broadcast %792 : f32 to vector<16x16xf32>
    %794 = arith.mulf %683, %793 : vector<16x16xf32>
    %c9_445 = arith.constant 9 : index
    %c1_446 = arith.constant 1 : index
    %795 = memref.load %arg2[%c9_445, %c1_446] : memref<32x4xf32, #tpu.memory_space<smem>>
    %796 = vector.broadcast %795 : f32 to vector<16x16xf32>
    %797 = arith.mulf %685, %796 : vector<16x16xf32>
    %798 = arith.addf %794, %797 : vector<16x16xf32>
    %c9_447 = arith.constant 9 : index
    %c2_448 = arith.constant 2 : index
    %799 = memref.load %arg2[%c9_447, %c2_448] : memref<32x4xf32, #tpu.memory_space<smem>>
    %800 = vector.broadcast %799 : f32 to vector<16x16xf32>
    %801 = arith.mulf %687, %800 : vector<16x16xf32>
    %802 = arith.addf %798, %801 : vector<16x16xf32>
    %c9_449 = arith.constant 9 : index
    %c3_450 = arith.constant 3 : index
    %803 = memref.load %arg2[%c9_449, %c3_450] : memref<32x4xf32, #tpu.memory_space<smem>>
    %804 = vector.broadcast %803 : f32 to vector<16x16xf32>
    %805 = arith.mulf %689, %804 : vector<16x16xf32>
    %806 = arith.addf %802, %805 : vector<16x16xf32>
    %c9_451 = arith.constant 9 : index
    %807 = memref.load %arg3[%c9_451] : memref<32xf32, #tpu.memory_space<smem>>
    %808 = vector.broadcast %807 : f32 to vector<16x16xf32>
    %809 = arith.addf %806, %808 : vector<16x16xf32>
    %c17_452 = arith.constant 17 : index
    %c0_453 = arith.constant 0 : index
    %810 = memref.load %arg2[%c17_452, %c0_453] : memref<32x4xf32, #tpu.memory_space<smem>>
    %811 = vector.broadcast %810 : f32 to vector<16x16xf32>
    %812 = arith.mulf %683, %811 : vector<16x16xf32>
    %c17_454 = arith.constant 17 : index
    %c1_455 = arith.constant 1 : index
    %813 = memref.load %arg2[%c17_454, %c1_455] : memref<32x4xf32, #tpu.memory_space<smem>>
    %814 = vector.broadcast %813 : f32 to vector<16x16xf32>
    %815 = arith.mulf %685, %814 : vector<16x16xf32>
    %816 = arith.addf %812, %815 : vector<16x16xf32>
    %c17_456 = arith.constant 17 : index
    %c2_457 = arith.constant 2 : index
    %817 = memref.load %arg2[%c17_456, %c2_457] : memref<32x4xf32, #tpu.memory_space<smem>>
    %818 = vector.broadcast %817 : f32 to vector<16x16xf32>
    %819 = arith.mulf %687, %818 : vector<16x16xf32>
    %820 = arith.addf %816, %819 : vector<16x16xf32>
    %c17_458 = arith.constant 17 : index
    %c3_459 = arith.constant 3 : index
    %821 = memref.load %arg2[%c17_458, %c3_459] : memref<32x4xf32, #tpu.memory_space<smem>>
    %822 = vector.broadcast %821 : f32 to vector<16x16xf32>
    %823 = arith.mulf %689, %822 : vector<16x16xf32>
    %824 = arith.addf %820, %823 : vector<16x16xf32>
    %c17_460 = arith.constant 17 : index
    %825 = memref.load %arg3[%c17_460] : memref<32xf32, #tpu.memory_space<smem>>
    %826 = vector.broadcast %825 : f32 to vector<16x16xf32>
    %827 = arith.addf %824, %826 : vector<16x16xf32>
    %c25_461 = arith.constant 25 : index
    %c0_462 = arith.constant 0 : index
    %828 = memref.load %arg2[%c25_461, %c0_462] : memref<32x4xf32, #tpu.memory_space<smem>>
    %829 = vector.broadcast %828 : f32 to vector<16x16xf32>
    %830 = arith.mulf %683, %829 : vector<16x16xf32>
    %c25_463 = arith.constant 25 : index
    %c1_464 = arith.constant 1 : index
    %831 = memref.load %arg2[%c25_463, %c1_464] : memref<32x4xf32, #tpu.memory_space<smem>>
    %832 = vector.broadcast %831 : f32 to vector<16x16xf32>
    %833 = arith.mulf %685, %832 : vector<16x16xf32>
    %834 = arith.addf %830, %833 : vector<16x16xf32>
    %c25_465 = arith.constant 25 : index
    %c2_466 = arith.constant 2 : index
    %835 = memref.load %arg2[%c25_465, %c2_466] : memref<32x4xf32, #tpu.memory_space<smem>>
    %836 = vector.broadcast %835 : f32 to vector<16x16xf32>
    %837 = arith.mulf %687, %836 : vector<16x16xf32>
    %838 = arith.addf %834, %837 : vector<16x16xf32>
    %c25_467 = arith.constant 25 : index
    %c3_468 = arith.constant 3 : index
    %839 = memref.load %arg2[%c25_467, %c3_468] : memref<32x4xf32, #tpu.memory_space<smem>>
    %840 = vector.broadcast %839 : f32 to vector<16x16xf32>
    %841 = arith.mulf %689, %840 : vector<16x16xf32>
    %842 = arith.addf %838, %841 : vector<16x16xf32>
    %c25_469 = arith.constant 25 : index
    %843 = memref.load %arg3[%c25_469] : memref<32xf32, #tpu.memory_space<smem>>
    %844 = vector.broadcast %843 : f32 to vector<16x16xf32>
    %845 = arith.addf %842, %844 : vector<16x16xf32>
    %cst_470 = arith.constant dense<0.000000e+00> : vector<16x32xf32>
    %846 = tpu.matmul %791, %0, %cst_470 {dimension_numbers = #tpu.dot_dimension_numbers<[1], [0], [0], [1], [0, 0, 1, 1], [], []>} : vector<16x16xf32>, vector<16x32xf32>, vector<16x32xf32> -> vector<16x32xf32>
    %cst_471 = arith.constant dense<0.000000e+00> : vector<16x32xf32>
    %847 = tpu.matmul %809, %1, %cst_471 {dimension_numbers = #tpu.dot_dimension_numbers<[1], [0], [0], [1], [0, 0, 1, 1], [], []>} : vector<16x16xf32>, vector<16x32xf32>, vector<16x32xf32> -> vector<16x32xf32>
    %848 = arith.addf %846, %847 : vector<16x32xf32>
    %cst_472 = arith.constant dense<0.000000e+00> : vector<16x32xf32>
    %849 = tpu.matmul %827, %0, %cst_472 {dimension_numbers = #tpu.dot_dimension_numbers<[1], [0], [0], [1], [0, 0, 1, 1], [], []>} : vector<16x16xf32>, vector<16x32xf32>, vector<16x32xf32> -> vector<16x32xf32>
    %cst_473 = arith.constant dense<0.000000e+00> : vector<16x32xf32>
    %850 = tpu.matmul %845, %1, %cst_473 {dimension_numbers = #tpu.dot_dimension_numbers<[1], [0], [0], [1], [0, 0, 1, 1], [], []>} : vector<16x16xf32>, vector<16x32xf32>, vector<16x32xf32> -> vector<16x32xf32>
    %851 = arith.addf %849, %850 : vector<16x32xf32>
    %c1_474 = arith.constant 1 : index
    %c1_475 = arith.constant 1 : index
    %c0_476 = arith.constant 0 : index
    %c0_477 = arith.constant 0 : index
    %852 = vector.load %arg7[%c1_474, %c1_475, %c0_476, %c0_477] : memref<3x8x16x64xf32, #tpu.memory_space<vmem>>, vector<1x1x16x32xf32>
    %853 = vector.shape_cast %852 : vector<1x1x16x32xf32> to vector<16x32xf32>
    %854 = vector.shape_cast %848 : vector<16x32xf32> to vector<1x1x16x32xf32>
    tpu.vector_store %arg7[%c1_474, %c1_475, %c0_476, %c0_477], %854 {strides = array<i32>} : memref<3x8x16x64xf32, #tpu.memory_space<vmem>>, vector<1x1x16x32xf32>,
    %c1_478 = arith.constant 1 : index
    %c1_479 = arith.constant 1 : index
    %c0_480 = arith.constant 0 : index
    %c32_481 = arith.constant 32 : index
    %855 = vector.load %arg7[%c1_478, %c1_479, %c0_480, %c32_481] : memref<3x8x16x64xf32, #tpu.memory_space<vmem>>, vector<1x1x16x32xf32>
    %856 = vector.shape_cast %855 : vector<1x1x16x32xf32> to vector<16x32xf32>
    %857 = vector.shape_cast %851 : vector<16x32xf32> to vector<1x1x16x32xf32>
    tpu.vector_store %arg7[%c1_478, %c1_479, %c0_480, %c32_481], %857 {strides = array<i32>} : memref<3x8x16x64xf32, #tpu.memory_space<vmem>>, vector<1x1x16x32xf32>,
    %c2_482 = arith.constant 2 : index
    %c0_483 = arith.constant 0 : index
    %858 = memref.load %arg2[%c2_482, %c0_483] : memref<32x4xf32, #tpu.memory_space<smem>>
    %859 = vector.broadcast %858 : f32 to vector<16x16xf32>
    %860 = arith.mulf %683, %859 : vector<16x16xf32>
    %c2_484 = arith.constant 2 : index
    %c1_485 = arith.constant 1 : index
    %861 = memref.load %arg2[%c2_484, %c1_485] : memref<32x4xf32, #tpu.memory_space<smem>>
    %862 = vector.broadcast %861 : f32 to vector<16x16xf32>
    %863 = arith.mulf %685, %862 : vector<16x16xf32>
    %864 = arith.addf %860, %863 : vector<16x16xf32>
    %c2_486 = arith.constant 2 : index
    %c2_487 = arith.constant 2 : index
    %865 = memref.load %arg2[%c2_486, %c2_487] : memref<32x4xf32, #tpu.memory_space<smem>>
    %866 = vector.broadcast %865 : f32 to vector<16x16xf32>
    %867 = arith.mulf %687, %866 : vector<16x16xf32>
    %868 = arith.addf %864, %867 : vector<16x16xf32>
    %c2_488 = arith.constant 2 : index
    %c3_489 = arith.constant 3 : index
    %869 = memref.load %arg2[%c2_488, %c3_489] : memref<32x4xf32, #tpu.memory_space<smem>>
    %870 = vector.broadcast %869 : f32 to vector<16x16xf32>
    %871 = arith.mulf %689, %870 : vector<16x16xf32>
    %872 = arith.addf %868, %871 : vector<16x16xf32>
    %c2_490 = arith.constant 2 : index
    %873 = memref.load %arg3[%c2_490] : memref<32xf32, #tpu.memory_space<smem>>
    %874 = vector.broadcast %873 : f32 to vector<16x16xf32>
    %875 = arith.addf %872, %874 : vector<16x16xf32>
    %c10_491 = arith.constant 10 : index
    %c0_492 = arith.constant 0 : index
    %876 = memref.load %arg2[%c10_491, %c0_492] : memref<32x4xf32, #tpu.memory_space<smem>>
    %877 = vector.broadcast %876 : f32 to vector<16x16xf32>
    %878 = arith.mulf %683, %877 : vector<16x16xf32>
    %c10_493 = arith.constant 10 : index
    %c1_494 = arith.constant 1 : index
    %879 = memref.load %arg2[%c10_493, %c1_494] : memref<32x4xf32, #tpu.memory_space<smem>>
    %880 = vector.broadcast %879 : f32 to vector<16x16xf32>
    %881 = arith.mulf %685, %880 : vector<16x16xf32>
    %882 = arith.addf %878, %881 : vector<16x16xf32>
    %c10_495 = arith.constant 10 : index
    %c2_496 = arith.constant 2 : index
    %883 = memref.load %arg2[%c10_495, %c2_496] : memref<32x4xf32, #tpu.memory_space<smem>>
    %884 = vector.broadcast %883 : f32 to vector<16x16xf32>
    %885 = arith.mulf %687, %884 : vector<16x16xf32>
    %886 = arith.addf %882, %885 : vector<16x16xf32>
    %c10_497 = arith.constant 10 : index
    %c3_498 = arith.constant 3 : index
    %887 = memref.load %arg2[%c10_497, %c3_498] : memref<32x4xf32, #tpu.memory_space<smem>>
    %888 = vector.broadcast %887 : f32 to vector<16x16xf32>
    %889 = arith.mulf %689, %888 : vector<16x16xf32>
    %890 = arith.addf %886, %889 : vector<16x16xf32>
    %c10_499 = arith.constant 10 : index
    %891 = memref.load %arg3[%c10_499] : memref<32xf32, #tpu.memory_space<smem>>
    %892 = vector.broadcast %891 : f32 to vector<16x16xf32>
    %893 = arith.addf %890, %892 : vector<16x16xf32>
    %c18_500 = arith.constant 18 : index
    %c0_501 = arith.constant 0 : index
    %894 = memref.load %arg2[%c18_500, %c0_501] : memref<32x4xf32, #tpu.memory_space<smem>>
    %895 = vector.broadcast %894 : f32 to vector<16x16xf32>
    %896 = arith.mulf %683, %895 : vector<16x16xf32>
    %c18_502 = arith.constant 18 : index
    %c1_503 = arith.constant 1 : index
    %897 = memref.load %arg2[%c18_502, %c1_503] : memref<32x4xf32, #tpu.memory_space<smem>>
    %898 = vector.broadcast %897 : f32 to vector<16x16xf32>
    %899 = arith.mulf %685, %898 : vector<16x16xf32>
    %900 = arith.addf %896, %899 : vector<16x16xf32>
    %c18_504 = arith.constant 18 : index
    %c2_505 = arith.constant 2 : index
    %901 = memref.load %arg2[%c18_504, %c2_505] : memref<32x4xf32, #tpu.memory_space<smem>>
    %902 = vector.broadcast %901 : f32 to vector<16x16xf32>
    %903 = arith.mulf %687, %902 : vector<16x16xf32>
    %904 = arith.addf %900, %903 : vector<16x16xf32>
    %c18_506 = arith.constant 18 : index
    %c3_507 = arith.constant 3 : index
    %905 = memref.load %arg2[%c18_506, %c3_507] : memref<32x4xf32, #tpu.memory_space<smem>>
    %906 = vector.broadcast %905 : f32 to vector<16x16xf32>
    %907 = arith.mulf %689, %906 : vector<16x16xf32>
    %908 = arith.addf %904, %907 : vector<16x16xf32>
    %c18_508 = arith.constant 18 : index
    %909 = memref.load %arg3[%c18_508] : memref<32xf32, #tpu.memory_space<smem>>
    %910 = vector.broadcast %909 : f32 to vector<16x16xf32>
    %911 = arith.addf %908, %910 : vector<16x16xf32>
    %c26_509 = arith.constant 26 : index
    %c0_510 = arith.constant 0 : index
    %912 = memref.load %arg2[%c26_509, %c0_510] : memref<32x4xf32, #tpu.memory_space<smem>>
    %913 = vector.broadcast %912 : f32 to vector<16x16xf32>
    %914 = arith.mulf %683, %913 : vector<16x16xf32>
    %c26_511 = arith.constant 26 : index
    %c1_512 = arith.constant 1 : index
    %915 = memref.load %arg2[%c26_511, %c1_512] : memref<32x4xf32, #tpu.memory_space<smem>>
    %916 = vector.broadcast %915 : f32 to vector<16x16xf32>
    %917 = arith.mulf %685, %916 : vector<16x16xf32>
    %918 = arith.addf %914, %917 : vector<16x16xf32>
    %c26_513 = arith.constant 26 : index
    %c2_514 = arith.constant 2 : index
    %919 = memref.load %arg2[%c26_513, %c2_514] : memref<32x4xf32, #tpu.memory_space<smem>>
    %920 = vector.broadcast %919 : f32 to vector<16x16xf32>
    %921 = arith.mulf %687, %920 : vector<16x16xf32>
    %922 = arith.addf %918, %921 : vector<16x16xf32>
    %c26_515 = arith.constant 26 : index
    %c3_516 = arith.constant 3 : index
    %923 = memref.load %arg2[%c26_515, %c3_516] : memref<32x4xf32, #tpu.memory_space<smem>>
    %924 = vector.broadcast %923 : f32 to vector<16x16xf32>
    %925 = arith.mulf %689, %924 : vector<16x16xf32>
    %926 = arith.addf %922, %925 : vector<16x16xf32>
    %c26_517 = arith.constant 26 : index
    %927 = memref.load %arg3[%c26_517] : memref<32xf32, #tpu.memory_space<smem>>
    %928 = vector.broadcast %927 : f32 to vector<16x16xf32>
    %929 = arith.addf %926, %928 : vector<16x16xf32>
    %cst_518 = arith.constant dense<0.000000e+00> : vector<16x32xf32>
    %930 = tpu.matmul %875, %0, %cst_518 {dimension_numbers = #tpu.dot_dimension_numbers<[1], [0], [0], [1], [0, 0, 1, 1], [], []>} : vector<16x16xf32>, vector<16x32xf32>, vector<16x32xf32> -> vector<16x32xf32>
    %cst_519 = arith.constant dense<0.000000e+00> : vector<16x32xf32>
    %931 = tpu.matmul %893, %1, %cst_519 {dimension_numbers = #tpu.dot_dimension_numbers<[1], [0], [0], [1], [0, 0, 1, 1], [], []>} : vector<16x16xf32>, vector<16x32xf32>, vector<16x32xf32> -> vector<16x32xf32>
    %932 = arith.addf %930, %931 : vector<16x32xf32>
    %cst_520 = arith.constant dense<0.000000e+00> : vector<16x32xf32>
    %933 = tpu.matmul %911, %0, %cst_520 {dimension_numbers = #tpu.dot_dimension_numbers<[1], [0], [0], [1], [0, 0, 1, 1], [], []>} : vector<16x16xf32>, vector<16x32xf32>, vector<16x32xf32> -> vector<16x32xf32>
    %cst_521 = arith.constant dense<0.000000e+00> : vector<16x32xf32>
    %934 = tpu.matmul %929, %1, %cst_521 {dimension_numbers = #tpu.dot_dimension_numbers<[1], [0], [0], [1], [0, 0, 1, 1], [], []>} : vector<16x16xf32>, vector<16x32xf32>, vector<16x32xf32> -> vector<16x32xf32>
    %935 = arith.addf %933, %934 : vector<16x32xf32>
    %c1_522 = arith.constant 1 : index
    %c2_523 = arith.constant 2 : index
    %c0_524 = arith.constant 0 : index
    %c0_525 = arith.constant 0 : index
    %936 = vector.load %arg7[%c1_522, %c2_523, %c0_524, %c0_525] : memref<3x8x16x64xf32, #tpu.memory_space<vmem>>, vector<1x1x16x32xf32>
    %937 = vector.shape_cast %936 : vector<1x1x16x32xf32> to vector<16x32xf32>
    %938 = vector.shape_cast %932 : vector<16x32xf32> to vector<1x1x16x32xf32>
    tpu.vector_store %arg7[%c1_522, %c2_523, %c0_524, %c0_525], %938 {strides = array<i32>} : memref<3x8x16x64xf32, #tpu.memory_space<vmem>>, vector<1x1x16x32xf32>,
    %c1_526 = arith.constant 1 : index
    %c2_527 = arith.constant 2 : index
    %c0_528 = arith.constant 0 : index
    %c32_529 = arith.constant 32 : index
    %939 = vector.load %arg7[%c1_526, %c2_527, %c0_528, %c32_529] : memref<3x8x16x64xf32, #tpu.memory_space<vmem>>, vector<1x1x16x32xf32>
    %940 = vector.shape_cast %939 : vector<1x1x16x32xf32> to vector<16x32xf32>
    %941 = vector.shape_cast %935 : vector<16x32xf32> to vector<1x1x16x32xf32>
    tpu.vector_store %arg7[%c1_526, %c2_527, %c0_528, %c32_529], %941 {strides = array<i32>} : memref<3x8x16x64xf32, #tpu.memory_space<vmem>>, vector<1x1x16x32xf32>,
    %c3_530 = arith.constant 3 : index
    %c0_531 = arith.constant 0 : index
    %942 = memref.load %arg2[%c3_530, %c0_531] : memref<32x4xf32, #tpu.memory_space<smem>>
    %943 = vector.broadcast %942 : f32 to vector<16x16xf32>
    %944 = arith.mulf %683, %943 : vector<16x16xf32>
    %c3_532 = arith.constant 3 : index
    %c1_533 = arith.constant 1 : index
    %945 = memref.load %arg2[%c3_532, %c1_533] : memref<32x4xf32, #tpu.memory_space<smem>>
    %946 = vector.broadcast %945 : f32 to vector<16x16xf32>
    %947 = arith.mulf %685, %946 : vector<16x16xf32>
    %948 = arith.addf %944, %947 : vector<16x16xf32>
    %c3_534 = arith.constant 3 : index
    %c2_535 = arith.constant 2 : index
    %949 = memref.load %arg2[%c3_534, %c2_535] : memref<32x4xf32, #tpu.memory_space<smem>>
    %950 = vector.broadcast %949 : f32 to vector<16x16xf32>
    %951 = arith.mulf %687, %950 : vector<16x16xf32>
    %952 = arith.addf %948, %951 : vector<16x16xf32>
    %c3_536 = arith.constant 3 : index
    %c3_537 = arith.constant 3 : index
    %953 = memref.load %arg2[%c3_536, %c3_537] : memref<32x4xf32, #tpu.memory_space<smem>>
    %954 = vector.broadcast %953 : f32 to vector<16x16xf32>
    %955 = arith.mulf %689, %954 : vector<16x16xf32>
    %956 = arith.addf %952, %955 : vector<16x16xf32>
    %c3_538 = arith.constant 3 : index
    %957 = memref.load %arg3[%c3_538] : memref<32xf32, #tpu.memory_space<smem>>
    %958 = vector.broadcast %957 : f32 to vector<16x16xf32>
    %959 = arith.addf %956, %958 : vector<16x16xf32>
    %c11_539 = arith.constant 11 : index
    %c0_540 = arith.constant 0 : index
    %960 = memref.load %arg2[%c11_539, %c0_540] : memref<32x4xf32, #tpu.memory_space<smem>>
    %961 = vector.broadcast %960 : f32 to vector<16x16xf32>
    %962 = arith.mulf %683, %961 : vector<16x16xf32>
    %c11_541 = arith.constant 11 : index
    %c1_542 = arith.constant 1 : index
    %963 = memref.load %arg2[%c11_541, %c1_542] : memref<32x4xf32, #tpu.memory_space<smem>>
    %964 = vector.broadcast %963 : f32 to vector<16x16xf32>
    %965 = arith.mulf %685, %964 : vector<16x16xf32>
    %966 = arith.addf %962, %965 : vector<16x16xf32>
    %c11_543 = arith.constant 11 : index
    %c2_544 = arith.constant 2 : index
    %967 = memref.load %arg2[%c11_543, %c2_544] : memref<32x4xf32, #tpu.memory_space<smem>>
    %968 = vector.broadcast %967 : f32 to vector<16x16xf32>
    %969 = arith.mulf %687, %968 : vector<16x16xf32>
    %970 = arith.addf %966, %969 : vector<16x16xf32>
    %c11_545 = arith.constant 11 : index
    %c3_546 = arith.constant 3 : index
    %971 = memref.load %arg2[%c11_545, %c3_546] : memref<32x4xf32, #tpu.memory_space<smem>>
    %972 = vector.broadcast %971 : f32 to vector<16x16xf32>
    %973 = arith.mulf %689, %972 : vector<16x16xf32>
    %974 = arith.addf %970, %973 : vector<16x16xf32>
    %c11_547 = arith.constant 11 : index
    %975 = memref.load %arg3[%c11_547] : memref<32xf32, #tpu.memory_space<smem>>
    %976 = vector.broadcast %975 : f32 to vector<16x16xf32>
    %977 = arith.addf %974, %976 : vector<16x16xf32>
    %c19_548 = arith.constant 19 : index
    %c0_549 = arith.constant 0 : index
    %978 = memref.load %arg2[%c19_548, %c0_549] : memref<32x4xf32, #tpu.memory_space<smem>>
    %979 = vector.broadcast %978 : f32 to vector<16x16xf32>
    %980 = arith.mulf %683, %979 : vector<16x16xf32>
    %c19_550 = arith.constant 19 : index
    %c1_551 = arith.constant 1 : index
    %981 = memref.load %arg2[%c19_550, %c1_551] : memref<32x4xf32, #tpu.memory_space<smem>>
    %982 = vector.broadcast %981 : f32 to vector<16x16xf32>
    %983 = arith.mulf %685, %982 : vector<16x16xf32>
    %984 = arith.addf %980, %983 : vector<16x16xf32>
    %c19_552 = arith.constant 19 : index
    %c2_553 = arith.constant 2 : index
    %985 = memref.load %arg2[%c19_552, %c2_553] : memref<32x4xf32, #tpu.memory_space<smem>>
    %986 = vector.broadcast %985 : f32 to vector<16x16xf32>
    %987 = arith.mulf %687, %986 : vector<16x16xf32>
    %988 = arith.addf %984, %987 : vector<16x16xf32>
    %c19_554 = arith.constant 19 : index
    %c3_555 = arith.constant 3 : index
    %989 = memref.load %arg2[%c19_554, %c3_555] : memref<32x4xf32, #tpu.memory_space<smem>>
    %990 = vector.broadcast %989 : f32 to vector<16x16xf32>
    %991 = arith.mulf %689, %990 : vector<16x16xf32>
    %992 = arith.addf %988, %991 : vector<16x16xf32>
    %c19_556 = arith.constant 19 : index
    %993 = memref.load %arg3[%c19_556] : memref<32xf32, #tpu.memory_space<smem>>
    %994 = vector.broadcast %993 : f32 to vector<16x16xf32>
    %995 = arith.addf %992, %994 : vector<16x16xf32>
    %c27_557 = arith.constant 27 : index
    %c0_558 = arith.constant 0 : index
    %996 = memref.load %arg2[%c27_557, %c0_558] : memref<32x4xf32, #tpu.memory_space<smem>>
    %997 = vector.broadcast %996 : f32 to vector<16x16xf32>
    %998 = arith.mulf %683, %997 : vector<16x16xf32>
    %c27_559 = arith.constant 27 : index
    %c1_560 = arith.constant 1 : index
    %999 = memref.load %arg2[%c27_559, %c1_560] : memref<32x4xf32, #tpu.memory_space<smem>>
    %1000 = vector.broadcast %999 : f32 to vector<16x16xf32>
    %1001 = arith.mulf %685, %1000 : vector<16x16xf32>
    %1002 = arith.addf %998, %1001 : vector<16x16xf32>
    %c27_561 = arith.constant 27 : index
    %c2_562 = arith.constant 2 : index
    %1003 = memref.load %arg2[%c27_561, %c2_562] : memref<32x4xf32, #tpu.memory_space<smem>>
    %1004 = vector.broadcast %1003 : f32 to vector<16x16xf32>
    %1005 = arith.mulf %687, %1004 : vector<16x16xf32>
    %1006 = arith.addf %1002, %1005 : vector<16x16xf32>
    %c27_563 = arith.constant 27 : index
    %c3_564 = arith.constant 3 : index
    %1007 = memref.load %arg2[%c27_563, %c3_564] : memref<32x4xf32, #tpu.memory_space<smem>>
    %1008 = vector.broadcast %1007 : f32 to vector<16x16xf32>
    %1009 = arith.mulf %689, %1008 : vector<16x16xf32>
    %1010 = arith.addf %1006, %1009 : vector<16x16xf32>
    %c27_565 = arith.constant 27 : index
    %1011 = memref.load %arg3[%c27_565] : memref<32xf32, #tpu.memory_space<smem>>
    %1012 = vector.broadcast %1011 : f32 to vector<16x16xf32>
    %1013 = arith.addf %1010, %1012 : vector<16x16xf32>
    %cst_566 = arith.constant dense<0.000000e+00> : vector<16x32xf32>
    %1014 = tpu.matmul %959, %0, %cst_566 {dimension_numbers = #tpu.dot_dimension_numbers<[1], [0], [0], [1], [0, 0, 1, 1], [], []>} : vector<16x16xf32>, vector<16x32xf32>, vector<16x32xf32> -> vector<16x32xf32>
    %cst_567 = arith.constant dense<0.000000e+00> : vector<16x32xf32>
    %1015 = tpu.matmul %977, %1, %cst_567 {dimension_numbers = #tpu.dot_dimension_numbers<[1], [0], [0], [1], [0, 0, 1, 1], [], []>} : vector<16x16xf32>, vector<16x32xf32>, vector<16x32xf32> -> vector<16x32xf32>
    %1016 = arith.addf %1014, %1015 : vector<16x32xf32>
    %cst_568 = arith.constant dense<0.000000e+00> : vector<16x32xf32>
    %1017 = tpu.matmul %995, %0, %cst_568 {dimension_numbers = #tpu.dot_dimension_numbers<[1], [0], [0], [1], [0, 0, 1, 1], [], []>} : vector<16x16xf32>, vector<16x32xf32>, vector<16x32xf32> -> vector<16x32xf32>
    %cst_569 = arith.constant dense<0.000000e+00> : vector<16x32xf32>
    %1018 = tpu.matmul %1013, %1, %cst_569 {dimension_numbers = #tpu.dot_dimension_numbers<[1], [0], [0], [1], [0, 0, 1, 1], [], []>} : vector<16x16xf32>, vector<16x32xf32>, vector<16x32xf32> -> vector<16x32xf32>
    %1019 = arith.addf %1017, %1018 : vector<16x32xf32>
    %c1_570 = arith.constant 1 : index
    %c3_571 = arith.constant 3 : index
    %c0_572 = arith.constant 0 : index
    %c0_573 = arith.constant 0 : index
    %1020 = vector.load %arg7[%c1_570, %c3_571, %c0_572, %c0_573] : memref<3x8x16x64xf32, #tpu.memory_space<vmem>>, vector<1x1x16x32xf32>
    %1021 = vector.shape_cast %1020 : vector<1x1x16x32xf32> to vector<16x32xf32>
    %1022 = vector.shape_cast %1016 : vector<16x32xf32> to vector<1x1x16x32xf32>
    tpu.vector_store %arg7[%c1_570, %c3_571, %c0_572, %c0_573], %1022 {strides = array<i32>} : memref<3x8x16x64xf32, #tpu.memory_space<vmem>>, vector<1x1x16x32xf32>,
    %c1_574 = arith.constant 1 : index
    %c3_575 = arith.constant 3 : index
    %c0_576 = arith.constant 0 : index
    %c32_577 = arith.constant 32 : index
    %1023 = vector.load %arg7[%c1_574, %c3_575, %c0_576, %c32_577] : memref<3x8x16x64xf32, #tpu.memory_space<vmem>>, vector<1x1x16x32xf32>
    %1024 = vector.shape_cast %1023 : vector<1x1x16x32xf32> to vector<16x32xf32>
    %1025 = vector.shape_cast %1019 : vector<16x32xf32> to vector<1x1x16x32xf32>
    tpu.vector_store %arg7[%c1_574, %c3_575, %c0_576, %c32_577], %1025 {strides = array<i32>} : memref<3x8x16x64xf32, #tpu.memory_space<vmem>>, vector<1x1x16x32xf32>,
    %c4_578 = arith.constant 4 : index
    %c0_579 = arith.constant 0 : index
    %1026 = memref.load %arg2[%c4_578, %c0_579] : memref<32x4xf32, #tpu.memory_space<smem>>
    %1027 = vector.broadcast %1026 : f32 to vector<16x16xf32>
    %1028 = arith.mulf %683, %1027 : vector<16x16xf32>
    %c4_580 = arith.constant 4 : index
    %c1_581 = arith.constant 1 : index
    %1029 = memref.load %arg2[%c4_580, %c1_581] : memref<32x4xf32, #tpu.memory_space<smem>>
    %1030 = vector.broadcast %1029 : f32 to vector<16x16xf32>
    %1031 = arith.mulf %685, %1030 : vector<16x16xf32>
    %1032 = arith.addf %1028, %1031 : vector<16x16xf32>
    %c4_582 = arith.constant 4 : index
    %c2_583 = arith.constant 2 : index
    %1033 = memref.load %arg2[%c4_582, %c2_583] : memref<32x4xf32, #tpu.memory_space<smem>>
    %1034 = vector.broadcast %1033 : f32 to vector<16x16xf32>
    %1035 = arith.mulf %687, %1034 : vector<16x16xf32>
    %1036 = arith.addf %1032, %1035 : vector<16x16xf32>
    %c4_584 = arith.constant 4 : index
    %c3_585 = arith.constant 3 : index
    %1037 = memref.load %arg2[%c4_584, %c3_585] : memref<32x4xf32, #tpu.memory_space<smem>>
    %1038 = vector.broadcast %1037 : f32 to vector<16x16xf32>
    %1039 = arith.mulf %689, %1038 : vector<16x16xf32>
    %1040 = arith.addf %1036, %1039 : vector<16x16xf32>
    %c4_586 = arith.constant 4 : index
    %1041 = memref.load %arg3[%c4_586] : memref<32xf32, #tpu.memory_space<smem>>
    %1042 = vector.broadcast %1041 : f32 to vector<16x16xf32>
    %1043 = arith.addf %1040, %1042 : vector<16x16xf32>
    %c12_587 = arith.constant 12 : index
    %c0_588 = arith.constant 0 : index
    %1044 = memref.load %arg2[%c12_587, %c0_588] : memref<32x4xf32, #tpu.memory_space<smem>>
    %1045 = vector.broadcast %1044 : f32 to vector<16x16xf32>
    %1046 = arith.mulf %683, %1045 : vector<16x16xf32>
    %c12_589 = arith.constant 12 : index
    %c1_590 = arith.constant 1 : index
    %1047 = memref.load %arg2[%c12_589, %c1_590] : memref<32x4xf32, #tpu.memory_space<smem>>
    %1048 = vector.broadcast %1047 : f32 to vector<16x16xf32>
    %1049 = arith.mulf %685, %1048 : vector<16x16xf32>
    %1050 = arith.addf %1046, %1049 : vector<16x16xf32>
    %c12_591 = arith.constant 12 : index
    %c2_592 = arith.constant 2 : index
    %1051 = memref.load %arg2[%c12_591, %c2_592] : memref<32x4xf32, #tpu.memory_space<smem>>
    %1052 = vector.broadcast %1051 : f32 to vector<16x16xf32>
    %1053 = arith.mulf %687, %1052 : vector<16x16xf32>
    %1054 = arith.addf %1050, %1053 : vector<16x16xf32>
    %c12_593 = arith.constant 12 : index
    %c3_594 = arith.constant 3 : index
    %1055 = memref.load %arg2[%c12_593, %c3_594] : memref<32x4xf32, #tpu.memory_space<smem>>
    %1056 = vector.broadcast %1055 : f32 to vector<16x16xf32>
    %1057 = arith.mulf %689, %1056 : vector<16x16xf32>
    %1058 = arith.addf %1054, %1057 : vector<16x16xf32>
    %c12_595 = arith.constant 12 : index
    %1059 = memref.load %arg3[%c12_595] : memref<32xf32, #tpu.memory_space<smem>>
    %1060 = vector.broadcast %1059 : f32 to vector<16x16xf32>
    %1061 = arith.addf %1058, %1060 : vector<16x16xf32>
    %c20_596 = arith.constant 20 : index
    %c0_597 = arith.constant 0 : index
    %1062 = memref.load %arg2[%c20_596, %c0_597] : memref<32x4xf32, #tpu.memory_space<smem>>
    %1063 = vector.broadcast %1062 : f32 to vector<16x16xf32>
    %1064 = arith.mulf %683, %1063 : vector<16x16xf32>
    %c20_598 = arith.constant 20 : index
    %c1_599 = arith.constant 1 : index
    %1065 = memref.load %arg2[%c20_598, %c1_599] : memref<32x4xf32, #tpu.memory_space<smem>>
    %1066 = vector.broadcast %1065 : f32 to vector<16x16xf32>
    %1067 = arith.mulf %685, %1066 : vector<16x16xf32>
    %1068 = arith.addf %1064, %1067 : vector<16x16xf32>
    %c20_600 = arith.constant 20 : index
    %c2_601 = arith.constant 2 : index
    %1069 = memref.load %arg2[%c20_600, %c2_601] : memref<32x4xf32, #tpu.memory_space<smem>>
    %1070 = vector.broadcast %1069 : f32 to vector<16x16xf32>
    %1071 = arith.mulf %687, %1070 : vector<16x16xf32>
    %1072 = arith.addf %1068, %1071 : vector<16x16xf32>
    %c20_602 = arith.constant 20 : index
    %c3_603 = arith.constant 3 : index
    %1073 = memref.load %arg2[%c20_602, %c3_603] : memref<32x4xf32, #tpu.memory_space<smem>>
    %1074 = vector.broadcast %1073 : f32 to vector<16x16xf32>
    %1075 = arith.mulf %689, %1074 : vector<16x16xf32>
    %1076 = arith.addf %1072, %1075 : vector<16x16xf32>
    %c20_604 = arith.constant 20 : index
    %1077 = memref.load %arg3[%c20_604] : memref<32xf32, #tpu.memory_space<smem>>
    %1078 = vector.broadcast %1077 : f32 to vector<16x16xf32>
    %1079 = arith.addf %1076, %1078 : vector<16x16xf32>
    %c28_605 = arith.constant 28 : index
    %c0_606 = arith.constant 0 : index
    %1080 = memref.load %arg2[%c28_605, %c0_606] : memref<32x4xf32, #tpu.memory_space<smem>>
    %1081 = vector.broadcast %1080 : f32 to vector<16x16xf32>
    %1082 = arith.mulf %683, %1081 : vector<16x16xf32>
    %c28_607 = arith.constant 28 : index
    %c1_608 = arith.constant 1 : index
    %1083 = memref.load %arg2[%c28_607, %c1_608] : memref<32x4xf32, #tpu.memory_space<smem>>
    %1084 = vector.broadcast %1083 : f32 to vector<16x16xf32>
    %1085 = arith.mulf %685, %1084 : vector<16x16xf32>
    %1086 = arith.addf %1082, %1085 : vector<16x16xf32>
    %c28_609 = arith.constant 28 : index
    %c2_610 = arith.constant 2 : index
    %1087 = memref.load %arg2[%c28_609, %c2_610] : memref<32x4xf32, #tpu.memory_space<smem>>
    %1088 = vector.broadcast %1087 : f32 to vector<16x16xf32>
    %1089 = arith.mulf %687, %1088 : vector<16x16xf32>
    %1090 = arith.addf %1086, %1089 : vector<16x16xf32>
    %c28_611 = arith.constant 28 : index
    %c3_612 = arith.constant 3 : index
    %1091 = memref.load %arg2[%c28_611, %c3_612] : memref<32x4xf32, #tpu.memory_space<smem>>
    %1092 = vector.broadcast %1091 : f32 to vector<16x16xf32>
    %1093 = arith.mulf %689, %1092 : vector<16x16xf32>
    %1094 = arith.addf %1090, %1093 : vector<16x16xf32>
    %c28_613 = arith.constant 28 : index
    %1095 = memref.load %arg3[%c28_613] : memref<32xf32, #tpu.memory_space<smem>>
    %1096 = vector.broadcast %1095 : f32 to vector<16x16xf32>
    %1097 = arith.addf %1094, %1096 : vector<16x16xf32>
    %cst_614 = arith.constant dense<0.000000e+00> : vector<16x32xf32>
    %1098 = tpu.matmul %1043, %0, %cst_614 {dimension_numbers = #tpu.dot_dimension_numbers<[1], [0], [0], [1], [0, 0, 1, 1], [], []>} : vector<16x16xf32>, vector<16x32xf32>, vector<16x32xf32> -> vector<16x32xf32>
    %cst_615 = arith.constant dense<0.000000e+00> : vector<16x32xf32>
    %1099 = tpu.matmul %1061, %1, %cst_615 {dimension_numbers = #tpu.dot_dimension_numbers<[1], [0], [0], [1], [0, 0, 1, 1], [], []>} : vector<16x16xf32>, vector<16x32xf32>, vector<16x32xf32> -> vector<16x32xf32>
    %1100 = arith.addf %1098, %1099 : vector<16x32xf32>
    %cst_616 = arith.constant dense<0.000000e+00> : vector<16x32xf32>
    %1101 = tpu.matmul %1079, %0, %cst_616 {dimension_numbers = #tpu.dot_dimension_numbers<[1], [0], [0], [1], [0, 0, 1, 1], [], []>} : vector<16x16xf32>, vector<16x32xf32>, vector<16x32xf32> -> vector<16x32xf32>
    %cst_617 = arith.constant dense<0.000000e+00> : vector<16x32xf32>
    %1102 = tpu.matmul %1097, %1, %cst_617 {dimension_numbers = #tpu.dot_dimension_numbers<[1], [0], [0], [1], [0, 0, 1, 1], [], []>} : vector<16x16xf32>, vector<16x32xf32>, vector<16x32xf32> -> vector<16x32xf32>
    %1103 = arith.addf %1101, %1102 : vector<16x32xf32>
    %c1_618 = arith.constant 1 : index
    %c4_619 = arith.constant 4 : index
    %c0_620 = arith.constant 0 : index
    %c0_621 = arith.constant 0 : index
    %1104 = vector.load %arg7[%c1_618, %c4_619, %c0_620, %c0_621] : memref<3x8x16x64xf32, #tpu.memory_space<vmem>>, vector<1x1x16x32xf32>
    %1105 = vector.shape_cast %1104 : vector<1x1x16x32xf32> to vector<16x32xf32>
    %1106 = vector.shape_cast %1100 : vector<16x32xf32> to vector<1x1x16x32xf32>
    tpu.vector_store %arg7[%c1_618, %c4_619, %c0_620, %c0_621], %1106 {strides = array<i32>} : memref<3x8x16x64xf32, #tpu.memory_space<vmem>>, vector<1x1x16x32xf32>,
    %c1_622 = arith.constant 1 : index
    %c4_623 = arith.constant 4 : index
    %c0_624 = arith.constant 0 : index
    %c32_625 = arith.constant 32 : index
    %1107 = vector.load %arg7[%c1_622, %c4_623, %c0_624, %c32_625] : memref<3x8x16x64xf32, #tpu.memory_space<vmem>>, vector<1x1x16x32xf32>
    %1108 = vector.shape_cast %1107 : vector<1x1x16x32xf32> to vector<16x32xf32>
    %1109 = vector.shape_cast %1103 : vector<16x32xf32> to vector<1x1x16x32xf32>
    tpu.vector_store %arg7[%c1_622, %c4_623, %c0_624, %c32_625], %1109 {strides = array<i32>} : memref<3x8x16x64xf32, #tpu.memory_space<vmem>>, vector<1x1x16x32xf32>,
    %c5_626 = arith.constant 5 : index
    %c0_627 = arith.constant 0 : index
    %1110 = memref.load %arg2[%c5_626, %c0_627] : memref<32x4xf32, #tpu.memory_space<smem>>
    %1111 = vector.broadcast %1110 : f32 to vector<16x16xf32>
    %1112 = arith.mulf %683, %1111 : vector<16x16xf32>
    %c5_628 = arith.constant 5 : index
    %c1_629 = arith.constant 1 : index
    %1113 = memref.load %arg2[%c5_628, %c1_629] : memref<32x4xf32, #tpu.memory_space<smem>>
    %1114 = vector.broadcast %1113 : f32 to vector<16x16xf32>
    %1115 = arith.mulf %685, %1114 : vector<16x16xf32>
    %1116 = arith.addf %1112, %1115 : vector<16x16xf32>
    %c5_630 = arith.constant 5 : index
    %c2_631 = arith.constant 2 : index
    %1117 = memref.load %arg2[%c5_630, %c2_631] : memref<32x4xf32, #tpu.memory_space<smem>>
    %1118 = vector.broadcast %1117 : f32 to vector<16x16xf32>
    %1119 = arith.mulf %687, %1118 : vector<16x16xf32>
    %1120 = arith.addf %1116, %1119 : vector<16x16xf32>
    %c5_632 = arith.constant 5 : index
    %c3_633 = arith.constant 3 : index
    %1121 = memref.load %arg2[%c5_632, %c3_633] : memref<32x4xf32, #tpu.memory_space<smem>>
    %1122 = vector.broadcast %1121 : f32 to vector<16x16xf32>
    %1123 = arith.mulf %689, %1122 : vector<16x16xf32>
    %1124 = arith.addf %1120, %1123 : vector<16x16xf32>
    %c5_634 = arith.constant 5 : index
    %1125 = memref.load %arg3[%c5_634] : memref<32xf32, #tpu.memory_space<smem>>
    %1126 = vector.broadcast %1125 : f32 to vector<16x16xf32>
    %1127 = arith.addf %1124, %1126 : vector<16x16xf32>
    %c13_635 = arith.constant 13 : index
    %c0_636 = arith.constant 0 : index
    %1128 = memref.load %arg2[%c13_635, %c0_636] : memref<32x4xf32, #tpu.memory_space<smem>>
    %1129 = vector.broadcast %1128 : f32 to vector<16x16xf32>
    %1130 = arith.mulf %683, %1129 : vector<16x16xf32>
    %c13_637 = arith.constant 13 : index
    %c1_638 = arith.constant 1 : index
    %1131 = memref.load %arg2[%c13_637, %c1_638] : memref<32x4xf32, #tpu.memory_space<smem>>
    %1132 = vector.broadcast %1131 : f32 to vector<16x16xf32>
    %1133 = arith.mulf %685, %1132 : vector<16x16xf32>
    %1134 = arith.addf %1130, %1133 : vector<16x16xf32>
    %c13_639 = arith.constant 13 : index
    %c2_640 = arith.constant 2 : index
    %1135 = memref.load %arg2[%c13_639, %c2_640] : memref<32x4xf32, #tpu.memory_space<smem>>
    %1136 = vector.broadcast %1135 : f32 to vector<16x16xf32>
    %1137 = arith.mulf %687, %1136 : vector<16x16xf32>
    %1138 = arith.addf %1134, %1137 : vector<16x16xf32>
    %c13_641 = arith.constant 13 : index
    %c3_642 = arith.constant 3 : index
    %1139 = memref.load %arg2[%c13_641, %c3_642] : memref<32x4xf32, #tpu.memory_space<smem>>
    %1140 = vector.broadcast %1139 : f32 to vector<16x16xf32>
    %1141 = arith.mulf %689, %1140 : vector<16x16xf32>
    %1142 = arith.addf %1138, %1141 : vector<16x16xf32>
    %c13_643 = arith.constant 13 : index
    %1143 = memref.load %arg3[%c13_643] : memref<32xf32, #tpu.memory_space<smem>>
    %1144 = vector.broadcast %1143 : f32 to vector<16x16xf32>
    %1145 = arith.addf %1142, %1144 : vector<16x16xf32>
    %c21_644 = arith.constant 21 : index
    %c0_645 = arith.constant 0 : index
    %1146 = memref.load %arg2[%c21_644, %c0_645] : memref<32x4xf32, #tpu.memory_space<smem>>
    %1147 = vector.broadcast %1146 : f32 to vector<16x16xf32>
    %1148 = arith.mulf %683, %1147 : vector<16x16xf32>
    %c21_646 = arith.constant 21 : index
    %c1_647 = arith.constant 1 : index
    %1149 = memref.load %arg2[%c21_646, %c1_647] : memref<32x4xf32, #tpu.memory_space<smem>>
    %1150 = vector.broadcast %1149 : f32 to vector<16x16xf32>
    %1151 = arith.mulf %685, %1150 : vector<16x16xf32>
    %1152 = arith.addf %1148, %1151 : vector<16x16xf32>
    %c21_648 = arith.constant 21 : index
    %c2_649 = arith.constant 2 : index
    %1153 = memref.load %arg2[%c21_648, %c2_649] : memref<32x4xf32, #tpu.memory_space<smem>>
    %1154 = vector.broadcast %1153 : f32 to vector<16x16xf32>
    %1155 = arith.mulf %687, %1154 : vector<16x16xf32>
    %1156 = arith.addf %1152, %1155 : vector<16x16xf32>
    %c21_650 = arith.constant 21 : index
    %c3_651 = arith.constant 3 : index
    %1157 = memref.load %arg2[%c21_650, %c3_651] : memref<32x4xf32, #tpu.memory_space<smem>>
    %1158 = vector.broadcast %1157 : f32 to vector<16x16xf32>
    %1159 = arith.mulf %689, %1158 : vector<16x16xf32>
    %1160 = arith.addf %1156, %1159 : vector<16x16xf32>
    %c21_652 = arith.constant 21 : index
    %1161 = memref.load %arg3[%c21_652] : memref<32xf32, #tpu.memory_space<smem>>
    %1162 = vector.broadcast %1161 : f32 to vector<16x16xf32>
    %1163 = arith.addf %1160, %1162 : vector<16x16xf32>
    %c29_653 = arith.constant 29 : index
    %c0_654 = arith.constant 0 : index
    %1164 = memref.load %arg2[%c29_653, %c0_654] : memref<32x4xf32, #tpu.memory_space<smem>>
    %1165 = vector.broadcast %1164 : f32 to vector<16x16xf32>
    %1166 = arith.mulf %683, %1165 : vector<16x16xf32>
    %c29_655 = arith.constant 29 : index
    %c1_656 = arith.constant 1 : index
    %1167 = memref.load %arg2[%c29_655, %c1_656] : memref<32x4xf32, #tpu.memory_space<smem>>
    %1168 = vector.broadcast %1167 : f32 to vector<16x16xf32>
    %1169 = arith.mulf %685, %1168 : vector<16x16xf32>
    %1170 = arith.addf %1166, %1169 : vector<16x16xf32>
    %c29_657 = arith.constant 29 : index
    %c2_658 = arith.constant 2 : index
    %1171 = memref.load %arg2[%c29_657, %c2_658] : memref<32x4xf32, #tpu.memory_space<smem>>
    %1172 = vector.broadcast %1171 : f32 to vector<16x16xf32>
    %1173 = arith.mulf %687, %1172 : vector<16x16xf32>
    %1174 = arith.addf %1170, %1173 : vector<16x16xf32>
    %c29_659 = arith.constant 29 : index
    %c3_660 = arith.constant 3 : index
    %1175 = memref.load %arg2[%c29_659, %c3_660] : memref<32x4xf32, #tpu.memory_space<smem>>
    %1176 = vector.broadcast %1175 : f32 to vector<16x16xf32>
    %1177 = arith.mulf %689, %1176 : vector<16x16xf32>
    %1178 = arith.addf %1174, %1177 : vector<16x16xf32>
    %c29_661 = arith.constant 29 : index
    %1179 = memref.load %arg3[%c29_661] : memref<32xf32, #tpu.memory_space<smem>>
    %1180 = vector.broadcast %1179 : f32 to vector<16x16xf32>
    %1181 = arith.addf %1178, %1180 : vector<16x16xf32>
    %cst_662 = arith.constant dense<0.000000e+00> : vector<16x32xf32>
    %1182 = tpu.matmul %1127, %0, %cst_662 {dimension_numbers = #tpu.dot_dimension_numbers<[1], [0], [0], [1], [0, 0, 1, 1], [], []>} : vector<16x16xf32>, vector<16x32xf32>, vector<16x32xf32> -> vector<16x32xf32>
    %cst_663 = arith.constant dense<0.000000e+00> : vector<16x32xf32>
    %1183 = tpu.matmul %1145, %1, %cst_663 {dimension_numbers = #tpu.dot_dimension_numbers<[1], [0], [0], [1], [0, 0, 1, 1], [], []>} : vector<16x16xf32>, vector<16x32xf32>, vector<16x32xf32> -> vector<16x32xf32>
    %1184 = arith.addf %1182, %1183 : vector<16x32xf32>
    %cst_664 = arith.constant dense<0.000000e+00> : vector<16x32xf32>
    %1185 = tpu.matmul %1163, %0, %cst_664 {dimension_numbers = #tpu.dot_dimension_numbers<[1], [0], [0], [1], [0, 0, 1, 1], [], []>} : vector<16x16xf32>, vector<16x32xf32>, vector<16x32xf32> -> vector<16x32xf32>
    %cst_665 = arith.constant dense<0.000000e+00> : vector<16x32xf32>
    %1186 = tpu.matmul %1181, %1, %cst_665 {dimension_numbers = #tpu.dot_dimension_numbers<[1], [0], [0], [1], [0, 0, 1, 1], [], []>} : vector<16x16xf32>, vector<16x32xf32>, vector<16x32xf32> -> vector<16x32xf32>
    %1187 = arith.addf %1185, %1186 : vector<16x32xf32>
    %c1_666 = arith.constant 1 : index
    %c5_667 = arith.constant 5 : index
    %c0_668 = arith.constant 0 : index
    %c0_669 = arith.constant 0 : index
    %1188 = vector.load %arg7[%c1_666, %c5_667, %c0_668, %c0_669] : memref<3x8x16x64xf32, #tpu.memory_space<vmem>>, vector<1x1x16x32xf32>
    %1189 = vector.shape_cast %1188 : vector<1x1x16x32xf32> to vector<16x32xf32>
    %1190 = vector.shape_cast %1184 : vector<16x32xf32> to vector<1x1x16x32xf32>
    tpu.vector_store %arg7[%c1_666, %c5_667, %c0_668, %c0_669], %1190 {strides = array<i32>} : memref<3x8x16x64xf32, #tpu.memory_space<vmem>>, vector<1x1x16x32xf32>,
    %c1_670 = arith.constant 1 : index
    %c5_671 = arith.constant 5 : index
    %c0_672 = arith.constant 0 : index
    %c32_673 = arith.constant 32 : index
    %1191 = vector.load %arg7[%c1_670, %c5_671, %c0_672, %c32_673] : memref<3x8x16x64xf32, #tpu.memory_space<vmem>>, vector<1x1x16x32xf32>
    %1192 = vector.shape_cast %1191 : vector<1x1x16x32xf32> to vector<16x32xf32>
    %1193 = vector.shape_cast %1187 : vector<16x32xf32> to vector<1x1x16x32xf32>
    tpu.vector_store %arg7[%c1_670, %c5_671, %c0_672, %c32_673], %1193 {strides = array<i32>} : memref<3x8x16x64xf32, #tpu.memory_space<vmem>>, vector<1x1x16x32xf32>,
    %c6_674 = arith.constant 6 : index
    %c0_675 = arith.constant 0 : index
    %1194 = memref.load %arg2[%c6_674, %c0_675] : memref<32x4xf32, #tpu.memory_space<smem>>
    %1195 = vector.broadcast %1194 : f32 to vector<16x16xf32>
    %1196 = arith.mulf %683, %1195 : vector<16x16xf32>
    %c6_676 = arith.constant 6 : index
    %c1_677 = arith.constant 1 : index
    %1197 = memref.load %arg2[%c6_676, %c1_677] : memref<32x4xf32, #tpu.memory_space<smem>>
    %1198 = vector.broadcast %1197 : f32 to vector<16x16xf32>
    %1199 = arith.mulf %685, %1198 : vector<16x16xf32>
    %1200 = arith.addf %1196, %1199 : vector<16x16xf32>
    %c6_678 = arith.constant 6 : index
    %c2_679 = arith.constant 2 : index
    %1201 = memref.load %arg2[%c6_678, %c2_679] : memref<32x4xf32, #tpu.memory_space<smem>>
    %1202 = vector.broadcast %1201 : f32 to vector<16x16xf32>
    %1203 = arith.mulf %687, %1202 : vector<16x16xf32>
    %1204 = arith.addf %1200, %1203 : vector<16x16xf32>
    %c6_680 = arith.constant 6 : index
    %c3_681 = arith.constant 3 : index
    %1205 = memref.load %arg2[%c6_680, %c3_681] : memref<32x4xf32, #tpu.memory_space<smem>>
    %1206 = vector.broadcast %1205 : f32 to vector<16x16xf32>
    %1207 = arith.mulf %689, %1206 : vector<16x16xf32>
    %1208 = arith.addf %1204, %1207 : vector<16x16xf32>
    %c6_682 = arith.constant 6 : index
    %1209 = memref.load %arg3[%c6_682] : memref<32xf32, #tpu.memory_space<smem>>
    %1210 = vector.broadcast %1209 : f32 to vector<16x16xf32>
    %1211 = arith.addf %1208, %1210 : vector<16x16xf32>
    %c14_683 = arith.constant 14 : index
    %c0_684 = arith.constant 0 : index
    %1212 = memref.load %arg2[%c14_683, %c0_684] : memref<32x4xf32, #tpu.memory_space<smem>>
    %1213 = vector.broadcast %1212 : f32 to vector<16x16xf32>
    %1214 = arith.mulf %683, %1213 : vector<16x16xf32>
    %c14_685 = arith.constant 14 : index
    %c1_686 = arith.constant 1 : index
    %1215 = memref.load %arg2[%c14_685, %c1_686] : memref<32x4xf32, #tpu.memory_space<smem>>
    %1216 = vector.broadcast %1215 : f32 to vector<16x16xf32>
    %1217 = arith.mulf %685, %1216 : vector<16x16xf32>
    %1218 = arith.addf %1214, %1217 : vector<16x16xf32>
    %c14_687 = arith.constant 14 : index
    %c2_688 = arith.constant 2 : index
    %1219 = memref.load %arg2[%c14_687, %c2_688] : memref<32x4xf32, #tpu.memory_space<smem>>
    %1220 = vector.broadcast %1219 : f32 to vector<16x16xf32>
    %1221 = arith.mulf %687, %1220 : vector<16x16xf32>
    %1222 = arith.addf %1218, %1221 : vector<16x16xf32>
    %c14_689 = arith.constant 14 : index
    %c3_690 = arith.constant 3 : index
    %1223 = memref.load %arg2[%c14_689, %c3_690] : memref<32x4xf32, #tpu.memory_space<smem>>
    %1224 = vector.broadcast %1223 : f32 to vector<16x16xf32>
    %1225 = arith.mulf %689, %1224 : vector<16x16xf32>
    %1226 = arith.addf %1222, %1225 : vector<16x16xf32>
    %c14_691 = arith.constant 14 : index
    %1227 = memref.load %arg3[%c14_691] : memref<32xf32, #tpu.memory_space<smem>>
    %1228 = vector.broadcast %1227 : f32 to vector<16x16xf32>
    %1229 = arith.addf %1226, %1228 : vector<16x16xf32>
    %c22_692 = arith.constant 22 : index
    %c0_693 = arith.constant 0 : index
    %1230 = memref.load %arg2[%c22_692, %c0_693] : memref<32x4xf32, #tpu.memory_space<smem>>
    %1231 = vector.broadcast %1230 : f32 to vector<16x16xf32>
    %1232 = arith.mulf %683, %1231 : vector<16x16xf32>
    %c22_694 = arith.constant 22 : index
    %c1_695 = arith.constant 1 : index
    %1233 = memref.load %arg2[%c22_694, %c1_695] : memref<32x4xf32, #tpu.memory_space<smem>>
    %1234 = vector.broadcast %1233 : f32 to vector<16x16xf32>
    %1235 = arith.mulf %685, %1234 : vector<16x16xf32>
    %1236 = arith.addf %1232, %1235 : vector<16x16xf32>
    %c22_696 = arith.constant 22 : index
    %c2_697 = arith.constant 2 : index
    %1237 = memref.load %arg2[%c22_696, %c2_697] : memref<32x4xf32, #tpu.memory_space<smem>>
    %1238 = vector.broadcast %1237 : f32 to vector<16x16xf32>
    %1239 = arith.mulf %687, %1238 : vector<16x16xf32>
    %1240 = arith.addf %1236, %1239 : vector<16x16xf32>
    %c22_698 = arith.constant 22 : index
    %c3_699 = arith.constant 3 : index
    %1241 = memref.load %arg2[%c22_698, %c3_699] : memref<32x4xf32, #tpu.memory_space<smem>>
    %1242 = vector.broadcast %1241 : f32 to vector<16x16xf32>
    %1243 = arith.mulf %689, %1242 : vector<16x16xf32>
    %1244 = arith.addf %1240, %1243 : vector<16x16xf32>
    %c22_700 = arith.constant 22 : index
    %1245 = memref.load %arg3[%c22_700] : memref<32xf32, #tpu.memory_space<smem>>
    %1246 = vector.broadcast %1245 : f32 to vector<16x16xf32>
    %1247 = arith.addf %1244, %1246 : vector<16x16xf32>
    %c30_701 = arith.constant 30 : index
    %c0_702 = arith.constant 0 : index
    %1248 = memref.load %arg2[%c30_701, %c0_702] : memref<32x4xf32, #tpu.memory_space<smem>>
    %1249 = vector.broadcast %1248 : f32 to vector<16x16xf32>
    %1250 = arith.mulf %683, %1249 : vector<16x16xf32>
    %c30_703 = arith.constant 30 : index
    %c1_704 = arith.constant 1 : index
    %1251 = memref.load %arg2[%c30_703, %c1_704] : memref<32x4xf32, #tpu.memory_space<smem>>
    %1252 = vector.broadcast %1251 : f32 to vector<16x16xf32>
    %1253 = arith.mulf %685, %1252 : vector<16x16xf32>
    %1254 = arith.addf %1250, %1253 : vector<16x16xf32>
    %c30_705 = arith.constant 30 : index
    %c2_706 = arith.constant 2 : index
    %1255 = memref.load %arg2[%c30_705, %c2_706] : memref<32x4xf32, #tpu.memory_space<smem>>
    %1256 = vector.broadcast %1255 : f32 to vector<16x16xf32>
    %1257 = arith.mulf %687, %1256 : vector<16x16xf32>
    %1258 = arith.addf %1254, %1257 : vector<16x16xf32>
    %c30_707 = arith.constant 30 : index
    %c3_708 = arith.constant 3 : index
    %1259 = memref.load %arg2[%c30_707, %c3_708] : memref<32x4xf32, #tpu.memory_space<smem>>
    %1260 = vector.broadcast %1259 : f32 to vector<16x16xf32>
    %1261 = arith.mulf %689, %1260 : vector<16x16xf32>
    %1262 = arith.addf %1258, %1261 : vector<16x16xf32>
    %c30_709 = arith.constant 30 : index
    %1263 = memref.load %arg3[%c30_709] : memref<32xf32, #tpu.memory_space<smem>>
    %1264 = vector.broadcast %1263 : f32 to vector<16x16xf32>
    %1265 = arith.addf %1262, %1264 : vector<16x16xf32>
    %cst_710 = arith.constant dense<0.000000e+00> : vector<16x32xf32>
    %1266 = tpu.matmul %1211, %0, %cst_710 {dimension_numbers = #tpu.dot_dimension_numbers<[1], [0], [0], [1], [0, 0, 1, 1], [], []>} : vector<16x16xf32>, vector<16x32xf32>, vector<16x32xf32> -> vector<16x32xf32>
    %cst_711 = arith.constant dense<0.000000e+00> : vector<16x32xf32>
    %1267 = tpu.matmul %1229, %1, %cst_711 {dimension_numbers = #tpu.dot_dimension_numbers<[1], [0], [0], [1], [0, 0, 1, 1], [], []>} : vector<16x16xf32>, vector<16x32xf32>, vector<16x32xf32> -> vector<16x32xf32>
    %1268 = arith.addf %1266, %1267 : vector<16x32xf32>
    %cst_712 = arith.constant dense<0.000000e+00> : vector<16x32xf32>
    %1269 = tpu.matmul %1247, %0, %cst_712 {dimension_numbers = #tpu.dot_dimension_numbers<[1], [0], [0], [1], [0, 0, 1, 1], [], []>} : vector<16x16xf32>, vector<16x32xf32>, vector<16x32xf32> -> vector<16x32xf32>
    %cst_713 = arith.constant dense<0.000000e+00> : vector<16x32xf32>
    %1270 = tpu.matmul %1265, %1, %cst_713 {dimension_numbers = #tpu.dot_dimension_numbers<[1], [0], [0], [1], [0, 0, 1, 1], [], []>} : vector<16x16xf32>, vector<16x32xf32>, vector<16x32xf32> -> vector<16x32xf32>
    %1271 = arith.addf %1269, %1270 : vector<16x32xf32>
    %c1_714 = arith.constant 1 : index
    %c6_715 = arith.constant 6 : index
    %c0_716 = arith.constant 0 : index
    %c0_717 = arith.constant 0 : index
    %1272 = vector.load %arg7[%c1_714, %c6_715, %c0_716, %c0_717] : memref<3x8x16x64xf32, #tpu.memory_space<vmem>>, vector<1x1x16x32xf32>
    %1273 = vector.shape_cast %1272 : vector<1x1x16x32xf32> to vector<16x32xf32>
    %1274 = vector.shape_cast %1268 : vector<16x32xf32> to vector<1x1x16x32xf32>
    tpu.vector_store %arg7[%c1_714, %c6_715, %c0_716, %c0_717], %1274 {strides = array<i32>} : memref<3x8x16x64xf32, #tpu.memory_space<vmem>>, vector<1x1x16x32xf32>,
    %c1_718 = arith.constant 1 : index
    %c6_719 = arith.constant 6 : index
    %c0_720 = arith.constant 0 : index
    %c32_721 = arith.constant 32 : index
    %1275 = vector.load %arg7[%c1_718, %c6_719, %c0_720, %c32_721] : memref<3x8x16x64xf32, #tpu.memory_space<vmem>>, vector<1x1x16x32xf32>
    %1276 = vector.shape_cast %1275 : vector<1x1x16x32xf32> to vector<16x32xf32>
    %1277 = vector.shape_cast %1271 : vector<16x32xf32> to vector<1x1x16x32xf32>
    tpu.vector_store %arg7[%c1_718, %c6_719, %c0_720, %c32_721], %1277 {strides = array<i32>} : memref<3x8x16x64xf32, #tpu.memory_space<vmem>>, vector<1x1x16x32xf32>,
    %c7_722 = arith.constant 7 : index
    %c0_723 = arith.constant 0 : index
    %1278 = memref.load %arg2[%c7_722, %c0_723] : memref<32x4xf32, #tpu.memory_space<smem>>
    %1279 = vector.broadcast %1278 : f32 to vector<16x16xf32>
    %1280 = arith.mulf %683, %1279 : vector<16x16xf32>
    %c7_724 = arith.constant 7 : index
    %c1_725 = arith.constant 1 : index
    %1281 = memref.load %arg2[%c7_724, %c1_725] : memref<32x4xf32, #tpu.memory_space<smem>>
    %1282 = vector.broadcast %1281 : f32 to vector<16x16xf32>
    %1283 = arith.mulf %685, %1282 : vector<16x16xf32>
    %1284 = arith.addf %1280, %1283 : vector<16x16xf32>
    %c7_726 = arith.constant 7 : index
    %c2_727 = arith.constant 2 : index
    %1285 = memref.load %arg2[%c7_726, %c2_727] : memref<32x4xf32, #tpu.memory_space<smem>>
    %1286 = vector.broadcast %1285 : f32 to vector<16x16xf32>
    %1287 = arith.mulf %687, %1286 : vector<16x16xf32>
    %1288 = arith.addf %1284, %1287 : vector<16x16xf32>
    %c7_728 = arith.constant 7 : index
    %c3_729 = arith.constant 3 : index
    %1289 = memref.load %arg2[%c7_728, %c3_729] : memref<32x4xf32, #tpu.memory_space<smem>>
    %1290 = vector.broadcast %1289 : f32 to vector<16x16xf32>
    %1291 = arith.mulf %689, %1290 : vector<16x16xf32>
    %1292 = arith.addf %1288, %1291 : vector<16x16xf32>
    %c7_730 = arith.constant 7 : index
    %1293 = memref.load %arg3[%c7_730] : memref<32xf32, #tpu.memory_space<smem>>
    %1294 = vector.broadcast %1293 : f32 to vector<16x16xf32>
    %1295 = arith.addf %1292, %1294 : vector<16x16xf32>
    %c15_731 = arith.constant 15 : index
    %c0_732 = arith.constant 0 : index
    %1296 = memref.load %arg2[%c15_731, %c0_732] : memref<32x4xf32, #tpu.memory_space<smem>>
    %1297 = vector.broadcast %1296 : f32 to vector<16x16xf32>
    %1298 = arith.mulf %683, %1297 : vector<16x16xf32>
    %c15_733 = arith.constant 15 : index
    %c1_734 = arith.constant 1 : index
    %1299 = memref.load %arg2[%c15_733, %c1_734] : memref<32x4xf32, #tpu.memory_space<smem>>
    %1300 = vector.broadcast %1299 : f32 to vector<16x16xf32>
    %1301 = arith.mulf %685, %1300 : vector<16x16xf32>
    %1302 = arith.addf %1298, %1301 : vector<16x16xf32>
    %c15_735 = arith.constant 15 : index
    %c2_736 = arith.constant 2 : index
    %1303 = memref.load %arg2[%c15_735, %c2_736] : memref<32x4xf32, #tpu.memory_space<smem>>
    %1304 = vector.broadcast %1303 : f32 to vector<16x16xf32>
    %1305 = arith.mulf %687, %1304 : vector<16x16xf32>
    %1306 = arith.addf %1302, %1305 : vector<16x16xf32>
    %c15_737 = arith.constant 15 : index
    %c3_738 = arith.constant 3 : index
    %1307 = memref.load %arg2[%c15_737, %c3_738] : memref<32x4xf32, #tpu.memory_space<smem>>
    %1308 = vector.broadcast %1307 : f32 to vector<16x16xf32>
    %1309 = arith.mulf %689, %1308 : vector<16x16xf32>
    %1310 = arith.addf %1306, %1309 : vector<16x16xf32>
    %c15_739 = arith.constant 15 : index
    %1311 = memref.load %arg3[%c15_739] : memref<32xf32, #tpu.memory_space<smem>>
    %1312 = vector.broadcast %1311 : f32 to vector<16x16xf32>
    %1313 = arith.addf %1310, %1312 : vector<16x16xf32>
    %c23_740 = arith.constant 23 : index
    %c0_741 = arith.constant 0 : index
    %1314 = memref.load %arg2[%c23_740, %c0_741] : memref<32x4xf32, #tpu.memory_space<smem>>
    %1315 = vector.broadcast %1314 : f32 to vector<16x16xf32>
    %1316 = arith.mulf %683, %1315 : vector<16x16xf32>
    %c23_742 = arith.constant 23 : index
    %c1_743 = arith.constant 1 : index
    %1317 = memref.load %arg2[%c23_742, %c1_743] : memref<32x4xf32, #tpu.memory_space<smem>>
    %1318 = vector.broadcast %1317 : f32 to vector<16x16xf32>
    %1319 = arith.mulf %685, %1318 : vector<16x16xf32>
    %1320 = arith.addf %1316, %1319 : vector<16x16xf32>
    %c23_744 = arith.constant 23 : index
    %c2_745 = arith.constant 2 : index
    %1321 = memref.load %arg2[%c23_744, %c2_745] : memref<32x4xf32, #tpu.memory_space<smem>>
    %1322 = vector.broadcast %1321 : f32 to vector<16x16xf32>
    %1323 = arith.mulf %687, %1322 : vector<16x16xf32>
    %1324 = arith.addf %1320, %1323 : vector<16x16xf32>
    %c23_746 = arith.constant 23 : index
    %c3_747 = arith.constant 3 : index
    %1325 = memref.load %arg2[%c23_746, %c3_747] : memref<32x4xf32, #tpu.memory_space<smem>>
    %1326 = vector.broadcast %1325 : f32 to vector<16x16xf32>
    %1327 = arith.mulf %689, %1326 : vector<16x16xf32>
    %1328 = arith.addf %1324, %1327 : vector<16x16xf32>
    %c23_748 = arith.constant 23 : index
    %1329 = memref.load %arg3[%c23_748] : memref<32xf32, #tpu.memory_space<smem>>
    %1330 = vector.broadcast %1329 : f32 to vector<16x16xf32>
    %1331 = arith.addf %1328, %1330 : vector<16x16xf32>
    %c31_749 = arith.constant 31 : index
    %c0_750 = arith.constant 0 : index
    %1332 = memref.load %arg2[%c31_749, %c0_750] : memref<32x4xf32, #tpu.memory_space<smem>>
    %1333 = vector.broadcast %1332 : f32 to vector<16x16xf32>
    %1334 = arith.mulf %683, %1333 : vector<16x16xf32>
    %c31_751 = arith.constant 31 : index
    %c1_752 = arith.constant 1 : index
    %1335 = memref.load %arg2[%c31_751, %c1_752] : memref<32x4xf32, #tpu.memory_space<smem>>
    %1336 = vector.broadcast %1335 : f32 to vector<16x16xf32>
    %1337 = arith.mulf %685, %1336 : vector<16x16xf32>
    %1338 = arith.addf %1334, %1337 : vector<16x16xf32>
    %c31_753 = arith.constant 31 : index
    %c2_754 = arith.constant 2 : index
    %1339 = memref.load %arg2[%c31_753, %c2_754] : memref<32x4xf32, #tpu.memory_space<smem>>
    %1340 = vector.broadcast %1339 : f32 to vector<16x16xf32>
    %1341 = arith.mulf %687, %1340 : vector<16x16xf32>
    %1342 = arith.addf %1338, %1341 : vector<16x16xf32>
    %c31_755 = arith.constant 31 : index
    %c3_756 = arith.constant 3 : index
    %1343 = memref.load %arg2[%c31_755, %c3_756] : memref<32x4xf32, #tpu.memory_space<smem>>
    %1344 = vector.broadcast %1343 : f32 to vector<16x16xf32>
    %1345 = arith.mulf %689, %1344 : vector<16x16xf32>
    %1346 = arith.addf %1342, %1345 : vector<16x16xf32>
    %c31_757 = arith.constant 31 : index
    %1347 = memref.load %arg3[%c31_757] : memref<32xf32, #tpu.memory_space<smem>>
    %1348 = vector.broadcast %1347 : f32 to vector<16x16xf32>
    %1349 = arith.addf %1346, %1348 : vector<16x16xf32>
    %cst_758 = arith.constant dense<0.000000e+00> : vector<16x32xf32>
    %1350 = tpu.matmul %1295, %0, %cst_758 {dimension_numbers = #tpu.dot_dimension_numbers<[1], [0], [0], [1], [0, 0, 1, 1], [], []>} : vector<16x16xf32>, vector<16x32xf32>, vector<16x32xf32> -> vector<16x32xf32>
    %cst_759 = arith.constant dense<0.000000e+00> : vector<16x32xf32>
    %1351 = tpu.matmul %1313, %1, %cst_759 {dimension_numbers = #tpu.dot_dimension_numbers<[1], [0], [0], [1], [0, 0, 1, 1], [], []>} : vector<16x16xf32>, vector<16x32xf32>, vector<16x32xf32> -> vector<16x32xf32>
    %1352 = arith.addf %1350, %1351 : vector<16x32xf32>
    %cst_760 = arith.constant dense<0.000000e+00> : vector<16x32xf32>
    %1353 = tpu.matmul %1331, %0, %cst_760 {dimension_numbers = #tpu.dot_dimension_numbers<[1], [0], [0], [1], [0, 0, 1, 1], [], []>} : vector<16x16xf32>, vector<16x32xf32>, vector<16x32xf32> -> vector<16x32xf32>
    %cst_761 = arith.constant dense<0.000000e+00> : vector<16x32xf32>
    %1354 = tpu.matmul %1349, %1, %cst_761 {dimension_numbers = #tpu.dot_dimension_numbers<[1], [0], [0], [1], [0, 0, 1, 1], [], []>} : vector<16x16xf32>, vector<16x32xf32>, vector<16x32xf32> -> vector<16x32xf32>
    %1355 = arith.addf %1353, %1354 : vector<16x32xf32>
    %c1_762 = arith.constant 1 : index
    %c7_763 = arith.constant 7 : index
    %c0_764 = arith.constant 0 : index
    %c0_765 = arith.constant 0 : index
    %1356 = vector.load %arg7[%c1_762, %c7_763, %c0_764, %c0_765] : memref<3x8x16x64xf32, #tpu.memory_space<vmem>>, vector<1x1x16x32xf32>
    %1357 = vector.shape_cast %1356 : vector<1x1x16x32xf32> to vector<16x32xf32>
    %1358 = vector.shape_cast %1352 : vector<16x32xf32> to vector<1x1x16x32xf32>
    tpu.vector_store %arg7[%c1_762, %c7_763, %c0_764, %c0_765], %1358 {strides = array<i32>} : memref<3x8x16x64xf32, #tpu.memory_space<vmem>>, vector<1x1x16x32xf32>,
    %c1_766 = arith.constant 1 : index
    %c7_767 = arith.constant 7 : index
    %c0_768 = arith.constant 0 : index
    %c32_769 = arith.constant 32 : index
    %1359 = vector.load %arg7[%c1_766, %c7_767, %c0_768, %c32_769] : memref<3x8x16x64xf32, #tpu.memory_space<vmem>>, vector<1x1x16x32xf32>
    %1360 = vector.shape_cast %1359 : vector<1x1x16x32xf32> to vector<16x32xf32>
    %1361 = vector.shape_cast %1355 : vector<16x32xf32> to vector<1x1x16x32xf32>
    tpu.vector_store %arg7[%c1_766, %c7_767, %c0_768, %c32_769], %1361 {strides = array<i32>} : memref<3x8x16x64xf32, #tpu.memory_space<vmem>>, vector<1x1x16x32xf32>,
    %c2_770 = arith.constant 2 : index
    %c0_771 = arith.constant 0 : index
    %c0_772 = arith.constant 0 : index
    %c0_773 = arith.constant 0 : index
    %1362 = vector.load %arg6[%c2_770, %c0_771, %c0_772, %c0_773] : memref<3x4x16x16xf32, #tpu.memory_space<vmem>>, vector<1x1x16x16xf32>
    %1363 = vector.shape_cast %1362 : vector<1x1x16x16xf32> to vector<16x16xf32>
    %c2_774 = arith.constant 2 : index
    %c1_775 = arith.constant 1 : index
    %c0_776 = arith.constant 0 : index
    %c0_777 = arith.constant 0 : index
    %1364 = vector.load %arg6[%c2_774, %c1_775, %c0_776, %c0_777] : memref<3x4x16x16xf32, #tpu.memory_space<vmem>>, vector<1x1x16x16xf32>
    %1365 = vector.shape_cast %1364 : vector<1x1x16x16xf32> to vector<16x16xf32>
    %c2_778 = arith.constant 2 : index
    %c2_779 = arith.constant 2 : index
    %c0_780 = arith.constant 0 : index
    %c0_781 = arith.constant 0 : index
    %1366 = vector.load %arg6[%c2_778, %c2_779, %c0_780, %c0_781] : memref<3x4x16x16xf32, #tpu.memory_space<vmem>>, vector<1x1x16x16xf32>
    %1367 = vector.shape_cast %1366 : vector<1x1x16x16xf32> to vector<16x16xf32>
    %c2_782 = arith.constant 2 : index
    %c3_783 = arith.constant 3 : index
    %c0_784 = arith.constant 0 : index
    %c0_785 = arith.constant 0 : index
    %1368 = vector.load %arg6[%c2_782, %c3_783, %c0_784, %c0_785] : memref<3x4x16x16xf32, #tpu.memory_space<vmem>>, vector<1x1x16x16xf32>
    %1369 = vector.shape_cast %1368 : vector<1x1x16x16xf32> to vector<16x16xf32>
    %c0_786 = arith.constant 0 : index
    %c0_787 = arith.constant 0 : index
    %1370 = memref.load %arg2[%c0_786, %c0_787] : memref<32x4xf32, #tpu.memory_space<smem>>
    %1371 = vector.broadcast %1370 : f32 to vector<16x16xf32>
    %1372 = arith.mulf %1363, %1371 : vector<16x16xf32>
    %c0_788 = arith.constant 0 : index
    %c1_789 = arith.constant 1 : index
    %1373 = memref.load %arg2[%c0_788, %c1_789] : memref<32x4xf32, #tpu.memory_space<smem>>
    %1374 = vector.broadcast %1373 : f32 to vector<16x16xf32>
    %1375 = arith.mulf %1365, %1374 : vector<16x16xf32>
    %1376 = arith.addf %1372, %1375 : vector<16x16xf32>
    %c0_790 = arith.constant 0 : index
    %c2_791 = arith.constant 2 : index
    %1377 = memref.load %arg2[%c0_790, %c2_791] : memref<32x4xf32, #tpu.memory_space<smem>>
    %1378 = vector.broadcast %1377 : f32 to vector<16x16xf32>
    %1379 = arith.mulf %1367, %1378 : vector<16x16xf32>
    %1380 = arith.addf %1376, %1379 : vector<16x16xf32>
    %c0_792 = arith.constant 0 : index
    %c3_793 = arith.constant 3 : index
    %1381 = memref.load %arg2[%c0_792, %c3_793] : memref<32x4xf32, #tpu.memory_space<smem>>
    %1382 = vector.broadcast %1381 : f32 to vector<16x16xf32>
    %1383 = arith.mulf %1369, %1382 : vector<16x16xf32>
    %1384 = arith.addf %1380, %1383 : vector<16x16xf32>
    %c0_794 = arith.constant 0 : index
    %1385 = memref.load %arg3[%c0_794] : memref<32xf32, #tpu.memory_space<smem>>
    %1386 = vector.broadcast %1385 : f32 to vector<16x16xf32>
    %1387 = arith.addf %1384, %1386 : vector<16x16xf32>
    %c8_795 = arith.constant 8 : index
    %c0_796 = arith.constant 0 : index
    %1388 = memref.load %arg2[%c8_795, %c0_796] : memref<32x4xf32, #tpu.memory_space<smem>>
    %1389 = vector.broadcast %1388 : f32 to vector<16x16xf32>
    %1390 = arith.mulf %1363, %1389 : vector<16x16xf32>
    %c8_797 = arith.constant 8 : index
    %c1_798 = arith.constant 1 : index
    %1391 = memref.load %arg2[%c8_797, %c1_798] : memref<32x4xf32, #tpu.memory_space<smem>>
    %1392 = vector.broadcast %1391 : f32 to vector<16x16xf32>
    %1393 = arith.mulf %1365, %1392 : vector<16x16xf32>
    %1394 = arith.addf %1390, %1393 : vector<16x16xf32>
    %c8_799 = arith.constant 8 : index
    %c2_800 = arith.constant 2 : index
    %1395 = memref.load %arg2[%c8_799, %c2_800] : memref<32x4xf32, #tpu.memory_space<smem>>
    %1396 = vector.broadcast %1395 : f32 to vector<16x16xf32>
    %1397 = arith.mulf %1367, %1396 : vector<16x16xf32>
    %1398 = arith.addf %1394, %1397 : vector<16x16xf32>
    %c8_801 = arith.constant 8 : index
    %c3_802 = arith.constant 3 : index
    %1399 = memref.load %arg2[%c8_801, %c3_802] : memref<32x4xf32, #tpu.memory_space<smem>>
    %1400 = vector.broadcast %1399 : f32 to vector<16x16xf32>
    %1401 = arith.mulf %1369, %1400 : vector<16x16xf32>
    %1402 = arith.addf %1398, %1401 : vector<16x16xf32>
    %c8_803 = arith.constant 8 : index
    %1403 = memref.load %arg3[%c8_803] : memref<32xf32, #tpu.memory_space<smem>>
    %1404 = vector.broadcast %1403 : f32 to vector<16x16xf32>
    %1405 = arith.addf %1402, %1404 : vector<16x16xf32>
    %c16_804 = arith.constant 16 : index
    %c0_805 = arith.constant 0 : index
    %1406 = memref.load %arg2[%c16_804, %c0_805] : memref<32x4xf32, #tpu.memory_space<smem>>
    %1407 = vector.broadcast %1406 : f32 to vector<16x16xf32>
    %1408 = arith.mulf %1363, %1407 : vector<16x16xf32>
    %c16_806 = arith.constant 16 : index
    %c1_807 = arith.constant 1 : index
    %1409 = memref.load %arg2[%c16_806, %c1_807] : memref<32x4xf32, #tpu.memory_space<smem>>
    %1410 = vector.broadcast %1409 : f32 to vector<16x16xf32>
    %1411 = arith.mulf %1365, %1410 : vector<16x16xf32>
    %1412 = arith.addf %1408, %1411 : vector<16x16xf32>
    %c16_808 = arith.constant 16 : index
    %c2_809 = arith.constant 2 : index
    %1413 = memref.load %arg2[%c16_808, %c2_809] : memref<32x4xf32, #tpu.memory_space<smem>>
    %1414 = vector.broadcast %1413 : f32 to vector<16x16xf32>
    %1415 = arith.mulf %1367, %1414 : vector<16x16xf32>
    %1416 = arith.addf %1412, %1415 : vector<16x16xf32>
    %c16_810 = arith.constant 16 : index
    %c3_811 = arith.constant 3 : index
    %1417 = memref.load %arg2[%c16_810, %c3_811] : memref<32x4xf32, #tpu.memory_space<smem>>
    %1418 = vector.broadcast %1417 : f32 to vector<16x16xf32>
    %1419 = arith.mulf %1369, %1418 : vector<16x16xf32>
    %1420 = arith.addf %1416, %1419 : vector<16x16xf32>
    %c16_812 = arith.constant 16 : index
    %1421 = memref.load %arg3[%c16_812] : memref<32xf32, #tpu.memory_space<smem>>
    %1422 = vector.broadcast %1421 : f32 to vector<16x16xf32>
    %1423 = arith.addf %1420, %1422 : vector<16x16xf32>
    %c24_813 = arith.constant 24 : index
    %c0_814 = arith.constant 0 : index
    %1424 = memref.load %arg2[%c24_813, %c0_814] : memref<32x4xf32, #tpu.memory_space<smem>>
    %1425 = vector.broadcast %1424 : f32 to vector<16x16xf32>
    %1426 = arith.mulf %1363, %1425 : vector<16x16xf32>
    %c24_815 = arith.constant 24 : index
    %c1_816 = arith.constant 1 : index
    %1427 = memref.load %arg2[%c24_815, %c1_816] : memref<32x4xf32, #tpu.memory_space<smem>>
    %1428 = vector.broadcast %1427 : f32 to vector<16x16xf32>
    %1429 = arith.mulf %1365, %1428 : vector<16x16xf32>
    %1430 = arith.addf %1426, %1429 : vector<16x16xf32>
    %c24_817 = arith.constant 24 : index
    %c2_818 = arith.constant 2 : index
    %1431 = memref.load %arg2[%c24_817, %c2_818] : memref<32x4xf32, #tpu.memory_space<smem>>
    %1432 = vector.broadcast %1431 : f32 to vector<16x16xf32>
    %1433 = arith.mulf %1367, %1432 : vector<16x16xf32>
    %1434 = arith.addf %1430, %1433 : vector<16x16xf32>
    %c24_819 = arith.constant 24 : index
    %c3_820 = arith.constant 3 : index
    %1435 = memref.load %arg2[%c24_819, %c3_820] : memref<32x4xf32, #tpu.memory_space<smem>>
    %1436 = vector.broadcast %1435 : f32 to vector<16x16xf32>
    %1437 = arith.mulf %1369, %1436 : vector<16x16xf32>
    %1438 = arith.addf %1434, %1437 : vector<16x16xf32>
    %c24_821 = arith.constant 24 : index
    %1439 = memref.load %arg3[%c24_821] : memref<32xf32, #tpu.memory_space<smem>>
    %1440 = vector.broadcast %1439 : f32 to vector<16x16xf32>
    %1441 = arith.addf %1438, %1440 : vector<16x16xf32>
    %cst_822 = arith.constant dense<0.000000e+00> : vector<16x32xf32>
    %1442 = tpu.matmul %1387, %0, %cst_822 {dimension_numbers = #tpu.dot_dimension_numbers<[1], [0], [0], [1], [0, 0, 1, 1], [], []>} : vector<16x16xf32>, vector<16x32xf32>, vector<16x32xf32> -> vector<16x32xf32>
    %cst_823 = arith.constant dense<0.000000e+00> : vector<16x32xf32>
    %1443 = tpu.matmul %1405, %1, %cst_823 {dimension_numbers = #tpu.dot_dimension_numbers<[1], [0], [0], [1], [0, 0, 1, 1], [], []>} : vector<16x16xf32>, vector<16x32xf32>, vector<16x32xf32> -> vector<16x32xf32>
    %1444 = arith.addf %1442, %1443 : vector<16x32xf32>
    %cst_824 = arith.constant dense<0.000000e+00> : vector<16x32xf32>
    %1445 = tpu.matmul %1423, %0, %cst_824 {dimension_numbers = #tpu.dot_dimension_numbers<[1], [0], [0], [1], [0, 0, 1, 1], [], []>} : vector<16x16xf32>, vector<16x32xf32>, vector<16x32xf32> -> vector<16x32xf32>
    %cst_825 = arith.constant dense<0.000000e+00> : vector<16x32xf32>
    %1446 = tpu.matmul %1441, %1, %cst_825 {dimension_numbers = #tpu.dot_dimension_numbers<[1], [0], [0], [1], [0, 0, 1, 1], [], []>} : vector<16x16xf32>, vector<16x32xf32>, vector<16x32xf32> -> vector<16x32xf32>
    %1447 = arith.addf %1445, %1446 : vector<16x32xf32>
    %c2_826 = arith.constant 2 : index
    %c0_827 = arith.constant 0 : index
    %c0_828 = arith.constant 0 : index
    %c0_829 = arith.constant 0 : index
    %1448 = vector.load %arg7[%c2_826, %c0_827, %c0_828, %c0_829] : memref<3x8x16x64xf32, #tpu.memory_space<vmem>>, vector<1x1x16x32xf32>
    %1449 = vector.shape_cast %1448 : vector<1x1x16x32xf32> to vector<16x32xf32>
    %1450 = vector.shape_cast %1444 : vector<16x32xf32> to vector<1x1x16x32xf32>
    tpu.vector_store %arg7[%c2_826, %c0_827, %c0_828, %c0_829], %1450 {strides = array<i32>} : memref<3x8x16x64xf32, #tpu.memory_space<vmem>>, vector<1x1x16x32xf32>,
    %c2_830 = arith.constant 2 : index
    %c0_831 = arith.constant 0 : index
    %c0_832 = arith.constant 0 : index
    %c32_833 = arith.constant 32 : index
    %1451 = vector.load %arg7[%c2_830, %c0_831, %c0_832, %c32_833] : memref<3x8x16x64xf32, #tpu.memory_space<vmem>>, vector<1x1x16x32xf32>
    %1452 = vector.shape_cast %1451 : vector<1x1x16x32xf32> to vector<16x32xf32>
    %1453 = vector.shape_cast %1447 : vector<16x32xf32> to vector<1x1x16x32xf32>
    tpu.vector_store %arg7[%c2_830, %c0_831, %c0_832, %c32_833], %1453 {strides = array<i32>} : memref<3x8x16x64xf32, #tpu.memory_space<vmem>>, vector<1x1x16x32xf32>,
    %c1_834 = arith.constant 1 : index
    %c0_835 = arith.constant 0 : index
    %1454 = memref.load %arg2[%c1_834, %c0_835] : memref<32x4xf32, #tpu.memory_space<smem>>
    %1455 = vector.broadcast %1454 : f32 to vector<16x16xf32>
    %1456 = arith.mulf %1363, %1455 : vector<16x16xf32>
    %c1_836 = arith.constant 1 : index
    %c1_837 = arith.constant 1 : index
    %1457 = memref.load %arg2[%c1_836, %c1_837] : memref<32x4xf32, #tpu.memory_space<smem>>
    %1458 = vector.broadcast %1457 : f32 to vector<16x16xf32>
    %1459 = arith.mulf %1365, %1458 : vector<16x16xf32>
    %1460 = arith.addf %1456, %1459 : vector<16x16xf32>
    %c1_838 = arith.constant 1 : index
    %c2_839 = arith.constant 2 : index
    %1461 = memref.load %arg2[%c1_838, %c2_839] : memref<32x4xf32, #tpu.memory_space<smem>>
    %1462 = vector.broadcast %1461 : f32 to vector<16x16xf32>
    %1463 = arith.mulf %1367, %1462 : vector<16x16xf32>
    %1464 = arith.addf %1460, %1463 : vector<16x16xf32>
    %c1_840 = arith.constant 1 : index
    %c3_841 = arith.constant 3 : index
    %1465 = memref.load %arg2[%c1_840, %c3_841] : memref<32x4xf32, #tpu.memory_space<smem>>
    %1466 = vector.broadcast %1465 : f32 to vector<16x16xf32>
    %1467 = arith.mulf %1369, %1466 : vector<16x16xf32>
    %1468 = arith.addf %1464, %1467 : vector<16x16xf32>
    %c1_842 = arith.constant 1 : index
    %1469 = memref.load %arg3[%c1_842] : memref<32xf32, #tpu.memory_space<smem>>
    %1470 = vector.broadcast %1469 : f32 to vector<16x16xf32>
    %1471 = arith.addf %1468, %1470 : vector<16x16xf32>
    %c9_843 = arith.constant 9 : index
    %c0_844 = arith.constant 0 : index
    %1472 = memref.load %arg2[%c9_843, %c0_844] : memref<32x4xf32, #tpu.memory_space<smem>>
    %1473 = vector.broadcast %1472 : f32 to vector<16x16xf32>
    %1474 = arith.mulf %1363, %1473 : vector<16x16xf32>
    %c9_845 = arith.constant 9 : index
    %c1_846 = arith.constant 1 : index
    %1475 = memref.load %arg2[%c9_845, %c1_846] : memref<32x4xf32, #tpu.memory_space<smem>>
    %1476 = vector.broadcast %1475 : f32 to vector<16x16xf32>
    %1477 = arith.mulf %1365, %1476 : vector<16x16xf32>
    %1478 = arith.addf %1474, %1477 : vector<16x16xf32>
    %c9_847 = arith.constant 9 : index
    %c2_848 = arith.constant 2 : index
    %1479 = memref.load %arg2[%c9_847, %c2_848] : memref<32x4xf32, #tpu.memory_space<smem>>
    %1480 = vector.broadcast %1479 : f32 to vector<16x16xf32>
    %1481 = arith.mulf %1367, %1480 : vector<16x16xf32>
    %1482 = arith.addf %1478, %1481 : vector<16x16xf32>
    %c9_849 = arith.constant 9 : index
    %c3_850 = arith.constant 3 : index
    %1483 = memref.load %arg2[%c9_849, %c3_850] : memref<32x4xf32, #tpu.memory_space<smem>>
    %1484 = vector.broadcast %1483 : f32 to vector<16x16xf32>
    %1485 = arith.mulf %1369, %1484 : vector<16x16xf32>
    %1486 = arith.addf %1482, %1485 : vector<16x16xf32>
    %c9_851 = arith.constant 9 : index
    %1487 = memref.load %arg3[%c9_851] : memref<32xf32, #tpu.memory_space<smem>>
    %1488 = vector.broadcast %1487 : f32 to vector<16x16xf32>
    %1489 = arith.addf %1486, %1488 : vector<16x16xf32>
    %c17_852 = arith.constant 17 : index
    %c0_853 = arith.constant 0 : index
    %1490 = memref.load %arg2[%c17_852, %c0_853] : memref<32x4xf32, #tpu.memory_space<smem>>
    %1491 = vector.broadcast %1490 : f32 to vector<16x16xf32>
    %1492 = arith.mulf %1363, %1491 : vector<16x16xf32>
    %c17_854 = arith.constant 17 : index
    %c1_855 = arith.constant 1 : index
    %1493 = memref.load %arg2[%c17_854, %c1_855] : memref<32x4xf32, #tpu.memory_space<smem>>
    %1494 = vector.broadcast %1493 : f32 to vector<16x16xf32>
    %1495 = arith.mulf %1365, %1494 : vector<16x16xf32>
    %1496 = arith.addf %1492, %1495 : vector<16x16xf32>
    %c17_856 = arith.constant 17 : index
    %c2_857 = arith.constant 2 : index
    %1497 = memref.load %arg2[%c17_856, %c2_857] : memref<32x4xf32, #tpu.memory_space<smem>>
    %1498 = vector.broadcast %1497 : f32 to vector<16x16xf32>
    %1499 = arith.mulf %1367, %1498 : vector<16x16xf32>
    %1500 = arith.addf %1496, %1499 : vector<16x16xf32>
    %c17_858 = arith.constant 17 : index
    %c3_859 = arith.constant 3 : index
    %1501 = memref.load %arg2[%c17_858, %c3_859] : memref<32x4xf32, #tpu.memory_space<smem>>
    %1502 = vector.broadcast %1501 : f32 to vector<16x16xf32>
    %1503 = arith.mulf %1369, %1502 : vector<16x16xf32>
    %1504 = arith.addf %1500, %1503 : vector<16x16xf32>
    %c17_860 = arith.constant 17 : index
    %1505 = memref.load %arg3[%c17_860] : memref<32xf32, #tpu.memory_space<smem>>
    %1506 = vector.broadcast %1505 : f32 to vector<16x16xf32>
    %1507 = arith.addf %1504, %1506 : vector<16x16xf32>
    %c25_861 = arith.constant 25 : index
    %c0_862 = arith.constant 0 : index
    %1508 = memref.load %arg2[%c25_861, %c0_862] : memref<32x4xf32, #tpu.memory_space<smem>>
    %1509 = vector.broadcast %1508 : f32 to vector<16x16xf32>
    %1510 = arith.mulf %1363, %1509 : vector<16x16xf32>
    %c25_863 = arith.constant 25 : index
    %c1_864 = arith.constant 1 : index
    %1511 = memref.load %arg2[%c25_863, %c1_864] : memref<32x4xf32, #tpu.memory_space<smem>>
    %1512 = vector.broadcast %1511 : f32 to vector<16x16xf32>
    %1513 = arith.mulf %1365, %1512 : vector<16x16xf32>
    %1514 = arith.addf %1510, %1513 : vector<16x16xf32>
    %c25_865 = arith.constant 25 : index
    %c2_866 = arith.constant 2 : index
    %1515 = memref.load %arg2[%c25_865, %c2_866] : memref<32x4xf32, #tpu.memory_space<smem>>
    %1516 = vector.broadcast %1515 : f32 to vector<16x16xf32>
    %1517 = arith.mulf %1367, %1516 : vector<16x16xf32>
    %1518 = arith.addf %1514, %1517 : vector<16x16xf32>
    %c25_867 = arith.constant 25 : index
    %c3_868 = arith.constant 3 : index
    %1519 = memref.load %arg2[%c25_867, %c3_868] : memref<32x4xf32, #tpu.memory_space<smem>>
    %1520 = vector.broadcast %1519 : f32 to vector<16x16xf32>
    %1521 = arith.mulf %1369, %1520 : vector<16x16xf32>
    %1522 = arith.addf %1518, %1521 : vector<16x16xf32>
    %c25_869 = arith.constant 25 : index
    %1523 = memref.load %arg3[%c25_869] : memref<32xf32, #tpu.memory_space<smem>>
    %1524 = vector.broadcast %1523 : f32 to vector<16x16xf32>
    %1525 = arith.addf %1522, %1524 : vector<16x16xf32>
    %cst_870 = arith.constant dense<0.000000e+00> : vector<16x32xf32>
    %1526 = tpu.matmul %1471, %0, %cst_870 {dimension_numbers = #tpu.dot_dimension_numbers<[1], [0], [0], [1], [0, 0, 1, 1], [], []>} : vector<16x16xf32>, vector<16x32xf32>, vector<16x32xf32> -> vector<16x32xf32>
    %cst_871 = arith.constant dense<0.000000e+00> : vector<16x32xf32>
    %1527 = tpu.matmul %1489, %1, %cst_871 {dimension_numbers = #tpu.dot_dimension_numbers<[1], [0], [0], [1], [0, 0, 1, 1], [], []>} : vector<16x16xf32>, vector<16x32xf32>, vector<16x32xf32> -> vector<16x32xf32>
    %1528 = arith.addf %1526, %1527 : vector<16x32xf32>
    %cst_872 = arith.constant dense<0.000000e+00> : vector<16x32xf32>
    %1529 = tpu.matmul %1507, %0, %cst_872 {dimension_numbers = #tpu.dot_dimension_numbers<[1], [0], [0], [1], [0, 0, 1, 1], [], []>} : vector<16x16xf32>, vector<16x32xf32>, vector<16x32xf32> -> vector<16x32xf32>
    %cst_873 = arith.constant dense<0.000000e+00> : vector<16x32xf32>
    %1530 = tpu.matmul %1525, %1, %cst_873 {dimension_numbers = #tpu.dot_dimension_numbers<[1], [0], [0], [1], [0, 0, 1, 1], [], []>} : vector<16x16xf32>, vector<16x32xf32>, vector<16x32xf32> -> vector<16x32xf32>
    %1531 = arith.addf %1529, %1530 : vector<16x32xf32>
    %c2_874 = arith.constant 2 : index
    %c1_875 = arith.constant 1 : index
    %c0_876 = arith.constant 0 : index
    %c0_877 = arith.constant 0 : index
    %1532 = vector.load %arg7[%c2_874, %c1_875, %c0_876, %c0_877] : memref<3x8x16x64xf32, #tpu.memory_space<vmem>>, vector<1x1x16x32xf32>
    %1533 = vector.shape_cast %1532 : vector<1x1x16x32xf32> to vector<16x32xf32>
    %1534 = vector.shape_cast %1528 : vector<16x32xf32> to vector<1x1x16x32xf32>
    tpu.vector_store %arg7[%c2_874, %c1_875, %c0_876, %c0_877], %1534 {strides = array<i32>} : memref<3x8x16x64xf32, #tpu.memory_space<vmem>>, vector<1x1x16x32xf32>,
    %c2_878 = arith.constant 2 : index
    %c1_879 = arith.constant 1 : index
    %c0_880 = arith.constant 0 : index
    %c32_881 = arith.constant 32 : index
    %1535 = vector.load %arg7[%c2_878, %c1_879, %c0_880, %c32_881] : memref<3x8x16x64xf32, #tpu.memory_space<vmem>>, vector<1x1x16x32xf32>
    %1536 = vector.shape_cast %1535 : vector<1x1x16x32xf32> to vector<16x32xf32>
    %1537 = vector.shape_cast %1531 : vector<16x32xf32> to vector<1x1x16x32xf32>
    tpu.vector_store %arg7[%c2_878, %c1_879, %c0_880, %c32_881], %1537 {strides = array<i32>} : memref<3x8x16x64xf32, #tpu.memory_space<vmem>>, vector<1x1x16x32xf32>,
    %c2_882 = arith.constant 2 : index
    %c0_883 = arith.constant 0 : index
    %1538 = memref.load %arg2[%c2_882, %c0_883] : memref<32x4xf32, #tpu.memory_space<smem>>
    %1539 = vector.broadcast %1538 : f32 to vector<16x16xf32>
    %1540 = arith.mulf %1363, %1539 : vector<16x16xf32>
    %c2_884 = arith.constant 2 : index
    %c1_885 = arith.constant 1 : index
    %1541 = memref.load %arg2[%c2_884, %c1_885] : memref<32x4xf32, #tpu.memory_space<smem>>
    %1542 = vector.broadcast %1541 : f32 to vector<16x16xf32>
    %1543 = arith.mulf %1365, %1542 : vector<16x16xf32>
    %1544 = arith.addf %1540, %1543 : vector<16x16xf32>
    %c2_886 = arith.constant 2 : index
    %c2_887 = arith.constant 2 : index
    %1545 = memref.load %arg2[%c2_886, %c2_887] : memref<32x4xf32, #tpu.memory_space<smem>>
    %1546 = vector.broadcast %1545 : f32 to vector<16x16xf32>
    %1547 = arith.mulf %1367, %1546 : vector<16x16xf32>
    %1548 = arith.addf %1544, %1547 : vector<16x16xf32>
    %c2_888 = arith.constant 2 : index
    %c3_889 = arith.constant 3 : index
    %1549 = memref.load %arg2[%c2_888, %c3_889] : memref<32x4xf32, #tpu.memory_space<smem>>
    %1550 = vector.broadcast %1549 : f32 to vector<16x16xf32>
    %1551 = arith.mulf %1369, %1550 : vector<16x16xf32>
    %1552 = arith.addf %1548, %1551 : vector<16x16xf32>
    %c2_890 = arith.constant 2 : index
    %1553 = memref.load %arg3[%c2_890] : memref<32xf32, #tpu.memory_space<smem>>
    %1554 = vector.broadcast %1553 : f32 to vector<16x16xf32>
    %1555 = arith.addf %1552, %1554 : vector<16x16xf32>
    %c10_891 = arith.constant 10 : index
    %c0_892 = arith.constant 0 : index
    %1556 = memref.load %arg2[%c10_891, %c0_892] : memref<32x4xf32, #tpu.memory_space<smem>>
    %1557 = vector.broadcast %1556 : f32 to vector<16x16xf32>
    %1558 = arith.mulf %1363, %1557 : vector<16x16xf32>
    %c10_893 = arith.constant 10 : index
    %c1_894 = arith.constant 1 : index
    %1559 = memref.load %arg2[%c10_893, %c1_894] : memref<32x4xf32, #tpu.memory_space<smem>>
    %1560 = vector.broadcast %1559 : f32 to vector<16x16xf32>
    %1561 = arith.mulf %1365, %1560 : vector<16x16xf32>
    %1562 = arith.addf %1558, %1561 : vector<16x16xf32>
    %c10_895 = arith.constant 10 : index
    %c2_896 = arith.constant 2 : index
    %1563 = memref.load %arg2[%c10_895, %c2_896] : memref<32x4xf32, #tpu.memory_space<smem>>
    %1564 = vector.broadcast %1563 : f32 to vector<16x16xf32>
    %1565 = arith.mulf %1367, %1564 : vector<16x16xf32>
    %1566 = arith.addf %1562, %1565 : vector<16x16xf32>
    %c10_897 = arith.constant 10 : index
    %c3_898 = arith.constant 3 : index
    %1567 = memref.load %arg2[%c10_897, %c3_898] : memref<32x4xf32, #tpu.memory_space<smem>>
    %1568 = vector.broadcast %1567 : f32 to vector<16x16xf32>
    %1569 = arith.mulf %1369, %1568 : vector<16x16xf32>
    %1570 = arith.addf %1566, %1569 : vector<16x16xf32>
    %c10_899 = arith.constant 10 : index
    %1571 = memref.load %arg3[%c10_899] : memref<32xf32, #tpu.memory_space<smem>>
    %1572 = vector.broadcast %1571 : f32 to vector<16x16xf32>
    %1573 = arith.addf %1570, %1572 : vector<16x16xf32>
    %c18_900 = arith.constant 18 : index
    %c0_901 = arith.constant 0 : index
    %1574 = memref.load %arg2[%c18_900, %c0_901] : memref<32x4xf32, #tpu.memory_space<smem>>
    %1575 = vector.broadcast %1574 : f32 to vector<16x16xf32>
    %1576 = arith.mulf %1363, %1575 : vector<16x16xf32>
    %c18_902 = arith.constant 18 : index
    %c1_903 = arith.constant 1 : index
    %1577 = memref.load %arg2[%c18_902, %c1_903] : memref<32x4xf32, #tpu.memory_space<smem>>
    %1578 = vector.broadcast %1577 : f32 to vector<16x16xf32>
    %1579 = arith.mulf %1365, %1578 : vector<16x16xf32>
    %1580 = arith.addf %1576, %1579 : vector<16x16xf32>
    %c18_904 = arith.constant 18 : index
    %c2_905 = arith.constant 2 : index
    %1581 = memref.load %arg2[%c18_904, %c2_905] : memref<32x4xf32, #tpu.memory_space<smem>>
    %1582 = vector.broadcast %1581 : f32 to vector<16x16xf32>
    %1583 = arith.mulf %1367, %1582 : vector<16x16xf32>
    %1584 = arith.addf %1580, %1583 : vector<16x16xf32>
    %c18_906 = arith.constant 18 : index
    %c3_907 = arith.constant 3 : index
    %1585 = memref.load %arg2[%c18_906, %c3_907] : memref<32x4xf32, #tpu.memory_space<smem>>
    %1586 = vector.broadcast %1585 : f32 to vector<16x16xf32>
    %1587 = arith.mulf %1369, %1586 : vector<16x16xf32>
    %1588 = arith.addf %1584, %1587 : vector<16x16xf32>
    %c18_908 = arith.constant 18 : index
    %1589 = memref.load %arg3[%c18_908] : memref<32xf32, #tpu.memory_space<smem>>
    %1590 = vector.broadcast %1589 : f32 to vector<16x16xf32>
    %1591 = arith.addf %1588, %1590 : vector<16x16xf32>
    %c26_909 = arith.constant 26 : index
    %c0_910 = arith.constant 0 : index
    %1592 = memref.load %arg2[%c26_909, %c0_910] : memref<32x4xf32, #tpu.memory_space<smem>>
    %1593 = vector.broadcast %1592 : f32 to vector<16x16xf32>
    %1594 = arith.mulf %1363, %1593 : vector<16x16xf32>
    %c26_911 = arith.constant 26 : index
    %c1_912 = arith.constant 1 : index
    %1595 = memref.load %arg2[%c26_911, %c1_912] : memref<32x4xf32, #tpu.memory_space<smem>>
    %1596 = vector.broadcast %1595 : f32 to vector<16x16xf32>
    %1597 = arith.mulf %1365, %1596 : vector<16x16xf32>
    %1598 = arith.addf %1594, %1597 : vector<16x16xf32>
    %c26_913 = arith.constant 26 : index
    %c2_914 = arith.constant 2 : index
    %1599 = memref.load %arg2[%c26_913, %c2_914] : memref<32x4xf32, #tpu.memory_space<smem>>
    %1600 = vector.broadcast %1599 : f32 to vector<16x16xf32>
    %1601 = arith.mulf %1367, %1600 : vector<16x16xf32>
    %1602 = arith.addf %1598, %1601 : vector<16x16xf32>
    %c26_915 = arith.constant 26 : index
    %c3_916 = arith.constant 3 : index
    %1603 = memref.load %arg2[%c26_915, %c3_916] : memref<32x4xf32, #tpu.memory_space<smem>>
    %1604 = vector.broadcast %1603 : f32 to vector<16x16xf32>
    %1605 = arith.mulf %1369, %1604 : vector<16x16xf32>
    %1606 = arith.addf %1602, %1605 : vector<16x16xf32>
    %c26_917 = arith.constant 26 : index
    %1607 = memref.load %arg3[%c26_917] : memref<32xf32, #tpu.memory_space<smem>>
    %1608 = vector.broadcast %1607 : f32 to vector<16x16xf32>
    %1609 = arith.addf %1606, %1608 : vector<16x16xf32>
    %cst_918 = arith.constant dense<0.000000e+00> : vector<16x32xf32>
    %1610 = tpu.matmul %1555, %0, %cst_918 {dimension_numbers = #tpu.dot_dimension_numbers<[1], [0], [0], [1], [0, 0, 1, 1], [], []>} : vector<16x16xf32>, vector<16x32xf32>, vector<16x32xf32> -> vector<16x32xf32>
    %cst_919 = arith.constant dense<0.000000e+00> : vector<16x32xf32>
    %1611 = tpu.matmul %1573, %1, %cst_919 {dimension_numbers = #tpu.dot_dimension_numbers<[1], [0], [0], [1], [0, 0, 1, 1], [], []>} : vector<16x16xf32>, vector<16x32xf32>, vector<16x32xf32> -> vector<16x32xf32>
    %1612 = arith.addf %1610, %1611 : vector<16x32xf32>
    %cst_920 = arith.constant dense<0.000000e+00> : vector<16x32xf32>
    %1613 = tpu.matmul %1591, %0, %cst_920 {dimension_numbers = #tpu.dot_dimension_numbers<[1], [0], [0], [1], [0, 0, 1, 1], [], []>} : vector<16x16xf32>, vector<16x32xf32>, vector<16x32xf32> -> vector<16x32xf32>
    %cst_921 = arith.constant dense<0.000000e+00> : vector<16x32xf32>
    %1614 = tpu.matmul %1609, %1, %cst_921 {dimension_numbers = #tpu.dot_dimension_numbers<[1], [0], [0], [1], [0, 0, 1, 1], [], []>} : vector<16x16xf32>, vector<16x32xf32>, vector<16x32xf32> -> vector<16x32xf32>
    %1615 = arith.addf %1613, %1614 : vector<16x32xf32>
    %c2_922 = arith.constant 2 : index
    %c2_923 = arith.constant 2 : index
    %c0_924 = arith.constant 0 : index
    %c0_925 = arith.constant 0 : index
    %1616 = vector.load %arg7[%c2_922, %c2_923, %c0_924, %c0_925] : memref<3x8x16x64xf32, #tpu.memory_space<vmem>>, vector<1x1x16x32xf32>
    %1617 = vector.shape_cast %1616 : vector<1x1x16x32xf32> to vector<16x32xf32>
    %1618 = vector.shape_cast %1612 : vector<16x32xf32> to vector<1x1x16x32xf32>
    tpu.vector_store %arg7[%c2_922, %c2_923, %c0_924, %c0_925], %1618 {strides = array<i32>} : memref<3x8x16x64xf32, #tpu.memory_space<vmem>>, vector<1x1x16x32xf32>,
    %c2_926 = arith.constant 2 : index
    %c2_927 = arith.constant 2 : index
    %c0_928 = arith.constant 0 : index
    %c32_929 = arith.constant 32 : index
    %1619 = vector.load %arg7[%c2_926, %c2_927, %c0_928, %c32_929] : memref<3x8x16x64xf32, #tpu.memory_space<vmem>>, vector<1x1x16x32xf32>
    %1620 = vector.shape_cast %1619 : vector<1x1x16x32xf32> to vector<16x32xf32>
    %1621 = vector.shape_cast %1615 : vector<16x32xf32> to vector<1x1x16x32xf32>
    tpu.vector_store %arg7[%c2_926, %c2_927, %c0_928, %c32_929], %1621 {strides = array<i32>} : memref<3x8x16x64xf32, #tpu.memory_space<vmem>>, vector<1x1x16x32xf32>,
    %c3_930 = arith.constant 3 : index
    %c0_931 = arith.constant 0 : index
    %1622 = memref.load %arg2[%c3_930, %c0_931] : memref<32x4xf32, #tpu.memory_space<smem>>
    %1623 = vector.broadcast %1622 : f32 to vector<16x16xf32>
    %1624 = arith.mulf %1363, %1623 : vector<16x16xf32>
    %c3_932 = arith.constant 3 : index
    %c1_933 = arith.constant 1 : index
    %1625 = memref.load %arg2[%c3_932, %c1_933] : memref<32x4xf32, #tpu.memory_space<smem>>
    %1626 = vector.broadcast %1625 : f32 to vector<16x16xf32>
    %1627 = arith.mulf %1365, %1626 : vector<16x16xf32>
    %1628 = arith.addf %1624, %1627 : vector<16x16xf32>
    %c3_934 = arith.constant 3 : index
    %c2_935 = arith.constant 2 : index
    %1629 = memref.load %arg2[%c3_934, %c2_935] : memref<32x4xf32, #tpu.memory_space<smem>>
    %1630 = vector.broadcast %1629 : f32 to vector<16x16xf32>
    %1631 = arith.mulf %1367, %1630 : vector<16x16xf32>
    %1632 = arith.addf %1628, %1631 : vector<16x16xf32>
    %c3_936 = arith.constant 3 : index
    %c3_937 = arith.constant 3 : index
    %1633 = memref.load %arg2[%c3_936, %c3_937] : memref<32x4xf32, #tpu.memory_space<smem>>
    %1634 = vector.broadcast %1633 : f32 to vector<16x16xf32>
    %1635 = arith.mulf %1369, %1634 : vector<16x16xf32>
    %1636 = arith.addf %1632, %1635 : vector<16x16xf32>
    %c3_938 = arith.constant 3 : index
    %1637 = memref.load %arg3[%c3_938] : memref<32xf32, #tpu.memory_space<smem>>
    %1638 = vector.broadcast %1637 : f32 to vector<16x16xf32>
    %1639 = arith.addf %1636, %1638 : vector<16x16xf32>
    %c11_939 = arith.constant 11 : index
    %c0_940 = arith.constant 0 : index
    %1640 = memref.load %arg2[%c11_939, %c0_940] : memref<32x4xf32, #tpu.memory_space<smem>>
    %1641 = vector.broadcast %1640 : f32 to vector<16x16xf32>
    %1642 = arith.mulf %1363, %1641 : vector<16x16xf32>
    %c11_941 = arith.constant 11 : index
    %c1_942 = arith.constant 1 : index
    %1643 = memref.load %arg2[%c11_941, %c1_942] : memref<32x4xf32, #tpu.memory_space<smem>>
    %1644 = vector.broadcast %1643 : f32 to vector<16x16xf32>
    %1645 = arith.mulf %1365, %1644 : vector<16x16xf32>
    %1646 = arith.addf %1642, %1645 : vector<16x16xf32>
    %c11_943 = arith.constant 11 : index
    %c2_944 = arith.constant 2 : index
    %1647 = memref.load %arg2[%c11_943, %c2_944] : memref<32x4xf32, #tpu.memory_space<smem>>
    %1648 = vector.broadcast %1647 : f32 to vector<16x16xf32>
    %1649 = arith.mulf %1367, %1648 : vector<16x16xf32>
    %1650 = arith.addf %1646, %1649 : vector<16x16xf32>
    %c11_945 = arith.constant 11 : index
    %c3_946 = arith.constant 3 : index
    %1651 = memref.load %arg2[%c11_945, %c3_946] : memref<32x4xf32, #tpu.memory_space<smem>>
    %1652 = vector.broadcast %1651 : f32 to vector<16x16xf32>
    %1653 = arith.mulf %1369, %1652 : vector<16x16xf32>
    %1654 = arith.addf %1650, %1653 : vector<16x16xf32>
    %c11_947 = arith.constant 11 : index
    %1655 = memref.load %arg3[%c11_947] : memref<32xf32, #tpu.memory_space<smem>>
    %1656 = vector.broadcast %1655 : f32 to vector<16x16xf32>
    %1657 = arith.addf %1654, %1656 : vector<16x16xf32>
    %c19_948 = arith.constant 19 : index
    %c0_949 = arith.constant 0 : index
    %1658 = memref.load %arg2[%c19_948, %c0_949] : memref<32x4xf32, #tpu.memory_space<smem>>
    %1659 = vector.broadcast %1658 : f32 to vector<16x16xf32>
    %1660 = arith.mulf %1363, %1659 : vector<16x16xf32>
    %c19_950 = arith.constant 19 : index
    %c1_951 = arith.constant 1 : index
    %1661 = memref.load %arg2[%c19_950, %c1_951] : memref<32x4xf32, #tpu.memory_space<smem>>
    %1662 = vector.broadcast %1661 : f32 to vector<16x16xf32>
    %1663 = arith.mulf %1365, %1662 : vector<16x16xf32>
    %1664 = arith.addf %1660, %1663 : vector<16x16xf32>
    %c19_952 = arith.constant 19 : index
    %c2_953 = arith.constant 2 : index
    %1665 = memref.load %arg2[%c19_952, %c2_953] : memref<32x4xf32, #tpu.memory_space<smem>>
    %1666 = vector.broadcast %1665 : f32 to vector<16x16xf32>
    %1667 = arith.mulf %1367, %1666 : vector<16x16xf32>
    %1668 = arith.addf %1664, %1667 : vector<16x16xf32>
    %c19_954 = arith.constant 19 : index
    %c3_955 = arith.constant 3 : index
    %1669 = memref.load %arg2[%c19_954, %c3_955] : memref<32x4xf32, #tpu.memory_space<smem>>
    %1670 = vector.broadcast %1669 : f32 to vector<16x16xf32>
    %1671 = arith.mulf %1369, %1670 : vector<16x16xf32>
    %1672 = arith.addf %1668, %1671 : vector<16x16xf32>
    %c19_956 = arith.constant 19 : index
    %1673 = memref.load %arg3[%c19_956] : memref<32xf32, #tpu.memory_space<smem>>
    %1674 = vector.broadcast %1673 : f32 to vector<16x16xf32>
    %1675 = arith.addf %1672, %1674 : vector<16x16xf32>
    %c27_957 = arith.constant 27 : index
    %c0_958 = arith.constant 0 : index
    %1676 = memref.load %arg2[%c27_957, %c0_958] : memref<32x4xf32, #tpu.memory_space<smem>>
    %1677 = vector.broadcast %1676 : f32 to vector<16x16xf32>
    %1678 = arith.mulf %1363, %1677 : vector<16x16xf32>
    %c27_959 = arith.constant 27 : index
    %c1_960 = arith.constant 1 : index
    %1679 = memref.load %arg2[%c27_959, %c1_960] : memref<32x4xf32, #tpu.memory_space<smem>>
    %1680 = vector.broadcast %1679 : f32 to vector<16x16xf32>
    %1681 = arith.mulf %1365, %1680 : vector<16x16xf32>
    %1682 = arith.addf %1678, %1681 : vector<16x16xf32>
    %c27_961 = arith.constant 27 : index
    %c2_962 = arith.constant 2 : index
    %1683 = memref.load %arg2[%c27_961, %c2_962] : memref<32x4xf32, #tpu.memory_space<smem>>
    %1684 = vector.broadcast %1683 : f32 to vector<16x16xf32>
    %1685 = arith.mulf %1367, %1684 : vector<16x16xf32>
    %1686 = arith.addf %1682, %1685 : vector<16x16xf32>
    %c27_963 = arith.constant 27 : index
    %c3_964 = arith.constant 3 : index
    %1687 = memref.load %arg2[%c27_963, %c3_964] : memref<32x4xf32, #tpu.memory_space<smem>>
    %1688 = vector.broadcast %1687 : f32 to vector<16x16xf32>
    %1689 = arith.mulf %1369, %1688 : vector<16x16xf32>
    %1690 = arith.addf %1686, %1689 : vector<16x16xf32>
    %c27_965 = arith.constant 27 : index
    %1691 = memref.load %arg3[%c27_965] : memref<32xf32, #tpu.memory_space<smem>>
    %1692 = vector.broadcast %1691 : f32 to vector<16x16xf32>
    %1693 = arith.addf %1690, %1692 : vector<16x16xf32>
    %cst_966 = arith.constant dense<0.000000e+00> : vector<16x32xf32>
    %1694 = tpu.matmul %1639, %0, %cst_966 {dimension_numbers = #tpu.dot_dimension_numbers<[1], [0], [0], [1], [0, 0, 1, 1], [], []>} : vector<16x16xf32>, vector<16x32xf32>, vector<16x32xf32> -> vector<16x32xf32>
    %cst_967 = arith.constant dense<0.000000e+00> : vector<16x32xf32>
    %1695 = tpu.matmul %1657, %1, %cst_967 {dimension_numbers = #tpu.dot_dimension_numbers<[1], [0], [0], [1], [0, 0, 1, 1], [], []>} : vector<16x16xf32>, vector<16x32xf32>, vector<16x32xf32> -> vector<16x32xf32>
    %1696 = arith.addf %1694, %1695 : vector<16x32xf32>
    %cst_968 = arith.constant dense<0.000000e+00> : vector<16x32xf32>
    %1697 = tpu.matmul %1675, %0, %cst_968 {dimension_numbers = #tpu.dot_dimension_numbers<[1], [0], [0], [1], [0, 0, 1, 1], [], []>} : vector<16x16xf32>, vector<16x32xf32>, vector<16x32xf32> -> vector<16x32xf32>
    %cst_969 = arith.constant dense<0.000000e+00> : vector<16x32xf32>
    %1698 = tpu.matmul %1693, %1, %cst_969 {dimension_numbers = #tpu.dot_dimension_numbers<[1], [0], [0], [1], [0, 0, 1, 1], [], []>} : vector<16x16xf32>, vector<16x32xf32>, vector<16x32xf32> -> vector<16x32xf32>
    %1699 = arith.addf %1697, %1698 : vector<16x32xf32>
    %c2_970 = arith.constant 2 : index
    %c3_971 = arith.constant 3 : index
    %c0_972 = arith.constant 0 : index
    %c0_973 = arith.constant 0 : index
    %1700 = vector.load %arg7[%c2_970, %c3_971, %c0_972, %c0_973] : memref<3x8x16x64xf32, #tpu.memory_space<vmem>>, vector<1x1x16x32xf32>
    %1701 = vector.shape_cast %1700 : vector<1x1x16x32xf32> to vector<16x32xf32>
    %1702 = vector.shape_cast %1696 : vector<16x32xf32> to vector<1x1x16x32xf32>
    tpu.vector_store %arg7[%c2_970, %c3_971, %c0_972, %c0_973], %1702 {strides = array<i32>} : memref<3x8x16x64xf32, #tpu.memory_space<vmem>>, vector<1x1x16x32xf32>,
    %c2_974 = arith.constant 2 : index
    %c3_975 = arith.constant 3 : index
    %c0_976 = arith.constant 0 : index
    %c32_977 = arith.constant 32 : index
    %1703 = vector.load %arg7[%c2_974, %c3_975, %c0_976, %c32_977] : memref<3x8x16x64xf32, #tpu.memory_space<vmem>>, vector<1x1x16x32xf32>
    %1704 = vector.shape_cast %1703 : vector<1x1x16x32xf32> to vector<16x32xf32>
    %1705 = vector.shape_cast %1699 : vector<16x32xf32> to vector<1x1x16x32xf32>
    tpu.vector_store %arg7[%c2_974, %c3_975, %c0_976, %c32_977], %1705 {strides = array<i32>} : memref<3x8x16x64xf32, #tpu.memory_space<vmem>>, vector<1x1x16x32xf32>,
    %c4_978 = arith.constant 4 : index
    %c0_979 = arith.constant 0 : index
    %1706 = memref.load %arg2[%c4_978, %c0_979] : memref<32x4xf32, #tpu.memory_space<smem>>
    %1707 = vector.broadcast %1706 : f32 to vector<16x16xf32>
    %1708 = arith.mulf %1363, %1707 : vector<16x16xf32>
    %c4_980 = arith.constant 4 : index
    %c1_981 = arith.constant 1 : index
    %1709 = memref.load %arg2[%c4_980, %c1_981] : memref<32x4xf32, #tpu.memory_space<smem>>
    %1710 = vector.broadcast %1709 : f32 to vector<16x16xf32>
    %1711 = arith.mulf %1365, %1710 : vector<16x16xf32>
    %1712 = arith.addf %1708, %1711 : vector<16x16xf32>
    %c4_982 = arith.constant 4 : index
    %c2_983 = arith.constant 2 : index
    %1713 = memref.load %arg2[%c4_982, %c2_983] : memref<32x4xf32, #tpu.memory_space<smem>>
    %1714 = vector.broadcast %1713 : f32 to vector<16x16xf32>
    %1715 = arith.mulf %1367, %1714 : vector<16x16xf32>
    %1716 = arith.addf %1712, %1715 : vector<16x16xf32>
    %c4_984 = arith.constant 4 : index
    %c3_985 = arith.constant 3 : index
    %1717 = memref.load %arg2[%c4_984, %c3_985] : memref<32x4xf32, #tpu.memory_space<smem>>
    %1718 = vector.broadcast %1717 : f32 to vector<16x16xf32>
    %1719 = arith.mulf %1369, %1718 : vector<16x16xf32>
    %1720 = arith.addf %1716, %1719 : vector<16x16xf32>
    %c4_986 = arith.constant 4 : index
    %1721 = memref.load %arg3[%c4_986] : memref<32xf32, #tpu.memory_space<smem>>
    %1722 = vector.broadcast %1721 : f32 to vector<16x16xf32>
    %1723 = arith.addf %1720, %1722 : vector<16x16xf32>
    %c12_987 = arith.constant 12 : index
    %c0_988 = arith.constant 0 : index
    %1724 = memref.load %arg2[%c12_987, %c0_988] : memref<32x4xf32, #tpu.memory_space<smem>>
    %1725 = vector.broadcast %1724 : f32 to vector<16x16xf32>
    %1726 = arith.mulf %1363, %1725 : vector<16x16xf32>
    %c12_989 = arith.constant 12 : index
    %c1_990 = arith.constant 1 : index
    %1727 = memref.load %arg2[%c12_989, %c1_990] : memref<32x4xf32, #tpu.memory_space<smem>>
    %1728 = vector.broadcast %1727 : f32 to vector<16x16xf32>
    %1729 = arith.mulf %1365, %1728 : vector<16x16xf32>
    %1730 = arith.addf %1726, %1729 : vector<16x16xf32>
    %c12_991 = arith.constant 12 : index
    %c2_992 = arith.constant 2 : index
    %1731 = memref.load %arg2[%c12_991, %c2_992] : memref<32x4xf32, #tpu.memory_space<smem>>
    %1732 = vector.broadcast %1731 : f32 to vector<16x16xf32>
    %1733 = arith.mulf %1367, %1732 : vector<16x16xf32>
    %1734 = arith.addf %1730, %1733 : vector<16x16xf32>
    %c12_993 = arith.constant 12 : index
    %c3_994 = arith.constant 3 : index
    %1735 = memref.load %arg2[%c12_993, %c3_994] : memref<32x4xf32, #tpu.memory_space<smem>>
    %1736 = vector.broadcast %1735 : f32 to vector<16x16xf32>
    %1737 = arith.mulf %1369, %1736 : vector<16x16xf32>
    %1738 = arith.addf %1734, %1737 : vector<16x16xf32>
    %c12_995 = arith.constant 12 : index
    %1739 = memref.load %arg3[%c12_995] : memref<32xf32, #tpu.memory_space<smem>>
    %1740 = vector.broadcast %1739 : f32 to vector<16x16xf32>
    %1741 = arith.addf %1738, %1740 : vector<16x16xf32>
    %c20_996 = arith.constant 20 : index
    %c0_997 = arith.constant 0 : index
    %1742 = memref.load %arg2[%c20_996, %c0_997] : memref<32x4xf32, #tpu.memory_space<smem>>
    %1743 = vector.broadcast %1742 : f32 to vector<16x16xf32>
    %1744 = arith.mulf %1363, %1743 : vector<16x16xf32>
    %c20_998 = arith.constant 20 : index
    %c1_999 = arith.constant 1 : index
    %1745 = memref.load %arg2[%c20_998, %c1_999] : memref<32x4xf32, #tpu.memory_space<smem>>
    %1746 = vector.broadcast %1745 : f32 to vector<16x16xf32>
    %1747 = arith.mulf %1365, %1746 : vector<16x16xf32>
    %1748 = arith.addf %1744, %1747 : vector<16x16xf32>
    %c20_1000 = arith.constant 20 : index
    %c2_1001 = arith.constant 2 : index
    %1749 = memref.load %arg2[%c20_1000, %c2_1001] : memref<32x4xf32, #tpu.memory_space<smem>>
    %1750 = vector.broadcast %1749 : f32 to vector<16x16xf32>
    %1751 = arith.mulf %1367, %1750 : vector<16x16xf32>
    %1752 = arith.addf %1748, %1751 : vector<16x16xf32>
    %c20_1002 = arith.constant 20 : index
    %c3_1003 = arith.constant 3 : index
    %1753 = memref.load %arg2[%c20_1002, %c3_1003] : memref<32x4xf32, #tpu.memory_space<smem>>
    %1754 = vector.broadcast %1753 : f32 to vector<16x16xf32>
    %1755 = arith.mulf %1369, %1754 : vector<16x16xf32>
    %1756 = arith.addf %1752, %1755 : vector<16x16xf32>
    %c20_1004 = arith.constant 20 : index
    %1757 = memref.load %arg3[%c20_1004] : memref<32xf32, #tpu.memory_space<smem>>
    %1758 = vector.broadcast %1757 : f32 to vector<16x16xf32>
    %1759 = arith.addf %1756, %1758 : vector<16x16xf32>
    %c28_1005 = arith.constant 28 : index
    %c0_1006 = arith.constant 0 : index
    %1760 = memref.load %arg2[%c28_1005, %c0_1006] : memref<32x4xf32, #tpu.memory_space<smem>>
    %1761 = vector.broadcast %1760 : f32 to vector<16x16xf32>
    %1762 = arith.mulf %1363, %1761 : vector<16x16xf32>
    %c28_1007 = arith.constant 28 : index
    %c1_1008 = arith.constant 1 : index
    %1763 = memref.load %arg2[%c28_1007, %c1_1008] : memref<32x4xf32, #tpu.memory_space<smem>>
    %1764 = vector.broadcast %1763 : f32 to vector<16x16xf32>
    %1765 = arith.mulf %1365, %1764 : vector<16x16xf32>
    %1766 = arith.addf %1762, %1765 : vector<16x16xf32>
    %c28_1009 = arith.constant 28 : index
    %c2_1010 = arith.constant 2 : index
    %1767 = memref.load %arg2[%c28_1009, %c2_1010] : memref<32x4xf32, #tpu.memory_space<smem>>
    %1768 = vector.broadcast %1767 : f32 to vector<16x16xf32>
    %1769 = arith.mulf %1367, %1768 : vector<16x16xf32>
    %1770 = arith.addf %1766, %1769 : vector<16x16xf32>
    %c28_1011 = arith.constant 28 : index
    %c3_1012 = arith.constant 3 : index
    %1771 = memref.load %arg2[%c28_1011, %c3_1012] : memref<32x4xf32, #tpu.memory_space<smem>>
    %1772 = vector.broadcast %1771 : f32 to vector<16x16xf32>
    %1773 = arith.mulf %1369, %1772 : vector<16x16xf32>
    %1774 = arith.addf %1770, %1773 : vector<16x16xf32>
    %c28_1013 = arith.constant 28 : index
    %1775 = memref.load %arg3[%c28_1013] : memref<32xf32, #tpu.memory_space<smem>>
    %1776 = vector.broadcast %1775 : f32 to vector<16x16xf32>
    %1777 = arith.addf %1774, %1776 : vector<16x16xf32>
    %cst_1014 = arith.constant dense<0.000000e+00> : vector<16x32xf32>
    %1778 = tpu.matmul %1723, %0, %cst_1014 {dimension_numbers = #tpu.dot_dimension_numbers<[1], [0], [0], [1], [0, 0, 1, 1], [], []>} : vector<16x16xf32>, vector<16x32xf32>, vector<16x32xf32> -> vector<16x32xf32>
    %cst_1015 = arith.constant dense<0.000000e+00> : vector<16x32xf32>
    %1779 = tpu.matmul %1741, %1, %cst_1015 {dimension_numbers = #tpu.dot_dimension_numbers<[1], [0], [0], [1], [0, 0, 1, 1], [], []>} : vector<16x16xf32>, vector<16x32xf32>, vector<16x32xf32> -> vector<16x32xf32>
    %1780 = arith.addf %1778, %1779 : vector<16x32xf32>
    %cst_1016 = arith.constant dense<0.000000e+00> : vector<16x32xf32>
    %1781 = tpu.matmul %1759, %0, %cst_1016 {dimension_numbers = #tpu.dot_dimension_numbers<[1], [0], [0], [1], [0, 0, 1, 1], [], []>} : vector<16x16xf32>, vector<16x32xf32>, vector<16x32xf32> -> vector<16x32xf32>
    %cst_1017 = arith.constant dense<0.000000e+00> : vector<16x32xf32>
    %1782 = tpu.matmul %1777, %1, %cst_1017 {dimension_numbers = #tpu.dot_dimension_numbers<[1], [0], [0], [1], [0, 0, 1, 1], [], []>} : vector<16x16xf32>, vector<16x32xf32>, vector<16x32xf32> -> vector<16x32xf32>
    %1783 = arith.addf %1781, %1782 : vector<16x32xf32>
    %c2_1018 = arith.constant 2 : index
    %c4_1019 = arith.constant 4 : index
    %c0_1020 = arith.constant 0 : index
    %c0_1021 = arith.constant 0 : index
    %1784 = vector.load %arg7[%c2_1018, %c4_1019, %c0_1020, %c0_1021] : memref<3x8x16x64xf32, #tpu.memory_space<vmem>>, vector<1x1x16x32xf32>
    %1785 = vector.shape_cast %1784 : vector<1x1x16x32xf32> to vector<16x32xf32>
    %1786 = vector.shape_cast %1780 : vector<16x32xf32> to vector<1x1x16x32xf32>
    tpu.vector_store %arg7[%c2_1018, %c4_1019, %c0_1020, %c0_1021], %1786 {strides = array<i32>} : memref<3x8x16x64xf32, #tpu.memory_space<vmem>>, vector<1x1x16x32xf32>,
    %c2_1022 = arith.constant 2 : index
    %c4_1023 = arith.constant 4 : index
    %c0_1024 = arith.constant 0 : index
    %c32_1025 = arith.constant 32 : index
    %1787 = vector.load %arg7[%c2_1022, %c4_1023, %c0_1024, %c32_1025] : memref<3x8x16x64xf32, #tpu.memory_space<vmem>>, vector<1x1x16x32xf32>
    %1788 = vector.shape_cast %1787 : vector<1x1x16x32xf32> to vector<16x32xf32>
    %1789 = vector.shape_cast %1783 : vector<16x32xf32> to vector<1x1x16x32xf32>
    tpu.vector_store %arg7[%c2_1022, %c4_1023, %c0_1024, %c32_1025], %1789 {strides = array<i32>} : memref<3x8x16x64xf32, #tpu.memory_space<vmem>>, vector<1x1x16x32xf32>,
    %c5_1026 = arith.constant 5 : index
    %c0_1027 = arith.constant 0 : index
    %1790 = memref.load %arg2[%c5_1026, %c0_1027] : memref<32x4xf32, #tpu.memory_space<smem>>
    %1791 = vector.broadcast %1790 : f32 to vector<16x16xf32>
    %1792 = arith.mulf %1363, %1791 : vector<16x16xf32>
    %c5_1028 = arith.constant 5 : index
    %c1_1029 = arith.constant 1 : index
    %1793 = memref.load %arg2[%c5_1028, %c1_1029] : memref<32x4xf32, #tpu.memory_space<smem>>
    %1794 = vector.broadcast %1793 : f32 to vector<16x16xf32>
    %1795 = arith.mulf %1365, %1794 : vector<16x16xf32>
    %1796 = arith.addf %1792, %1795 : vector<16x16xf32>
    %c5_1030 = arith.constant 5 : index
    %c2_1031 = arith.constant 2 : index
    %1797 = memref.load %arg2[%c5_1030, %c2_1031] : memref<32x4xf32, #tpu.memory_space<smem>>
    %1798 = vector.broadcast %1797 : f32 to vector<16x16xf32>
    %1799 = arith.mulf %1367, %1798 : vector<16x16xf32>
    %1800 = arith.addf %1796, %1799 : vector<16x16xf32>
    %c5_1032 = arith.constant 5 : index
    %c3_1033 = arith.constant 3 : index
    %1801 = memref.load %arg2[%c5_1032, %c3_1033] : memref<32x4xf32, #tpu.memory_space<smem>>
    %1802 = vector.broadcast %1801 : f32 to vector<16x16xf32>
    %1803 = arith.mulf %1369, %1802 : vector<16x16xf32>
    %1804 = arith.addf %1800, %1803 : vector<16x16xf32>
    %c5_1034 = arith.constant 5 : index
    %1805 = memref.load %arg3[%c5_1034] : memref<32xf32, #tpu.memory_space<smem>>
    %1806 = vector.broadcast %1805 : f32 to vector<16x16xf32>
    %1807 = arith.addf %1804, %1806 : vector<16x16xf32>
    %c13_1035 = arith.constant 13 : index
    %c0_1036 = arith.constant 0 : index
    %1808 = memref.load %arg2[%c13_1035, %c0_1036] : memref<32x4xf32, #tpu.memory_space<smem>>
    %1809 = vector.broadcast %1808 : f32 to vector<16x16xf32>
    %1810 = arith.mulf %1363, %1809 : vector<16x16xf32>
    %c13_1037 = arith.constant 13 : index
    %c1_1038 = arith.constant 1 : index
    %1811 = memref.load %arg2[%c13_1037, %c1_1038] : memref<32x4xf32, #tpu.memory_space<smem>>
    %1812 = vector.broadcast %1811 : f32 to vector<16x16xf32>
    %1813 = arith.mulf %1365, %1812 : vector<16x16xf32>
    %1814 = arith.addf %1810, %1813 : vector<16x16xf32>
    %c13_1039 = arith.constant 13 : index
    %c2_1040 = arith.constant 2 : index
    %1815 = memref.load %arg2[%c13_1039, %c2_1040] : memref<32x4xf32, #tpu.memory_space<smem>>
    %1816 = vector.broadcast %1815 : f32 to vector<16x16xf32>
    %1817 = arith.mulf %1367, %1816 : vector<16x16xf32>
    %1818 = arith.addf %1814, %1817 : vector<16x16xf32>
    %c13_1041 = arith.constant 13 : index
    %c3_1042 = arith.constant 3 : index
    %1819 = memref.load %arg2[%c13_1041, %c3_1042] : memref<32x4xf32, #tpu.memory_space<smem>>
    %1820 = vector.broadcast %1819 : f32 to vector<16x16xf32>
    %1821 = arith.mulf %1369, %1820 : vector<16x16xf32>
    %1822 = arith.addf %1818, %1821 : vector<16x16xf32>
    %c13_1043 = arith.constant 13 : index
    %1823 = memref.load %arg3[%c13_1043] : memref<32xf32, #tpu.memory_space<smem>>
    %1824 = vector.broadcast %1823 : f32 to vector<16x16xf32>
    %1825 = arith.addf %1822, %1824 : vector<16x16xf32>
    %c21_1044 = arith.constant 21 : index
    %c0_1045 = arith.constant 0 : index
    %1826 = memref.load %arg2[%c21_1044, %c0_1045] : memref<32x4xf32, #tpu.memory_space<smem>>
    %1827 = vector.broadcast %1826 : f32 to vector<16x16xf32>
    %1828 = arith.mulf %1363, %1827 : vector<16x16xf32>
    %c21_1046 = arith.constant 21 : index
    %c1_1047 = arith.constant 1 : index
    %1829 = memref.load %arg2[%c21_1046, %c1_1047] : memref<32x4xf32, #tpu.memory_space<smem>>
    %1830 = vector.broadcast %1829 : f32 to vector<16x16xf32>
    %1831 = arith.mulf %1365, %1830 : vector<16x16xf32>
    %1832 = arith.addf %1828, %1831 : vector<16x16xf32>
    %c21_1048 = arith.constant 21 : index
    %c2_1049 = arith.constant 2 : index
    %1833 = memref.load %arg2[%c21_1048, %c2_1049] : memref<32x4xf32, #tpu.memory_space<smem>>
    %1834 = vector.broadcast %1833 : f32 to vector<16x16xf32>
    %1835 = arith.mulf %1367, %1834 : vector<16x16xf32>
    %1836 = arith.addf %1832, %1835 : vector<16x16xf32>
    %c21_1050 = arith.constant 21 : index
    %c3_1051 = arith.constant 3 : index
    %1837 = memref.load %arg2[%c21_1050, %c3_1051] : memref<32x4xf32, #tpu.memory_space<smem>>
    %1838 = vector.broadcast %1837 : f32 to vector<16x16xf32>
    %1839 = arith.mulf %1369, %1838 : vector<16x16xf32>
    %1840 = arith.addf %1836, %1839 : vector<16x16xf32>
    %c21_1052 = arith.constant 21 : index
    %1841 = memref.load %arg3[%c21_1052] : memref<32xf32, #tpu.memory_space<smem>>
    %1842 = vector.broadcast %1841 : f32 to vector<16x16xf32>
    %1843 = arith.addf %1840, %1842 : vector<16x16xf32>
    %c29_1053 = arith.constant 29 : index
    %c0_1054 = arith.constant 0 : index
    %1844 = memref.load %arg2[%c29_1053, %c0_1054] : memref<32x4xf32, #tpu.memory_space<smem>>
    %1845 = vector.broadcast %1844 : f32 to vector<16x16xf32>
    %1846 = arith.mulf %1363, %1845 : vector<16x16xf32>
    %c29_1055 = arith.constant 29 : index
    %c1_1056 = arith.constant 1 : index
    %1847 = memref.load %arg2[%c29_1055, %c1_1056] : memref<32x4xf32, #tpu.memory_space<smem>>
    %1848 = vector.broadcast %1847 : f32 to vector<16x16xf32>
    %1849 = arith.mulf %1365, %1848 : vector<16x16xf32>
    %1850 = arith.addf %1846, %1849 : vector<16x16xf32>
    %c29_1057 = arith.constant 29 : index
    %c2_1058 = arith.constant 2 : index
    %1851 = memref.load %arg2[%c29_1057, %c2_1058] : memref<32x4xf32, #tpu.memory_space<smem>>
    %1852 = vector.broadcast %1851 : f32 to vector<16x16xf32>
    %1853 = arith.mulf %1367, %1852 : vector<16x16xf32>
    %1854 = arith.addf %1850, %1853 : vector<16x16xf32>
    %c29_1059 = arith.constant 29 : index
    %c3_1060 = arith.constant 3 : index
    %1855 = memref.load %arg2[%c29_1059, %c3_1060] : memref<32x4xf32, #tpu.memory_space<smem>>
    %1856 = vector.broadcast %1855 : f32 to vector<16x16xf32>
    %1857 = arith.mulf %1369, %1856 : vector<16x16xf32>
    %1858 = arith.addf %1854, %1857 : vector<16x16xf32>
    %c29_1061 = arith.constant 29 : index
    %1859 = memref.load %arg3[%c29_1061] : memref<32xf32, #tpu.memory_space<smem>>
    %1860 = vector.broadcast %1859 : f32 to vector<16x16xf32>
    %1861 = arith.addf %1858, %1860 : vector<16x16xf32>
    %cst_1062 = arith.constant dense<0.000000e+00> : vector<16x32xf32>
    %1862 = tpu.matmul %1807, %0, %cst_1062 {dimension_numbers = #tpu.dot_dimension_numbers<[1], [0], [0], [1], [0, 0, 1, 1], [], []>} : vector<16x16xf32>, vector<16x32xf32>, vector<16x32xf32> -> vector<16x32xf32>
    %cst_1063 = arith.constant dense<0.000000e+00> : vector<16x32xf32>
    %1863 = tpu.matmul %1825, %1, %cst_1063 {dimension_numbers = #tpu.dot_dimension_numbers<[1], [0], [0], [1], [0, 0, 1, 1], [], []>} : vector<16x16xf32>, vector<16x32xf32>, vector<16x32xf32> -> vector<16x32xf32>
    %1864 = arith.addf %1862, %1863 : vector<16x32xf32>
    %cst_1064 = arith.constant dense<0.000000e+00> : vector<16x32xf32>
    %1865 = tpu.matmul %1843, %0, %cst_1064 {dimension_numbers = #tpu.dot_dimension_numbers<[1], [0], [0], [1], [0, 0, 1, 1], [], []>} : vector<16x16xf32>, vector<16x32xf32>, vector<16x32xf32> -> vector<16x32xf32>
    %cst_1065 = arith.constant dense<0.000000e+00> : vector<16x32xf32>
    %1866 = tpu.matmul %1861, %1, %cst_1065 {dimension_numbers = #tpu.dot_dimension_numbers<[1], [0], [0], [1], [0, 0, 1, 1], [], []>} : vector<16x16xf32>, vector<16x32xf32>, vector<16x32xf32> -> vector<16x32xf32>
    %1867 = arith.addf %1865, %1866 : vector<16x32xf32>
    %c2_1066 = arith.constant 2 : index
    %c5_1067 = arith.constant 5 : index
    %c0_1068 = arith.constant 0 : index
    %c0_1069 = arith.constant 0 : index
    %1868 = vector.load %arg7[%c2_1066, %c5_1067, %c0_1068, %c0_1069] : memref<3x8x16x64xf32, #tpu.memory_space<vmem>>, vector<1x1x16x32xf32>
    %1869 = vector.shape_cast %1868 : vector<1x1x16x32xf32> to vector<16x32xf32>
    %1870 = vector.shape_cast %1864 : vector<16x32xf32> to vector<1x1x16x32xf32>
    tpu.vector_store %arg7[%c2_1066, %c5_1067, %c0_1068, %c0_1069], %1870 {strides = array<i32>} : memref<3x8x16x64xf32, #tpu.memory_space<vmem>>, vector<1x1x16x32xf32>,
    %c2_1070 = arith.constant 2 : index
    %c5_1071 = arith.constant 5 : index
    %c0_1072 = arith.constant 0 : index
    %c32_1073 = arith.constant 32 : index
    %1871 = vector.load %arg7[%c2_1070, %c5_1071, %c0_1072, %c32_1073] : memref<3x8x16x64xf32, #tpu.memory_space<vmem>>, vector<1x1x16x32xf32>
    %1872 = vector.shape_cast %1871 : vector<1x1x16x32xf32> to vector<16x32xf32>
    %1873 = vector.shape_cast %1867 : vector<16x32xf32> to vector<1x1x16x32xf32>
    tpu.vector_store %arg7[%c2_1070, %c5_1071, %c0_1072, %c32_1073], %1873 {strides = array<i32>} : memref<3x8x16x64xf32, #tpu.memory_space<vmem>>, vector<1x1x16x32xf32>,
    %c6_1074 = arith.constant 6 : index
    %c0_1075 = arith.constant 0 : index
    %1874 = memref.load %arg2[%c6_1074, %c0_1075] : memref<32x4xf32, #tpu.memory_space<smem>>
    %1875 = vector.broadcast %1874 : f32 to vector<16x16xf32>
    %1876 = arith.mulf %1363, %1875 : vector<16x16xf32>
    %c6_1076 = arith.constant 6 : index
    %c1_1077 = arith.constant 1 : index
    %1877 = memref.load %arg2[%c6_1076, %c1_1077] : memref<32x4xf32, #tpu.memory_space<smem>>
    %1878 = vector.broadcast %1877 : f32 to vector<16x16xf32>
    %1879 = arith.mulf %1365, %1878 : vector<16x16xf32>
    %1880 = arith.addf %1876, %1879 : vector<16x16xf32>
    %c6_1078 = arith.constant 6 : index
    %c2_1079 = arith.constant 2 : index
    %1881 = memref.load %arg2[%c6_1078, %c2_1079] : memref<32x4xf32, #tpu.memory_space<smem>>
    %1882 = vector.broadcast %1881 : f32 to vector<16x16xf32>
    %1883 = arith.mulf %1367, %1882 : vector<16x16xf32>
    %1884 = arith.addf %1880, %1883 : vector<16x16xf32>
    %c6_1080 = arith.constant 6 : index
    %c3_1081 = arith.constant 3 : index
    %1885 = memref.load %arg2[%c6_1080, %c3_1081] : memref<32x4xf32, #tpu.memory_space<smem>>
    %1886 = vector.broadcast %1885 : f32 to vector<16x16xf32>
    %1887 = arith.mulf %1369, %1886 : vector<16x16xf32>
    %1888 = arith.addf %1884, %1887 : vector<16x16xf32>
    %c6_1082 = arith.constant 6 : index
    %1889 = memref.load %arg3[%c6_1082] : memref<32xf32, #tpu.memory_space<smem>>
    %1890 = vector.broadcast %1889 : f32 to vector<16x16xf32>
    %1891 = arith.addf %1888, %1890 : vector<16x16xf32>
    %c14_1083 = arith.constant 14 : index
    %c0_1084 = arith.constant 0 : index
    %1892 = memref.load %arg2[%c14_1083, %c0_1084] : memref<32x4xf32, #tpu.memory_space<smem>>
    %1893 = vector.broadcast %1892 : f32 to vector<16x16xf32>
    %1894 = arith.mulf %1363, %1893 : vector<16x16xf32>
    %c14_1085 = arith.constant 14 : index
    %c1_1086 = arith.constant 1 : index
    %1895 = memref.load %arg2[%c14_1085, %c1_1086] : memref<32x4xf32, #tpu.memory_space<smem>>
    %1896 = vector.broadcast %1895 : f32 to vector<16x16xf32>
    %1897 = arith.mulf %1365, %1896 : vector<16x16xf32>
    %1898 = arith.addf %1894, %1897 : vector<16x16xf32>
    %c14_1087 = arith.constant 14 : index
    %c2_1088 = arith.constant 2 : index
    %1899 = memref.load %arg2[%c14_1087, %c2_1088] : memref<32x4xf32, #tpu.memory_space<smem>>
    %1900 = vector.broadcast %1899 : f32 to vector<16x16xf32>
    %1901 = arith.mulf %1367, %1900 : vector<16x16xf32>
    %1902 = arith.addf %1898, %1901 : vector<16x16xf32>
    %c14_1089 = arith.constant 14 : index
    %c3_1090 = arith.constant 3 : index
    %1903 = memref.load %arg2[%c14_1089, %c3_1090] : memref<32x4xf32, #tpu.memory_space<smem>>
    %1904 = vector.broadcast %1903 : f32 to vector<16x16xf32>
    %1905 = arith.mulf %1369, %1904 : vector<16x16xf32>
    %1906 = arith.addf %1902, %1905 : vector<16x16xf32>
    %c14_1091 = arith.constant 14 : index
    %1907 = memref.load %arg3[%c14_1091] : memref<32xf32, #tpu.memory_space<smem>>
    %1908 = vector.broadcast %1907 : f32 to vector<16x16xf32>
    %1909 = arith.addf %1906, %1908 : vector<16x16xf32>
    %c22_1092 = arith.constant 22 : index
    %c0_1093 = arith.constant 0 : index
    %1910 = memref.load %arg2[%c22_1092, %c0_1093] : memref<32x4xf32, #tpu.memory_space<smem>>
    %1911 = vector.broadcast %1910 : f32 to vector<16x16xf32>
    %1912 = arith.mulf %1363, %1911 : vector<16x16xf32>
    %c22_1094 = arith.constant 22 : index
    %c1_1095 = arith.constant 1 : index
    %1913 = memref.load %arg2[%c22_1094, %c1_1095] : memref<32x4xf32, #tpu.memory_space<smem>>
    %1914 = vector.broadcast %1913 : f32 to vector<16x16xf32>
    %1915 = arith.mulf %1365, %1914 : vector<16x16xf32>
    %1916 = arith.addf %1912, %1915 : vector<16x16xf32>
    %c22_1096 = arith.constant 22 : index
    %c2_1097 = arith.constant 2 : index
    %1917 = memref.load %arg2[%c22_1096, %c2_1097] : memref<32x4xf32, #tpu.memory_space<smem>>
    %1918 = vector.broadcast %1917 : f32 to vector<16x16xf32>
    %1919 = arith.mulf %1367, %1918 : vector<16x16xf32>
    %1920 = arith.addf %1916, %1919 : vector<16x16xf32>
    %c22_1098 = arith.constant 22 : index
    %c3_1099 = arith.constant 3 : index
    %1921 = memref.load %arg2[%c22_1098, %c3_1099] : memref<32x4xf32, #tpu.memory_space<smem>>
    %1922 = vector.broadcast %1921 : f32 to vector<16x16xf32>
    %1923 = arith.mulf %1369, %1922 : vector<16x16xf32>
    %1924 = arith.addf %1920, %1923 : vector<16x16xf32>
    %c22_1100 = arith.constant 22 : index
    %1925 = memref.load %arg3[%c22_1100] : memref<32xf32, #tpu.memory_space<smem>>
    %1926 = vector.broadcast %1925 : f32 to vector<16x16xf32>
    %1927 = arith.addf %1924, %1926 : vector<16x16xf32>
    %c30_1101 = arith.constant 30 : index
    %c0_1102 = arith.constant 0 : index
    %1928 = memref.load %arg2[%c30_1101, %c0_1102] : memref<32x4xf32, #tpu.memory_space<smem>>
    %1929 = vector.broadcast %1928 : f32 to vector<16x16xf32>
    %1930 = arith.mulf %1363, %1929 : vector<16x16xf32>
    %c30_1103 = arith.constant 30 : index
    %c1_1104 = arith.constant 1 : index
    %1931 = memref.load %arg2[%c30_1103, %c1_1104] : memref<32x4xf32, #tpu.memory_space<smem>>
    %1932 = vector.broadcast %1931 : f32 to vector<16x16xf32>
    %1933 = arith.mulf %1365, %1932 : vector<16x16xf32>
    %1934 = arith.addf %1930, %1933 : vector<16x16xf32>
    %c30_1105 = arith.constant 30 : index
    %c2_1106 = arith.constant 2 : index
    %1935 = memref.load %arg2[%c30_1105, %c2_1106] : memref<32x4xf32, #tpu.memory_space<smem>>
    %1936 = vector.broadcast %1935 : f32 to vector<16x16xf32>
    %1937 = arith.mulf %1367, %1936 : vector<16x16xf32>
    %1938 = arith.addf %1934, %1937 : vector<16x16xf32>
    %c30_1107 = arith.constant 30 : index
    %c3_1108 = arith.constant 3 : index
    %1939 = memref.load %arg2[%c30_1107, %c3_1108] : memref<32x4xf32, #tpu.memory_space<smem>>
    %1940 = vector.broadcast %1939 : f32 to vector<16x16xf32>
    %1941 = arith.mulf %1369, %1940 : vector<16x16xf32>
    %1942 = arith.addf %1938, %1941 : vector<16x16xf32>
    %c30_1109 = arith.constant 30 : index
    %1943 = memref.load %arg3[%c30_1109] : memref<32xf32, #tpu.memory_space<smem>>
    %1944 = vector.broadcast %1943 : f32 to vector<16x16xf32>
    %1945 = arith.addf %1942, %1944 : vector<16x16xf32>
    %cst_1110 = arith.constant dense<0.000000e+00> : vector<16x32xf32>
    %1946 = tpu.matmul %1891, %0, %cst_1110 {dimension_numbers = #tpu.dot_dimension_numbers<[1], [0], [0], [1], [0, 0, 1, 1], [], []>} : vector<16x16xf32>, vector<16x32xf32>, vector<16x32xf32> -> vector<16x32xf32>
    %cst_1111 = arith.constant dense<0.000000e+00> : vector<16x32xf32>
    %1947 = tpu.matmul %1909, %1, %cst_1111 {dimension_numbers = #tpu.dot_dimension_numbers<[1], [0], [0], [1], [0, 0, 1, 1], [], []>} : vector<16x16xf32>, vector<16x32xf32>, vector<16x32xf32> -> vector<16x32xf32>
    %1948 = arith.addf %1946, %1947 : vector<16x32xf32>
    %cst_1112 = arith.constant dense<0.000000e+00> : vector<16x32xf32>
    %1949 = tpu.matmul %1927, %0, %cst_1112 {dimension_numbers = #tpu.dot_dimension_numbers<[1], [0], [0], [1], [0, 0, 1, 1], [], []>} : vector<16x16xf32>, vector<16x32xf32>, vector<16x32xf32> -> vector<16x32xf32>
    %cst_1113 = arith.constant dense<0.000000e+00> : vector<16x32xf32>
    %1950 = tpu.matmul %1945, %1, %cst_1113 {dimension_numbers = #tpu.dot_dimension_numbers<[1], [0], [0], [1], [0, 0, 1, 1], [], []>} : vector<16x16xf32>, vector<16x32xf32>, vector<16x32xf32> -> vector<16x32xf32>
    %1951 = arith.addf %1949, %1950 : vector<16x32xf32>
    %c2_1114 = arith.constant 2 : index
    %c6_1115 = arith.constant 6 : index
    %c0_1116 = arith.constant 0 : index
    %c0_1117 = arith.constant 0 : index
    %1952 = vector.load %arg7[%c2_1114, %c6_1115, %c0_1116, %c0_1117] : memref<3x8x16x64xf32, #tpu.memory_space<vmem>>, vector<1x1x16x32xf32>
    %1953 = vector.shape_cast %1952 : vector<1x1x16x32xf32> to vector<16x32xf32>
    %1954 = vector.shape_cast %1948 : vector<16x32xf32> to vector<1x1x16x32xf32>
    tpu.vector_store %arg7[%c2_1114, %c6_1115, %c0_1116, %c0_1117], %1954 {strides = array<i32>} : memref<3x8x16x64xf32, #tpu.memory_space<vmem>>, vector<1x1x16x32xf32>,
    %c2_1118 = arith.constant 2 : index
    %c6_1119 = arith.constant 6 : index
    %c0_1120 = arith.constant 0 : index
    %c32_1121 = arith.constant 32 : index
    %1955 = vector.load %arg7[%c2_1118, %c6_1119, %c0_1120, %c32_1121] : memref<3x8x16x64xf32, #tpu.memory_space<vmem>>, vector<1x1x16x32xf32>
    %1956 = vector.shape_cast %1955 : vector<1x1x16x32xf32> to vector<16x32xf32>
    %1957 = vector.shape_cast %1951 : vector<16x32xf32> to vector<1x1x16x32xf32>
    tpu.vector_store %arg7[%c2_1118, %c6_1119, %c0_1120, %c32_1121], %1957 {strides = array<i32>} : memref<3x8x16x64xf32, #tpu.memory_space<vmem>>, vector<1x1x16x32xf32>,
    %c7_1122 = arith.constant 7 : index
    %c0_1123 = arith.constant 0 : index
    %1958 = memref.load %arg2[%c7_1122, %c0_1123] : memref<32x4xf32, #tpu.memory_space<smem>>
    %1959 = vector.broadcast %1958 : f32 to vector<16x16xf32>
    %1960 = arith.mulf %1363, %1959 : vector<16x16xf32>
    %c7_1124 = arith.constant 7 : index
    %c1_1125 = arith.constant 1 : index
    %1961 = memref.load %arg2[%c7_1124, %c1_1125] : memref<32x4xf32, #tpu.memory_space<smem>>
    %1962 = vector.broadcast %1961 : f32 to vector<16x16xf32>
    %1963 = arith.mulf %1365, %1962 : vector<16x16xf32>
    %1964 = arith.addf %1960, %1963 : vector<16x16xf32>
    %c7_1126 = arith.constant 7 : index
    %c2_1127 = arith.constant 2 : index
    %1965 = memref.load %arg2[%c7_1126, %c2_1127] : memref<32x4xf32, #tpu.memory_space<smem>>
    %1966 = vector.broadcast %1965 : f32 to vector<16x16xf32>
    %1967 = arith.mulf %1367, %1966 : vector<16x16xf32>
    %1968 = arith.addf %1964, %1967 : vector<16x16xf32>
    %c7_1128 = arith.constant 7 : index
    %c3_1129 = arith.constant 3 : index
    %1969 = memref.load %arg2[%c7_1128, %c3_1129] : memref<32x4xf32, #tpu.memory_space<smem>>
    %1970 = vector.broadcast %1969 : f32 to vector<16x16xf32>
    %1971 = arith.mulf %1369, %1970 : vector<16x16xf32>
    %1972 = arith.addf %1968, %1971 : vector<16x16xf32>
    %c7_1130 = arith.constant 7 : index
    %1973 = memref.load %arg3[%c7_1130] : memref<32xf32, #tpu.memory_space<smem>>
    %1974 = vector.broadcast %1973 : f32 to vector<16x16xf32>
    %1975 = arith.addf %1972, %1974 : vector<16x16xf32>
    %c15_1131 = arith.constant 15 : index
    %c0_1132 = arith.constant 0 : index
    %1976 = memref.load %arg2[%c15_1131, %c0_1132] : memref<32x4xf32, #tpu.memory_space<smem>>
    %1977 = vector.broadcast %1976 : f32 to vector<16x16xf32>
    %1978 = arith.mulf %1363, %1977 : vector<16x16xf32>
    %c15_1133 = arith.constant 15 : index
    %c1_1134 = arith.constant 1 : index
    %1979 = memref.load %arg2[%c15_1133, %c1_1134] : memref<32x4xf32, #tpu.memory_space<smem>>
    %1980 = vector.broadcast %1979 : f32 to vector<16x16xf32>
    %1981 = arith.mulf %1365, %1980 : vector<16x16xf32>
    %1982 = arith.addf %1978, %1981 : vector<16x16xf32>
    %c15_1135 = arith.constant 15 : index
    %c2_1136 = arith.constant 2 : index
    %1983 = memref.load %arg2[%c15_1135, %c2_1136] : memref<32x4xf32, #tpu.memory_space<smem>>
    %1984 = vector.broadcast %1983 : f32 to vector<16x16xf32>
    %1985 = arith.mulf %1367, %1984 : vector<16x16xf32>
    %1986 = arith.addf %1982, %1985 : vector<16x16xf32>
    %c15_1137 = arith.constant 15 : index
    %c3_1138 = arith.constant 3 : index
    %1987 = memref.load %arg2[%c15_1137, %c3_1138] : memref<32x4xf32, #tpu.memory_space<smem>>
    %1988 = vector.broadcast %1987 : f32 to vector<16x16xf32>
    %1989 = arith.mulf %1369, %1988 : vector<16x16xf32>
    %1990 = arith.addf %1986, %1989 : vector<16x16xf32>
    %c15_1139 = arith.constant 15 : index
    %1991 = memref.load %arg3[%c15_1139] : memref<32xf32, #tpu.memory_space<smem>>
    %1992 = vector.broadcast %1991 : f32 to vector<16x16xf32>
    %1993 = arith.addf %1990, %1992 : vector<16x16xf32>
    %c23_1140 = arith.constant 23 : index
    %c0_1141 = arith.constant 0 : index
    %1994 = memref.load %arg2[%c23_1140, %c0_1141] : memref<32x4xf32, #tpu.memory_space<smem>>
    %1995 = vector.broadcast %1994 : f32 to vector<16x16xf32>
    %1996 = arith.mulf %1363, %1995 : vector<16x16xf32>
    %c23_1142 = arith.constant 23 : index
    %c1_1143 = arith.constant 1 : index
    %1997 = memref.load %arg2[%c23_1142, %c1_1143] : memref<32x4xf32, #tpu.memory_space<smem>>
    %1998 = vector.broadcast %1997 : f32 to vector<16x16xf32>
    %1999 = arith.mulf %1365, %1998 : vector<16x16xf32>
    %2000 = arith.addf %1996, %1999 : vector<16x16xf32>
    %c23_1144 = arith.constant 23 : index
    %c2_1145 = arith.constant 2 : index
    %2001 = memref.load %arg2[%c23_1144, %c2_1145] : memref<32x4xf32, #tpu.memory_space<smem>>
    %2002 = vector.broadcast %2001 : f32 to vector<16x16xf32>
    %2003 = arith.mulf %1367, %2002 : vector<16x16xf32>
    %2004 = arith.addf %2000, %2003 : vector<16x16xf32>
    %c23_1146 = arith.constant 23 : index
    %c3_1147 = arith.constant 3 : index
    %2005 = memref.load %arg2[%c23_1146, %c3_1147] : memref<32x4xf32, #tpu.memory_space<smem>>
    %2006 = vector.broadcast %2005 : f32 to vector<16x16xf32>
    %2007 = arith.mulf %1369, %2006 : vector<16x16xf32>
    %2008 = arith.addf %2004, %2007 : vector<16x16xf32>
    %c23_1148 = arith.constant 23 : index
    %2009 = memref.load %arg3[%c23_1148] : memref<32xf32, #tpu.memory_space<smem>>
    %2010 = vector.broadcast %2009 : f32 to vector<16x16xf32>
    %2011 = arith.addf %2008, %2010 : vector<16x16xf32>
    %c31_1149 = arith.constant 31 : index
    %c0_1150 = arith.constant 0 : index
    %2012 = memref.load %arg2[%c31_1149, %c0_1150] : memref<32x4xf32, #tpu.memory_space<smem>>
    %2013 = vector.broadcast %2012 : f32 to vector<16x16xf32>
    %2014 = arith.mulf %1363, %2013 : vector<16x16xf32>
    %c31_1151 = arith.constant 31 : index
    %c1_1152 = arith.constant 1 : index
    %2015 = memref.load %arg2[%c31_1151, %c1_1152] : memref<32x4xf32, #tpu.memory_space<smem>>
    %2016 = vector.broadcast %2015 : f32 to vector<16x16xf32>
    %2017 = arith.mulf %1365, %2016 : vector<16x16xf32>
    %2018 = arith.addf %2014, %2017 : vector<16x16xf32>
    %c31_1153 = arith.constant 31 : index
    %c2_1154 = arith.constant 2 : index
    %2019 = memref.load %arg2[%c31_1153, %c2_1154] : memref<32x4xf32, #tpu.memory_space<smem>>
    %2020 = vector.broadcast %2019 : f32 to vector<16x16xf32>
    %2021 = arith.mulf %1367, %2020 : vector<16x16xf32>
    %2022 = arith.addf %2018, %2021 : vector<16x16xf32>
    %c31_1155 = arith.constant 31 : index
    %c3_1156 = arith.constant 3 : index
    %2023 = memref.load %arg2[%c31_1155, %c3_1156] : memref<32x4xf32, #tpu.memory_space<smem>>
    %2024 = vector.broadcast %2023 : f32 to vector<16x16xf32>
    %2025 = arith.mulf %1369, %2024 : vector<16x16xf32>
    %2026 = arith.addf %2022, %2025 : vector<16x16xf32>
    %c31_1157 = arith.constant 31 : index
    %2027 = memref.load %arg3[%c31_1157] : memref<32xf32, #tpu.memory_space<smem>>
    %2028 = vector.broadcast %2027 : f32 to vector<16x16xf32>
    %2029 = arith.addf %2026, %2028 : vector<16x16xf32>
    %cst_1158 = arith.constant dense<0.000000e+00> : vector<16x32xf32>
    %2030 = tpu.matmul %1975, %0, %cst_1158 {dimension_numbers = #tpu.dot_dimension_numbers<[1], [0], [0], [1], [0, 0, 1, 1], [], []>} : vector<16x16xf32>, vector<16x32xf32>, vector<16x32xf32> -> vector<16x32xf32>
    %cst_1159 = arith.constant dense<0.000000e+00> : vector<16x32xf32>
    %2031 = tpu.matmul %1993, %1, %cst_1159 {dimension_numbers = #tpu.dot_dimension_numbers<[1], [0], [0], [1], [0, 0, 1, 1], [], []>} : vector<16x16xf32>, vector<16x32xf32>, vector<16x32xf32> -> vector<16x32xf32>
    %2032 = arith.addf %2030, %2031 : vector<16x32xf32>
    %cst_1160 = arith.constant dense<0.000000e+00> : vector<16x32xf32>
    %2033 = tpu.matmul %2011, %0, %cst_1160 {dimension_numbers = #tpu.dot_dimension_numbers<[1], [0], [0], [1], [0, 0, 1, 1], [], []>} : vector<16x16xf32>, vector<16x32xf32>, vector<16x32xf32> -> vector<16x32xf32>
    %cst_1161 = arith.constant dense<0.000000e+00> : vector<16x32xf32>
    %2034 = tpu.matmul %2029, %1, %cst_1161 {dimension_numbers = #tpu.dot_dimension_numbers<[1], [0], [0], [1], [0, 0, 1, 1], [], []>} : vector<16x16xf32>, vector<16x32xf32>, vector<16x32xf32> -> vector<16x32xf32>
    %2035 = arith.addf %2033, %2034 : vector<16x32xf32>
    %c2_1162 = arith.constant 2 : index
    %c7_1163 = arith.constant 7 : index
    %c0_1164 = arith.constant 0 : index
    %c0_1165 = arith.constant 0 : index
    %2036 = vector.load %arg7[%c2_1162, %c7_1163, %c0_1164, %c0_1165] : memref<3x8x16x64xf32, #tpu.memory_space<vmem>>, vector<1x1x16x32xf32>
    %2037 = vector.shape_cast %2036 : vector<1x1x16x32xf32> to vector<16x32xf32>
    %2038 = vector.shape_cast %2032 : vector<16x32xf32> to vector<1x1x16x32xf32>
    tpu.vector_store %arg7[%c2_1162, %c7_1163, %c0_1164, %c0_1165], %2038 {strides = array<i32>} : memref<3x8x16x64xf32, #tpu.memory_space<vmem>>, vector<1x1x16x32xf32>,
    %c2_1166 = arith.constant 2 : index
    %c7_1167 = arith.constant 7 : index
    %c0_1168 = arith.constant 0 : index
    %c32_1169 = arith.constant 32 : index
    %2039 = vector.load %arg7[%c2_1166, %c7_1167, %c0_1168, %c32_1169] : memref<3x8x16x64xf32, #tpu.memory_space<vmem>>, vector<1x1x16x32xf32>
    %2040 = vector.shape_cast %2039 : vector<1x1x16x32xf32> to vector<16x32xf32>
    %2041 = vector.shape_cast %2035 : vector<16x32xf32> to vector<1x1x16x32xf32>
    tpu.vector_store %arg7[%c2_1166, %c7_1167, %c0_1168, %c32_1169], %2041 {strides = array<i32>} : memref<3x8x16x64xf32, #tpu.memory_space<vmem>>, vector<1x1x16x32xf32>,
    return
  }
  func.func @transform_0(%arg0: i32, %arg1: i32) -> (i32, i32) {
    %c0_i32 = arith.constant 0 : i32
    %c0_i32_0 = arith.constant 0 : i32
    %c0_i32_1 = arith.constant 0 : i32
    return %c0_i32, %c0_i32_0 : i32, i32
  }
  func.func @transform_1(%arg0: i32, %arg1: i32) -> i32 {
    %c0_i32 = arith.constant 0 : i32
    %c0_i32_0 = arith.constant 0 : i32
    return %c0_i32 : i32
  }
  func.func @transform_2(%arg0: i32, %arg1: i32) -> (i32, i32) {
    %c0_i32 = arith.constant 0 : i32
    %c0_i32_0 = arith.constant 0 : i32
    %c0_i32_1 = arith.constant 0 : i32
    return %c0_i32, %c0_i32_0 : i32, i32
  }
  func.func @transform_3(%arg0: i32, %arg1: i32) -> (i32, i32) {
    %c0_i32 = arith.constant 0 : i32
    %c0_i32_0 = arith.constant 0 : i32
    %c0_i32_1 = arith.constant 0 : i32
    return %c0_i32, %c0_i32_0 : i32, i32
  }
  func.func @transform_4(%arg0: i32, %arg1: i32) -> (i32, i32, i32, i32) {
    %c0_i32 = arith.constant 0 : i32
    %c0_i32_0 = arith.constant 0 : i32
    %c0_i32_1 = arith.constant 0 : i32
    return %arg0, %c0_i32, %arg1, %c0_i32_0 : i32, i32, i32, i32
  }
  func.func @transform_5(%arg0: i32, %arg1: i32) -> (i32, i32, i32, i32) {
    %c0_i32 = arith.constant 0 : i32
    %c0_i32_0 = arith.constant 0 : i32
    %c0_i32_1 = arith.constant 0 : i32
    return %arg0, %c0_i32, %arg1, %c0_i32_0 : i32, i32, i32, i32
  }
}

</mosaic_0001>

<llo_original>
// kernel: tpu_custom_call.1
$region0: #{tpu_custom_call.1}
  #allocation0 [shape = 'u32[]', space=smem, size = 0x4, offset = 0x4, fixed_abs, tag = 'smem constant byte address 0x4 - core index']
  #allocation1 [shape = 'u32[72,128]{1,0:T(1,128)}', space=vmem, size = 0x9000, scoped, tag = 'internal scratch']
  %s0 = inlined_call_operand.vmem [shape: f32[32,4], index: 0, kind: input, shape index: {}]
  %s1 = inlined_call_operand.vmem [shape: f32[32], index: 1, kind: input, shape index: {}]
  %s2 = inlined_call_operand.vmem [shape: f32[16,32], index: 2, kind: input, shape index: {}]
  %s3 = inlined_call_operand.vmem [shape: f32[16,32], index: 3, kind: input, shape index: {}]
  %s4 = inlined_call_operand.hbm [shape: f32[6,4,16,16], index: 4, kind: input, shape index: {}]
  %s5 = inlined_call_operand.hbm [shape: f32[6,8,16,64], index: 5, kind: output, shape index: {}]
  %s6 = sld [smem:[#allocation0]]
  $region65: #{tpu_custom_call.1} parent=0
    _
  %s8 = ssub.s32 1, %s6
  %s9 = scalar_select 0, %s8, %s6
  $region1: #{tpu_custom_call.1} parent=0
    #allocation2 [shape = 'u8[16384]{0}', space=smem, size = 0x4000, scoped, tag = 'input window, operand 0, single buffered']
    #allocation3 [shape = 's32[2]{0}', space=sflag, size = 0x8, scoped, tag = 'scoped memory for tpu_custom_call.1']
    #allocation4 [shape = 's32[2]{0}', space=sflag, size = 0x8, scoped, tag = 'scoped memory for tpu_custom_call.1']
    #allocation5 [shape = 's32[2]{0}', space=sflag, size = 0x8, scoped, tag = 'scoped memory for tpu_custom_call.1']
    #allocation6 [shape = 'u8[512]{0}', space=smem, size = 0x200, scoped, tag = 'input window, operand 1, single buffered']
    #allocation7 [shape = 's32[1]{0}', space=sflag, size = 0x4, scoped, tag = 'scoped memory for tpu_custom_call.1']
    #allocation8 [shape = 'u8[196608]{0}', space=vmem, size = 0x30000, scoped, tag = 'input window, operand 4']
    #allocation9 [shape = 'u8[393216]{0}', space=vmem, size = 0x60000, scoped, tag = 'output window, operand 0']
    %10 = vsyncpa [#allocation5], 0
    %11 = vsyncpa [#allocation7], 0
    %12 = vsyncpa [#allocation3], 0
    %s13 = scalar_lea.sflag [#allocation3], 1
    %14 = vsyncpa %s13, 0
    %15 = vsyncpa [#allocation4], 0
    %s16 = scalar_lea.sflag [#allocation4], 1
    %17 = vsyncpa %s16, 0
    loop: start=0, step=1, limit=4
    $region2: #{tpu_custom_call.1} parent=1 // loop_pre_header
      _
    $region3: #{tpu_custom_call.1} parent=1 // loop_header
      %s19 = sphi 0, %s23
      %p20 = scmp.ge.s32.totalorder %s19, 4
      %s26 = sphi 0, %s38
      %s27 = sphi 0, %s34
      %s28 = sphi 0, %s26
      %s29 = sphi 0, %s27
      %s30 = sphi 0, %s28
      %s31 = sphi 0, %s29
      %s39 = sphi 0, %s39
      %s41 = sphi 0, %s39
      %s42 = sphi 0, %s41
      %s56 = sphi 0, %s42
      %s60 = sphi 0, %s60
      %s62 = sphi 0, %s60
      %s63 = sphi 0, %s62
      %s77 = sphi 0, %s63
      %s81 = sphi 0, %s81
      %s83 = sphi 0, %s81
      %s84 = sphi 0, %s83
      %s98 = sphi 0, %s84
      %s102 = sphi 0, %s102
      %s104 = sphi 0, %s102
      %s105 = sphi 0, %s104
      %s119 = sphi 0, %s105
      %s127 = sphi 0, %s129
      %s130 = sphi 0, %s127
      %s131 = sphi 0, %s130
      %s147 = sphi 0, %s131
      %s155 = sphi 0, %s157
      %s158 = sphi 0, %s155
      %s159 = sphi 0, %s158
      %s175 = sphi 0, %s159
    $region4: #{tpu_custom_call.1} parent=1 // loop_header_branch
      %22 = sbr.rel (%p20) target = $region8
    $region5: #{tpu_custom_call.1} parent=1 // loop_body
      %s24 = ssub.s32 %s19, 1
      %s25 = ssub.s32 %s19, 2
      %s32 = sadd.s32 1, %s27
      %p33 = scmp.ge.s32.totalorder %s32, 1
      %s34 = scalar_select %p33, 0, %s32
      %s35 = sadd.s32 1, %s26
      %s36 = scalar_select %p33, %s35, %s26
      %p37 = scmp.ge.s32.totalorder %s36, 2
      %s38 = scalar_select %p37, 0, %s36
      %s40 = sadd.s32 %s39, 1
      %p43 = scmp.eq.s32.totalorder %s19, 1
      %p44 = scmp.ne.s32.totalorder %s39, %s41
      %p45 = scmp.eq.s32.totalorder %s19, 0
      %p46 = por %p44, %p45
      %p47 = scmp.ne.s32.totalorder %s39, %s41
      %p48 = scmp.eq.s32.totalorder %s24, 1
      %p49 = por %p47, %p48
      %p50 = scmp.ne.s32.totalorder %s41, %s42
      %p51 = scmp.eq.s32.totalorder %s24, 0
      %p52 = por %p50, %p51
      %p53 = scmp.ne.s32.totalorder %s41, %s42
      %p54 = scmp.eq.s32.totalorder %s25, 1
      %p55 = por %p53, %p54
      %p57 = scmp.ne.s32.totalorder %s42, %s56
      %p58 = scmp.eq.s32.totalorder %s25, 0
      %p59 = por %p57, %p58
      %s61 = sadd.s32 %s60, 1
      %p64 = scmp.eq.s32.totalorder %s19, 1
      %p65 = scmp.ne.s32.totalorder %s60, %s62
      %p66 = scmp.eq.s32.totalorder %s19, 0
      %p67 = por %p65, %p66
      %p68 = scmp.ne.s32.totalorder %s60, %s62
      %p69 = scmp.eq.s32.totalorder %s24, 1
      %p70 = por %p68, %p69
      %p71 = scmp.ne.s32.totalorder %s62, %s63
      %p72 = scmp.eq.s32.totalorder %s24, 0
      %p73 = por %p71, %p72
      %p74 = scmp.ne.s32.totalorder %s62, %s63
      %p75 = scmp.eq.s32.totalorder %s25, 1
      %p76 = por %p74, %p75
      %p78 = scmp.ne.s32.totalorder %s63, %s77
      %p79 = scmp.eq.s32.totalorder %s25, 0
      %p80 = por %p78, %p79
      %s82 = sadd.s32 %s81, 1
      %p85 = scmp.eq.s32.totalorder %s19, 1
      %p86 = scmp.ne.s32.totalorder %s81, %s83
      %p87 = scmp.eq.s32.totalorder %s19, 0
      %p88 = por %p86, %p87
      %p89 = scmp.ne.s32.totalorder %s81, %s83
      %p90 = scmp.eq.s32.totalorder %s24, 1
      %p91 = por %p89, %p90
      %p92 = scmp.ne.s32.totalorder %s83, %s84
      %p93 = scmp.eq.s32.totalorder %s24, 0
      %p94 = por %p92, %p93
      %p95 = scmp.ne.s32.totalorder %s83, %s84
      %p96 = scmp.eq.s32.totalorder %s25, 1
      %p97 = por %p95, %p96
      %p99 = scmp.ne.s32.totalorder %s84, %s98
      %p100 = scmp.eq.s32.totalorder %s25, 0
      %p101 = por %p99, %p100
      %s103 = sadd.s32 %s102, 1
      %p106 = scmp.eq.s32.totalorder %s19, 1
      %p107 = scmp.ne.s32.totalorder %s102, %s104
      %p108 = scmp.eq.s32.totalorder %s19, 0
      %p109 = por %p107, %p108
      %p110 = scmp.ne.s32.totalorder %s102, %s104
      %p111 = scmp.eq.s32.totalorder %s24, 1
      %p112 = por %p110, %p111
      %p113 = scmp.ne.s32.totalorder %s104, %s105
      %p114 = scmp.eq.s32.totalorder %s24, 0
      %p115 = por %p113, %p114
      %p116 = scmp.ne.s32.totalorder %s104, %s105
      %p117 = scmp.eq.s32.totalorder %s25, 1
      %p118 = por %p116, %p117
      %p120 = scmp.ne.s32.totalorder %s105, %s119
      %p121 = scmp.eq.s32.totalorder %s25, 0
      %p122 = por %p120, %p121
      %s123 = ssub.s32 %s26, %s38
      %s124 = ssub.s32 %s27, %s34
      %s125 = sor.u32 %s123, %s124
      %p126 = scmp.eq.s32.totalorder %s125, 0
      %s128 = sadd.s32 %s127, 1
      %s129 = scalar_select %p126, %s127, %s128
      %p132 = pneg %p126
      %p133 = scmp.eq.s32.totalorder %s19, 1
      %p134 = por %p132, %p133
      %p135 = scmp.ne.s32.totalorder %s127, %s130
      %p136 = scmp.eq.s32.totalorder %s19, 0
      %p137 = por %p135, %p136
      %p138 = scmp.ne.s32.totalorder %s127, %s130
      %p139 = scmp.eq.s32.totalorder %s24, 1
      %p140 = por %p138, %p139
      %p141 = scmp.ne.s32.totalorder %s130, %s131
      %p142 = scmp.eq.s32.totalorder %s24, 0
      %p143 = por %p141, %p142
      %p144 = scmp.ne.s32.totalorder %s130, %s131
      %p145 = scmp.eq.s32.totalorder %s25, 1
      %p146 = por %p144, %p145
      %p148 = scmp.ne.s32.totalorder %s131, %s147
      %p149 = scmp.eq.s32.totalorder %s25, 0
      %p150 = por %p148, %p149
      %s151 = ssub.s32 %s26, %s38
      %s152 = ssub.s32 %s27, %s34
      %s153 = sor.u32 %s151, %s152
      %p154 = scmp.eq.s32.totalorder %s153, 0
      %s156 = sadd.s32 %s155, 1
      %s157 = scalar_select %p154, %s155, %s156
      %p160 = pneg %p154
      %p161 = scmp.eq.s32.totalorder %s19, 1
      %p162 = por %p160, %p161
      %p163 = scmp.ne.s32.totalorder %s155, %s158
      %p164 = scmp.eq.s32.totalorder %s19, 0
      %p165 = por %p163, %p164
      %p166 = scmp.ne.s32.totalorder %s155, %s158
      %p167 = scmp.eq.s32.totalorder %s24, 1
      %p168 = por %p166, %p167
      %p169 = scmp.ne.s32.totalorder %s158, %s159
      %p170 = scmp.eq.s32.totalorder %s24, 0
      %p171 = por %p169, %p170
      %p172 = scmp.ne.s32.totalorder %s158, %s159
      %p173 = scmp.eq.s32.totalorder %s25, 1
      %p174 = por %p172, %p173
      %p176 = scmp.ne.s32.totalorder %s159, %s175
      %p177 = scmp.eq.s32.totalorder %s25, 0
      %p178 = por %p176, %p177
      %p179 = scmp.le.s32.totalorder 1, %s19
      %p180 = scmp.lt.s32.totalorder %s19, 3
      %p181 = pnand %p179, %p180
      %p182 = pneg %p181
      // Predicated region
      $region9: #{tpu_custom_call.1} parent=5 // pred_check
        _
      $region10: #{tpu_custom_call.1} parent=5 // pred_check_branch
        %184 = sbr.rel (%p181) target = $region12
      $region11: #{tpu_custom_call.1} parent=5 // pred_region
        %s185 = ssub.s32 %s19, 1
        // Predicated region
        $region13: #{tpu_custom_call.1} parent=11 // pred_check
          %p186 = pneg %p52
        $region14: #{tpu_custom_call.1} parent=11 // pred_check_branch
          %188 = sbr.rel (%p186) target = $region16
        $region15: #{tpu_custom_call.1} parent=11 // pred_region
          %190 = vsyncadd [#allocation5], 0
          %s191 = sshll.u32 %s0, 4
          %s192 = int_to_ptr.vmem [resolvable:$true] %s191
          %197 = dma.vmem_to_smem %s192, 512, [#allocation2], [#allocation5], 128, 128, 8
        $region16: #{tpu_custom_call.1} parent=11 // pred_fallthru
          _
        // Predicated region
        $region17: #{tpu_custom_call.1} parent=11 // pred_check
          %p198 = pneg %p73
        $region18: #{tpu_custom_call.1} parent=11 // pred_check_branch
          %200 = sbr.rel (%p198) target = $region20
        $region19: #{tpu_custom_call.1} parent=11 // pred_region
          %202 = vsyncadd [#allocation7], 0
          %s204 = sshll.u32 %s1, 4
          %s205 = int_to_ptr.vmem [resolvable:$true] %s204
          %207 = dma.vmem_to_smem %s205, 16, [#allocation6], [#allocation7]
        $region20: #{tpu_custom_call.1} parent=11 // pred_fallthru
          _
        // Predicated region
        $region21: #{tpu_custom_call.1} parent=11 // pred_check
          %p208 = pneg %p94
        $region22: #{tpu_custom_call.1} parent=11 // pred_check_branch
          %210 = sbr.rel (%p208) target = $region24
        $region23: #{tpu_custom_call.1} parent=11 // pred_region
          _
        $region24: #{tpu_custom_call.1} parent=11 // pred_fallthru
          _
        // Predicated region
        $region25: #{tpu_custom_call.1} parent=11 // pred_check
          %p211 = pneg %p115
        $region26: #{tpu_custom_call.1} parent=11 // pred_check_branch
          %213 = sbr.rel (%p211) target = $region28
        $region27: #{tpu_custom_call.1} parent=11 // pred_region
          _
        $region28: #{tpu_custom_call.1} parent=11 // pred_fallthru
          _
      $region12: #{tpu_custom_call.1} parent=5 // pred_fallthru
        _
      %p214 = scmp.lt.s32.totalorder %s19, 2
      // Predicated region
      $region29: #{tpu_custom_call.1} parent=5 // pred_check
        %p215 = pneg %p214
      $region30: #{tpu_custom_call.1} parent=5 // pred_check_branch
        %217 = sbr.rel (%p215) target = $region32
      $region31: #{tpu_custom_call.1} parent=5 // pred_region
        // Predicated region
        $region33: #{tpu_custom_call.1} parent=31 // pred_check
          %p218 = pneg %p137
        $region34: #{tpu_custom_call.1} parent=31 // pred_check_branch
          %220 = sbr.rel (%p218) target = $region36
        $region35: #{tpu_custom_call.1} parent=31 // pred_region
          %s221 = sand.u32 %s127, 1
          %s222 = scalar_lea.sflag [#allocation3], %s221
          %s223 = sand.u32 %s127, 1
          %s224 = smul.addr %s223, 192
          %s225 = scalar_lea.vmem [#allocation8], %s224
          %s226 = smul.u32 3, %s26
          %s227 = smul.u32 2, %s27
          %229 = vsyncadd %s222, 0
          %s230 = smul.addr %s226, 8
          %s231 = sadd.s32 %s227, %s230
          %s232 = smul.addr %s231, 8
          %s233 = scalar_lea.hbm %s4, %s232
          %s234 = sshll.u32 %s233, 4
          %s235 = int_to_ptr.hbm [resolvable:$true] %s234
          %s236 = sshll.u32 %s225, 4
          %s237 = int_to_ptr.vmem [resolvable:$true] %s236
          %242 = dma.hbm_to_vmem [thread:$0]  %s235, 3072, %s237, %s222, 128, 128, 8
        $region36: #{tpu_custom_call.1} parent=31 // pred_fallthru
          _
      $region32: #{tpu_custom_call.1} parent=5 // pred_fallthru
        _
      %p243 = scmp.le.s32.totalorder 1, %s19
      %p244 = scmp.lt.s32.totalorder %s19, 3
      %p245 = pnand %p243, %p244
      %p246 = pneg %p245
      // Predicated region
      $region37: #{tpu_custom_call.1} parent=5 // pred_check
        _
      $region38: #{tpu_custom_call.1} parent=5 // pred_check_branch
        %248 = sbr.rel (%p245) target = $region40
      $region39: #{tpu_custom_call.1} parent=5 // pred_region
        %s249 = ssub.s32 %s19, 1
        // Predicated region
        $region41: #{tpu_custom_call.1} parent=39 // pred_check
          %p250 = pneg %p52
        $region42: #{tpu_custom_call.1} parent=39 // pred_check_branch
          %252 = sbr.rel (%p250) target = $region44
        $region43: #{tpu_custom_call.1} parent=39 // pred_region
          %254 = dma.done [#allocation5], 512
        $region44: #{tpu_custom_call.1} parent=39 // pred_fallthru
          _
        // Predicated region
        $region45: #{tpu_custom_call.1} parent=39 // pred_check
          %p255 = pneg %p73
        $region46: #{tpu_custom_call.1} parent=39 // pred_check_branch
          %257 = sbr.rel (%p255) target = $region48
        $region47: #{tpu_custom_call.1} parent=39 // pred_region
          %259 = dma.done [#allocation7], 16
        $region48: #{tpu_custom_call.1} parent=39 // pred_fallthru
          _
        %s260 = sand.u32 %s130, 1
        %s261 = scalar_lea.sflag [#allocation3], %s260
        %s262 = sand.u32 %s130, 1
        %s263 = smul.addr %s262, 192
        %s264 = scalar_lea.vmem [#allocation8], %s263
        // Predicated region
        $region49: #{tpu_custom_call.1} parent=39 // pred_check
          %p265 = pneg %p143
        $region50: #{tpu_custom_call.1} parent=39 // pred_check_branch
          %267 = sbr.rel (%p265) target = $region52
        $region51: #{tpu_custom_call.1} parent=39 // pred_region
          %269 = dma.done %s261, 3072
        $region52: #{tpu_custom_call.1} parent=39 // pred_fallthru
          _
        %270 = sfence
        %p271 = pneg %p52
        %p272 = pneg %p49
        %p273 = pneg %p73
        %p274 = pneg %p70
        %p275 = pneg %p94
        %p276 = pneg %p91
        %p277 = pneg %p115
        %p278 = pneg %p112
        %s279 = sand.u32 %s130, 1
        %s280 = scalar_lea.sflag [#allocation3], %s279
        %s281 = sand.u32 %s130, 1
        %s282 = smul.addr %s281, 192
        %s283 = scalar_lea.vmem [#allocation8], %s282
        %p284 = pneg %p143
        %p285 = pneg %p140
        %p286 = pneg %p171
        %p287 = pneg %p168
        %s288 = sand.u32 %s158, 1
        %s289 = scalar_lea.sflag [#allocation4], %s288
        %s290 = sand.u32 %s158, 1
        %s291 = smul.addr %s290, 384
        %s292 = scalar_lea.vmem [#allocation9], %s291
        %s293 = smul.u32 3, %s28
        %s294 = smul.u32 2, %s29
        %s295 = smul.u32 3, %s28
        %s296 = smul.u32 2, %s29
        %v297 = vld [vmem:[%s2] sm:$0xff]
        %v298 = vld [vmem:[%s2 + $0x8] sm:$0xff]
        %v299 = vld [vmem:[%s3] sm:$0xff]
        %v300 = vld [vmem:[%s3 + $0x8] sm:$0xff]
        %v301 = vld [vmem:[%s264] sm:$0xff]
        %v302 = vld [vmem:[%s264 + $0x8] sm:$0xff]
        %s303 = scalar_lea.vmem %s264, 16 [#allocation8]
        %v304 = vld [vmem:[%s303] sm:$0xff]
        %v305 = vld [vmem:[%s303 + $0x8] sm:$0xff]
        %s306 = scalar_lea.vmem %s264, 32 [#allocation8]
        %v307 = vld [vmem:[%s306] sm:$0xff]
        %v308 = vld [vmem:[%s306 + $0x8] sm:$0xff]
        %s309 = scalar_lea.vmem %s264, 48 [#allocation8]
        %v310 = vld [vmem:[%s309] sm:$0xff]
        %v311 = vld [vmem:[%s309 + $0x8] sm:$0xff]
        %s312 = sld [smem:[#allocation2]]
        %v313 = vstv %s312
        %v314 = vmul.f32 %v301, %v313
        %v315 = vmul.f32 %v302, %v313
        %s316 = sld [smem:[#allocation2 + $0x1]]
        %v317 = vstv %s316
        %v318 = vmul.f32 %v304, %v317
        %v319 = vmul.f32 %v305, %v317
        %v320 = vadd.f32 %v314, %v318
        %v321 = vadd.f32 %v315, %v319
        %s322 = sld [smem:[#allocation2 + $0x2]]
        %v323 = vstv %s322
        %v324 = vmul.f32 %v307, %v323
        %v325 = vmul.f32 %v308, %v323
        %v326 = vadd.f32 %v320, %v324
        %v327 = vadd.f32 %v321, %v325
        %s328 = sld [smem:[#allocation2 + $0x3]]
        %v329 = vstv %s328
        %v330 = vmul.f32 %v310, %v329
        %v331 = vmul.f32 %v311, %v329
        %v332 = vadd.f32 %v326, %v330
        %v333 = vadd.f32 %v327, %v331
        %s334 = sld [smem:[#allocation6]]
        %v335 = vstv %s334
        %v336 = vadd.f32 %v332, %v335
        %v337 = vadd.f32 %v333, %v335
        %s338 = sld [smem:[#allocation2 + $0x400]]
        %v339 = vstv %s338
        %v340 = vmul.f32 %v301, %v339
        %v341 = vmul.f32 %v302, %v339
        %s342 = sld [smem:[#allocation2 + $0x401]]
        %v343 = vstv %s342
        %v344 = vmul.f32 %v304, %v343
        %v345 = vmul.f32 %v305, %v343
        %v346 = vadd.f32 %v340, %v344
        %v347 = vadd.f32 %v341, %v345
        %s348 = sld [smem:[#allocation2 + $0x402]]
        %v349 = vstv %s348
        %v350 = vmul.f32 %v307, %v349
        %v351 = vmul.f32 %v308, %v349
        %v352 = vadd.f32 %v346, %v350
        %v353 = vadd.f32 %v347, %v351
        %s354 = sld [smem:[#allocation2 + $0x403]]
        %v355 = vstv %s354
        %v356 = vmul.f32 %v310, %v355
        %v357 = vmul.f32 %v311, %v355
        %v358 = vadd.f32 %v352, %v356
        %v359 = vadd.f32 %v353, %v357
        %s360 = sld [smem:[#allocation6 + $0x8]]
        %v361 = vstv %s360
        %v362 = vadd.f32 %v358, %v361
        %v363 = vadd.f32 %v359, %v361
        %s364 = sld [smem:[#allocation2 + $0x800]]
        %v365 = vstv %s364
        %v366 = vmul.f32 %v301, %v365
        %v367 = vmul.f32 %v302, %v365
        %s368 = sld [smem:[#allocation2 + $0x801]]
        %v369 = vstv %s368
        %v370 = vmul.f32 %v304, %v369
        %v371 = vmul.f32 %v305, %v369
        %v372 = vadd.f32 %v366, %v370
        %v373 = vadd.f32 %v367, %v371
        %s374 = sld [smem:[#allocation2 + $0x802]]
        %v375 = vstv %s374
        %v376 = vmul.f32 %v307, %v375
        %v377 = vmul.f32 %v308, %v375
        %v378 = vadd.f32 %v372, %v376
        %v379 = vadd.f32 %v373, %v377
        %s380 = sld [smem:[#allocation2 + $0x803]]
        %v381 = vstv %s380
        %v382 = vmul.f32 %v310, %v381
        %v383 = vmul.f32 %v311, %v381
        %v384 = vadd.f32 %v378, %v382
        %v385 = vadd.f32 %v379, %v383
        %s386 = sld [smem:[#allocation6 + $0x10]]
        %v387 = vstv %s386
        %v388 = vadd.f32 %v384, %v387
        %v389 = vadd.f32 %v385, %v387
        %s390 = sld [smem:[#allocation2 + $0xc00]]
        %v391 = vstv %s390
        %v392 = vmul.f32 %v301, %v391
        %v393 = vmul.f32 %v302, %v391
        %s394 = sld [smem:[#allocation2 + $0xc01]]
        %v395 = vstv %s394
        %v396 = vmul.f32 %v304, %v395
        %v397 = vmul.f32 %v305, %v395
        %v398 = vadd.f32 %v392, %v396
        %v399 = vadd.f32 %v393, %v397
        %s400 = sld [smem:[#allocation2 + $0xc02]]
        %v401 = vstv %s400
        %v402 = vmul.f32 %v307, %v401
        %v403 = vmul.f32 %v308, %v401
        %v404 = vadd.f32 %v398, %v402
        %v405 = vadd.f32 %v399, %v403
        %s406 = sld [smem:[#allocation2 + $0xc03]]
        %v407 = vstv %s406
        %v408 = vmul.f32 %v310, %v407
        %v409 = vmul.f32 %v311, %v407
        %v410 = vadd.f32 %v404, %v408
        %v411 = vadd.f32 %v405, %v409
        %s412 = sld [smem:[#allocation6 + $0x18]]
        %v413 = vstv %s412
        %v414 = vadd.f32 %v410, %v413
        %v415 = vadd.f32 %v411, %v413
        %vm416 = vcmask 130048
        %v418 = vsel %vm416, %v362, 0
        %v421 = vsel %vm416, %v363, 0
        %423 = vmatpush.msra.mxu0 0.0
        %424 = vmatpush.msra.mxu0 0.0
        %425 = vmatpush.msra.mxu0 0.0
        %426 = vmatpush.msra.mxu0 0.0
        %427 = vmatpush.msra.mxu0 0.0
        %428 = vmatpush.msra.mxu0 0.0
        %429 = vmatpush.msra.mxu0 0.0
        %430 = vmatpush.msra.mxu0 0.0
        %431 = vmatpush.msra.mxu0 0.0
        %432 = vmatpush.msra.mxu0 0.0
        %433 = vmatpush.msra.mxu0 0.0
        %434 = vmatpush.msra.mxu0 0.0
        %435 = vmatpush.msra.mxu0 0.0
        %436 = vmatpush.msra.mxu0 0.0
        %437 = vmatpush.msra.mxu0 %v300
        %438 = vmatpush.msra.mxu0 %v299
        %439 = vmatmul.f32.gmra.mxu0 %v418
        %v440 = vpop.f32.mrf.mxu0
        %v441 = vadd.f32 0.0, %v440
        %442 = vmatmul.f32.gmra.mxu0 %v421
        %v443 = vpop.f32.mrf.mxu0
        %v444 = vadd.f32 0.0, %v443
        %445 = vdwg.mxu0
        %v447 = vsel %vm416, %v336, 0
        %v450 = vsel %vm416, %v337, 0
        %452 = vmatpush.msra.mxu0 0.0
        %453 = vmatpush.msra.mxu0 0.0
        %454 = vmatpush.msra.mxu0 0.0
        %455 = vmatpush.msra.mxu0 0.0
        %456 = vmatpush.msra.mxu0 0.0
        %457 = vmatpush.msra.mxu0 0.0
        %458 = vmatpush.msra.mxu0 0.0
        %459 = vmatpush.msra.mxu0 0.0
        %460 = vmatpush.msra.mxu0 0.0
        %461 = vmatpush.msra.mxu0 0.0
        %462 = vmatpush.msra.mxu0 0.0
        %463 = vmatpush.msra.mxu0 0.0
        %464 = vmatpush.msra.mxu0 0.0
        %465 = vmatpush.msra.mxu0 0.0
        %466 = vmatpush.msra.mxu0 %v298
        %467 = vmatpush.msra.mxu0 %v297
        %468 = vmatmul.f32.gmra.mxu0 %v447
        %v469 = vpop.f32.mrf.mxu0
        %v470 = vadd.f32 %v441, %v469
        %471 = vmatmul.f32.gmra.mxu0 %v450
        %v472 = vpop.f32.mrf.mxu0
        %v473 = vadd.f32 %v444, %v472
        %474 = vdwg.mxu0
        %v476 = vsel %vm416, %v414, 0
        %v479 = vsel %vm416, %v415, 0
        %481 = vmatpush.msra.mxu0 0.0
        %482 = vmatpush.msra.mxu0 0.0
        %483 = vmatpush.msra.mxu0 0.0
        %484 = vmatpush.msra.mxu0 0.0
        %485 = vmatpush.msra.mxu0 0.0
        %486 = vmatpush.msra.mxu0 0.0
        %487 = vmatpush.msra.mxu0 0.0
        %488 = vmatpush.msra.mxu0 0.0
        %489 = vmatpush.msra.mxu0 0.0
        %490 = vmatpush.msra.mxu0 0.0
        %491 = vmatpush.msra.mxu0 0.0
        %492 = vmatpush.msra.mxu0 0.0
        %493 = vmatpush.msra.mxu0 0.0
        %494 = vmatpush.msra.mxu0 0.0
        %495 = vmatpush.msra.mxu0 %v300
        %496 = vmatpush.msra.mxu0 %v299
        %497 = vmatmul.f32.gmra.mxu0 %v476
        %v498 = vpop.f32.mrf.mxu0
        %v499 = vadd.f32 0.0, %v498
        %500 = vmatmul.f32.gmra.mxu0 %v479
        %v501 = vpop.f32.mrf.mxu0
        %v502 = vadd.f32 0.0, %v501
        %503 = vdwg.mxu0
        %v505 = vsel %vm416, %v388, 0
        %v508 = vsel %vm416, %v389, 0
        %510 = vmatpush.msra.mxu0 0.0
        %511 = vmatpush.msra.mxu0 0.0
        %512 = vmatpush.msra.mxu0 0.0
        %513 = vmatpush.msra.mxu0 0.0
        %514 = vmatpush.msra.mxu0 0.0
        %515 = vmatpush.msra.mxu0 0.0
        %516 = vmatpush.msra.mxu0 0.0
        %517 = vmatpush.msra.mxu0 0.0
        %518 = vmatpush.msra.mxu0 0.0
        %519 = vmatpush.msra.mxu0 0.0
        %520 = vmatpush.msra.mxu0 0.0
        %521 = vmatpush.msra.mxu0 0.0
        %522 = vmatpush.msra.mxu0 0.0
        %523 = vmatpush.msra.mxu0 0.0
        %524 = vmatpush.msra.mxu0 %v298
        %525 = vmatpush.msra.mxu0 %v297
        %526 = vmatmul.f32.gmra.mxu0 %v505
        %v527 = vpop.f32.mrf.mxu0
        %v528 = vadd.f32 %v499, %v527
        %529 = vmatmul.f32.gmra.mxu0 %v508
        %v530 = vpop.f32.mrf.mxu0
        %v531 = vadd.f32 %v502, %v530
        %532 = vdwg.mxu0
        %vm533 = vcmask 261120
        %534 = vst.msk [vmem:[%s292] sm:$0xff] %vm533, %v470
        %535 = vst.msk [vmem:[%s292 + $0x8] sm:$0xff] %vm533, %v473
        %538 = vrot.lane.b32.xlu0 %v528, 32
        %v539 = vpop.permute.xlu0 %538
        %540 = vrot.lane.b32.xlu0 %v531, 32
        %v541 = vpop.permute.xlu0 %540
        %vm544 = vcmask 523520
        %545 = vst.msk [vmem:[%s292] sm:$0xff] %vm544, %v539
        %546 = vst.msk [vmem:[%s292 + $0x8] sm:$0xff] %vm544, %v541
        %s547 = sld [smem:[#allocation2 + $0x80]]
        %v548 = vstv %s547
        %v549 = vmul.f32 %v301, %v548
        %v550 = vmul.f32 %v302, %v548
        %s551 = sld [smem:[#allocation2 + $0x81]]
        %v552 = vstv %s551
        %v553 = vmul.f32 %v304, %v552
        %v554 = vmul.f32 %v305, %v552
        %v555 = vadd.f32 %v549, %v553
        %v556 = vadd.f32 %v550, %v554
        %s557 = sld [smem:[#allocation2 + $0x82]]
        %v558 = vstv %s557
        %v559 = vmul.f32 %v307, %v558
        %v560 = vmul.f32 %v308, %v558
        %v561 = vadd.f32 %v555, %v559
        %v562 = vadd.f32 %v556, %v560
        %s563 = sld [smem:[#allocation2 + $0x83]]
        %v564 = vstv %s563
        %v565 = vmul.f32 %v310, %v564
        %v566 = vmul.f32 %v311, %v564
        %v567 = vadd.f32 %v561, %v565
        %v568 = vadd.f32 %v562, %v566
        %s569 = sld [smem:[#allocation6 + $0x1]]
        %v570 = vstv %s569
        %v571 = vadd.f32 %v567, %v570
        %v572 = vadd.f32 %v568, %v570
        %s573 = sld [smem:[#allocation2 + $0x480]]
        %v574 = vstv %s573
        %v575 = vmul.f32 %v301, %v574
        %v576 = vmul.f32 %v302, %v574
        %s577 = sld [smem:[#allocation2 + $0x481]]
        %v578 = vstv %s577
        %v579 = vmul.f32 %v304, %v578
        %v580 = vmul.f32 %v305, %v578
        %v581 = vadd.f32 %v575, %v579
        %v582 = vadd.f32 %v576, %v580
        %s583 = sld [smem:[#allocation2 + $0x482]]
        %v584 = vstv %s583
        %v585 = vmul.f32 %v307, %v584
        %v586 = vmul.f32 %v308, %v584
        %v587 = vadd.f32 %v581, %v585
        %v588 = vadd.f32 %v582, %v586
        %s589 = sld [smem:[#allocation2 + $0x483]]
        %v590 = vstv %s589
        %v591 = vmul.f32 %v310, %v590
        %v592 = vmul.f32 %v311, %v590
        %v593 = vadd.f32 %v587, %v591
        %v594 = vadd.f32 %v588, %v592
        %s595 = sld [smem:[#allocation6 + $0x9]]
        %v596 = vstv %s595
        %v597 = vadd.f32 %v593, %v596
        %v598 = vadd.f32 %v594, %v596
        %s599 = sld [smem:[#allocation2 + $0x880]]
        %v600 = vstv %s599
        %v601 = vmul.f32 %v301, %v600
        %v602 = vmul.f32 %v302, %v600
        %s603 = sld [smem:[#allocation2 + $0x881]]
        %v604 = vstv %s603
        %v605 = vmul.f32 %v304, %v604
        %v606 = vmul.f32 %v305, %v604
        %v607 = vadd.f32 %v601, %v605
        %v608 = vadd.f32 %v602, %v606
        %s609 = sld [smem:[#allocation2 + $0x882]]
        %v610 = vstv %s609
        %v611 = vmul.f32 %v307, %v610
        %v612 = vmul.f32 %v308, %v610
        %v613 = vadd.f32 %v607, %v611
        %v614 = vadd.f32 %v608, %v612
        %s615 = sld [smem:[#allocation2 + $0x883]]
        %v616 = vstv %s615
        %v617 = vmul.f32 %v310, %v616
        %v618 = vmul.f32 %v311, %v616
        %v619 = vadd.f32 %v613, %v617
        %v620 = vadd.f32 %v614, %v618
        %s621 = sld [smem:[#allocation6 + $0x11]]
        %v622 = vstv %s621
        %v623 = vadd.f32 %v619, %v622
        %v624 = vadd.f32 %v620, %v622
        %s625 = sld [smem:[#allocation2 + $0xc80]]
        %v626 = vstv %s625
        %v627 = vmul.f32 %v301, %v626
        %v628 = vmul.f32 %v302, %v626
        %s629 = sld [smem:[#allocation2 + $0xc81]]
        %v630 = vstv %s629
        %v631 = vmul.f32 %v304, %v630
        %v632 = vmul.f32 %v305, %v630
        %v633 = vadd.f32 %v627, %v631
        %v634 = vadd.f32 %v628, %v632
        %s635 = sld [smem:[#allocation2 + $0xc82]]
        %v636 = vstv %s635
        %v637 = vmul.f32 %v307, %v636
        %v638 = vmul.f32 %v308, %v636
        %v639 = vadd.f32 %v633, %v637
        %v640 = vadd.f32 %v634, %v638
        %s641 = sld [smem:[#allocation2 + $0xc83]]
        %v642 = vstv %s641
        %v643 = vmul.f32 %v310, %v642
        %v644 = vmul.f32 %v311, %v642
        %v645 = vadd.f32 %v639, %v643
        %v646 = vadd.f32 %v640, %v644
        %s647 = sld [smem:[#allocation6 + $0x19]]
        %v648 = vstv %s647
        %v649 = vadd.f32 %v645, %v648
        %v650 = vadd.f32 %v646, %v648
        %v652 = vsel %vm416, %v597, 0
        %v655 = vsel %vm416, %v598, 0
        %657 = vmatpush.msra.mxu0 0.0
        %658 = vmatpush.msra.mxu0 0.0
        %659 = vmatpush.msra.mxu0 0.0
        %660 = vmatpush.msra.mxu0 0.0
        %661 = vmatpush.msra.mxu0 0.0
        %662 = vmatpush.msra.mxu0 0.0
        %663 = vmatpush.msra.mxu0 0.0
        %664 = vmatpush.msra.mxu0 0.0
        %665 = vmatpush.msra.mxu0 0.0
        %666 = vmatpush.msra.mxu0 0.0
        %667 = vmatpush.msra.mxu0 0.0
        %668 = vmatpush.msra.mxu0 0.0
        %669 = vmatpush.msra.mxu0 0.0
        %670 = vmatpush.msra.mxu0 0.0
        %671 = vmatpush.msra.mxu0 %v300
        %672 = vmatpush.msra.mxu0 %v299
        %673 = vmatmul.f32.gmra.mxu0 %v652
        %v674 = vpop.f32.mrf.mxu0
        %v675 = vadd.f32 0.0, %v674
        %676 = vmatmul.f32.gmra.mxu0 %v655
        %v677 = vpop.f32.mrf.mxu0
        %v678 = vadd.f32 0.0, %v677
        %679 = vdwg.mxu0
        %v681 = vsel %vm416, %v571, 0
        %v684 = vsel %vm416, %v572, 0
        %686 = vmatpush.msra.mxu0 0.0
        %687 = vmatpush.msra.mxu0 0.0
        %688 = vmatpush.msra.mxu0 0.0
        %689 = vmatpush.msra.mxu0 0.0
        %690 = vmatpush.msra.mxu0 0.0
        %691 = vmatpush.msra.mxu0 0.0
        %692 = vmatpush.msra.mxu0 0.0
        %693 = vmatpush.msra.mxu0 0.0
        %694 = vmatpush.msra.mxu0 0.0
        %695 = vmatpush.msra.mxu0 0.0
        %696 = vmatpush.msra.mxu0 0.0
        %697 = vmatpush.msra.mxu0 0.0
        %698 = vmatpush.msra.mxu0 0.0
        %699 = vmatpush.msra.mxu0 0.0
        %700 = vmatpush.msra.mxu0 %v298
        %701 = vmatpush.msra.mxu0 %v297
        %702 = vmatmul.f32.gmra.mxu0 %v681
        %v703 = vpop.f32.mrf.mxu0
        %v704 = vadd.f32 %v675, %v703
        %705 = vmatmul.f32.gmra.mxu0 %v684
        %v706 = vpop.f32.mrf.mxu0
        %v707 = vadd.f32 %v678, %v706
        %708 = vdwg.mxu0
        %v710 = vsel %vm416, %v649, 0
        %v713 = vsel %vm416, %v650, 0
        %715 = vmatpush.msra.mxu0 0.0
        %716 = vmatpush.msra.mxu0 0.0
        %717 = vmatpush.msra.mxu0 0.0
        %718 = vmatpush.msra.mxu0 0.0
        %719 = vmatpush.msra.mxu0 0.0
        %720 = vmatpush.msra.mxu0 0.0
        %721 = vmatpush.msra.mxu0 0.0
        %722 = vmatpush.msra.mxu0 0.0
        %723 = vmatpush.msra.mxu0 0.0
        %724 = vmatpush.msra.mxu0 0.0
        %725 = vmatpush.msra.mxu0 0.0
        %726 = vmatpush.msra.mxu0 0.0
        %727 = vmatpush.msra.mxu0 0.0
        %728 = vmatpush.msra.mxu0 0.0
        %729 = vmatpush.msra.mxu0 %v300
        %730 = vmatpush.msra.mxu0 %v299
        %731 = vmatmul.f32.gmra.mxu0 %v710
        %v732 = vpop.f32.mrf.mxu0
        %v733 = vadd.f32 0.0, %v732
        %734 = vmatmul.f32.gmra.mxu0 %v713
        %v735 = vpop.f32.mrf.mxu0
        %v736 = vadd.f32 0.0, %v735
        %737 = vdwg.mxu0
        %v739 = vsel %vm416, %v623, 0
        %v742 = vsel %vm416, %v624, 0
        %744 = vmatpush.msra.mxu0 0.0
        %745 = vmatpush.msra.mxu0 0.0
        %746 = vmatpush.msra.mxu0 0.0
        %747 = vmatpush.msra.mxu0 0.0
        %748 = vmatpush.msra.mxu0 0.0
        %749 = vmatpush.msra.mxu0 0.0
        %750 = vmatpush.msra.mxu0 0.0
        %751 = vmatpush.msra.mxu0 0.0
        %752 = vmatpush.msra.mxu0 0.0
        %753 = vmatpush.msra.mxu0 0.0
        %754 = vmatpush.msra.mxu0 0.0
        %755 = vmatpush.msra.mxu0 0.0
        %756 = vmatpush.msra.mxu0 0.0
        %757 = vmatpush.msra.mxu0 0.0
        %758 = vmatpush.msra.mxu0 %v298
        %759 = vmatpush.msra.mxu0 %v297
        %760 = vmatmul.f32.gmra.mxu0 %v739
        %v761 = vpop.f32.mrf.mxu0
        %v762 = vadd.f32 %v733, %v761
        %763 = vmatmul.f32.gmra.mxu0 %v742
        %v764 = vpop.f32.mrf.mxu0
        %v765 = vadd.f32 %v736, %v764
        %766 = vdwg.mxu0
        %s767 = scalar_lea.vmem %s292, 16 [#allocation9]
        %768 = vst.msk [vmem:[%s767] sm:$0xff] %vm533, %v704
        %769 = vst.msk [vmem:[%s767 + $0x8] sm:$0xff] %vm533, %v707
        %772 = vrot.lane.b32.xlu0 %v762, 32
        %v773 = vpop.permute.xlu0 %772
        %774 = vrot.lane.b32.xlu0 %v765, 32
        %v775 = vpop.permute.xlu0 %774
        %778 = vst.msk [vmem:[%s767] sm:$0xff] %vm544, %v773
        %779 = vst.msk [vmem:[%s767 + $0x8] sm:$0xff] %vm544, %v775
        %s780 = sld [smem:[#allocation2 + $0x100]]
        %v781 = vstv %s780
        %v782 = vmul.f32 %v301, %v781
        %v783 = vmul.f32 %v302, %v781
        %s784 = sld [smem:[#allocation2 + $0x101]]
        %v785 = vstv %s784
        %v786 = vmul.f32 %v304, %v785
        %v787 = vmul.f32 %v305, %v785
        %v788 = vadd.f32 %v782, %v786
        %v789 = vadd.f32 %v783, %v787
        %s790 = sld [smem:[#allocation2 + $0x102]]
        %v791 = vstv %s790
        %v792 = vmul.f32 %v307, %v791
        %v793 = vmul.f32 %v308, %v791
        %v794 = vadd.f32 %v788, %v792
        %v795 = vadd.f32 %v789, %v793
        %s796 = sld [smem:[#allocation2 + $0x103]]
        %v797 = vstv %s796
        %v798 = vmul.f32 %v310, %v797
        %v799 = vmul.f32 %v311, %v797
        %v800 = vadd.f32 %v794, %v798
        %v801 = vadd.f32 %v795, %v799
        %s802 = sld [smem:[#allocation6 + $0x2]]
        %v803 = vstv %s802
        %v804 = vadd.f32 %v800, %v803
        %v805 = vadd.f32 %v801, %v803
        %s806 = sld [smem:[#allocation2 + $0x500]]
        %v807 = vstv %s806
        %v808 = vmul.f32 %v301, %v807
        %v809 = vmul.f32 %v302, %v807
        %s810 = sld [smem:[#allocation2 + $0x501]]
        %v811 = vstv %s810
        %v812 = vmul.f32 %v304, %v811
        %v813 = vmul.f32 %v305, %v811
        %v814 = vadd.f32 %v808, %v812
        %v815 = vadd.f32 %v809, %v813
        %s816 = sld [smem:[#allocation2 + $0x502]]
        %v817 = vstv %s816
        %v818 = vmul.f32 %v307, %v817
        %v819 = vmul.f32 %v308, %v817
        %v820 = vadd.f32 %v814, %v818
        %v821 = vadd.f32 %v815, %v819
        %s822 = sld [smem:[#allocation2 + $0x503]]
        %v823 = vstv %s822
        %v824 = vmul.f32 %v310, %v823
        %v825 = vmul.f32 %v311, %v823
        %v826 = vadd.f32 %v820, %v824
        %v827 = vadd.f32 %v821, %v825
        %s828 = sld [smem:[#allocation6 + $0xa]]
        %v829 = vstv %s828
        %v830 = vadd.f32 %v826, %v829
        %v831 = vadd.f32 %v827, %v829
        %s832 = sld [smem:[#allocation2 + $0x900]]
        %v833 = vstv %s832
        %v834 = vmul.f32 %v301, %v833
        %v835 = vmul.f32 %v302, %v833
        %s836 = sld [smem:[#allocation2 + $0x901]]
        %v837 = vstv %s836
        %v838 = vmul.f32 %v304, %v837
        %v839 = vmul.f32 %v305, %v837
        %v840 = vadd.f32 %v834, %v838
        %v841 = vadd.f32 %v835, %v839
        %s842 = sld [smem:[#allocation2 + $0x902]]
        %v843 = vstv %s842
        %v844 = vmul.f32 %v307, %v843
        %v845 = vmul.f32 %v308, %v843
        %v846 = vadd.f32 %v840, %v844
        %v847 = vadd.f32 %v841, %v845
        %s848 = sld [smem:[#allocation2 + $0x903]]
        %v849 = vstv %s848
        %v850 = vmul.f32 %v310, %v849
        %v851 = vmul.f32 %v311, %v849
        %v852 = vadd.f32 %v846, %v850
        %v853 = vadd.f32 %v847, %v851
        %s854 = sld [smem:[#allocation6 + $0x12]]
        %v855 = vstv %s854
        %v856 = vadd.f32 %v852, %v855
        %v857 = vadd.f32 %v853, %v855
        %s858 = sld [smem:[#allocation2 + $0xd00]]
        %v859 = vstv %s858
        %v860 = vmul.f32 %v301, %v859
        %v861 = vmul.f32 %v302, %v859
        %s862 = sld [smem:[#allocation2 + $0xd01]]
        %v863 = vstv %s862
        %v864 = vmul.f32 %v304, %v863
        %v865 = vmul.f32 %v305, %v863
        %v866 = vadd.f32 %v860, %v864
        %v867 = vadd.f32 %v861, %v865
        %s868 = sld [smem:[#allocation2 + $0xd02]]
        %v869 = vstv %s868
        %v870 = vmul.f32 %v307, %v869
        %v871 = vmul.f32 %v308, %v869
        %v872 = vadd.f32 %v866, %v870
        %v873 = vadd.f32 %v867, %v871
        %s874 = sld [smem:[#allocation2 + $0xd03]]
        %v875 = vstv %s874
        %v876 = vmul.f32 %v310, %v875
        %v877 = vmul.f32 %v311, %v875
        %v878 = vadd.f32 %v872, %v876
        %v879 = vadd.f32 %v873, %v877
        %s880 = sld [smem:[#allocation6 + $0x1a]]
        %v881 = vstv %s880
        %v882 = vadd.f32 %v878, %v881
        %v883 = vadd.f32 %v879, %v881
        %v885 = vsel %vm416, %v830, 0
        %v888 = vsel %vm416, %v831, 0
        %890 = vmatpush.msra.mxu0 0.0
        %891 = vmatpush.msra.mxu0 0.0
        %892 = vmatpush.msra.mxu0 0.0
        %893 = vmatpush.msra.mxu0 0.0
        %894 = vmatpush.msra.mxu0 0.0
        %895 = vmatpush.msra.mxu0 0.0
        %896 = vmatpush.msra.mxu0 0.0
        %897 = vmatpush.msra.mxu0 0.0
        %898 = vmatpush.msra.mxu0 0.0
        %899 = vmatpush.msra.mxu0 0.0
        %900 = vmatpush.msra.mxu0 0.0
        %901 = vmatpush.msra.mxu0 0.0
        %902 = vmatpush.msra.mxu0 0.0
        %903 = vmatpush.msra.mxu0 0.0
        %904 = vmatpush.msra.mxu0 %v300
        %905 = vmatpush.msra.mxu0 %v299
        %906 = vmatmul.f32.gmra.mxu0 %v885
        %v907 = vpop.f32.mrf.mxu0
        %v908 = vadd.f32 0.0, %v907
        %909 = vmatmul.f32.gmra.mxu0 %v888
        %v910 = vpop.f32.mrf.mxu0
        %v911 = vadd.f32 0.0, %v910
        %912 = vdwg.mxu0
        %v914 = vsel %vm416, %v804, 0
        %v917 = vsel %vm416, %v805, 0
        %919 = vmatpush.msra.mxu0 0.0
        %920 = vmatpush.msra.mxu0 0.0
        %921 = vmatpush.msra.mxu0 0.0
        %922 = vmatpush.msra.mxu0 0.0
        %923 = vmatpush.msra.mxu0 0.0
        %924 = vmatpush.msra.mxu0 0.0
        %925 = vmatpush.msra.mxu0 0.0
        %926 = vmatpush.msra.mxu0 0.0
        %927 = vmatpush.msra.mxu0 0.0
        %928 = vmatpush.msra.mxu0 0.0
        %929 = vmatpush.msra.mxu0 0.0
        %930 = vmatpush.msra.mxu0 0.0
        %931 = vmatpush.msra.mxu0 0.0
        %932 = vmatpush.msra.mxu0 0.0
        %933 = vmatpush.msra.mxu0 %v298
        %934 = vmatpush.msra.mxu0 %v297
        %935 = vmatmul.f32.gmra.mxu0 %v914
        %v936 = vpop.f32.mrf.mxu0
        %v937 = vadd.f32 %v908, %v936
        %938 = vmatmul.f32.gmra.mxu0 %v917
        %v939 = vpop.f32.mrf.mxu0
        %v940 = vadd.f32 %v911, %v939
        %941 = vdwg.mxu0
        %v943 = vsel %vm416, %v882, 0
        %v946 = vsel %vm416, %v883, 0
        %948 = vmatpush.msra.mxu0 0.0
        %949 = vmatpush.msra.mxu0 0.0
        %950 = vmatpush.msra.mxu0 0.0
        %951 = vmatpush.msra.mxu0 0.0
        %952 = vmatpush.msra.mxu0 0.0
        %953 = vmatpush.msra.mxu0 0.0
        %954 = vmatpush.msra.mxu0 0.0
        %955 = vmatpush.msra.mxu0 0.0
        %956 = vmatpush.msra.mxu0 0.0
        %957 = vmatpush.msra.mxu0 0.0
        %958 = vmatpush.msra.mxu0 0.0
        %959 = vmatpush.msra.mxu0 0.0
        %960 = vmatpush.msra.mxu0 0.0
        %961 = vmatpush.msra.mxu0 0.0
        %962 = vmatpush.msra.mxu0 %v300
        %963 = vmatpush.msra.mxu0 %v299
        %964 = vmatmul.f32.gmra.mxu0 %v943
        %v965 = vpop.f32.mrf.mxu0
        %v966 = vadd.f32 0.0, %v965
        %967 = vmatmul.f32.gmra.mxu0 %v946
        %v968 = vpop.f32.mrf.mxu0
        %v969 = vadd.f32 0.0, %v968
        %970 = vdwg.mxu0
        %v972 = vsel %vm416, %v856, 0
        %v975 = vsel %vm416, %v857, 0
        %977 = vmatpush.msra.mxu0 0.0
        %978 = vmatpush.msra.mxu0 0.0
        %979 = vmatpush.msra.mxu0 0.0
        %980 = vmatpush.msra.mxu0 0.0
        %981 = vmatpush.msra.mxu0 0.0
        %982 = vmatpush.msra.mxu0 0.0
        %983 = vmatpush.msra.mxu0 0.0
        %984 = vmatpush.msra.mxu0 0.0
        %985 = vmatpush.msra.mxu0 0.0
        %986 = vmatpush.msra.mxu0 0.0
        %987 = vmatpush.msra.mxu0 0.0
        %988 = vmatpush.msra.mxu0 0.0
        %989 = vmatpush.msra.mxu0 0.0
        %990 = vmatpush.msra.mxu0 0.0
        %991 = vmatpush.msra.mxu0 %v298
        %992 = vmatpush.msra.mxu0 %v297
        %993 = vmatmul.f32.gmra.mxu0 %v972
        %v994 = vpop.f32.mrf.mxu0
        %v995 = vadd.f32 %v966, %v994
        %996 = vmatmul.f32.gmra.mxu0 %v975
        %v997 = vpop.f32.mrf.mxu0
        %v998 = vadd.f32 %v969, %v997
        %999 = vdwg.mxu0
        %s1000 = scalar_lea.vmem %s292, 32 [#allocation9]
        %1001 = vst.msk [vmem:[%s1000] sm:$0xff] %vm533, %v937
        %1002 = vst.msk [vmem:[%s1000 + $0x8] sm:$0xff] %vm533, %v940
        %1005 = vrot.lane.b32.xlu0 %v995, 32
        %v1006 = vpop.permute.xlu0 %1005
        %1007 = vrot.lane.b32.xlu0 %v998, 32
        %v1008 = vpop.permute.xlu0 %1007
        %1011 = vst.msk [vmem:[%s1000] sm:$0xff] %vm544, %v1006
        %1012 = vst.msk [vmem:[%s1000 + $0x8] sm:$0xff] %vm544, %v1008
        %s1013 = sld [smem:[#allocation2 + $0x180]]
        %v1014 = vstv %s1013
        %v1015 = vmul.f32 %v301, %v1014
        %v1016 = vmul.f32 %v302, %v1014
        %s1017 = sld [smem:[#allocation2 + $0x181]]
        %v1018 = vstv %s1017
        %v1019 = vmul.f32 %v304, %v1018
        %v1020 = vmul.f32 %v305, %v1018
        %v1021 = vadd.f32 %v1015, %v1019
        %v1022 = vadd.f32 %v1016, %v1020
        %s1023 = sld [smem:[#allocation2 + $0x182]]
        %v1024 = vstv %s1023
        %v1025 = vmul.f32 %v307, %v1024
        %v1026 = vmul.f32 %v308, %v1024
        %v1027 = vadd.f32 %v1021, %v1025
        %v1028 = vadd.f32 %v1022, %v1026
        %s1029 = sld [smem:[#allocation2 + $0x183]]
        %v1030 = vstv %s1029
        %v1031 = vmul.f32 %v310, %v1030
        %v1032 = vmul.f32 %v311, %v1030
        %v1033 = vadd.f32 %v1027, %v1031
        %v1034 = vadd.f32 %v1028, %v1032
        %s1035 = sld [smem:[#allocation6 + $0x3]]
        %v1036 = vstv %s1035
        %v1037 = vadd.f32 %v1033, %v1036
        %v1038 = vadd.f32 %v1034, %v1036
        %s1039 = sld [smem:[#allocation2 + $0x580]]
        %v1040 = vstv %s1039
        %v1041 = vmul.f32 %v301, %v1040
        %v1042 = vmul.f32 %v302, %v1040
        %s1043 = sld [smem:[#allocation2 + $0x581]]
        %v1044 = vstv %s1043
        %v1045 = vmul.f32 %v304, %v1044
        %v1046 = vmul.f32 %v305, %v1044
        %v1047 = vadd.f32 %v1041, %v1045
        %v1048 = vadd.f32 %v1042, %v1046
        %s1049 = sld [smem:[#allocation2 + $0x582]]
        %v1050 = vstv %s1049
        %v1051 = vmul.f32 %v307, %v1050
        %v1052 = vmul.f32 %v308, %v1050
        %v1053 = vadd.f32 %v1047, %v1051
        %v1054 = vadd.f32 %v1048, %v1052
        %s1055 = sld [smem:[#allocation2 + $0x583]]
        %v1056 = vstv %s1055
        %v1057 = vmul.f32 %v310, %v1056
        %v1058 = vmul.f32 %v311, %v1056
        %v1059 = vadd.f32 %v1053, %v1057
        %v1060 = vadd.f32 %v1054, %v1058
        %s1061 = sld [smem:[#allocation6 + $0xb]]
        %v1062 = vstv %s1061
        %v1063 = vadd.f32 %v1059, %v1062
        %v1064 = vadd.f32 %v1060, %v1062
        %s1065 = sld [smem:[#allocation2 + $0x980]]
        %v1066 = vstv %s1065
        %v1067 = vmul.f32 %v301, %v1066
        %v1068 = vmul.f32 %v302, %v1066
        %s1069 = sld [smem:[#allocation2 + $0x981]]
        %v1070 = vstv %s1069
        %v1071 = vmul.f32 %v304, %v1070
        %v1072 = vmul.f32 %v305, %v1070
        %v1073 = vadd.f32 %v1067, %v1071
        %v1074 = vadd.f32 %v1068, %v1072
        %s1075 = sld [smem:[#allocation2 + $0x982]]
        %v1076 = vstv %s1075
        %v1077 = vmul.f32 %v307, %v1076
        %v1078 = vmul.f32 %v308, %v1076
        %v1079 = vadd.f32 %v1073, %v1077
        %v1080 = vadd.f32 %v1074, %v1078
        %s1081 = sld [smem:[#allocation2 + $0x983]]
        %v1082 = vstv %s1081
        %v1083 = vmul.f32 %v310, %v1082
        %v1084 = vmul.f32 %v311, %v1082
        %v1085 = vadd.f32 %v1079, %v1083
        %v1086 = vadd.f32 %v1080, %v1084
        %s1087 = sld [smem:[#allocation6 + $0x13]]
        %v1088 = vstv %s1087
        %v1089 = vadd.f32 %v1085, %v1088
        %v1090 = vadd.f32 %v1086, %v1088
        %s1091 = sld [smem:[#allocation2 + $0xd80]]
        %v1092 = vstv %s1091
        %v1093 = vmul.f32 %v301, %v1092
        %v1094 = vmul.f32 %v302, %v1092
        %s1095 = sld [smem:[#allocation2 + $0xd81]]
        %v1096 = vstv %s1095
        %v1097 = vmul.f32 %v304, %v1096
        %v1098 = vmul.f32 %v305, %v1096
        %v1099 = vadd.f32 %v1093, %v1097
        %v1100 = vadd.f32 %v1094, %v1098
        %s1101 = sld [smem:[#allocation2 + $0xd82]]
        %v1102 = vstv %s1101
        %v1103 = vmul.f32 %v307, %v1102
        %v1104 = vmul.f32 %v308, %v1102
        %v1105 = vadd.f32 %v1099, %v1103
        %v1106 = vadd.f32 %v1100, %v1104
        %s1107 = sld [smem:[#allocation2 + $0xd83]]
        %v1108 = vstv %s1107
        %v1109 = vmul.f32 %v310, %v1108
        %v1110 = vmul.f32 %v311, %v1108
        %v1111 = vadd.f32 %v1105, %v1109
        %v1112 = vadd.f32 %v1106, %v1110
        %s1113 = sld [smem:[#allocation6 + $0x1b]]
        %v1114 = vstv %s1113
        %v1115 = vadd.f32 %v1111, %v1114
        %v1116 = vadd.f32 %v1112, %v1114
        %v1118 = vsel %vm416, %v1063, 0
        %v1121 = vsel %vm416, %v1064, 0
        %1123 = vmatpush.msra.mxu0 0.0
        %1124 = vmatpush.msra.mxu0 0.0
        %1125 = vmatpush.msra.mxu0 0.0
        %1126 = vmatpush.msra.mxu0 0.0
        %1127 = vmatpush.msra.mxu0 0.0
        %1128 = vmatpush.msra.mxu0 0.0
        %1129 = vmatpush.msra.mxu0 0.0
        %1130 = vmatpush.msra.mxu0 0.0
        %1131 = vmatpush.msra.mxu0 0.0
        %1132 = vmatpush.msra.mxu0 0.0
        %1133 = vmatpush.msra.mxu0 0.0
        %1134 = vmatpush.msra.mxu0 0.0
        %1135 = vmatpush.msra.mxu0 0.0
        %1136 = vmatpush.msra.mxu0 0.0
        %1137 = vmatpush.msra.mxu0 %v300
        %1138 = vmatpush.msra.mxu0 %v299
        %1139 = vmatmul.f32.gmra.mxu0 %v1118
        %v1140 = vpop.f32.mrf.mxu0
        %v1141 = vadd.f32 0.0, %v1140
        %1142 = vmatmul.f32.gmra.mxu0 %v1121
        %v1143 = vpop.f32.mrf.mxu0
        %v1144 = vadd.f32 0.0, %v1143
        %1145 = vdwg.mxu0
        %v1147 = vsel %vm416, %v1037, 0
        %v1150 = vsel %vm416, %v1038, 0
        %1152 = vmatpush.msra.mxu0 0.0
        %1153 = vmatpush.msra.mxu0 0.0
        %1154 = vmatpush.msra.mxu0 0.0
        %1155 = vmatpush.msra.mxu0 0.0
        %1156 = vmatpush.msra.mxu0 0.0
        %1157 = vmatpush.msra.mxu0 0.0
        %1158 = vmatpush.msra.mxu0 0.0
        %1159 = vmatpush.msra.mxu0 0.0
        %1160 = vmatpush.msra.mxu0 0.0
        %1161 = vmatpush.msra.mxu0 0.0
        %1162 = vmatpush.msra.mxu0 0.0
        %1163 = vmatpush.msra.mxu0 0.0
        %1164 = vmatpush.msra.mxu0 0.0
        %1165 = vmatpush.msra.mxu0 0.0
        %1166 = vmatpush.msra.mxu0 %v298
        %1167 = vmatpush.msra.mxu0 %v297
        %1168 = vmatmul.f32.gmra.mxu0 %v1147
        %v1169 = vpop.f32.mrf.mxu0
        %v1170 = vadd.f32 %v1141, %v1169
        %1171 = vmatmul.f32.gmra.mxu0 %v1150
        %v1172 = vpop.f32.mrf.mxu0
        %v1173 = vadd.f32 %v1144, %v1172
        %1174 = vdwg.mxu0
        %v1176 = vsel %vm416, %v1115, 0
        %v1179 = vsel %vm416, %v1116, 0
        %1181 = vmatpush.msra.mxu0 0.0
        %1182 = vmatpush.msra.mxu0 0.0
        %1183 = vmatpush.msra.mxu0 0.0
        %1184 = vmatpush.msra.mxu0 0.0
        %1185 = vmatpush.msra.mxu0 0.0
        %1186 = vmatpush.msra.mxu0 0.0
        %1187 = vmatpush.msra.mxu0 0.0
        %1188 = vmatpush.msra.mxu0 0.0
        %1189 = vmatpush.msra.mxu0 0.0
        %1190 = vmatpush.msra.mxu0 0.0
        %1191 = vmatpush.msra.mxu0 0.0
        %1192 = vmatpush.msra.mxu0 0.0
        %1193 = vmatpush.msra.mxu0 0.0
        %1194 = vmatpush.msra.mxu0 0.0
        %1195 = vmatpush.msra.mxu0 %v300
        %1196 = vmatpush.msra.mxu0 %v299
        %1197 = vmatmul.f32.gmra.mxu0 %v1176
        %v1198 = vpop.f32.mrf.mxu0
        %v1199 = vadd.f32 0.0, %v1198
        %1200 = vmatmul.f32.gmra.mxu0 %v1179
        %v1201 = vpop.f32.mrf.mxu0
        %v1202 = vadd.f32 0.0, %v1201
        %1203 = vdwg.mxu0
        %v1205 = vsel %vm416, %v1089, 0
        %v1208 = vsel %vm416, %v1090, 0
        %1210 = vmatpush.msra.mxu0 0.0
        %1211 = vmatpush.msra.mxu0 0.0
        %1212 = vmatpush.msra.mxu0 0.0
        %1213 = vmatpush.msra.mxu0 0.0
        %1214 = vmatpush.msra.mxu0 0.0
        %1215 = vmatpush.msra.mxu0 0.0
        %1216 = vmatpush.msra.mxu0 0.0
        %1217 = vmatpush.msra.mxu0 0.0
        %1218 = vmatpush.msra.mxu0 0.0
        %1219 = vmatpush.msra.mxu0 0.0
        %1220 = vmatpush.msra.mxu0 0.0
        %1221 = vmatpush.msra.mxu0 0.0
        %1222 = vmatpush.msra.mxu0 0.0
        %1223 = vmatpush.msra.mxu0 0.0
        %1224 = vmatpush.msra.mxu0 %v298
        %1225 = vmatpush.msra.mxu0 %v297
        %1226 = vmatmul.f32.gmra.mxu0 %v1205
        %v1227 = vpop.f32.mrf.mxu0
        %v1228 = vadd.f32 %v1199, %v1227
        %1229 = vmatmul.f32.gmra.mxu0 %v1208
        %v1230 = vpop.f32.mrf.mxu0
        %v1231 = vadd.f32 %v1202, %v1230
        %1232 = vdwg.mxu0
        %s1233 = scalar_lea.vmem %s292, 48 [#allocation9]
        %1234 = vst.msk [vmem:[%s1233] sm:$0xff] %vm533, %v1170
        %1235 = vst.msk [vmem:[%s1233 + $0x8] sm:$0xff] %vm533, %v1173
        %1238 = vrot.lane.b32.xlu0 %v1228, 32
        %v1239 = vpop.permute.xlu0 %1238
        %1240 = vrot.lane.b32.xlu0 %v1231, 32
        %v1241 = vpop.permute.xlu0 %1240
        %1244 = vst.msk [vmem:[%s1233] sm:$0xff] %vm544, %v1239
        %1245 = vst.msk [vmem:[%s1233 + $0x8] sm:$0xff] %vm544, %v1241
        %s1246 = sld [smem:[#allocation2 + $0x200]]
        %v1247 = vstv %s1246
        %v1248 = vmul.f32 %v301, %v1247
        %v1249 = vmul.f32 %v302, %v1247
        %s1250 = sld [smem:[#allocation2 + $0x201]]
        %v1251 = vstv %s1250
        %v1252 = vmul.f32 %v304, %v1251
        %v1253 = vmul.f32 %v305, %v1251
        %v1254 = vadd.f32 %v1248, %v1252
        %v1255 = vadd.f32 %v1249, %v1253
        %s1256 = sld [smem:[#allocation2 + $0x202]]
        %v1257 = vstv %s1256
        %v1258 = vmul.f32 %v307, %v1257
        %v1259 = vmul.f32 %v308, %v1257
        %v1260 = vadd.f32 %v1254, %v1258
        %v1261 = vadd.f32 %v1255, %v1259
        %s1262 = sld [smem:[#allocation2 + $0x203]]
        %v1263 = vstv %s1262
        %v1264 = vmul.f32 %v310, %v1263
        %v1265 = vmul.f32 %v311, %v1263
        %v1266 = vadd.f32 %v1260, %v1264
        %v1267 = vadd.f32 %v1261, %v1265
        %s1268 = sld [smem:[#allocation6 + $0x4]]
        %v1269 = vstv %s1268
        %v1270 = vadd.f32 %v1266, %v1269
        %v1271 = vadd.f32 %v1267, %v1269
        %s1272 = sld [smem:[#allocation2 + $0x600]]
        %v1273 = vstv %s1272
        %v1274 = vmul.f32 %v301, %v1273
        %v1275 = vmul.f32 %v302, %v1273
        %s1276 = sld [smem:[#allocation2 + $0x601]]
        %v1277 = vstv %s1276
        %v1278 = vmul.f32 %v304, %v1277
        %v1279 = vmul.f32 %v305, %v1277
        %v1280 = vadd.f32 %v1274, %v1278
        %v1281 = vadd.f32 %v1275, %v1279
        %s1282 = sld [smem:[#allocation2 + $0x602]]
        %v1283 = vstv %s1282
        %v1284 = vmul.f32 %v307, %v1283
        %v1285 = vmul.f32 %v308, %v1283
        %v1286 = vadd.f32 %v1280, %v1284
        %v1287 = vadd.f32 %v1281, %v1285
        %s1288 = sld [smem:[#allocation2 + $0x603]]
        %v1289 = vstv %s1288
        %v1290 = vmul.f32 %v310, %v1289
        %v1291 = vmul.f32 %v311, %v1289
        %v1292 = vadd.f32 %v1286, %v1290
        %v1293 = vadd.f32 %v1287, %v1291
        %s1294 = sld [smem:[#allocation6 + $0xc]]
        %v1295 = vstv %s1294
        %v1296 = vadd.f32 %v1292, %v1295
        %v1297 = vadd.f32 %v1293, %v1295
        %s1298 = sld [smem:[#allocation2 + $0xa00]]
        %v1299 = vstv %s1298
        %v1300 = vmul.f32 %v301, %v1299
        %v1301 = vmul.f32 %v302, %v1299
        %s1302 = sld [smem:[#allocation2 + $0xa01]]
        %v1303 = vstv %s1302
        %v1304 = vmul.f32 %v304, %v1303
        %v1305 = vmul.f32 %v305, %v1303
        %v1306 = vadd.f32 %v1300, %v1304
        %v1307 = vadd.f32 %v1301, %v1305
        %s1308 = sld [smem:[#allocation2 + $0xa02]]
        %v1309 = vstv %s1308
        %v1310 = vmul.f32 %v307, %v1309
        %v1311 = vmul.f32 %v308, %v1309
        %v1312 = vadd.f32 %v1306, %v1310
        %v1313 = vadd.f32 %v1307, %v1311
        %s1314 = sld [smem:[#allocation2 + $0xa03]]
        %v1315 = vstv %s1314
        %v1316 = vmul.f32 %v310, %v1315
        %v1317 = vmul.f32 %v311, %v1315
        %v1318 = vadd.f32 %v1312, %v1316
        %v1319 = vadd.f32 %v1313, %v1317
        %s1320 = sld [smem:[#allocation6 + $0x14]]
        %v1321 = vstv %s1320
        %v1322 = vadd.f32 %v1318, %v1321
        %v1323 = vadd.f32 %v1319, %v1321
        %s1324 = sld [smem:[#allocation2 + $0xe00]]
        %v1325 = vstv %s1324
        %v1326 = vmul.f32 %v301, %v1325
        %v1327 = vmul.f32 %v302, %v1325
        %s1328 = sld [smem:[#allocation2 + $0xe01]]
        %v1329 = vstv %s1328
        %v1330 = vmul.f32 %v304, %v1329
        %v1331 = vmul.f32 %v305, %v1329
        %v1332 = vadd.f32 %v1326, %v1330
        %v1333 = vadd.f32 %v1327, %v1331
        %s1334 = sld [smem:[#allocation2 + $0xe02]]
        %v1335 = vstv %s1334
        %v1336 = vmul.f32 %v307, %v1335
        %v1337 = vmul.f32 %v308, %v1335
        %v1338 = vadd.f32 %v1332, %v1336
        %v1339 = vadd.f32 %v1333, %v1337
        %s1340 = sld [smem:[#allocation2 + $0xe03]]
        %v1341 = vstv %s1340
        %v1342 = vmul.f32 %v310, %v1341
        %v1343 = vmul.f32 %v311, %v1341
        %v1344 = vadd.f32 %v1338, %v1342
        %v1345 = vadd.f32 %v1339, %v1343
        %s1346 = sld [smem:[#allocation6 + $0x1c]]
        %v1347 = vstv %s1346
        %v1348 = vadd.f32 %v1344, %v1347
        %v1349 = vadd.f32 %v1345, %v1347
        %v1351 = vsel %vm416, %v1296, 0
        %v1354 = vsel %vm416, %v1297, 0
        %1356 = vmatpush.msra.mxu0 0.0
        %1357 = vmatpush.msra.mxu0 0.0
        %1358 = vmatpush.msra.mxu0 0.0
        %1359 = vmatpush.msra.mxu0 0.0
        %1360 = vmatpush.msra.mxu0 0.0
        %1361 = vmatpush.msra.mxu0 0.0
        %1362 = vmatpush.msra.mxu0 0.0
        %1363 = vmatpush.msra.mxu0 0.0
        %1364 = vmatpush.msra.mxu0 0.0
        %1365 = vmatpush.msra.mxu0 0.0
        %1366 = vmatpush.msra.mxu0 0.0
        %1367 = vmatpush.msra.mxu0 0.0
        %1368 = vmatpush.msra.mxu0 0.0
        %1369 = vmatpush.msra.mxu0 0.0
        %1370 = vmatpush.msra.mxu0 %v300
        %1371 = vmatpush.msra.mxu0 %v299
        %1372 = vmatmul.f32.gmra.mxu0 %v1351
        %v1373 = vpop.f32.mrf.mxu0
        %v1374 = vadd.f32 0.0, %v1373
        %1375 = vmatmul.f32.gmra.mxu0 %v1354
        %v1376 = vpop.f32.mrf.mxu0
        %v1377 = vadd.f32 0.0, %v1376
        %1378 = vdwg.mxu0
        %v1380 = vsel %vm416, %v1270, 0
        %v1383 = vsel %vm416, %v1271, 0
        %1385 = vmatpush.msra.mxu0 0.0
        %1386 = vmatpush.msra.mxu0 0.0
        %1387 = vmatpush.msra.mxu0 0.0
        %1388 = vmatpush.msra.mxu0 0.0
        %1389 = vmatpush.msra.mxu0 0.0
        %1390 = vmatpush.msra.mxu0 0.0
        %1391 = vmatpush.msra.mxu0 0.0
        %1392 = vmatpush.msra.mxu0 0.0
        %1393 = vmatpush.msra.mxu0 0.0
        %1394 = vmatpush.msra.mxu0 0.0
        %1395 = vmatpush.msra.mxu0 0.0
        %1396 = vmatpush.msra.mxu0 0.0
        %1397 = vmatpush.msra.mxu0 0.0
        %1398 = vmatpush.msra.mxu0 0.0
        %1399 = vmatpush.msra.mxu0 %v298
        %1400 = vmatpush.msra.mxu0 %v297
        %1401 = vmatmul.f32.gmra.mxu0 %v1380
        %v1402 = vpop.f32.mrf.mxu0
        %v1403 = vadd.f32 %v1374, %v1402
        %1404 = vmatmul.f32.gmra.mxu0 %v1383
        %v1405 = vpop.f32.mrf.mxu0
        %v1406 = vadd.f32 %v1377, %v1405
        %1407 = vdwg.mxu0
        %v1409 = vsel %vm416, %v1348, 0
        %v1412 = vsel %vm416, %v1349, 0
        %1414 = vmatpush.msra.mxu0 0.0
        %1415 = vmatpush.msra.mxu0 0.0
        %1416 = vmatpush.msra.mxu0 0.0
        %1417 = vmatpush.msra.mxu0 0.0
        %1418 = vmatpush.msra.mxu0 0.0
        %1419 = vmatpush.msra.mxu0 0.0
        %1420 = vmatpush.msra.mxu0 0.0
        %1421 = vmatpush.msra.mxu0 0.0
        %1422 = vmatpush.msra.mxu0 0.0
        %1423 = vmatpush.msra.mxu0 0.0
        %1424 = vmatpush.msra.mxu0 0.0
        %1425 = vmatpush.msra.mxu0 0.0
        %1426 = vmatpush.msra.mxu0 0.0
        %1427 = vmatpush.msra.mxu0 0.0
        %1428 = vmatpush.msra.mxu0 %v300
        %1429 = vmatpush.msra.mxu0 %v299
        %1430 = vmatmul.f32.gmra.mxu0 %v1409
        %v1431 = vpop.f32.mrf.mxu0
        %v1432 = vadd.f32 0.0, %v1431
        %1433 = vmatmul.f32.gmra.mxu0 %v1412
        %v1434 = vpop.f32.mrf.mxu0
        %v1435 = vadd.f32 0.0, %v1434
        %1436 = vdwg.mxu0
        %v1438 = vsel %vm416, %v1322, 0
        %v1441 = vsel %vm416, %v1323, 0
        %1443 = vmatpush.msra.mxu0 0.0
        %1444 = vmatpush.msra.mxu0 0.0
        %1445 = vmatpush.msra.mxu0 0.0
        %1446 = vmatpush.msra.mxu0 0.0
        %1447 = vmatpush.msra.mxu0 0.0
        %1448 = vmatpush.msra.mxu0 0.0
        %1449 = vmatpush.msra.mxu0 0.0
        %1450 = vmatpush.msra.mxu0 0.0
        %1451 = vmatpush.msra.mxu0 0.0
        %1452 = vmatpush.msra.mxu0 0.0
        %1453 = vmatpush.msra.mxu0 0.0
        %1454 = vmatpush.msra.mxu0 0.0
        %1455 = vmatpush.msra.mxu0 0.0
        %1456 = vmatpush.msra.mxu0 0.0
        %1457 = vmatpush.msra.mxu0 %v298
        %1458 = vmatpush.msra.mxu0 %v297
        %1459 = vmatmul.f32.gmra.mxu0 %v1438
        %v1460 = vpop.f32.mrf.mxu0
        %v1461 = vadd.f32 %v1432, %v1460
        %1462 = vmatmul.f32.gmra.mxu0 %v1441
        %v1463 = vpop.f32.mrf.mxu0
        %v1464 = vadd.f32 %v1435, %v1463
        %1465 = vdwg.mxu0
        %s1466 = scalar_lea.vmem %s292, 64 [#allocation9]
        %1467 = vst.msk [vmem:[%s1466] sm:$0xff] %vm533, %v1403
        %1468 = vst.msk [vmem:[%s1466 + $0x8] sm:$0xff] %vm533, %v1406
        %1471 = vrot.lane.b32.xlu0 %v1461, 32
        %v1472 = vpop.permute.xlu0 %1471
        %1473 = vrot.lane.b32.xlu0 %v1464, 32
        %v1474 = vpop.permute.xlu0 %1473
        %1477 = vst.msk [vmem:[%s1466] sm:$0xff] %vm544, %v1472
        %1478 = vst.msk [vmem:[%s1466 + $0x8] sm:$0xff] %vm544, %v1474
        %s1479 = sld [smem:[#allocation2 + $0x280]]
        %v1480 = vstv %s1479
        %v1481 = vmul.f32 %v301, %v1480
        %v1482 = vmul.f32 %v302, %v1480
        %s1483 = sld [smem:[#allocation2 + $0x281]]
        %v1484 = vstv %s1483
        %v1485 = vmul.f32 %v304, %v1484
        %v1486 = vmul.f32 %v305, %v1484
        %v1487 = vadd.f32 %v1481, %v1485
        %v1488 = vadd.f32 %v1482, %v1486
        %s1489 = sld [smem:[#allocation2 + $0x282]]
        %v1490 = vstv %s1489
        %v1491 = vmul.f32 %v307, %v1490
        %v1492 = vmul.f32 %v308, %v1490
        %v1493 = vadd.f32 %v1487, %v1491
        %v1494 = vadd.f32 %v1488, %v1492
        %s1495 = sld [smem:[#allocation2 + $0x283]]
        %v1496 = vstv %s1495
        %v1497 = vmul.f32 %v310, %v1496
        %v1498 = vmul.f32 %v311, %v1496
        %v1499 = vadd.f32 %v1493, %v1497
        %v1500 = vadd.f32 %v1494, %v1498
        %s1501 = sld [smem:[#allocation6 + $0x5]]
        %v1502 = vstv %s1501
        %v1503 = vadd.f32 %v1499, %v1502
        %v1504 = vadd.f32 %v1500, %v1502
        %s1505 = sld [smem:[#allocation2 + $0x680]]
        %v1506 = vstv %s1505
        %v1507 = vmul.f32 %v301, %v1506
        %v1508 = vmul.f32 %v302, %v1506
        %s1509 = sld [smem:[#allocation2 + $0x681]]
        %v1510 = vstv %s1509
        %v1511 = vmul.f32 %v304, %v1510
        %v1512 = vmul.f32 %v305, %v1510
        %v1513 = vadd.f32 %v1507, %v1511
        %v1514 = vadd.f32 %v1508, %v1512
        %s1515 = sld [smem:[#allocation2 + $0x682]]
        %v1516 = vstv %s1515
        %v1517 = vmul.f32 %v307, %v1516
        %v1518 = vmul.f32 %v308, %v1516
        %v1519 = vadd.f32 %v1513, %v1517
        %v1520 = vadd.f32 %v1514, %v1518
        %s1521 = sld [smem:[#allocation2 + $0x683]]
        %v1522 = vstv %s1521
        %v1523 = vmul.f32 %v310, %v1522
        %v1524 = vmul.f32 %v311, %v1522
        %v1525 = vadd.f32 %v1519, %v1523
        %v1526 = vadd.f32 %v1520, %v1524
        %s1527 = sld [smem:[#allocation6 + $0xd]]
        %v1528 = vstv %s1527
        %v1529 = vadd.f32 %v1525, %v1528
        %v1530 = vadd.f32 %v1526, %v1528
        %s1531 = sld [smem:[#allocation2 + $0xa80]]
        %v1532 = vstv %s1531
        %v1533 = vmul.f32 %v301, %v1532
        %v1534 = vmul.f32 %v302, %v1532
        %s1535 = sld [smem:[#allocation2 + $0xa81]]
        %v1536 = vstv %s1535
        %v1537 = vmul.f32 %v304, %v1536
        %v1538 = vmul.f32 %v305, %v1536
        %v1539 = vadd.f32 %v1533, %v1537
        %v1540 = vadd.f32 %v1534, %v1538
        %s1541 = sld [smem:[#allocation2 + $0xa82]]
        %v1542 = vstv %s1541
        %v1543 = vmul.f32 %v307, %v1542
        %v1544 = vmul.f32 %v308, %v1542
        %v1545 = vadd.f32 %v1539, %v1543
        %v1546 = vadd.f32 %v1540, %v1544
        %s1547 = sld [smem:[#allocation2 + $0xa83]]
        %v1548 = vstv %s1547
        %v1549 = vmul.f32 %v310, %v1548
        %v1550 = vmul.f32 %v311, %v1548
        %v1551 = vadd.f32 %v1545, %v1549
        %v1552 = vadd.f32 %v1546, %v1550
        %s1553 = sld [smem:[#allocation6 + $0x15]]
        %v1554 = vstv %s1553
        %v1555 = vadd.f32 %v1551, %v1554
        %v1556 = vadd.f32 %v1552, %v1554
        %s1557 = sld [smem:[#allocation2 + $0xe80]]
        %v1558 = vstv %s1557
        %v1559 = vmul.f32 %v301, %v1558
        %v1560 = vmul.f32 %v302, %v1558
        %s1561 = sld [smem:[#allocation2 + $0xe81]]
        %v1562 = vstv %s1561
        %v1563 = vmul.f32 %v304, %v1562
        %v1564 = vmul.f32 %v305, %v1562
        %v1565 = vadd.f32 %v1559, %v1563
        %v1566 = vadd.f32 %v1560, %v1564
        %s1567 = sld [smem:[#allocation2 + $0xe82]]
        %v1568 = vstv %s1567
        %v1569 = vmul.f32 %v307, %v1568
        %v1570 = vmul.f32 %v308, %v1568
        %v1571 = vadd.f32 %v1565, %v1569
        %v1572 = vadd.f32 %v1566, %v1570
        %s1573 = sld [smem:[#allocation2 + $0xe83]]
        %v1574 = vstv %s1573
        %v1575 = vmul.f32 %v310, %v1574
        %v1576 = vmul.f32 %v311, %v1574
        %v1577 = vadd.f32 %v1571, %v1575
        %v1578 = vadd.f32 %v1572, %v1576
        %s1579 = sld [smem:[#allocation6 + $0x1d]]
        %v1580 = vstv %s1579
        %v1581 = vadd.f32 %v1577, %v1580
        %v1582 = vadd.f32 %v1578, %v1580
        %v1584 = vsel %vm416, %v1529, 0
        %v1587 = vsel %vm416, %v1530, 0
        %1589 = vmatpush.msra.mxu0 0.0
        %1590 = vmatpush.msra.mxu0 0.0
        %1591 = vmatpush.msra.mxu0 0.0
        %1592 = vmatpush.msra.mxu0 0.0
        %1593 = vmatpush.msra.mxu0 0.0
        %1594 = vmatpush.msra.mxu0 0.0
        %1595 = vmatpush.msra.mxu0 0.0
        %1596 = vmatpush.msra.mxu0 0.0
        %1597 = vmatpush.msra.mxu0 0.0
        %1598 = vmatpush.msra.mxu0 0.0
        %1599 = vmatpush.msra.mxu0 0.0
        %1600 = vmatpush.msra.mxu0 0.0
        %1601 = vmatpush.msra.mxu0 0.0
        %1602 = vmatpush.msra.mxu0 0.0
        %1603 = vmatpush.msra.mxu0 %v300
        %1604 = vmatpush.msra.mxu0 %v299
        %1605 = vmatmul.f32.gmra.mxu0 %v1584
        %v1606 = vpop.f32.mrf.mxu0
        %v1607 = vadd.f32 0.0, %v1606
        %1608 = vmatmul.f32.gmra.mxu0 %v1587
        %v1609 = vpop.f32.mrf.mxu0
        %v1610 = vadd.f32 0.0, %v1609
        %1611 = vdwg.mxu0
        %v1613 = vsel %vm416, %v1503, 0
        %v1616 = vsel %vm416, %v1504, 0
        %1618 = vmatpush.msra.mxu0 0.0
        %1619 = vmatpush.msra.mxu0 0.0
        %1620 = vmatpush.msra.mxu0 0.0
        %1621 = vmatpush.msra.mxu0 0.0
        %1622 = vmatpush.msra.mxu0 0.0
        %1623 = vmatpush.msra.mxu0 0.0
        %1624 = vmatpush.msra.mxu0 0.0
        %1625 = vmatpush.msra.mxu0 0.0
        %1626 = vmatpush.msra.mxu0 0.0
        %1627 = vmatpush.msra.mxu0 0.0
        %1628 = vmatpush.msra.mxu0 0.0
        %1629 = vmatpush.msra.mxu0 0.0
        %1630 = vmatpush.msra.mxu0 0.0
        %1631 = vmatpush.msra.mxu0 0.0
        %1632 = vmatpush.msra.mxu0 %v298
        %1633 = vmatpush.msra.mxu0 %v297
        %1634 = vmatmul.f32.gmra.mxu0 %v1613
        %v1635 = vpop.f32.mrf.mxu0
        %v1636 = vadd.f32 %v1607, %v1635
        %1637 = vmatmul.f32.gmra.mxu0 %v1616
        %v1638 = vpop.f32.mrf.mxu0
        %v1639 = vadd.f32 %v1610, %v1638
        %1640 = vdwg.mxu0
        %v1642 = vsel %vm416, %v1581, 0
        %v1645 = vsel %vm416, %v1582, 0
        %1647 = vmatpush.msra.mxu0 0.0
        %1648 = vmatpush.msra.mxu0 0.0
        %1649 = vmatpush.msra.mxu0 0.0
        %1650 = vmatpush.msra.mxu0 0.0
        %1651 = vmatpush.msra.mxu0 0.0
        %1652 = vmatpush.msra.mxu0 0.0
        %1653 = vmatpush.msra.mxu0 0.0
        %1654 = vmatpush.msra.mxu0 0.0
        %1655 = vmatpush.msra.mxu0 0.0
        %1656 = vmatpush.msra.mxu0 0.0
        %1657 = vmatpush.msra.mxu0 0.0
        %1658 = vmatpush.msra.mxu0 0.0
        %1659 = vmatpush.msra.mxu0 0.0
        %1660 = vmatpush.msra.mxu0 0.0
        %1661 = vmatpush.msra.mxu0 %v300
        %1662 = vmatpush.msra.mxu0 %v299
        %1663 = vmatmul.f32.gmra.mxu0 %v1642
        %v1664 = vpop.f32.mrf.mxu0
        %v1665 = vadd.f32 0.0, %v1664
        %1666 = vmatmul.f32.gmra.mxu0 %v1645
        %v1667 = vpop.f32.mrf.mxu0
        %v1668 = vadd.f32 0.0, %v1667
        %1669 = vdwg.mxu0
        %v1671 = vsel %vm416, %v1555, 0
        %v1674 = vsel %vm416, %v1556, 0
        %1676 = vmatpush.msra.mxu0 0.0
        %1677 = vmatpush.msra.mxu0 0.0
        %1678 = vmatpush.msra.mxu0 0.0
        %1679 = vmatpush.msra.mxu0 0.0
        %1680 = vmatpush.msra.mxu0 0.0
        %1681 = vmatpush.msra.mxu0 0.0
        %1682 = vmatpush.msra.mxu0 0.0
        %1683 = vmatpush.msra.mxu0 0.0
        %1684 = vmatpush.msra.mxu0 0.0
        %1685 = vmatpush.msra.mxu0 0.0
        %1686 = vmatpush.msra.mxu0 0.0
        %1687 = vmatpush.msra.mxu0 0.0
        %1688 = vmatpush.msra.mxu0 0.0
        %1689 = vmatpush.msra.mxu0 0.0
        %1690 = vmatpush.msra.mxu0 %v298
        %1691 = vmatpush.msra.mxu0 %v297
        %1692 = vmatmul.f32.gmra.mxu0 %v1671
        %v1693 = vpop.f32.mrf.mxu0
        %v1694 = vadd.f32 %v1665, %v1693
        %1695 = vmatmul.f32.gmra.mxu0 %v1674
        %v1696 = vpop.f32.mrf.mxu0
        %v1697 = vadd.f32 %v1668, %v1696
        %1698 = vdwg.mxu0
        %s1699 = scalar_lea.vmem %s292, 80 [#allocation9]
        %1700 = vst.msk [vmem:[%s1699] sm:$0xff] %vm533, %v1636
        %1701 = vst.msk [vmem:[%s1699 + $0x8] sm:$0xff] %vm533, %v1639
        %1704 = vrot.lane.b32.xlu0 %v1694, 32
        %v1705 = vpop.permute.xlu0 %1704
        %1706 = vrot.lane.b32.xlu0 %v1697, 32
        %v1707 = vpop.permute.xlu0 %1706
        %1710 = vst.msk [vmem:[%s1699] sm:$0xff] %vm544, %v1705
        %1711 = vst.msk [vmem:[%s1699 + $0x8] sm:$0xff] %vm544, %v1707
        %s1712 = sld [smem:[#allocation2 + $0x300]]
        %v1713 = vstv %s1712
        %v1714 = vmul.f32 %v301, %v1713
        %v1715 = vmul.f32 %v302, %v1713
        %s1716 = sld [smem:[#allocation2 + $0x301]]
        %v1717 = vstv %s1716
        %v1718 = vmul.f32 %v304, %v1717
        %v1719 = vmul.f32 %v305, %v1717
        %v1720 = vadd.f32 %v1714, %v1718
        %v1721 = vadd.f32 %v1715, %v1719
        %s1722 = sld [smem:[#allocation2 + $0x302]]
        %v1723 = vstv %s1722
        %v1724 = vmul.f32 %v307, %v1723
        %v1725 = vmul.f32 %v308, %v1723
        %v1726 = vadd.f32 %v1720, %v1724
        %v1727 = vadd.f32 %v1721, %v1725
        %s1728 = sld [smem:[#allocation2 + $0x303]]
        %v1729 = vstv %s1728
        %v1730 = vmul.f32 %v310, %v1729
        %v1731 = vmul.f32 %v311, %v1729
        %v1732 = vadd.f32 %v1726, %v1730
        %v1733 = vadd.f32 %v1727, %v1731
        %s1734 = sld [smem:[#allocation6 + $0x6]]
        %v1735 = vstv %s1734
        %v1736 = vadd.f32 %v1732, %v1735
        %v1737 = vadd.f32 %v1733, %v1735
        %s1738 = sld [smem:[#allocation2 + $0x700]]
        %v1739 = vstv %s1738
        %v1740 = vmul.f32 %v301, %v1739
        %v1741 = vmul.f32 %v302, %v1739
        %s1742 = sld [smem:[#allocation2 + $0x701]]
        %v1743 = vstv %s1742
        %v1744 = vmul.f32 %v304, %v1743
        %v1745 = vmul.f32 %v305, %v1743
        %v1746 = vadd.f32 %v1740, %v1744
        %v1747 = vadd.f32 %v1741, %v1745
        %s1748 = sld [smem:[#allocation2 + $0x702]]
        %v1749 = vstv %s1748
        %v1750 = vmul.f32 %v307, %v1749
        %v1751 = vmul.f32 %v308, %v1749
        %v1752 = vadd.f32 %v1746, %v1750
        %v1753 = vadd.f32 %v1747, %v1751
        %s1754 = sld [smem:[#allocation2 + $0x703]]
        %v1755 = vstv %s1754
        %v1756 = vmul.f32 %v310, %v1755
        %v1757 = vmul.f32 %v311, %v1755
        %v1758 = vadd.f32 %v1752, %v1756
        %v1759 = vadd.f32 %v1753, %v1757
        %s1760 = sld [smem:[#allocation6 + $0xe]]
        %v1761 = vstv %s1760
        %v1762 = vadd.f32 %v1758, %v1761
        %v1763 = vadd.f32 %v1759, %v1761
        %s1764 = sld [smem:[#allocation2 + $0xb00]]
        %v1765 = vstv %s1764
        %v1766 = vmul.f32 %v301, %v1765
        %v1767 = vmul.f32 %v302, %v1765
        %s1768 = sld [smem:[#allocation2 + $0xb01]]
        %v1769 = vstv %s1768
        %v1770 = vmul.f32 %v304, %v1769
        %v1771 = vmul.f32 %v305, %v1769
        %v1772 = vadd.f32 %v1766, %v1770
        %v1773 = vadd.f32 %v1767, %v1771
        %s1774 = sld [smem:[#allocation2 + $0xb02]]
        %v1775 = vstv %s1774
        %v1776 = vmul.f32 %v307, %v1775
        %v1777 = vmul.f32 %v308, %v1775
        %v1778 = vadd.f32 %v1772, %v1776
        %v1779 = vadd.f32 %v1773, %v1777
        %s1780 = sld [smem:[#allocation2 + $0xb03]]
        %v1781 = vstv %s1780
        %v1782 = vmul.f32 %v310, %v1781
        %v1783 = vmul.f32 %v311, %v1781
        %v1784 = vadd.f32 %v1778, %v1782
        %v1785 = vadd.f32 %v1779, %v1783
        %s1786 = sld [smem:[#allocation6 + $0x16]]
        %v1787 = vstv %s1786
        %v1788 = vadd.f32 %v1784, %v1787
        %v1789 = vadd.f32 %v1785, %v1787
        %s1790 = sld [smem:[#allocation2 + $0xf00]]
        %v1791 = vstv %s1790
        %v1792 = vmul.f32 %v301, %v1791
        %v1793 = vmul.f32 %v302, %v1791
        %s1794 = sld [smem:[#allocation2 + $0xf01]]
        %v1795 = vstv %s1794
        %v1796 = vmul.f32 %v304, %v1795
        %v1797 = vmul.f32 %v305, %v1795
        %v1798 = vadd.f32 %v1792, %v1796
        %v1799 = vadd.f32 %v1793, %v1797
        %s1800 = sld [smem:[#allocation2 + $0xf02]]
        %v1801 = vstv %s1800
        %v1802 = vmul.f32 %v307, %v1801
        %v1803 = vmul.f32 %v308, %v1801
        %v1804 = vadd.f32 %v1798, %v1802
        %v1805 = vadd.f32 %v1799, %v1803
        %s1806 = sld [smem:[#allocation2 + $0xf03]]
        %v1807 = vstv %s1806
        %v1808 = vmul.f32 %v310, %v1807
        %v1809 = vmul.f32 %v311, %v1807
        %v1810 = vadd.f32 %v1804, %v1808
        %v1811 = vadd.f32 %v1805, %v1809
        %s1812 = sld [smem:[#allocation6 + $0x1e]]
        %v1813 = vstv %s1812
        %v1814 = vadd.f32 %v1810, %v1813
        %v1815 = vadd.f32 %v1811, %v1813
        %v1817 = vsel %vm416, %v1762, 0
        %v1820 = vsel %vm416, %v1763, 0
        %1822 = vmatpush.msra.mxu0 0.0
        %1823 = vmatpush.msra.mxu0 0.0
        %1824 = vmatpush.msra.mxu0 0.0
        %1825 = vmatpush.msra.mxu0 0.0
        %1826 = vmatpush.msra.mxu0 0.0
        %1827 = vmatpush.msra.mxu0 0.0
        %1828 = vmatpush.msra.mxu0 0.0
        %1829 = vmatpush.msra.mxu0 0.0
        %1830 = vmatpush.msra.mxu0 0.0
        %1831 = vmatpush.msra.mxu0 0.0
        %1832 = vmatpush.msra.mxu0 0.0
        %1833 = vmatpush.msra.mxu0 0.0
        %1834 = vmatpush.msra.mxu0 0.0
        %1835 = vmatpush.msra.mxu0 0.0
        %1836 = vmatpush.msra.mxu0 %v300
        %1837 = vmatpush.msra.mxu0 %v299
        %1838 = vmatmul.f32.gmra.mxu0 %v1817
        %v1839 = vpop.f32.mrf.mxu0
        %v1840 = vadd.f32 0.0, %v1839
        %1841 = vmatmul.f32.gmra.mxu0 %v1820
        %v1842 = vpop.f32.mrf.mxu0
        %v1843 = vadd.f32 0.0, %v1842
        %1844 = vdwg.mxu0
        %v1846 = vsel %vm416, %v1736, 0
        %v1849 = vsel %vm416, %v1737, 0
        %1851 = vmatpush.msra.mxu0 0.0
        %1852 = vmatpush.msra.mxu0 0.0
        %1853 = vmatpush.msra.mxu0 0.0
        %1854 = vmatpush.msra.mxu0 0.0
        %1855 = vmatpush.msra.mxu0 0.0
        %1856 = vmatpush.msra.mxu0 0.0
        %1857 = vmatpush.msra.mxu0 0.0
        %1858 = vmatpush.msra.mxu0 0.0
        %1859 = vmatpush.msra.mxu0 0.0
        %1860 = vmatpush.msra.mxu0 0.0
        %1861 = vmatpush.msra.mxu0 0.0
        %1862 = vmatpush.msra.mxu0 0.0
        %1863 = vmatpush.msra.mxu0 0.0
        %1864 = vmatpush.msra.mxu0 0.0
        %1865 = vmatpush.msra.mxu0 %v298
        %1866 = vmatpush.msra.mxu0 %v297
        %1867 = vmatmul.f32.gmra.mxu0 %v1846
        %v1868 = vpop.f32.mrf.mxu0
        %v1869 = vadd.f32 %v1840, %v1868
        %1870 = vmatmul.f32.gmra.mxu0 %v1849
        %v1871 = vpop.f32.mrf.mxu0
        %v1872 = vadd.f32 %v1843, %v1871
        %1873 = vdwg.mxu0
        %v1875 = vsel %vm416, %v1814, 0
        %v1878 = vsel %vm416, %v1815, 0
        %1880 = vmatpush.msra.mxu0 0.0
        %1881 = vmatpush.msra.mxu0 0.0
        %1882 = vmatpush.msra.mxu0 0.0
        %1883 = vmatpush.msra.mxu0 0.0
        %1884 = vmatpush.msra.mxu0 0.0
        %1885 = vmatpush.msra.mxu0 0.0
        %1886 = vmatpush.msra.mxu0 0.0
        %1887 = vmatpush.msra.mxu0 0.0
        %1888 = vmatpush.msra.mxu0 0.0
        %1889 = vmatpush.msra.mxu0 0.0
        %1890 = vmatpush.msra.mxu0 0.0
        %1891 = vmatpush.msra.mxu0 0.0
        %1892 = vmatpush.msra.mxu0 0.0
        %1893 = vmatpush.msra.mxu0 0.0
        %1894 = vmatpush.msra.mxu0 %v300
        %1895 = vmatpush.msra.mxu0 %v299
        %1896 = vmatmul.f32.gmra.mxu0 %v1875
        %v1897 = vpop.f32.mrf.mxu0
        %v1898 = vadd.f32 0.0, %v1897
        %1899 = vmatmul.f32.gmra.mxu0 %v1878
        %v1900 = vpop.f32.mrf.mxu0
        %v1901 = vadd.f32 0.0, %v1900
        %1902 = vdwg.mxu0
        %v1904 = vsel %vm416, %v1788, 0
        %v1907 = vsel %vm416, %v1789, 0
        %1909 = vmatpush.msra.mxu0 0.0
        %1910 = vmatpush.msra.mxu0 0.0
        %1911 = vmatpush.msra.mxu0 0.0
        %1912 = vmatpush.msra.mxu0 0.0
        %1913 = vmatpush.msra.mxu0 0.0
        %1914 = vmatpush.msra.mxu0 0.0
        %1915 = vmatpush.msra.mxu0 0.0
        %1916 = vmatpush.msra.mxu0 0.0
        %1917 = vmatpush.msra.mxu0 0.0
        %1918 = vmatpush.msra.mxu0 0.0
        %1919 = vmatpush.msra.mxu0 0.0
        %1920 = vmatpush.msra.mxu0 0.0
        %1921 = vmatpush.msra.mxu0 0.0
        %1922 = vmatpush.msra.mxu0 0.0
        %1923 = vmatpush.msra.mxu0 %v298
        %1924 = vmatpush.msra.mxu0 %v297
        %1925 = vmatmul.f32.gmra.mxu0 %v1904
        %v1926 = vpop.f32.mrf.mxu0
        %v1927 = vadd.f32 %v1898, %v1926
        %1928 = vmatmul.f32.gmra.mxu0 %v1907
        %v1929 = vpop.f32.mrf.mxu0
        %v1930 = vadd.f32 %v1901, %v1929
        %1931 = vdwg.mxu0
        %s1932 = scalar_lea.vmem %s292, 96 [#allocation9]
        %1933 = vst.msk [vmem:[%s1932] sm:$0xff] %vm533, %v1869
        %1934 = vst.msk [vmem:[%s1932 + $0x8] sm:$0xff] %vm533, %v1872
        %1937 = vrot.lane.b32.xlu0 %v1927, 32
        %v1938 = vpop.permute.xlu0 %1937
        %1939 = vrot.lane.b32.xlu0 %v1930, 32
        %v1940 = vpop.permute.xlu0 %1939
        %1943 = vst.msk [vmem:[%s1932] sm:$0xff] %vm544, %v1938
        %1944 = vst.msk [vmem:[%s1932 + $0x8] sm:$0xff] %vm544, %v1940
        %s1945 = sld [smem:[#allocation2 + $0x380]]
        %v1946 = vstv %s1945
        %v1947 = vmul.f32 %v301, %v1946
        %v1948 = vmul.f32 %v302, %v1946
        %s1949 = sld [smem:[#allocation2 + $0x381]]
        %v1950 = vstv %s1949
        %v1951 = vmul.f32 %v304, %v1950
        %v1952 = vmul.f32 %v305, %v1950
        %v1953 = vadd.f32 %v1947, %v1951
        %v1954 = vadd.f32 %v1948, %v1952
        %s1955 = sld [smem:[#allocation2 + $0x382]]
        %v1956 = vstv %s1955
        %v1957 = vmul.f32 %v307, %v1956
        %v1958 = vmul.f32 %v308, %v1956
        %v1959 = vadd.f32 %v1953, %v1957
        %v1960 = vadd.f32 %v1954, %v1958
        %s1961 = sld [smem:[#allocation2 + $0x383]]
        %v1962 = vstv %s1961
        %v1963 = vmul.f32 %v310, %v1962
        %v1964 = vmul.f32 %v311, %v1962
        %v1965 = vadd.f32 %v1959, %v1963
        %v1966 = vadd.f32 %v1960, %v1964
        %s1967 = sld [smem:[#allocation6 + $0x7]]
        %v1968 = vstv %s1967
        %v1969 = vadd.f32 %v1965, %v1968
        %v1970 = vadd.f32 %v1966, %v1968
        %s1971 = sld [smem:[#allocation2 + $0x780]]
        %v1972 = vstv %s1971
        %v1973 = vmul.f32 %v301, %v1972
        %v1974 = vmul.f32 %v302, %v1972
        %s1975 = sld [smem:[#allocation2 + $0x781]]
        %v1976 = vstv %s1975
        %v1977 = vmul.f32 %v304, %v1976
        %v1978 = vmul.f32 %v305, %v1976
        %v1979 = vadd.f32 %v1973, %v1977
        %v1980 = vadd.f32 %v1974, %v1978
        %s1981 = sld [smem:[#allocation2 + $0x782]]
        %v1982 = vstv %s1981
        %v1983 = vmul.f32 %v307, %v1982
        %v1984 = vmul.f32 %v308, %v1982
        %v1985 = vadd.f32 %v1979, %v1983
        %v1986 = vadd.f32 %v1980, %v1984
        %s1987 = sld [smem:[#allocation2 + $0x783]]
        %v1988 = vstv %s1987
        %v1989 = vmul.f32 %v310, %v1988
        %v1990 = vmul.f32 %v311, %v1988
        %v1991 = vadd.f32 %v1985, %v1989
        %v1992 = vadd.f32 %v1986, %v1990
        %s1993 = sld [smem:[#allocation6 + $0xf]]
        %v1994 = vstv %s1993
        %v1995 = vadd.f32 %v1991, %v1994
        %v1996 = vadd.f32 %v1992, %v1994
        %s1997 = sld [smem:[#allocation2 + $0xb80]]
        %v1998 = vstv %s1997
        %v1999 = vmul.f32 %v301, %v1998
        %v2000 = vmul.f32 %v302, %v1998
        %s2001 = sld [smem:[#allocation2 + $0xb81]]
        %v2002 = vstv %s2001
        %v2003 = vmul.f32 %v304, %v2002
        %v2004 = vmul.f32 %v305, %v2002
        %v2005 = vadd.f32 %v1999, %v2003
        %v2006 = vadd.f32 %v2000, %v2004
        %s2007 = sld [smem:[#allocation2 + $0xb82]]
        %v2008 = vstv %s2007
        %v2009 = vmul.f32 %v307, %v2008
        %v2010 = vmul.f32 %v308, %v2008
        %v2011 = vadd.f32 %v2005, %v2009
        %v2012 = vadd.f32 %v2006, %v2010
        %s2013 = sld [smem:[#allocation2 + $0xb83]]
        %v2014 = vstv %s2013
        %v2015 = vmul.f32 %v310, %v2014
        %v2016 = vmul.f32 %v311, %v2014
        %v2017 = vadd.f32 %v2011, %v2015
        %v2018 = vadd.f32 %v2012, %v2016
        %s2019 = sld [smem:[#allocation6 + $0x17]]
        %v2020 = vstv %s2019
        %v2021 = vadd.f32 %v2017, %v2020
        %v2022 = vadd.f32 %v2018, %v2020
        %s2023 = sld [smem:[#allocation2 + $0xf80]]
        %v2024 = vstv %s2023
        %v2025 = vmul.f32 %v301, %v2024
        %v2026 = vmul.f32 %v302, %v2024
        %s2027 = sld [smem:[#allocation2 + $0xf81]]
        %v2028 = vstv %s2027
        %v2029 = vmul.f32 %v304, %v2028
        %v2030 = vmul.f32 %v305, %v2028
        %v2031 = vadd.f32 %v2025, %v2029
        %v2032 = vadd.f32 %v2026, %v2030
        %s2033 = sld [smem:[#allocation2 + $0xf82]]
        %v2034 = vstv %s2033
        %v2035 = vmul.f32 %v307, %v2034
        %v2036 = vmul.f32 %v308, %v2034
        %v2037 = vadd.f32 %v2031, %v2035
        %v2038 = vadd.f32 %v2032, %v2036
        %s2039 = sld [smem:[#allocation2 + $0xf83]]
        %v2040 = vstv %s2039
        %v2041 = vmul.f32 %v310, %v2040
        %v2042 = vmul.f32 %v311, %v2040
        %v2043 = vadd.f32 %v2037, %v2041
        %v2044 = vadd.f32 %v2038, %v2042
        %s2045 = sld [smem:[#allocation6 + $0x1f]]
        %v2046 = vstv %s2045
        %v2047 = vadd.f32 %v2043, %v2046
        %v2048 = vadd.f32 %v2044, %v2046
        %v2050 = vsel %vm416, %v1995, 0
        %v2053 = vsel %vm416, %v1996, 0
        %2055 = vmatpush.msra.mxu0 0.0
        %2056 = vmatpush.msra.mxu0 0.0
        %2057 = vmatpush.msra.mxu0 0.0
        %2058 = vmatpush.msra.mxu0 0.0
        %2059 = vmatpush.msra.mxu0 0.0
        %2060 = vmatpush.msra.mxu0 0.0
        %2061 = vmatpush.msra.mxu0 0.0
        %2062 = vmatpush.msra.mxu0 0.0
        %2063 = vmatpush.msra.mxu0 0.0
        %2064 = vmatpush.msra.mxu0 0.0
        %2065 = vmatpush.msra.mxu0 0.0
        %2066 = vmatpush.msra.mxu0 0.0
        %2067 = vmatpush.msra.mxu0 0.0
        %2068 = vmatpush.msra.mxu0 0.0
        %2069 = vmatpush.msra.mxu0 %v300
        %2070 = vmatpush.msra.mxu0 %v299
        %2071 = vmatmul.f32.gmra.mxu0 %v2050
        %v2072 = vpop.f32.mrf.mxu0
        %v2073 = vadd.f32 0.0, %v2072
        %2074 = vmatmul.f32.gmra.mxu0 %v2053
        %v2075 = vpop.f32.mrf.mxu0
        %v2076 = vadd.f32 0.0, %v2075
        %2077 = vdwg.mxu0
        %v2079 = vsel %vm416, %v1969, 0
        %v2082 = vsel %vm416, %v1970, 0
        %2084 = vmatpush.msra.mxu0 0.0
        %2085 = vmatpush.msra.mxu0 0.0
        %2086 = vmatpush.msra.mxu0 0.0
        %2087 = vmatpush.msra.mxu0 0.0
        %2088 = vmatpush.msra.mxu0 0.0
        %2089 = vmatpush.msra.mxu0 0.0
        %2090 = vmatpush.msra.mxu0 0.0
        %2091 = vmatpush.msra.mxu0 0.0
        %2092 = vmatpush.msra.mxu0 0.0
        %2093 = vmatpush.msra.mxu0 0.0
        %2094 = vmatpush.msra.mxu0 0.0
        %2095 = vmatpush.msra.mxu0 0.0
        %2096 = vmatpush.msra.mxu0 0.0
        %2097 = vmatpush.msra.mxu0 0.0
        %2098 = vmatpush.msra.mxu0 %v298
        %2099 = vmatpush.msra.mxu0 %v297
        %2100 = vmatmul.f32.gmra.mxu0 %v2079
        %v2101 = vpop.f32.mrf.mxu0
        %v2102 = vadd.f32 %v2073, %v2101
        %2103 = vmatmul.f32.gmra.mxu0 %v2082
        %v2104 = vpop.f32.mrf.mxu0
        %v2105 = vadd.f32 %v2076, %v2104
        %2106 = vdwg.mxu0
        %v2108 = vsel %vm416, %v2047, 0
        %v2111 = vsel %vm416, %v2048, 0
        %2113 = vmatpush.msra.mxu0 0.0
        %2114 = vmatpush.msra.mxu0 0.0
        %2115 = vmatpush.msra.mxu0 0.0
        %2116 = vmatpush.msra.mxu0 0.0
        %2117 = vmatpush.msra.mxu0 0.0
        %2118 = vmatpush.msra.mxu0 0.0
        %2119 = vmatpush.msra.mxu0 0.0
        %2120 = vmatpush.msra.mxu0 0.0
        %2121 = vmatpush.msra.mxu0 0.0
        %2122 = vmatpush.msra.mxu0 0.0
        %2123 = vmatpush.msra.mxu0 0.0
        %2124 = vmatpush.msra.mxu0 0.0
        %2125 = vmatpush.msra.mxu0 0.0
        %2126 = vmatpush.msra.mxu0 0.0
        %2127 = vmatpush.msra.mxu0 %v300
        %2128 = vmatpush.msra.mxu0 %v299
        %2129 = vmatmul.f32.gmra.mxu0 %v2108
        %v2130 = vpop.f32.mrf.mxu0
        %v2131 = vadd.f32 0.0, %v2130
        %2132 = vmatmul.f32.gmra.mxu0 %v2111
        %v2133 = vpop.f32.mrf.mxu0
        %v2134 = vadd.f32 0.0, %v2133
        %2135 = vdwg.mxu0
        %v2137 = vsel %vm416, %v2021, 0
        %v2140 = vsel %vm416, %v2022, 0
        %2142 = vmatpush.msra.mxu0 0.0
        %2143 = vmatpush.msra.mxu0 0.0
        %2144 = vmatpush.msra.mxu0 0.0
        %2145 = vmatpush.msra.mxu0 0.0
        %2146 = vmatpush.msra.mxu0 0.0
        %2147 = vmatpush.msra.mxu0 0.0
        %2148 = vmatpush.msra.mxu0 0.0
        %2149 = vmatpush.msra.mxu0 0.0
        %2150 = vmatpush.msra.mxu0 0.0
        %2151 = vmatpush.msra.mxu0 0.0
        %2152 = vmatpush.msra.mxu0 0.0
        %2153 = vmatpush.msra.mxu0 0.0
        %2154 = vmatpush.msra.mxu0 0.0
        %2155 = vmatpush.msra.mxu0 0.0
        %2156 = vmatpush.msra.mxu0 %v298
        %2157 = vmatpush.msra.mxu0 %v297
        %2158 = vmatmul.f32.gmra.mxu0 %v2137
        %v2159 = vpop.f32.mrf.mxu0
        %v2160 = vadd.f32 %v2131, %v2159
        %2161 = vmatmul.f32.gmra.mxu0 %v2140
        %v2162 = vpop.f32.mrf.mxu0
        %v2163 = vadd.f32 %v2134, %v2162
        %2164 = vdwg.mxu0
        %s2165 = scalar_lea.vmem %s292, 112 [#allocation9]
        %2166 = vst.msk [vmem:[%s2165] sm:$0xff] %vm533, %v2102
        %2167 = vst.msk [vmem:[%s2165 + $0x8] sm:$0xff] %vm533, %v2105
        %2170 = vrot.lane.b32.xlu0 %v2160, 32
        %v2171 = vpop.permute.xlu0 %2170
        %2172 = vrot.lane.b32.xlu0 %v2163, 32
        %v2173 = vpop.permute.xlu0 %2172
        %2176 = vst.msk [vmem:[%s2165] sm:$0xff] %vm544, %v2171
        %2177 = vst.msk [vmem:[%s2165 + $0x8] sm:$0xff] %vm544, %v2173
        %s2178 = scalar_lea.vmem %s264, 64 [#allocation8]
        %v2179 = vld [vmem:[%s2178] sm:$0xff]
        %v2180 = vld [vmem:[%s2178 + $0x8] sm:$0xff]
        %s2181 = scalar_lea.vmem %s264, 80 [#allocation8]
        %v2182 = vld [vmem:[%s2181] sm:$0xff]
        %v2183 = vld [vmem:[%s2181 + $0x8] sm:$0xff]
        %s2184 = scalar_lea.vmem %s264, 96 [#allocation8]
        %v2185 = vld [vmem:[%s2184] sm:$0xff]
        %v2186 = vld [vmem:[%s2184 + $0x8] sm:$0xff]
        %s2187 = scalar_lea.vmem %s264, 112 [#allocation8]
        %v2188 = vld [vmem:[%s2187] sm:$0xff]
        %v2189 = vld [vmem:[%s2187 + $0x8] sm:$0xff]
        %s2190 = sld [smem:[#allocation2]]
        %v2191 = vstv %s2190
        %v2192 = vmul.f32 %v2179, %v2191
        %v2193 = vmul.f32 %v2180, %v2191
        %s2194 = sld [smem:[#allocation2 + $0x1]]
        %v2195 = vstv %s2194
        %v2196 = vmul.f32 %v2182, %v2195
        %v2197 = vmul.f32 %v2183, %v2195
        %v2198 = vadd.f32 %v2192, %v2196
        %v2199 = vadd.f32 %v2193, %v2197
        %s2200 = sld [smem:[#allocation2 + $0x2]]
        %v2201 = vstv %s2200
        %v2202 = vmul.f32 %v2185, %v2201
        %v2203 = vmul.f32 %v2186, %v2201
        %v2204 = vadd.f32 %v2198, %v2202
        %v2205 = vadd.f32 %v2199, %v2203
        %s2206 = sld [smem:[#allocation2 + $0x3]]
        %v2207 = vstv %s2206
        %v2208 = vmul.f32 %v2188, %v2207
        %v2209 = vmul.f32 %v2189, %v2207
        %v2210 = vadd.f32 %v2204, %v2208
        %v2211 = vadd.f32 %v2205, %v2209
        %s2212 = sld [smem:[#allocation6]]
        %v2213 = vstv %s2212
        %v2214 = vadd.f32 %v2210, %v2213
        %v2215 = vadd.f32 %v2211, %v2213
        %s2216 = sld [smem:[#allocation2 + $0x400]]
        %v2217 = vstv %s2216
        %v2218 = vmul.f32 %v2179, %v2217
        %v2219 = vmul.f32 %v2180, %v2217
        %s2220 = sld [smem:[#allocation2 + $0x401]]
        %v2221 = vstv %s2220
        %v2222 = vmul.f32 %v2182, %v2221
        %v2223 = vmul.f32 %v2183, %v2221
        %v2224 = vadd.f32 %v2218, %v2222
        %v2225 = vadd.f32 %v2219, %v2223
        %s2226 = sld [smem:[#allocation2 + $0x402]]
        %v2227 = vstv %s2226
        %v2228 = vmul.f32 %v2185, %v2227
        %v2229 = vmul.f32 %v2186, %v2227
        %v2230 = vadd.f32 %v2224, %v2228
        %v2231 = vadd.f32 %v2225, %v2229
        %s2232 = sld [smem:[#allocation2 + $0x403]]
        %v2233 = vstv %s2232
        %v2234 = vmul.f32 %v2188, %v2233
        %v2235 = vmul.f32 %v2189, %v2233
        %v2236 = vadd.f32 %v2230, %v2234
        %v2237 = vadd.f32 %v2231, %v2235
        %s2238 = sld [smem:[#allocation6 + $0x8]]
        %v2239 = vstv %s2238
        %v2240 = vadd.f32 %v2236, %v2239
        %v2241 = vadd.f32 %v2237, %v2239
        %s2242 = sld [smem:[#allocation2 + $0x800]]
        %v2243 = vstv %s2242
        %v2244 = vmul.f32 %v2179, %v2243
        %v2245 = vmul.f32 %v2180, %v2243
        %s2246 = sld [smem:[#allocation2 + $0x801]]
        %v2247 = vstv %s2246
        %v2248 = vmul.f32 %v2182, %v2247
        %v2249 = vmul.f32 %v2183, %v2247
        %v2250 = vadd.f32 %v2244, %v2248
        %v2251 = vadd.f32 %v2245, %v2249
        %s2252 = sld [smem:[#allocation2 + $0x802]]
        %v2253 = vstv %s2252
        %v2254 = vmul.f32 %v2185, %v2253
        %v2255 = vmul.f32 %v2186, %v2253
        %v2256 = vadd.f32 %v2250, %v2254
        %v2257 = vadd.f32 %v2251, %v2255
        %s2258 = sld [smem:[#allocation2 + $0x803]]
        %v2259 = vstv %s2258
        %v2260 = vmul.f32 %v2188, %v2259
        %v2261 = vmul.f32 %v2189, %v2259
        %v2262 = vadd.f32 %v2256, %v2260
        %v2263 = vadd.f32 %v2257, %v2261
        %s2264 = sld [smem:[#allocation6 + $0x10]]
        %v2265 = vstv %s2264
        %v2266 = vadd.f32 %v2262, %v2265
        %v2267 = vadd.f32 %v2263, %v2265
        %s2268 = sld [smem:[#allocation2 + $0xc00]]
        %v2269 = vstv %s2268
        %v2270 = vmul.f32 %v2179, %v2269
        %v2271 = vmul.f32 %v2180, %v2269
        %s2272 = sld [smem:[#allocation2 + $0xc01]]
        %v2273 = vstv %s2272
        %v2274 = vmul.f32 %v2182, %v2273
        %v2275 = vmul.f32 %v2183, %v2273
        %v2276 = vadd.f32 %v2270, %v2274
        %v2277 = vadd.f32 %v2271, %v2275
        %s2278 = sld [smem:[#allocation2 + $0xc02]]
        %v2279 = vstv %s2278
        %v2280 = vmul.f32 %v2185, %v2279
        %v2281 = vmul.f32 %v2186, %v2279
        %v2282 = vadd.f32 %v2276, %v2280
        %v2283 = vadd.f32 %v2277, %v2281
        %s2284 = sld [smem:[#allocation2 + $0xc03]]
        %v2285 = vstv %s2284
        %v2286 = vmul.f32 %v2188, %v2285
        %v2287 = vmul.f32 %v2189, %v2285
        %v2288 = vadd.f32 %v2282, %v2286
        %v2289 = vadd.f32 %v2283, %v2287
        %s2290 = sld [smem:[#allocation6 + $0x18]]
        %v2291 = vstv %s2290
        %v2292 = vadd.f32 %v2288, %v2291
        %v2293 = vadd.f32 %v2289, %v2291
        %v2295 = vsel %vm416, %v2240, 0
        %v2298 = vsel %vm416, %v2241, 0
        %2300 = vmatpush.msra.mxu0 0.0
        %2301 = vmatpush.msra.mxu0 0.0
        %2302 = vmatpush.msra.mxu0 0.0
        %2303 = vmatpush.msra.mxu0 0.0
        %2304 = vmatpush.msra.mxu0 0.0
        %2305 = vmatpush.msra.mxu0 0.0
        %2306 = vmatpush.msra.mxu0 0.0
        %2307 = vmatpush.msra.mxu0 0.0
        %2308 = vmatpush.msra.mxu0 0.0
        %2309 = vmatpush.msra.mxu0 0.0
        %2310 = vmatpush.msra.mxu0 0.0
        %2311 = vmatpush.msra.mxu0 0.0
        %2312 = vmatpush.msra.mxu0 0.0
        %2313 = vmatpush.msra.mxu0 0.0
        %2314 = vmatpush.msra.mxu0 %v300
        %2315 = vmatpush.msra.mxu0 %v299
        %2316 = vmatmul.f32.gmra.mxu0 %v2295
        %v2317 = vpop.f32.mrf.mxu0
        %v2318 = vadd.f32 0.0, %v2317
        %2319 = vmatmul.f32.gmra.mxu0 %v2298
        %v2320 = vpop.f32.mrf.mxu0
        %v2321 = vadd.f32 0.0, %v2320
        %2322 = vdwg.mxu0
        %v2324 = vsel %vm416, %v2214, 0
        %v2327 = vsel %vm416, %v2215, 0
        %2329 = vmatpush.msra.mxu0 0.0
        %2330 = vmatpush.msra.mxu0 0.0
        %2331 = vmatpush.msra.mxu0 0.0
        %2332 = vmatpush.msra.mxu0 0.0
        %2333 = vmatpush.msra.mxu0 0.0
        %2334 = vmatpush.msra.mxu0 0.0
        %2335 = vmatpush.msra.mxu0 0.0
        %2336 = vmatpush.msra.mxu0 0.0
        %2337 = vmatpush.msra.mxu0 0.0
        %2338 = vmatpush.msra.mxu0 0.0
        %2339 = vmatpush.msra.mxu0 0.0
        %2340 = vmatpush.msra.mxu0 0.0
        %2341 = vmatpush.msra.mxu0 0.0
        %2342 = vmatpush.msra.mxu0 0.0
        %2343 = vmatpush.msra.mxu0 %v298
        %2344 = vmatpush.msra.mxu0 %v297
        %2345 = vmatmul.f32.gmra.mxu0 %v2324
        %v2346 = vpop.f32.mrf.mxu0
        %v2347 = vadd.f32 %v2318, %v2346
        %2348 = vmatmul.f32.gmra.mxu0 %v2327
        %v2349 = vpop.f32.mrf.mxu0
        %v2350 = vadd.f32 %v2321, %v2349
        %2351 = vdwg.mxu0
        %v2353 = vsel %vm416, %v2292, 0
        %v2356 = vsel %vm416, %v2293, 0
        %2358 = vmatpush.msra.mxu0 0.0
        %2359 = vmatpush.msra.mxu0 0.0
        %2360 = vmatpush.msra.mxu0 0.0
        %2361 = vmatpush.msra.mxu0 0.0
        %2362 = vmatpush.msra.mxu0 0.0
        %2363 = vmatpush.msra.mxu0 0.0
        %2364 = vmatpush.msra.mxu0 0.0
        %2365 = vmatpush.msra.mxu0 0.0
        %2366 = vmatpush.msra.mxu0 0.0
        %2367 = vmatpush.msra.mxu0 0.0
        %2368 = vmatpush.msra.mxu0 0.0
        %2369 = vmatpush.msra.mxu0 0.0
        %2370 = vmatpush.msra.mxu0 0.0
        %2371 = vmatpush.msra.mxu0 0.0
        %2372 = vmatpush.msra.mxu0 %v300
        %2373 = vmatpush.msra.mxu0 %v299
        %2374 = vmatmul.f32.gmra.mxu0 %v2353
        %v2375 = vpop.f32.mrf.mxu0
        %v2376 = vadd.f32 0.0, %v2375
        %2377 = vmatmul.f32.gmra.mxu0 %v2356
        %v2378 = vpop.f32.mrf.mxu0
        %v2379 = vadd.f32 0.0, %v2378
        %2380 = vdwg.mxu0
        %v2382 = vsel %vm416, %v2266, 0
        %v2385 = vsel %vm416, %v2267, 0
        %2387 = vmatpush.msra.mxu0 0.0
        %2388 = vmatpush.msra.mxu0 0.0
        %2389 = vmatpush.msra.mxu0 0.0
        %2390 = vmatpush.msra.mxu0 0.0
        %2391 = vmatpush.msra.mxu0 0.0
        %2392 = vmatpush.msra.mxu0 0.0
        %2393 = vmatpush.msra.mxu0 0.0
        %2394 = vmatpush.msra.mxu0 0.0
        %2395 = vmatpush.msra.mxu0 0.0
        %2396 = vmatpush.msra.mxu0 0.0
        %2397 = vmatpush.msra.mxu0 0.0
        %2398 = vmatpush.msra.mxu0 0.0
        %2399 = vmatpush.msra.mxu0 0.0
        %2400 = vmatpush.msra.mxu0 0.0
        %2401 = vmatpush.msra.mxu0 %v298
        %2402 = vmatpush.msra.mxu0 %v297
        %2403 = vmatmul.f32.gmra.mxu0 %v2382
        %v2404 = vpop.f32.mrf.mxu0
        %v2405 = vadd.f32 %v2376, %v2404
        %2406 = vmatmul.f32.gmra.mxu0 %v2385
        %v2407 = vpop.f32.mrf.mxu0
        %v2408 = vadd.f32 %v2379, %v2407
        %2409 = vdwg.mxu0
        %s2410 = scalar_lea.vmem %s292, 128 [#allocation9]
        %2411 = vst.msk [vmem:[%s2410] sm:$0xff] %vm533, %v2347
        %2412 = vst.msk [vmem:[%s2410 + $0x8] sm:$0xff] %vm533, %v2350
        %2415 = vrot.lane.b32.xlu0 %v2405, 32
        %v2416 = vpop.permute.xlu0 %2415
        %2417 = vrot.lane.b32.xlu0 %v2408, 32
        %v2418 = vpop.permute.xlu0 %2417
        %2421 = vst.msk [vmem:[%s2410] sm:$0xff] %vm544, %v2416
        %2422 = vst.msk [vmem:[%s2410 + $0x8] sm:$0xff] %vm544, %v2418
        %s2423 = sld [smem:[#allocation2 + $0x80]]
        %v2424 = vstv %s2423
        %v2425 = vmul.f32 %v2179, %v2424
        %v2426 = vmul.f32 %v2180, %v2424
        %s2427 = sld [smem:[#allocation2 + $0x81]]
        %v2428 = vstv %s2427
        %v2429 = vmul.f32 %v2182, %v2428
        %v2430 = vmul.f32 %v2183, %v2428
        %v2431 = vadd.f32 %v2425, %v2429
        %v2432 = vadd.f32 %v2426, %v2430
        %s2433 = sld [smem:[#allocation2 + $0x82]]
        %v2434 = vstv %s2433
        %v2435 = vmul.f32 %v2185, %v2434
        %v2436 = vmul.f32 %v2186, %v2434
        %v2437 = vadd.f32 %v2431, %v2435
        %v2438 = vadd.f32 %v2432, %v2436
        %s2439 = sld [smem:[#allocation2 + $0x83]]
        %v2440 = vstv %s2439
        %v2441 = vmul.f32 %v2188, %v2440
        %v2442 = vmul.f32 %v2189, %v2440
        %v2443 = vadd.f32 %v2437, %v2441
        %v2444 = vadd.f32 %v2438, %v2442
        %s2445 = sld [smem:[#allocation6 + $0x1]]
        %v2446 = vstv %s2445
        %v2447 = vadd.f32 %v2443, %v2446
        %v2448 = vadd.f32 %v2444, %v2446
        %s2449 = sld [smem:[#allocation2 + $0x480]]
        %v2450 = vstv %s2449
        %v2451 = vmul.f32 %v2179, %v2450
        %v2452 = vmul.f32 %v2180, %v2450
        %s2453 = sld [smem:[#allocation2 + $0x481]]
        %v2454 = vstv %s2453
        %v2455 = vmul.f32 %v2182, %v2454
        %v2456 = vmul.f32 %v2183, %v2454
        %v2457 = vadd.f32 %v2451, %v2455
        %v2458 = vadd.f32 %v2452, %v2456
        %s2459 = sld [smem:[#allocation2 + $0x482]]
        %v2460 = vstv %s2459
        %v2461 = vmul.f32 %v2185, %v2460
        %v2462 = vmul.f32 %v2186, %v2460
        %v2463 = vadd.f32 %v2457, %v2461
        %v2464 = vadd.f32 %v2458, %v2462
        %s2465 = sld [smem:[#allocation2 + $0x483]]
        %v2466 = vstv %s2465
        %v2467 = vmul.f32 %v2188, %v2466
        %v2468 = vmul.f32 %v2189, %v2466
        %v2469 = vadd.f32 %v2463, %v2467
        %v2470 = vadd.f32 %v2464, %v2468
        %s2471 = sld [smem:[#allocation6 + $0x9]]
        %v2472 = vstv %s2471
        %v2473 = vadd.f32 %v2469, %v2472
        %v2474 = vadd.f32 %v2470, %v2472
        %s2475 = sld [smem:[#allocation2 + $0x880]]
        %v2476 = vstv %s2475
        %v2477 = vmul.f32 %v2179, %v2476
        %v2478 = vmul.f32 %v2180, %v2476
        %s2479 = sld [smem:[#allocation2 + $0x881]]
        %v2480 = vstv %s2479
        %v2481 = vmul.f32 %v2182, %v2480
        %v2482 = vmul.f32 %v2183, %v2480
        %v2483 = vadd.f32 %v2477, %v2481
        %v2484 = vadd.f32 %v2478, %v2482
        %s2485 = sld [smem:[#allocation2 + $0x882]]
        %v2486 = vstv %s2485
        %v2487 = vmul.f32 %v2185, %v2486
        %v2488 = vmul.f32 %v2186, %v2486
        %v2489 = vadd.f32 %v2483, %v2487
        %v2490 = vadd.f32 %v2484, %v2488
        %s2491 = sld [smem:[#allocation2 + $0x883]]
        %v2492 = vstv %s2491
        %v2493 = vmul.f32 %v2188, %v2492
        %v2494 = vmul.f32 %v2189, %v2492
        %v2495 = vadd.f32 %v2489, %v2493
        %v2496 = vadd.f32 %v2490, %v2494
        %s2497 = sld [smem:[#allocation6 + $0x11]]
        %v2498 = vstv %s2497
        %v2499 = vadd.f32 %v2495, %v2498
        %v2500 = vadd.f32 %v2496, %v2498
        %s2501 = sld [smem:[#allocation2 + $0xc80]]
        %v2502 = vstv %s2501
        %v2503 = vmul.f32 %v2179, %v2502
        %v2504 = vmul.f32 %v2180, %v2502
        %s2505 = sld [smem:[#allocation2 + $0xc81]]
        %v2506 = vstv %s2505
        %v2507 = vmul.f32 %v2182, %v2506
        %v2508 = vmul.f32 %v2183, %v2506
        %v2509 = vadd.f32 %v2503, %v2507
        %v2510 = vadd.f32 %v2504, %v2508
        %s2511 = sld [smem:[#allocation2 + $0xc82]]
        %v2512 = vstv %s2511
        %v2513 = vmul.f32 %v2185, %v2512
        %v2514 = vmul.f32 %v2186, %v2512
        %v2515 = vadd.f32 %v2509, %v2513
        %v2516 = vadd.f32 %v2510, %v2514
        %s2517 = sld [smem:[#allocation2 + $0xc83]]
        %v2518 = vstv %s2517
        %v2519 = vmul.f32 %v2188, %v2518
        %v2520 = vmul.f32 %v2189, %v2518
        %v2521 = vadd.f32 %v2515, %v2519
        %v2522 = vadd.f32 %v2516, %v2520
        %s2523 = sld [smem:[#allocation6 + $0x19]]
        %v2524 = vstv %s2523
        %v2525 = vadd.f32 %v2521, %v2524
        %v2526 = vadd.f32 %v2522, %v2524
        %v2528 = vsel %vm416, %v2473, 0
        %v2531 = vsel %vm416, %v2474, 0
        %2533 = vmatpush.msra.mxu0 0.0
        %2534 = vmatpush.msra.mxu0 0.0
        %2535 = vmatpush.msra.mxu0 0.0
        %2536 = vmatpush.msra.mxu0 0.0
        %2537 = vmatpush.msra.mxu0 0.0
        %2538 = vmatpush.msra.mxu0 0.0
        %2539 = vmatpush.msra.mxu0 0.0
        %2540 = vmatpush.msra.mxu0 0.0
        %2541 = vmatpush.msra.mxu0 0.0
        %2542 = vmatpush.msra.mxu0 0.0
        %2543 = vmatpush.msra.mxu0 0.0
        %2544 = vmatpush.msra.mxu0 0.0
        %2545 = vmatpush.msra.mxu0 0.0
        %2546 = vmatpush.msra.mxu0 0.0
        %2547 = vmatpush.msra.mxu0 %v300
        %2548 = vmatpush.msra.mxu0 %v299
        %2549 = vmatmul.f32.gmra.mxu0 %v2528
        %v2550 = vpop.f32.mrf.mxu0
        %v2551 = vadd.f32 0.0, %v2550
        %2552 = vmatmul.f32.gmra.mxu0 %v2531
        %v2553 = vpop.f32.mrf.mxu0
        %v2554 = vadd.f32 0.0, %v2553
        %2555 = vdwg.mxu0
        %v2557 = vsel %vm416, %v2447, 0
        %v2560 = vsel %vm416, %v2448, 0
        %2562 = vmatpush.msra.mxu0 0.0
        %2563 = vmatpush.msra.mxu0 0.0
        %2564 = vmatpush.msra.mxu0 0.0
        %2565 = vmatpush.msra.mxu0 0.0
        %2566 = vmatpush.msra.mxu0 0.0
        %2567 = vmatpush.msra.mxu0 0.0
        %2568 = vmatpush.msra.mxu0 0.0
        %2569 = vmatpush.msra.mxu0 0.0
        %2570 = vmatpush.msra.mxu0 0.0
        %2571 = vmatpush.msra.mxu0 0.0
        %2572 = vmatpush.msra.mxu0 0.0
        %2573 = vmatpush.msra.mxu0 0.0
        %2574 = vmatpush.msra.mxu0 0.0
        %2575 = vmatpush.msra.mxu0 0.0
        %2576 = vmatpush.msra.mxu0 %v298
        %2577 = vmatpush.msra.mxu0 %v297
        %2578 = vmatmul.f32.gmra.mxu0 %v2557
        %v2579 = vpop.f32.mrf.mxu0
        %v2580 = vadd.f32 %v2551, %v2579
        %2581 = vmatmul.f32.gmra.mxu0 %v2560
        %v2582 = vpop.f32.mrf.mxu0
        %v2583 = vadd.f32 %v2554, %v2582
        %2584 = vdwg.mxu0
        %v2586 = vsel %vm416, %v2525, 0
        %v2589 = vsel %vm416, %v2526, 0
        %2591 = vmatpush.msra.mxu0 0.0
        %2592 = vmatpush.msra.mxu0 0.0
        %2593 = vmatpush.msra.mxu0 0.0
        %2594 = vmatpush.msra.mxu0 0.0
        %2595 = vmatpush.msra.mxu0 0.0
        %2596 = vmatpush.msra.mxu0 0.0
        %2597 = vmatpush.msra.mxu0 0.0
        %2598 = vmatpush.msra.mxu0 0.0
        %2599 = vmatpush.msra.mxu0 0.0
        %2600 = vmatpush.msra.mxu0 0.0
        %2601 = vmatpush.msra.mxu0 0.0
        %2602 = vmatpush.msra.mxu0 0.0
        %2603 = vmatpush.msra.mxu0 0.0
        %2604 = vmatpush.msra.mxu0 0.0
        %2605 = vmatpush.msra.mxu0 %v300
        %2606 = vmatpush.msra.mxu0 %v299
        %2607 = vmatmul.f32.gmra.mxu0 %v2586
        %v2608 = vpop.f32.mrf.mxu0
        %v2609 = vadd.f32 0.0, %v2608
        %2610 = vmatmul.f32.gmra.mxu0 %v2589
        %v2611 = vpop.f32.mrf.mxu0
        %v2612 = vadd.f32 0.0, %v2611
        %2613 = vdwg.mxu0
        %v2615 = vsel %vm416, %v2499, 0
        %v2618 = vsel %vm416, %v2500, 0
        %2620 = vmatpush.msra.mxu0 0.0
        %2621 = vmatpush.msra.mxu0 0.0
        %2622 = vmatpush.msra.mxu0 0.0
        %2623 = vmatpush.msra.mxu0 0.0
        %2624 = vmatpush.msra.mxu0 0.0
        %2625 = vmatpush.msra.mxu0 0.0
        %2626 = vmatpush.msra.mxu0 0.0
        %2627 = vmatpush.msra.mxu0 0.0
        %2628 = vmatpush.msra.mxu0 0.0
        %2629 = vmatpush.msra.mxu0 0.0
        %2630 = vmatpush.msra.mxu0 0.0
        %2631 = vmatpush.msra.mxu0 0.0
        %2632 = vmatpush.msra.mxu0 0.0
        %2633 = vmatpush.msra.mxu0 0.0
        %2634 = vmatpush.msra.mxu0 %v298
        %2635 = vmatpush.msra.mxu0 %v297
        %2636 = vmatmul.f32.gmra.mxu0 %v2615
        %v2637 = vpop.f32.mrf.mxu0
        %v2638 = vadd.f32 %v2609, %v2637
        %2639 = vmatmul.f32.gmra.mxu0 %v2618
        %v2640 = vpop.f32.mrf.mxu0
        %v2641 = vadd.f32 %v2612, %v2640
        %2642 = vdwg.mxu0
        %s2643 = scalar_lea.vmem %s292, 144 [#allocation9]
        %2644 = vst.msk [vmem:[%s2643] sm:$0xff] %vm533, %v2580
        %2645 = vst.msk [vmem:[%s2643 + $0x8] sm:$0xff] %vm533, %v2583
        %2648 = vrot.lane.b32.xlu0 %v2638, 32
        %v2649 = vpop.permute.xlu0 %2648
        %2650 = vrot.lane.b32.xlu0 %v2641, 32
        %v2651 = vpop.permute.xlu0 %2650
        %2654 = vst.msk [vmem:[%s2643] sm:$0xff] %vm544, %v2649
        %2655 = vst.msk [vmem:[%s2643 + $0x8] sm:$0xff] %vm544, %v2651
        %s2656 = sld [smem:[#allocation2 + $0x100]]
        %v2657 = vstv %s2656
        %v2658 = vmul.f32 %v2179, %v2657
        %v2659 = vmul.f32 %v2180, %v2657
        %s2660 = sld [smem:[#allocation2 + $0x101]]
        %v2661 = vstv %s2660
        %v2662 = vmul.f32 %v2182, %v2661
        %v2663 = vmul.f32 %v2183, %v2661
        %v2664 = vadd.f32 %v2658, %v2662
        %v2665 = vadd.f32 %v2659, %v2663
        %s2666 = sld [smem:[#allocation2 + $0x102]]
        %v2667 = vstv %s2666
        %v2668 = vmul.f32 %v2185, %v2667
        %v2669 = vmul.f32 %v2186, %v2667
        %v2670 = vadd.f32 %v2664, %v2668
        %v2671 = vadd.f32 %v2665, %v2669
        %s2672 = sld [smem:[#allocation2 + $0x103]]
        %v2673 = vstv %s2672
        %v2674 = vmul.f32 %v2188, %v2673
        %v2675 = vmul.f32 %v2189, %v2673
        %v2676 = vadd.f32 %v2670, %v2674
        %v2677 = vadd.f32 %v2671, %v2675
        %s2678 = sld [smem:[#allocation6 + $0x2]]
        %v2679 = vstv %s2678
        %v2680 = vadd.f32 %v2676, %v2679
        %v2681 = vadd.f32 %v2677, %v2679
        %s2682 = sld [smem:[#allocation2 + $0x500]]
        %v2683 = vstv %s2682
        %v2684 = vmul.f32 %v2179, %v2683
        %v2685 = vmul.f32 %v2180, %v2683
        %s2686 = sld [smem:[#allocation2 + $0x501]]
        %v2687 = vstv %s2686
        %v2688 = vmul.f32 %v2182, %v2687
        %v2689 = vmul.f32 %v2183, %v2687
        %v2690 = vadd.f32 %v2684, %v2688
        %v2691 = vadd.f32 %v2685, %v2689
        %s2692 = sld [smem:[#allocation2 + $0x502]]
        %v2693 = vstv %s2692
        %v2694 = vmul.f32 %v2185, %v2693
        %v2695 = vmul.f32 %v2186, %v2693
        %v2696 = vadd.f32 %v2690, %v2694
        %v2697 = vadd.f32 %v2691, %v2695
        %s2698 = sld [smem:[#allocation2 + $0x503]]
        %v2699 = vstv %s2698
        %v2700 = vmul.f32 %v2188, %v2699
        %v2701 = vmul.f32 %v2189, %v2699
        %v2702 = vadd.f32 %v2696, %v2700
        %v2703 = vadd.f32 %v2697, %v2701
        %s2704 = sld [smem:[#allocation6 + $0xa]]
        %v2705 = vstv %s2704
        %v2706 = vadd.f32 %v2702, %v2705
        %v2707 = vadd.f32 %v2703, %v2705
        %s2708 = sld [smem:[#allocation2 + $0x900]]
        %v2709 = vstv %s2708
        %v2710 = vmul.f32 %v2179, %v2709
        %v2711 = vmul.f32 %v2180, %v2709
        %s2712 = sld [smem:[#allocation2 + $0x901]]
        %v2713 = vstv %s2712
        %v2714 = vmul.f32 %v2182, %v2713
        %v2715 = vmul.f32 %v2183, %v2713
        %v2716 = vadd.f32 %v2710, %v2714
        %v2717 = vadd.f32 %v2711, %v2715
        %s2718 = sld [smem:[#allocation2 + $0x902]]
        %v2719 = vstv %s2718
        %v2720 = vmul.f32 %v2185, %v2719
        %v2721 = vmul.f32 %v2186, %v2719
        %v2722 = vadd.f32 %v2716, %v2720
        %v2723 = vadd.f32 %v2717, %v2721
        %s2724 = sld [smem:[#allocation2 + $0x903]]
        %v2725 = vstv %s2724
        %v2726 = vmul.f32 %v2188, %v2725
        %v2727 = vmul.f32 %v2189, %v2725
        %v2728 = vadd.f32 %v2722, %v2726
        %v2729 = vadd.f32 %v2723, %v2727
        %s2730 = sld [smem:[#allocation6 + $0x12]]
        %v2731 = vstv %s2730
        %v2732 = vadd.f32 %v2728, %v2731
        %v2733 = vadd.f32 %v2729, %v2731
        %s2734 = sld [smem:[#allocation2 + $0xd00]]
        %v2735 = vstv %s2734
        %v2736 = vmul.f32 %v2179, %v2735
        %v2737 = vmul.f32 %v2180, %v2735
        %s2738 = sld [smem:[#allocation2 + $0xd01]]
        %v2739 = vstv %s2738
        %v2740 = vmul.f32 %v2182, %v2739
        %v2741 = vmul.f32 %v2183, %v2739
        %v2742 = vadd.f32 %v2736, %v2740
        %v2743 = vadd.f32 %v2737, %v2741
        %s2744 = sld [smem:[#allocation2 + $0xd02]]
        %v2745 = vstv %s2744
        %v2746 = vmul.f32 %v2185, %v2745
        %v2747 = vmul.f32 %v2186, %v2745
        %v2748 = vadd.f32 %v2742, %v2746
        %v2749 = vadd.f32 %v2743, %v2747
        %s2750 = sld [smem:[#allocation2 + $0xd03]]
        %v2751 = vstv %s2750
        %v2752 = vmul.f32 %v2188, %v2751
        %v2753 = vmul.f32 %v2189, %v2751
        %v2754 = vadd.f32 %v2748, %v2752
        %v2755 = vadd.f32 %v2749, %v2753
        %s2756 = sld [smem:[#allocation6 + $0x1a]]
        %v2757 = vstv %s2756
        %v2758 = vadd.f32 %v2754, %v2757
        %v2759 = vadd.f32 %v2755, %v2757
        %v2761 = vsel %vm416, %v2706, 0
        %v2764 = vsel %vm416, %v2707, 0
        %2766 = vmatpush.msra.mxu0 0.0
        %2767 = vmatpush.msra.mxu0 0.0
        %2768 = vmatpush.msra.mxu0 0.0
        %2769 = vmatpush.msra.mxu0 0.0
        %2770 = vmatpush.msra.mxu0 0.0
        %2771 = vmatpush.msra.mxu0 0.0
        %2772 = vmatpush.msra.mxu0 0.0
        %2773 = vmatpush.msra.mxu0 0.0
        %2774 = vmatpush.msra.mxu0 0.0
        %2775 = vmatpush.msra.mxu0 0.0
        %2776 = vmatpush.msra.mxu0 0.0
        %2777 = vmatpush.msra.mxu0 0.0
        %2778 = vmatpush.msra.mxu0 0.0
        %2779 = vmatpush.msra.mxu0 0.0
        %2780 = vmatpush.msra.mxu0 %v300
        %2781 = vmatpush.msra.mxu0 %v299
        %2782 = vmatmul.f32.gmra.mxu0 %v2761
        %v2783 = vpop.f32.mrf.mxu0
        %v2784 = vadd.f32 0.0, %v2783
        %2785 = vmatmul.f32.gmra.mxu0 %v2764
        %v2786 = vpop.f32.mrf.mxu0
        %v2787 = vadd.f32 0.0, %v2786
        %2788 = vdwg.mxu0
        %v2790 = vsel %vm416, %v2680, 0
        %v2793 = vsel %vm416, %v2681, 0
        %2795 = vmatpush.msra.mxu0 0.0
        %2796 = vmatpush.msra.mxu0 0.0
        %2797 = vmatpush.msra.mxu0 0.0
        %2798 = vmatpush.msra.mxu0 0.0
        %2799 = vmatpush.msra.mxu0 0.0
        %2800 = vmatpush.msra.mxu0 0.0
        %2801 = vmatpush.msra.mxu0 0.0
        %2802 = vmatpush.msra.mxu0 0.0
        %2803 = vmatpush.msra.mxu0 0.0
        %2804 = vmatpush.msra.mxu0 0.0
        %2805 = vmatpush.msra.mxu0 0.0
        %2806 = vmatpush.msra.mxu0 0.0
        %2807 = vmatpush.msra.mxu0 0.0
        %2808 = vmatpush.msra.mxu0 0.0
        %2809 = vmatpush.msra.mxu0 %v298
        %2810 = vmatpush.msra.mxu0 %v297
        %2811 = vmatmul.f32.gmra.mxu0 %v2790
        %v2812 = vpop.f32.mrf.mxu0
        %v2813 = vadd.f32 %v2784, %v2812
        %2814 = vmatmul.f32.gmra.mxu0 %v2793
        %v2815 = vpop.f32.mrf.mxu0
        %v2816 = vadd.f32 %v2787, %v2815
        %2817 = vdwg.mxu0
        %v2819 = vsel %vm416, %v2758, 0
        %v2822 = vsel %vm416, %v2759, 0
        %2824 = vmatpush.msra.mxu0 0.0
        %2825 = vmatpush.msra.mxu0 0.0
        %2826 = vmatpush.msra.mxu0 0.0
        %2827 = vmatpush.msra.mxu0 0.0
        %2828 = vmatpush.msra.mxu0 0.0
        %2829 = vmatpush.msra.mxu0 0.0
        %2830 = vmatpush.msra.mxu0 0.0
        %2831 = vmatpush.msra.mxu0 0.0
        %2832 = vmatpush.msra.mxu0 0.0
        %2833 = vmatpush.msra.mxu0 0.0
        %2834 = vmatpush.msra.mxu0 0.0
        %2835 = vmatpush.msra.mxu0 0.0
        %2836 = vmatpush.msra.mxu0 0.0
        %2837 = vmatpush.msra.mxu0 0.0
        %2838 = vmatpush.msra.mxu0 %v300
        %2839 = vmatpush.msra.mxu0 %v299
        %2840 = vmatmul.f32.gmra.mxu0 %v2819
        %v2841 = vpop.f32.mrf.mxu0
        %v2842 = vadd.f32 0.0, %v2841
        %2843 = vmatmul.f32.gmra.mxu0 %v2822
        %v2844 = vpop.f32.mrf.mxu0
        %v2845 = vadd.f32 0.0, %v2844
        %2846 = vdwg.mxu0
        %v2848 = vsel %vm416, %v2732, 0
        %v2851 = vsel %vm416, %v2733, 0
        %2853 = vmatpush.msra.mxu0 0.0
        %2854 = vmatpush.msra.mxu0 0.0
        %2855 = vmatpush.msra.mxu0 0.0
        %2856 = vmatpush.msra.mxu0 0.0
        %2857 = vmatpush.msra.mxu0 0.0
        %2858 = vmatpush.msra.mxu0 0.0
        %2859 = vmatpush.msra.mxu0 0.0
        %2860 = vmatpush.msra.mxu0 0.0
        %2861 = vmatpush.msra.mxu0 0.0
        %2862 = vmatpush.msra.mxu0 0.0
        %2863 = vmatpush.msra.mxu0 0.0
        %2864 = vmatpush.msra.mxu0 0.0
        %2865 = vmatpush.msra.mxu0 0.0
        %2866 = vmatpush.msra.mxu0 0.0
        %2867 = vmatpush.msra.mxu0 %v298
        %2868 = vmatpush.msra.mxu0 %v297
        %2869 = vmatmul.f32.gmra.mxu0 %v2848
        %v2870 = vpop.f32.mrf.mxu0
        %v2871 = vadd.f32 %v2842, %v2870
        %2872 = vmatmul.f32.gmra.mxu0 %v2851
        %v2873 = vpop.f32.mrf.mxu0
        %v2874 = vadd.f32 %v2845, %v2873
        %2875 = vdwg.mxu0
        %s2876 = scalar_lea.vmem %s292, 160 [#allocation9]
        %2877 = vst.msk [vmem:[%s2876] sm:$0xff] %vm533, %v2813
        %2878 = vst.msk [vmem:[%s2876 + $0x8] sm:$0xff] %vm533, %v2816
        %2881 = vrot.lane.b32.xlu0 %v2871, 32
        %v2882 = vpop.permute.xlu0 %2881
        %2883 = vrot.lane.b32.xlu0 %v2874, 32
        %v2884 = vpop.permute.xlu0 %2883
        %2887 = vst.msk [vmem:[%s2876] sm:$0xff] %vm544, %v2882
        %2888 = vst.msk [vmem:[%s2876 + $0x8] sm:$0xff] %vm544, %v2884
        %s2889 = sld [smem:[#allocation2 + $0x180]]
        %v2890 = vstv %s2889
        %v2891 = vmul.f32 %v2179, %v2890
        %v2892 = vmul.f32 %v2180, %v2890
        %s2893 = sld [smem:[#allocation2 + $0x181]]
        %v2894 = vstv %s2893
        %v2895 = vmul.f32 %v2182, %v2894
        %v2896 = vmul.f32 %v2183, %v2894
        %v2897 = vadd.f32 %v2891, %v2895
        %v2898 = vadd.f32 %v2892, %v2896
        %s2899 = sld [smem:[#allocation2 + $0x182]]
        %v2900 = vstv %s2899
        %v2901 = vmul.f32 %v2185, %v2900
        %v2902 = vmul.f32 %v2186, %v2900
        %v2903 = vadd.f32 %v2897, %v2901
        %v2904 = vadd.f32 %v2898, %v2902
        %s2905 = sld [smem:[#allocation2 + $0x183]]
        %v2906 = vstv %s2905
        %v2907 = vmul.f32 %v2188, %v2906
        %v2908 = vmul.f32 %v2189, %v2906
        %v2909 = vadd.f32 %v2903, %v2907
        %v2910 = vadd.f32 %v2904, %v2908
        %s2911 = sld [smem:[#allocation6 + $0x3]]
        %v2912 = vstv %s2911
        %v2913 = vadd.f32 %v2909, %v2912
        %v2914 = vadd.f32 %v2910, %v2912
        %s2915 = sld [smem:[#allocation2 + $0x580]]
        %v2916 = vstv %s2915
        %v2917 = vmul.f32 %v2179, %v2916
        %v2918 = vmul.f32 %v2180, %v2916
        %s2919 = sld [smem:[#allocation2 + $0x581]]
        %v2920 = vstv %s2919
        %v2921 = vmul.f32 %v2182, %v2920
        %v2922 = vmul.f32 %v2183, %v2920
        %v2923 = vadd.f32 %v2917, %v2921
        %v2924 = vadd.f32 %v2918, %v2922
        %s2925 = sld [smem:[#allocation2 + $0x582]]
        %v2926 = vstv %s2925
        %v2927 = vmul.f32 %v2185, %v2926
        %v2928 = vmul.f32 %v2186, %v2926
        %v2929 = vadd.f32 %v2923, %v2927
        %v2930 = vadd.f32 %v2924, %v2928
        %s2931 = sld [smem:[#allocation2 + $0x583]]
        %v2932 = vstv %s2931
        %v2933 = vmul.f32 %v2188, %v2932
        %v2934 = vmul.f32 %v2189, %v2932
        %v2935 = vadd.f32 %v2929, %v2933
        %v2936 = vadd.f32 %v2930, %v2934
        %s2937 = sld [smem:[#allocation6 + $0xb]]
        %v2938 = vstv %s2937
        %v2939 = vadd.f32 %v2935, %v2938
        %v2940 = vadd.f32 %v2936, %v2938
        %s2941 = sld [smem:[#allocation2 + $0x980]]
        %v2942 = vstv %s2941
        %v2943 = vmul.f32 %v2179, %v2942
        %v2944 = vmul.f32 %v2180, %v2942
        %s2945 = sld [smem:[#allocation2 + $0x981]]
        %v2946 = vstv %s2945
        %v2947 = vmul.f32 %v2182, %v2946
        %v2948 = vmul.f32 %v2183, %v2946
        %v2949 = vadd.f32 %v2943, %v2947
        %v2950 = vadd.f32 %v2944, %v2948
        %s2951 = sld [smem:[#allocation2 + $0x982]]
        %v2952 = vstv %s2951
        %v2953 = vmul.f32 %v2185, %v2952
        %v2954 = vmul.f32 %v2186, %v2952
        %v2955 = vadd.f32 %v2949, %v2953
        %v2956 = vadd.f32 %v2950, %v2954
        %s2957 = sld [smem:[#allocation2 + $0x983]]
        %v2958 = vstv %s2957
        %v2959 = vmul.f32 %v2188, %v2958
        %v2960 = vmul.f32 %v2189, %v2958
        %v2961 = vadd.f32 %v2955, %v2959
        %v2962 = vadd.f32 %v2956, %v2960
        %s2963 = sld [smem:[#allocation6 + $0x13]]
        %v2964 = vstv %s2963
        %v2965 = vadd.f32 %v2961, %v2964
        %v2966 = vadd.f32 %v2962, %v2964
        %s2967 = sld [smem:[#allocation2 + $0xd80]]
        %v2968 = vstv %s2967
        %v2969 = vmul.f32 %v2179, %v2968
        %v2970 = vmul.f32 %v2180, %v2968
        %s2971 = sld [smem:[#allocation2 + $0xd81]]
        %v2972 = vstv %s2971
        %v2973 = vmul.f32 %v2182, %v2972
        %v2974 = vmul.f32 %v2183, %v2972
        %v2975 = vadd.f32 %v2969, %v2973
        %v2976 = vadd.f32 %v2970, %v2974
        %s2977 = sld [smem:[#allocation2 + $0xd82]]
        %v2978 = vstv %s2977
        %v2979 = vmul.f32 %v2185, %v2978
        %v2980 = vmul.f32 %v2186, %v2978
        %v2981 = vadd.f32 %v2975, %v2979
        %v2982 = vadd.f32 %v2976, %v2980
        %s2983 = sld [smem:[#allocation2 + $0xd83]]
        %v2984 = vstv %s2983
        %v2985 = vmul.f32 %v2188, %v2984
        %v2986 = vmul.f32 %v2189, %v2984
        %v2987 = vadd.f32 %v2981, %v2985
        %v2988 = vadd.f32 %v2982, %v2986
        %s2989 = sld [smem:[#allocation6 + $0x1b]]
        %v2990 = vstv %s2989
        %v2991 = vadd.f32 %v2987, %v2990
        %v2992 = vadd.f32 %v2988, %v2990
        %v2994 = vsel %vm416, %v2939, 0
        %v2997 = vsel %vm416, %v2940, 0
        %2999 = vmatpush.msra.mxu0 0.0
        %3000 = vmatpush.msra.mxu0 0.0
        %3001 = vmatpush.msra.mxu0 0.0
        %3002 = vmatpush.msra.mxu0 0.0
        %3003 = vmatpush.msra.mxu0 0.0
        %3004 = vmatpush.msra.mxu0 0.0
        %3005 = vmatpush.msra.mxu0 0.0
        %3006 = vmatpush.msra.mxu0 0.0
        %3007 = vmatpush.msra.mxu0 0.0
        %3008 = vmatpush.msra.mxu0 0.0
        %3009 = vmatpush.msra.mxu0 0.0
        %3010 = vmatpush.msra.mxu0 0.0
        %3011 = vmatpush.msra.mxu0 0.0
        %3012 = vmatpush.msra.mxu0 0.0
        %3013 = vmatpush.msra.mxu0 %v300
        %3014 = vmatpush.msra.mxu0 %v299
        %3015 = vmatmul.f32.gmra.mxu0 %v2994
        %v3016 = vpop.f32.mrf.mxu0
        %v3017 = vadd.f32 0.0, %v3016
        %3018 = vmatmul.f32.gmra.mxu0 %v2997
        %v3019 = vpop.f32.mrf.mxu0
        %v3020 = vadd.f32 0.0, %v3019
        %3021 = vdwg.mxu0
        %v3023 = vsel %vm416, %v2913, 0
        %v3026 = vsel %vm416, %v2914, 0
        %3028 = vmatpush.msra.mxu0 0.0
        %3029 = vmatpush.msra.mxu0 0.0
        %3030 = vmatpush.msra.mxu0 0.0
        %3031 = vmatpush.msra.mxu0 0.0
        %3032 = vmatpush.msra.mxu0 0.0
        %3033 = vmatpush.msra.mxu0 0.0
        %3034 = vmatpush.msra.mxu0 0.0
        %3035 = vmatpush.msra.mxu0 0.0
        %3036 = vmatpush.msra.mxu0 0.0
        %3037 = vmatpush.msra.mxu0 0.0
        %3038 = vmatpush.msra.mxu0 0.0
        %3039 = vmatpush.msra.mxu0 0.0
        %3040 = vmatpush.msra.mxu0 0.0
        %3041 = vmatpush.msra.mxu0 0.0
        %3042 = vmatpush.msra.mxu0 %v298
        %3043 = vmatpush.msra.mxu0 %v297
        %3044 = vmatmul.f32.gmra.mxu0 %v3023
        %v3045 = vpop.f32.mrf.mxu0
        %v3046 = vadd.f32 %v3017, %v3045
        %3047 = vmatmul.f32.gmra.mxu0 %v3026
        %v3048 = vpop.f32.mrf.mxu0
        %v3049 = vadd.f32 %v3020, %v3048
        %3050 = vdwg.mxu0
        %v3052 = vsel %vm416, %v2991, 0
        %v3055 = vsel %vm416, %v2992, 0
        %3057 = vmatpush.msra.mxu0 0.0
        %3058 = vmatpush.msra.mxu0 0.0
        %3059 = vmatpush.msra.mxu0 0.0
        %3060 = vmatpush.msra.mxu0 0.0
        %3061 = vmatpush.msra.mxu0 0.0
        %3062 = vmatpush.msra.mxu0 0.0
        %3063 = vmatpush.msra.mxu0 0.0
        %3064 = vmatpush.msra.mxu0 0.0
        %3065 = vmatpush.msra.mxu0 0.0
        %3066 = vmatpush.msra.mxu0 0.0
        %3067 = vmatpush.msra.mxu0 0.0
        %3068 = vmatpush.msra.mxu0 0.0
        %3069 = vmatpush.msra.mxu0 0.0
        %3070 = vmatpush.msra.mxu0 0.0
        %3071 = vmatpush.msra.mxu0 %v300
        %3072 = vmatpush.msra.mxu0 %v299
        %3073 = vmatmul.f32.gmra.mxu0 %v3052
        %v3074 = vpop.f32.mrf.mxu0
        %v3075 = vadd.f32 0.0, %v3074
        %3076 = vmatmul.f32.gmra.mxu0 %v3055
        %v3077 = vpop.f32.mrf.mxu0
        %v3078 = vadd.f32 0.0, %v3077
        %3079 = vdwg.mxu0
        %v3081 = vsel %vm416, %v2965, 0
        %v3084 = vsel %vm416, %v2966, 0
        %3086 = vmatpush.msra.mxu0 0.0
        %3087 = vmatpush.msra.mxu0 0.0
        %3088 = vmatpush.msra.mxu0 0.0
        %3089 = vmatpush.msra.mxu0 0.0
        %3090 = vmatpush.msra.mxu0 0.0
        %3091 = vmatpush.msra.mxu0 0.0
        %3092 = vmatpush.msra.mxu0 0.0
        %3093 = vmatpush.msra.mxu0 0.0
        %3094 = vmatpush.msra.mxu0 0.0
        %3095 = vmatpush.msra.mxu0 0.0
        %3096 = vmatpush.msra.mxu0 0.0
        %3097 = vmatpush.msra.mxu0 0.0
        %3098 = vmatpush.msra.mxu0 0.0
        %3099 = vmatpush.msra.mxu0 0.0
        %3100 = vmatpush.msra.mxu0 %v298
        %3101 = vmatpush.msra.mxu0 %v297
        %3102 = vmatmul.f32.gmra.mxu0 %v3081
        %v3103 = vpop.f32.mrf.mxu0
        %v3104 = vadd.f32 %v3075, %v3103
        %3105 = vmatmul.f32.gmra.mxu0 %v3084
        %v3106 = vpop.f32.mrf.mxu0
        %v3107 = vadd.f32 %v3078, %v3106
        %3108 = vdwg.mxu0
        %s3109 = scalar_lea.vmem %s292, 176 [#allocation9]
        %3110 = vst.msk [vmem:[%s3109] sm:$0xff] %vm533, %v3046
        %3111 = vst.msk [vmem:[%s3109 + $0x8] sm:$0xff] %vm533, %v3049
        %3114 = vrot.lane.b32.xlu0 %v3104, 32
        %v3115 = vpop.permute.xlu0 %3114
        %3116 = vrot.lane.b32.xlu0 %v3107, 32
        %v3117 = vpop.permute.xlu0 %3116
        %3120 = vst.msk [vmem:[%s3109] sm:$0xff] %vm544, %v3115
        %3121 = vst.msk [vmem:[%s3109 + $0x8] sm:$0xff] %vm544, %v3117
        %s3122 = sld [smem:[#allocation2 + $0x200]]
        %v3123 = vstv %s3122
        %v3124 = vmul.f32 %v2179, %v3123
        %v3125 = vmul.f32 %v2180, %v3123
        %s3126 = sld [smem:[#allocation2 + $0x201]]
        %v3127 = vstv %s3126
        %v3128 = vmul.f32 %v2182, %v3127
        %v3129 = vmul.f32 %v2183, %v3127
        %v3130 = vadd.f32 %v3124, %v3128
        %v3131 = vadd.f32 %v3125, %v3129
        %s3132 = sld [smem:[#allocation2 + $0x202]]
        %v3133 = vstv %s3132
        %v3134 = vmul.f32 %v2185, %v3133
        %v3135 = vmul.f32 %v2186, %v3133
        %v3136 = vadd.f32 %v3130, %v3134
        %v3137 = vadd.f32 %v3131, %v3135
        %s3138 = sld [smem:[#allocation2 + $0x203]]
        %v3139 = vstv %s3138
        %v3140 = vmul.f32 %v2188, %v3139
        %v3141 = vmul.f32 %v2189, %v3139
        %v3142 = vadd.f32 %v3136, %v3140
        %v3143 = vadd.f32 %v3137, %v3141
        %s3144 = sld [smem:[#allocation6 + $0x4]]
        %v3145 = vstv %s3144
        %v3146 = vadd.f32 %v3142, %v3145
        %v3147 = vadd.f32 %v3143, %v3145
        %s3148 = sld [smem:[#allocation2 + $0x600]]
        %v3149 = vstv %s3148
        %v3150 = vmul.f32 %v2179, %v3149
        %v3151 = vmul.f32 %v2180, %v3149
        %s3152 = sld [smem:[#allocation2 + $0x601]]
        %v3153 = vstv %s3152
        %v3154 = vmul.f32 %v2182, %v3153
        %v3155 = vmul.f32 %v2183, %v3153
        %v3156 = vadd.f32 %v3150, %v3154
        %v3157 = vadd.f32 %v3151, %v3155
        %s3158 = sld [smem:[#allocation2 + $0x602]]
        %v3159 = vstv %s3158
        %v3160 = vmul.f32 %v2185, %v3159
        %v3161 = vmul.f32 %v2186, %v3159
        %v3162 = vadd.f32 %v3156, %v3160
        %v3163 = vadd.f32 %v3157, %v3161
        %s3164 = sld [smem:[#allocation2 + $0x603]]
        %v3165 = vstv %s3164
        %v3166 = vmul.f32 %v2188, %v3165
        %v3167 = vmul.f32 %v2189, %v3165
        %v3168 = vadd.f32 %v3162, %v3166
        %v3169 = vadd.f32 %v3163, %v3167
        %s3170 = sld [smem:[#allocation6 + $0xc]]
        %v3171 = vstv %s3170
        %v3172 = vadd.f32 %v3168, %v3171
        %v3173 = vadd.f32 %v3169, %v3171
        %s3174 = sld [smem:[#allocation2 + $0xa00]]
        %v3175 = vstv %s3174
        %v3176 = vmul.f32 %v2179, %v3175
        %v3177 = vmul.f32 %v2180, %v3175
        %s3178 = sld [smem:[#allocation2 + $0xa01]]
        %v3179 = vstv %s3178
        %v3180 = vmul.f32 %v2182, %v3179
        %v3181 = vmul.f32 %v2183, %v3179
        %v3182 = vadd.f32 %v3176, %v3180
        %v3183 = vadd.f32 %v3177, %v3181
        %s3184 = sld [smem:[#allocation2 + $0xa02]]
        %v3185 = vstv %s3184
        %v3186 = vmul.f32 %v2185, %v3185
        %v3187 = vmul.f32 %v2186, %v3185
        %v3188 = vadd.f32 %v3182, %v3186
        %v3189 = vadd.f32 %v3183, %v3187
        %s3190 = sld [smem:[#allocation2 + $0xa03]]
        %v3191 = vstv %s3190
        %v3192 = vmul.f32 %v2188, %v3191
        %v3193 = vmul.f32 %v2189, %v3191
        %v3194 = vadd.f32 %v3188, %v3192
        %v3195 = vadd.f32 %v3189, %v3193
        %s3196 = sld [smem:[#allocation6 + $0x14]]
        %v3197 = vstv %s3196
        %v3198 = vadd.f32 %v3194, %v3197
        %v3199 = vadd.f32 %v3195, %v3197
        %s3200 = sld [smem:[#allocation2 + $0xe00]]
        %v3201 = vstv %s3200
        %v3202 = vmul.f32 %v2179, %v3201
        %v3203 = vmul.f32 %v2180, %v3201
        %s3204 = sld [smem:[#allocation2 + $0xe01]]
        %v3205 = vstv %s3204
        %v3206 = vmul.f32 %v2182, %v3205
        %v3207 = vmul.f32 %v2183, %v3205
        %v3208 = vadd.f32 %v3202, %v3206
        %v3209 = vadd.f32 %v3203, %v3207
        %s3210 = sld [smem:[#allocation2 + $0xe02]]
        %v3211 = vstv %s3210
        %v3212 = vmul.f32 %v2185, %v3211
        %v3213 = vmul.f32 %v2186, %v3211
        %v3214 = vadd.f32 %v3208, %v3212
        %v3215 = vadd.f32 %v3209, %v3213
        %s3216 = sld [smem:[#allocation2 + $0xe03]]
        %v3217 = vstv %s3216
        %v3218 = vmul.f32 %v2188, %v3217
        %v3219 = vmul.f32 %v2189, %v3217
        %v3220 = vadd.f32 %v3214, %v3218
        %v3221 = vadd.f32 %v3215, %v3219
        %s3222 = sld [smem:[#allocation6 + $0x1c]]
        %v3223 = vstv %s3222
        %v3224 = vadd.f32 %v3220, %v3223
        %v3225 = vadd.f32 %v3221, %v3223
        %v3227 = vsel %vm416, %v3172, 0
        %v3230 = vsel %vm416, %v3173, 0
        %3232 = vmatpush.msra.mxu0 0.0
        %3233 = vmatpush.msra.mxu0 0.0
        %3234 = vmatpush.msra.mxu0 0.0
        %3235 = vmatpush.msra.mxu0 0.0
        %3236 = vmatpush.msra.mxu0 0.0
        %3237 = vmatpush.msra.mxu0 0.0
        %3238 = vmatpush.msra.mxu0 0.0
        %3239 = vmatpush.msra.mxu0 0.0
        %3240 = vmatpush.msra.mxu0 0.0
        %3241 = vmatpush.msra.mxu0 0.0
        %3242 = vmatpush.msra.mxu0 0.0
        %3243 = vmatpush.msra.mxu0 0.0
        %3244 = vmatpush.msra.mxu0 0.0
        %3245 = vmatpush.msra.mxu0 0.0
        %3246 = vmatpush.msra.mxu0 %v300
        %3247 = vmatpush.msra.mxu0 %v299
        %3248 = vmatmul.f32.gmra.mxu0 %v3227
        %v3249 = vpop.f32.mrf.mxu0
        %v3250 = vadd.f32 0.0, %v3249
        %3251 = vmatmul.f32.gmra.mxu0 %v3230
        %v3252 = vpop.f32.mrf.mxu0
        %v3253 = vadd.f32 0.0, %v3252
        %3254 = vdwg.mxu0
        %v3256 = vsel %vm416, %v3146, 0
        %v3259 = vsel %vm416, %v3147, 0
        %3261 = vmatpush.msra.mxu0 0.0
        %3262 = vmatpush.msra.mxu0 0.0
        %3263 = vmatpush.msra.mxu0 0.0
        %3264 = vmatpush.msra.mxu0 0.0
        %3265 = vmatpush.msra.mxu0 0.0
        %3266 = vmatpush.msra.mxu0 0.0
        %3267 = vmatpush.msra.mxu0 0.0
        %3268 = vmatpush.msra.mxu0 0.0
        %3269 = vmatpush.msra.mxu0 0.0
        %3270 = vmatpush.msra.mxu0 0.0
        %3271 = vmatpush.msra.mxu0 0.0
        %3272 = vmatpush.msra.mxu0 0.0
        %3273 = vmatpush.msra.mxu0 0.0
        %3274 = vmatpush.msra.mxu0 0.0
        %3275 = vmatpush.msra.mxu0 %v298
        %3276 = vmatpush.msra.mxu0 %v297
        %3277 = vmatmul.f32.gmra.mxu0 %v3256
        %v3278 = vpop.f32.mrf.mxu0
        %v3279 = vadd.f32 %v3250, %v3278
        %3280 = vmatmul.f32.gmra.mxu0 %v3259
        %v3281 = vpop.f32.mrf.mxu0
        %v3282 = vadd.f32 %v3253, %v3281
        %3283 = vdwg.mxu0
        %v3285 = vsel %vm416, %v3224, 0
        %v3288 = vsel %vm416, %v3225, 0
        %3290 = vmatpush.msra.mxu0 0.0
        %3291 = vmatpush.msra.mxu0 0.0
        %3292 = vmatpush.msra.mxu0 0.0
        %3293 = vmatpush.msra.mxu0 0.0
        %3294 = vmatpush.msra.mxu0 0.0
        %3295 = vmatpush.msra.mxu0 0.0
        %3296 = vmatpush.msra.mxu0 0.0
        %3297 = vmatpush.msra.mxu0 0.0
        %3298 = vmatpush.msra.mxu0 0.0
        %3299 = vmatpush.msra.mxu0 0.0
        %3300 = vmatpush.msra.mxu0 0.0
        %3301 = vmatpush.msra.mxu0 0.0
        %3302 = vmatpush.msra.mxu0 0.0
        %3303 = vmatpush.msra.mxu0 0.0
        %3304 = vmatpush.msra.mxu0 %v300
        %3305 = vmatpush.msra.mxu0 %v299
        %3306 = vmatmul.f32.gmra.mxu0 %v3285
        %v3307 = vpop.f32.mrf.mxu0
        %v3308 = vadd.f32 0.0, %v3307
        %3309 = vmatmul.f32.gmra.mxu0 %v3288
        %v3310 = vpop.f32.mrf.mxu0
        %v3311 = vadd.f32 0.0, %v3310
        %3312 = vdwg.mxu0
        %v3314 = vsel %vm416, %v3198, 0
        %v3317 = vsel %vm416, %v3199, 0
        %3319 = vmatpush.msra.mxu0 0.0
        %3320 = vmatpush.msra.mxu0 0.0
        %3321 = vmatpush.msra.mxu0 0.0
        %3322 = vmatpush.msra.mxu0 0.0
        %3323 = vmatpush.msra.mxu0 0.0
        %3324 = vmatpush.msra.mxu0 0.0
        %3325 = vmatpush.msra.mxu0 0.0
        %3326 = vmatpush.msra.mxu0 0.0
        %3327 = vmatpush.msra.mxu0 0.0
        %3328 = vmatpush.msra.mxu0 0.0
        %3329 = vmatpush.msra.mxu0 0.0
        %3330 = vmatpush.msra.mxu0 0.0
        %3331 = vmatpush.msra.mxu0 0.0
        %3332 = vmatpush.msra.mxu0 0.0
        %3333 = vmatpush.msra.mxu0 %v298
        %3334 = vmatpush.msra.mxu0 %v297
        %3335 = vmatmul.f32.gmra.mxu0 %v3314
        %v3336 = vpop.f32.mrf.mxu0
        %v3337 = vadd.f32 %v3308, %v3336
        %3338 = vmatmul.f32.gmra.mxu0 %v3317
        %v3339 = vpop.f32.mrf.mxu0
        %v3340 = vadd.f32 %v3311, %v3339
        %3341 = vdwg.mxu0
        %s3342 = scalar_lea.vmem %s292, 192 [#allocation9]
        %3343 = vst.msk [vmem:[%s3342] sm:$0xff] %vm533, %v3279
        %3344 = vst.msk [vmem:[%s3342 + $0x8] sm:$0xff] %vm533, %v3282
        %3347 = vrot.lane.b32.xlu0 %v3337, 32
        %v3348 = vpop.permute.xlu0 %3347
        %3349 = vrot.lane.b32.xlu0 %v3340, 32
        %v3350 = vpop.permute.xlu0 %3349
        %3353 = vst.msk [vmem:[%s3342] sm:$0xff] %vm544, %v3348
        %3354 = vst.msk [vmem:[%s3342 + $0x8] sm:$0xff] %vm544, %v3350
        %s3355 = sld [smem:[#allocation2 + $0x280]]
        %v3356 = vstv %s3355
        %v3357 = vmul.f32 %v2179, %v3356
        %v3358 = vmul.f32 %v2180, %v3356
        %s3359 = sld [smem:[#allocation2 + $0x281]]
        %v3360 = vstv %s3359
        %v3361 = vmul.f32 %v2182, %v3360
        %v3362 = vmul.f32 %v2183, %v3360
        %v3363 = vadd.f32 %v3357, %v3361
        %v3364 = vadd.f32 %v3358, %v3362
        %s3365 = sld [smem:[#allocation2 + $0x282]]
        %v3366 = vstv %s3365
        %v3367 = vmul.f32 %v2185, %v3366
        %v3368 = vmul.f32 %v2186, %v3366
        %v3369 = vadd.f32 %v3363, %v3367
        %v3370 = vadd.f32 %v3364, %v3368
        %s3371 = sld [smem:[#allocation2 + $0x283]]
        %v3372 = vstv %s3371
        %v3373 = vmul.f32 %v2188, %v3372
        %v3374 = vmul.f32 %v2189, %v3372
        %v3375 = vadd.f32 %v3369, %v3373
        %v3376 = vadd.f32 %v3370, %v3374
        %s3377 = sld [smem:[#allocation6 + $0x5]]
        %v3378 = vstv %s3377
        %v3379 = vadd.f32 %v3375, %v3378
        %v3380 = vadd.f32 %v3376, %v3378
        %s3381 = sld [smem:[#allocation2 + $0x680]]
        %v3382 = vstv %s3381
        %v3383 = vmul.f32 %v2179, %v3382
        %v3384 = vmul.f32 %v2180, %v3382
        %s3385 = sld [smem:[#allocation2 + $0x681]]
        %v3386 = vstv %s3385
        %v3387 = vmul.f32 %v2182, %v3386
        %v3388 = vmul.f32 %v2183, %v3386
        %v3389 = vadd.f32 %v3383, %v3387
        %v3390 = vadd.f32 %v3384, %v3388
        %s3391 = sld [smem:[#allocation2 + $0x682]]
        %v3392 = vstv %s3391
        %v3393 = vmul.f32 %v2185, %v3392
        %v3394 = vmul.f32 %v2186, %v3392
        %v3395 = vadd.f32 %v3389, %v3393
        %v3396 = vadd.f32 %v3390, %v3394
        %s3397 = sld [smem:[#allocation2 + $0x683]]
        %v3398 = vstv %s3397
        %v3399 = vmul.f32 %v2188, %v3398
        %v3400 = vmul.f32 %v2189, %v3398
        %v3401 = vadd.f32 %v3395, %v3399
        %v3402 = vadd.f32 %v3396, %v3400
        %s3403 = sld [smem:[#allocation6 + $0xd]]
        %v3404 = vstv %s3403
        %v3405 = vadd.f32 %v3401, %v3404
        %v3406 = vadd.f32 %v3402, %v3404
        %s3407 = sld [smem:[#allocation2 + $0xa80]]
        %v3408 = vstv %s3407
        %v3409 = vmul.f32 %v2179, %v3408
        %v3410 = vmul.f32 %v2180, %v3408
        %s3411 = sld [smem:[#allocation2 + $0xa81]]
        %v3412 = vstv %s3411
        %v3413 = vmul.f32 %v2182, %v3412
        %v3414 = vmul.f32 %v2183, %v3412
        %v3415 = vadd.f32 %v3409, %v3413
        %v3416 = vadd.f32 %v3410, %v3414
        %s3417 = sld [smem:[#allocation2 + $0xa82]]
        %v3418 = vstv %s3417
        %v3419 = vmul.f32 %v2185, %v3418
        %v3420 = vmul.f32 %v2186, %v3418
        %v3421 = vadd.f32 %v3415, %v3419
        %v3422 = vadd.f32 %v3416, %v3420
        %s3423 = sld [smem:[#allocation2 + $0xa83]]
        %v3424 = vstv %s3423
        %v3425 = vmul.f32 %v2188, %v3424
        %v3426 = vmul.f32 %v2189, %v3424
        %v3427 = vadd.f32 %v3421, %v3425
        %v3428 = vadd.f32 %v3422, %v3426
        %s3429 = sld [smem:[#allocation6 + $0x15]]
        %v3430 = vstv %s3429
        %v3431 = vadd.f32 %v3427, %v3430
        %v3432 = vadd.f32 %v3428, %v3430
        %s3433 = sld [smem:[#allocation2 + $0xe80]]
        %v3434 = vstv %s3433
        %v3435 = vmul.f32 %v2179, %v3434
        %v3436 = vmul.f32 %v2180, %v3434
        %s3437 = sld [smem:[#allocation2 + $0xe81]]
        %v3438 = vstv %s3437
        %v3439 = vmul.f32 %v2182, %v3438
        %v3440 = vmul.f32 %v2183, %v3438
        %v3441 = vadd.f32 %v3435, %v3439
        %v3442 = vadd.f32 %v3436, %v3440
        %s3443 = sld [smem:[#allocation2 + $0xe82]]
        %v3444 = vstv %s3443
        %v3445 = vmul.f32 %v2185, %v3444
        %v3446 = vmul.f32 %v2186, %v3444
        %v3447 = vadd.f32 %v3441, %v3445
        %v3448 = vadd.f32 %v3442, %v3446
        %s3449 = sld [smem:[#allocation2 + $0xe83]]
        %v3450 = vstv %s3449
        %v3451 = vmul.f32 %v2188, %v3450
        %v3452 = vmul.f32 %v2189, %v3450
        %v3453 = vadd.f32 %v3447, %v3451
        %v3454 = vadd.f32 %v3448, %v3452
        %s3455 = sld [smem:[#allocation6 + $0x1d]]
        %v3456 = vstv %s3455
        %v3457 = vadd.f32 %v3453, %v3456
        %v3458 = vadd.f32 %v3454, %v3456
        %v3460 = vsel %vm416, %v3405, 0
        %v3463 = vsel %vm416, %v3406, 0
        %3465 = vmatpush.msra.mxu0 0.0
        %3466 = vmatpush.msra.mxu0 0.0
        %3467 = vmatpush.msra.mxu0 0.0
        %3468 = vmatpush.msra.mxu0 0.0
        %3469 = vmatpush.msra.mxu0 0.0
        %3470 = vmatpush.msra.mxu0 0.0
        %3471 = vmatpush.msra.mxu0 0.0
        %3472 = vmatpush.msra.mxu0 0.0
        %3473 = vmatpush.msra.mxu0 0.0
        %3474 = vmatpush.msra.mxu0 0.0
        %3475 = vmatpush.msra.mxu0 0.0
        %3476 = vmatpush.msra.mxu0 0.0
        %3477 = vmatpush.msra.mxu0 0.0
        %3478 = vmatpush.msra.mxu0 0.0
        %3479 = vmatpush.msra.mxu0 %v300
        %3480 = vmatpush.msra.mxu0 %v299
        %3481 = vmatmul.f32.gmra.mxu0 %v3460
        %v3482 = vpop.f32.mrf.mxu0
        %v3483 = vadd.f32 0.0, %v3482
        %3484 = vmatmul.f32.gmra.mxu0 %v3463
        %v3485 = vpop.f32.mrf.mxu0
        %v3486 = vadd.f32 0.0, %v3485
        %3487 = vdwg.mxu0
        %v3489 = vsel %vm416, %v3379, 0
        %v3492 = vsel %vm416, %v3380, 0
        %3494 = vmatpush.msra.mxu0 0.0
        %3495 = vmatpush.msra.mxu0 0.0
        %3496 = vmatpush.msra.mxu0 0.0
        %3497 = vmatpush.msra.mxu0 0.0
        %3498 = vmatpush.msra.mxu0 0.0
        %3499 = vmatpush.msra.mxu0 0.0
        %3500 = vmatpush.msra.mxu0 0.0
        %3501 = vmatpush.msra.mxu0 0.0
        %3502 = vmatpush.msra.mxu0 0.0
        %3503 = vmatpush.msra.mxu0 0.0
        %3504 = vmatpush.msra.mxu0 0.0
        %3505 = vmatpush.msra.mxu0 0.0
        %3506 = vmatpush.msra.mxu0 0.0
        %3507 = vmatpush.msra.mxu0 0.0
        %3508 = vmatpush.msra.mxu0 %v298
        %3509 = vmatpush.msra.mxu0 %v297
        %3510 = vmatmul.f32.gmra.mxu0 %v3489
        %v3511 = vpop.f32.mrf.mxu0
        %v3512 = vadd.f32 %v3483, %v3511
        %3513 = vmatmul.f32.gmra.mxu0 %v3492
        %v3514 = vpop.f32.mrf.mxu0
        %v3515 = vadd.f32 %v3486, %v3514
        %3516 = vdwg.mxu0
        %v3518 = vsel %vm416, %v3457, 0
        %v3521 = vsel %vm416, %v3458, 0
        %3523 = vmatpush.msra.mxu0 0.0
        %3524 = vmatpush.msra.mxu0 0.0
        %3525 = vmatpush.msra.mxu0 0.0
        %3526 = vmatpush.msra.mxu0 0.0
        %3527 = vmatpush.msra.mxu0 0.0
        %3528 = vmatpush.msra.mxu0 0.0
        %3529 = vmatpush.msra.mxu0 0.0
        %3530 = vmatpush.msra.mxu0 0.0
        %3531 = vmatpush.msra.mxu0 0.0
        %3532 = vmatpush.msra.mxu0 0.0
        %3533 = vmatpush.msra.mxu0 0.0
        %3534 = vmatpush.msra.mxu0 0.0
        %3535 = vmatpush.msra.mxu0 0.0
        %3536 = vmatpush.msra.mxu0 0.0
        %3537 = vmatpush.msra.mxu0 %v300
        %3538 = vmatpush.msra.mxu0 %v299
        %3539 = vmatmul.f32.gmra.mxu0 %v3518
        %v3540 = vpop.f32.mrf.mxu0
        %v3541 = vadd.f32 0.0, %v3540
        %3542 = vmatmul.f32.gmra.mxu0 %v3521
        %v3543 = vpop.f32.mrf.mxu0
        %v3544 = vadd.f32 0.0, %v3543
        %3545 = vdwg.mxu0
        %v3547 = vsel %vm416, %v3431, 0
        %v3550 = vsel %vm416, %v3432, 0
        %3552 = vmatpush.msra.mxu0 0.0
        %3553 = vmatpush.msra.mxu0 0.0
        %3554 = vmatpush.msra.mxu0 0.0
        %3555 = vmatpush.msra.mxu0 0.0
        %3556 = vmatpush.msra.mxu0 0.0
        %3557 = vmatpush.msra.mxu0 0.0
        %3558 = vmatpush.msra.mxu0 0.0
        %3559 = vmatpush.msra.mxu0 0.0
        %3560 = vmatpush.msra.mxu0 0.0
        %3561 = vmatpush.msra.mxu0 0.0
        %3562 = vmatpush.msra.mxu0 0.0
        %3563 = vmatpush.msra.mxu0 0.0
        %3564 = vmatpush.msra.mxu0 0.0
        %3565 = vmatpush.msra.mxu0 0.0
        %3566 = vmatpush.msra.mxu0 %v298
        %3567 = vmatpush.msra.mxu0 %v297
        %3568 = vmatmul.f32.gmra.mxu0 %v3547
        %v3569 = vpop.f32.mrf.mxu0
        %v3570 = vadd.f32 %v3541, %v3569
        %3571 = vmatmul.f32.gmra.mxu0 %v3550
        %v3572 = vpop.f32.mrf.mxu0
        %v3573 = vadd.f32 %v3544, %v3572
        %3574 = vdwg.mxu0
        %s3575 = scalar_lea.vmem %s292, 208 [#allocation9]
        %3576 = vst.msk [vmem:[%s3575] sm:$0xff] %vm533, %v3512
        %3577 = vst.msk [vmem:[%s3575 + $0x8] sm:$0xff] %vm533, %v3515
        %3580 = vrot.lane.b32.xlu0 %v3570, 32
        %v3581 = vpop.permute.xlu0 %3580
        %3582 = vrot.lane.b32.xlu0 %v3573, 32
        %v3583 = vpop.permute.xlu0 %3582
        %3586 = vst.msk [vmem:[%s3575] sm:$0xff] %vm544, %v3581
        %3587 = vst.msk [vmem:[%s3575 + $0x8] sm:$0xff] %vm544, %v3583
        %s3588 = sld [smem:[#allocation2 + $0x300]]
        %v3589 = vstv %s3588
        %v3590 = vmul.f32 %v2179, %v3589
        %v3591 = vmul.f32 %v2180, %v3589
        %s3592 = sld [smem:[#allocation2 + $0x301]]
        %v3593 = vstv %s3592
        %v3594 = vmul.f32 %v2182, %v3593
        %v3595 = vmul.f32 %v2183, %v3593
        %v3596 = vadd.f32 %v3590, %v3594
        %v3597 = vadd.f32 %v3591, %v3595
        %s3598 = sld [smem:[#allocation2 + $0x302]]
        %v3599 = vstv %s3598
        %v3600 = vmul.f32 %v2185, %v3599
        %v3601 = vmul.f32 %v2186, %v3599
        %v3602 = vadd.f32 %v3596, %v3600
        %v3603 = vadd.f32 %v3597, %v3601
        %s3604 = sld [smem:[#allocation2 + $0x303]]
        %v3605 = vstv %s3604
        %v3606 = vmul.f32 %v2188, %v3605
        %v3607 = vmul.f32 %v2189, %v3605
        %v3608 = vadd.f32 %v3602, %v3606
        %v3609 = vadd.f32 %v3603, %v3607
        %s3610 = sld [smem:[#allocation6 + $0x6]]
        %v3611 = vstv %s3610
        %v3612 = vadd.f32 %v3608, %v3611
        %v3613 = vadd.f32 %v3609, %v3611
        %s3614 = sld [smem:[#allocation2 + $0x700]]
        %v3615 = vstv %s3614
        %v3616 = vmul.f32 %v2179, %v3615
        %v3617 = vmul.f32 %v2180, %v3615
        %s3618 = sld [smem:[#allocation2 + $0x701]]
        %v3619 = vstv %s3618
        %v3620 = vmul.f32 %v2182, %v3619
        %v3621 = vmul.f32 %v2183, %v3619
        %v3622 = vadd.f32 %v3616, %v3620
        %v3623 = vadd.f32 %v3617, %v3621
        %s3624 = sld [smem:[#allocation2 + $0x702]]
        %v3625 = vstv %s3624
        %v3626 = vmul.f32 %v2185, %v3625
        %v3627 = vmul.f32 %v2186, %v3625
        %v3628 = vadd.f32 %v3622, %v3626
        %v3629 = vadd.f32 %v3623, %v3627
        %s3630 = sld [smem:[#allocation2 + $0x703]]
        %v3631 = vstv %s3630
        %v3632 = vmul.f32 %v2188, %v3631
        %v3633 = vmul.f32 %v2189, %v3631
        %v3634 = vadd.f32 %v3628, %v3632
        %v3635 = vadd.f32 %v3629, %v3633
        %s3636 = sld [smem:[#allocation6 + $0xe]]
        %v3637 = vstv %s3636
        %v3638 = vadd.f32 %v3634, %v3637
        %v3639 = vadd.f32 %v3635, %v3637
        %s3640 = sld [smem:[#allocation2 + $0xb00]]
        %v3641 = vstv %s3640
        %v3642 = vmul.f32 %v2179, %v3641
        %v3643 = vmul.f32 %v2180, %v3641
        %s3644 = sld [smem:[#allocation2 + $0xb01]]
        %v3645 = vstv %s3644
        %v3646 = vmul.f32 %v2182, %v3645
        %v3647 = vmul.f32 %v2183, %v3645
        %v3648 = vadd.f32 %v3642, %v3646
        %v3649 = vadd.f32 %v3643, %v3647
        %s3650 = sld [smem:[#allocation2 + $0xb02]]
        %v3651 = vstv %s3650
        %v3652 = vmul.f32 %v2185, %v3651
        %v3653 = vmul.f32 %v2186, %v3651
        %v3654 = vadd.f32 %v3648, %v3652
        %v3655 = vadd.f32 %v3649, %v3653
        %s3656 = sld [smem:[#allocation2 + $0xb03]]
        %v3657 = vstv %s3656
        %v3658 = vmul.f32 %v2188, %v3657
        %v3659 = vmul.f32 %v2189, %v3657
        %v3660 = vadd.f32 %v3654, %v3658
        %v3661 = vadd.f32 %v3655, %v3659
        %s3662 = sld [smem:[#allocation6 + $0x16]]
        %v3663 = vstv %s3662
        %v3664 = vadd.f32 %v3660, %v3663
        %v3665 = vadd.f32 %v3661, %v3663
        %s3666 = sld [smem:[#allocation2 + $0xf00]]
        %v3667 = vstv %s3666
        %v3668 = vmul.f32 %v2179, %v3667
        %v3669 = vmul.f32 %v2180, %v3667
        %s3670 = sld [smem:[#allocation2 + $0xf01]]
        %v3671 = vstv %s3670
        %v3672 = vmul.f32 %v2182, %v3671
        %v3673 = vmul.f32 %v2183, %v3671
        %v3674 = vadd.f32 %v3668, %v3672
        %v3675 = vadd.f32 %v3669, %v3673
        %s3676 = sld [smem:[#allocation2 + $0xf02]]
        %v3677 = vstv %s3676
        %v3678 = vmul.f32 %v2185, %v3677
        %v3679 = vmul.f32 %v2186, %v3677
        %v3680 = vadd.f32 %v3674, %v3678
        %v3681 = vadd.f32 %v3675, %v3679
        %s3682 = sld [smem:[#allocation2 + $0xf03]]
        %v3683 = vstv %s3682
        %v3684 = vmul.f32 %v2188, %v3683
        %v3685 = vmul.f32 %v2189, %v3683
        %v3686 = vadd.f32 %v3680, %v3684
        %v3687 = vadd.f32 %v3681, %v3685
        %s3688 = sld [smem:[#allocation6 + $0x1e]]
        %v3689 = vstv %s3688
        %v3690 = vadd.f32 %v3686, %v3689
        %v3691 = vadd.f32 %v3687, %v3689
        %v3693 = vsel %vm416, %v3638, 0
        %v3696 = vsel %vm416, %v3639, 0
        %3698 = vmatpush.msra.mxu0 0.0
        %3699 = vmatpush.msra.mxu0 0.0
        %3700 = vmatpush.msra.mxu0 0.0
        %3701 = vmatpush.msra.mxu0 0.0
        %3702 = vmatpush.msra.mxu0 0.0
        %3703 = vmatpush.msra.mxu0 0.0
        %3704 = vmatpush.msra.mxu0 0.0
        %3705 = vmatpush.msra.mxu0 0.0
        %3706 = vmatpush.msra.mxu0 0.0
        %3707 = vmatpush.msra.mxu0 0.0
        %3708 = vmatpush.msra.mxu0 0.0
        %3709 = vmatpush.msra.mxu0 0.0
        %3710 = vmatpush.msra.mxu0 0.0
        %3711 = vmatpush.msra.mxu0 0.0
        %3712 = vmatpush.msra.mxu0 %v300
        %3713 = vmatpush.msra.mxu0 %v299
        %3714 = vmatmul.f32.gmra.mxu0 %v3693
        %v3715 = vpop.f32.mrf.mxu0
        %v3716 = vadd.f32 0.0, %v3715
        %3717 = vmatmul.f32.gmra.mxu0 %v3696
        %v3718 = vpop.f32.mrf.mxu0
        %v3719 = vadd.f32 0.0, %v3718
        %3720 = vdwg.mxu0
        %v3722 = vsel %vm416, %v3612, 0
        %v3725 = vsel %vm416, %v3613, 0
        %3727 = vmatpush.msra.mxu0 0.0
        %3728 = vmatpush.msra.mxu0 0.0
        %3729 = vmatpush.msra.mxu0 0.0
        %3730 = vmatpush.msra.mxu0 0.0
        %3731 = vmatpush.msra.mxu0 0.0
        %3732 = vmatpush.msra.mxu0 0.0
        %3733 = vmatpush.msra.mxu0 0.0
        %3734 = vmatpush.msra.mxu0 0.0
        %3735 = vmatpush.msra.mxu0 0.0
        %3736 = vmatpush.msra.mxu0 0.0
        %3737 = vmatpush.msra.mxu0 0.0
        %3738 = vmatpush.msra.mxu0 0.0
        %3739 = vmatpush.msra.mxu0 0.0
        %3740 = vmatpush.msra.mxu0 0.0
        %3741 = vmatpush.msra.mxu0 %v298
        %3742 = vmatpush.msra.mxu0 %v297
        %3743 = vmatmul.f32.gmra.mxu0 %v3722
        %v3744 = vpop.f32.mrf.mxu0
        %v3745 = vadd.f32 %v3716, %v3744
        %3746 = vmatmul.f32.gmra.mxu0 %v3725
        %v3747 = vpop.f32.mrf.mxu0
        %v3748 = vadd.f32 %v3719, %v3747
        %3749 = vdwg.mxu0
        %v3751 = vsel %vm416, %v3690, 0
        %v3754 = vsel %vm416, %v3691, 0
        %3756 = vmatpush.msra.mxu0 0.0
        %3757 = vmatpush.msra.mxu0 0.0
        %3758 = vmatpush.msra.mxu0 0.0
        %3759 = vmatpush.msra.mxu0 0.0
        %3760 = vmatpush.msra.mxu0 0.0
        %3761 = vmatpush.msra.mxu0 0.0
        %3762 = vmatpush.msra.mxu0 0.0
        %3763 = vmatpush.msra.mxu0 0.0
        %3764 = vmatpush.msra.mxu0 0.0
        %3765 = vmatpush.msra.mxu0 0.0
        %3766 = vmatpush.msra.mxu0 0.0
        %3767 = vmatpush.msra.mxu0 0.0
        %3768 = vmatpush.msra.mxu0 0.0
        %3769 = vmatpush.msra.mxu0 0.0
        %3770 = vmatpush.msra.mxu0 %v300
        %3771 = vmatpush.msra.mxu0 %v299
        %3772 = vmatmul.f32.gmra.mxu0 %v3751
        %v3773 = vpop.f32.mrf.mxu0
        %v3774 = vadd.f32 0.0, %v3773
        %3775 = vmatmul.f32.gmra.mxu0 %v3754
        %v3776 = vpop.f32.mrf.mxu0
        %v3777 = vadd.f32 0.0, %v3776
        %3778 = vdwg.mxu0
        %v3780 = vsel %vm416, %v3664, 0
        %v3783 = vsel %vm416, %v3665, 0
        %3785 = vmatpush.msra.mxu0 0.0
        %3786 = vmatpush.msra.mxu0 0.0
        %3787 = vmatpush.msra.mxu0 0.0
        %3788 = vmatpush.msra.mxu0 0.0
        %3789 = vmatpush.msra.mxu0 0.0
        %3790 = vmatpush.msra.mxu0 0.0
        %3791 = vmatpush.msra.mxu0 0.0
        %3792 = vmatpush.msra.mxu0 0.0
        %3793 = vmatpush.msra.mxu0 0.0
        %3794 = vmatpush.msra.mxu0 0.0
        %3795 = vmatpush.msra.mxu0 0.0
        %3796 = vmatpush.msra.mxu0 0.0
        %3797 = vmatpush.msra.mxu0 0.0
        %3798 = vmatpush.msra.mxu0 0.0
        %3799 = vmatpush.msra.mxu0 %v298
        %3800 = vmatpush.msra.mxu0 %v297
        %3801 = vmatmul.f32.gmra.mxu0 %v3780
        %v3802 = vpop.f32.mrf.mxu0
        %v3803 = vadd.f32 %v3774, %v3802
        %3804 = vmatmul.f32.gmra.mxu0 %v3783
        %v3805 = vpop.f32.mrf.mxu0
        %v3806 = vadd.f32 %v3777, %v3805
        %3807 = vdwg.mxu0
        %s3808 = scalar_lea.vmem %s292, 224 [#allocation9]
        %3809 = vst.msk [vmem:[%s3808] sm:$0xff] %vm533, %v3745
        %3810 = vst.msk [vmem:[%s3808 + $0x8] sm:$0xff] %vm533, %v3748
        %3813 = vrot.lane.b32.xlu0 %v3803, 32
        %v3814 = vpop.permute.xlu0 %3813
        %3815 = vrot.lane.b32.xlu0 %v3806, 32
        %v3816 = vpop.permute.xlu0 %3815
        %3819 = vst.msk [vmem:[%s3808] sm:$0xff] %vm544, %v3814
        %3820 = vst.msk [vmem:[%s3808 + $0x8] sm:$0xff] %vm544, %v3816
        %s3821 = sld [smem:[#allocation2 + $0x380]]
        %v3822 = vstv %s3821
        %v3823 = vmul.f32 %v2179, %v3822
        %v3824 = vmul.f32 %v2180, %v3822
        %s3825 = sld [smem:[#allocation2 + $0x381]]
        %v3826 = vstv %s3825
        %v3827 = vmul.f32 %v2182, %v3826
        %v3828 = vmul.f32 %v2183, %v3826
        %v3829 = vadd.f32 %v3823, %v3827
        %v3830 = vadd.f32 %v3824, %v3828
        %s3831 = sld [smem:[#allocation2 + $0x382]]
        %v3832 = vstv %s3831
        %v3833 = vmul.f32 %v2185, %v3832
        %v3834 = vmul.f32 %v2186, %v3832
        %v3835 = vadd.f32 %v3829, %v3833
        %v3836 = vadd.f32 %v3830, %v3834
        %s3837 = sld [smem:[#allocation2 + $0x383]]
        %v3838 = vstv %s3837
        %v3839 = vmul.f32 %v2188, %v3838
        %v3840 = vmul.f32 %v2189, %v3838
        %v3841 = vadd.f32 %v3835, %v3839
        %v3842 = vadd.f32 %v3836, %v3840
        %s3843 = sld [smem:[#allocation6 + $0x7]]
        %v3844 = vstv %s3843
        %v3845 = vadd.f32 %v3841, %v3844
        %v3846 = vadd.f32 %v3842, %v3844
        %s3847 = sld [smem:[#allocation2 + $0x780]]
        %v3848 = vstv %s3847
        %v3849 = vmul.f32 %v2179, %v3848
        %v3850 = vmul.f32 %v2180, %v3848
        %s3851 = sld [smem:[#allocation2 + $0x781]]
        %v3852 = vstv %s3851
        %v3853 = vmul.f32 %v2182, %v3852
        %v3854 = vmul.f32 %v2183, %v3852
        %v3855 = vadd.f32 %v3849, %v3853
        %v3856 = vadd.f32 %v3850, %v3854
        %s3857 = sld [smem:[#allocation2 + $0x782]]
        %v3858 = vstv %s3857
        %v3859 = vmul.f32 %v2185, %v3858
        %v3860 = vmul.f32 %v2186, %v3858
        %v3861 = vadd.f32 %v3855, %v3859
        %v3862 = vadd.f32 %v3856, %v3860
        %s3863 = sld [smem:[#allocation2 + $0x783]]
        %v3864 = vstv %s3863
        %v3865 = vmul.f32 %v2188, %v3864
        %v3866 = vmul.f32 %v2189, %v3864
        %v3867 = vadd.f32 %v3861, %v3865
        %v3868 = vadd.f32 %v3862, %v3866
        %s3869 = sld [smem:[#allocation6 + $0xf]]
        %v3870 = vstv %s3869
        %v3871 = vadd.f32 %v3867, %v3870
        %v3872 = vadd.f32 %v3868, %v3870
        %s3873 = sld [smem:[#allocation2 + $0xb80]]
        %v3874 = vstv %s3873
        %v3875 = vmul.f32 %v2179, %v3874
        %v3876 = vmul.f32 %v2180, %v3874
        %s3877 = sld [smem:[#allocation2 + $0xb81]]
        %v3878 = vstv %s3877
        %v3879 = vmul.f32 %v2182, %v3878
        %v3880 = vmul.f32 %v2183, %v3878
        %v3881 = vadd.f32 %v3875, %v3879
        %v3882 = vadd.f32 %v3876, %v3880
        %s3883 = sld [smem:[#allocation2 + $0xb82]]
        %v3884 = vstv %s3883
        %v3885 = vmul.f32 %v2185, %v3884
        %v3886 = vmul.f32 %v2186, %v3884
        %v3887 = vadd.f32 %v3881, %v3885
        %v3888 = vadd.f32 %v3882, %v3886
        %s3889 = sld [smem:[#allocation2 + $0xb83]]
        %v3890 = vstv %s3889
        %v3891 = vmul.f32 %v2188, %v3890
        %v3892 = vmul.f32 %v2189, %v3890
        %v3893 = vadd.f32 %v3887, %v3891
        %v3894 = vadd.f32 %v3888, %v3892
        %s3895 = sld [smem:[#allocation6 + $0x17]]
        %v3896 = vstv %s3895
        %v3897 = vadd.f32 %v3893, %v3896
        %v3898 = vadd.f32 %v3894, %v3896
        %s3899 = sld [smem:[#allocation2 + $0xf80]]
        %v3900 = vstv %s3899
        %v3901 = vmul.f32 %v2179, %v3900
        %v3902 = vmul.f32 %v2180, %v3900
        %s3903 = sld [smem:[#allocation2 + $0xf81]]
        %v3904 = vstv %s3903
        %v3905 = vmul.f32 %v2182, %v3904
        %v3906 = vmul.f32 %v2183, %v3904
        %v3907 = vadd.f32 %v3901, %v3905
        %v3908 = vadd.f32 %v3902, %v3906
        %s3909 = sld [smem:[#allocation2 + $0xf82]]
        %v3910 = vstv %s3909
        %v3911 = vmul.f32 %v2185, %v3910
        %v3912 = vmul.f32 %v2186, %v3910
        %v3913 = vadd.f32 %v3907, %v3911
        %v3914 = vadd.f32 %v3908, %v3912
        %s3915 = sld [smem:[#allocation2 + $0xf83]]
        %v3916 = vstv %s3915
        %v3917 = vmul.f32 %v2188, %v3916
        %v3918 = vmul.f32 %v2189, %v3916
        %v3919 = vadd.f32 %v3913, %v3917
        %v3920 = vadd.f32 %v3914, %v3918
        %s3921 = sld [smem:[#allocation6 + $0x1f]]
        %v3922 = vstv %s3921
        %v3923 = vadd.f32 %v3919, %v3922
        %v3924 = vadd.f32 %v3920, %v3922
        %v3926 = vsel %vm416, %v3871, 0
        %v3929 = vsel %vm416, %v3872, 0
        %3931 = vmatpush.msra.mxu0 0.0
        %3932 = vmatpush.msra.mxu0 0.0
        %3933 = vmatpush.msra.mxu0 0.0
        %3934 = vmatpush.msra.mxu0 0.0
        %3935 = vmatpush.msra.mxu0 0.0
        %3936 = vmatpush.msra.mxu0 0.0
        %3937 = vmatpush.msra.mxu0 0.0
        %3938 = vmatpush.msra.mxu0 0.0
        %3939 = vmatpush.msra.mxu0 0.0
        %3940 = vmatpush.msra.mxu0 0.0
        %3941 = vmatpush.msra.mxu0 0.0
        %3942 = vmatpush.msra.mxu0 0.0
        %3943 = vmatpush.msra.mxu0 0.0
        %3944 = vmatpush.msra.mxu0 0.0
        %3945 = vmatpush.msra.mxu0 %v300
        %3946 = vmatpush.msra.mxu0 %v299
        %3947 = vmatmul.f32.gmra.mxu0 %v3926
        %v3948 = vpop.f32.mrf.mxu0
        %v3949 = vadd.f32 0.0, %v3948
        %3950 = vmatmul.f32.gmra.mxu0 %v3929
        %v3951 = vpop.f32.mrf.mxu0
        %v3952 = vadd.f32 0.0, %v3951
        %3953 = vdwg.mxu0
        %v3955 = vsel %vm416, %v3845, 0
        %v3958 = vsel %vm416, %v3846, 0
        %3960 = vmatpush.msra.mxu0 0.0
        %3961 = vmatpush.msra.mxu0 0.0
        %3962 = vmatpush.msra.mxu0 0.0
        %3963 = vmatpush.msra.mxu0 0.0
        %3964 = vmatpush.msra.mxu0 0.0
        %3965 = vmatpush.msra.mxu0 0.0
        %3966 = vmatpush.msra.mxu0 0.0
        %3967 = vmatpush.msra.mxu0 0.0
        %3968 = vmatpush.msra.mxu0 0.0
        %3969 = vmatpush.msra.mxu0 0.0
        %3970 = vmatpush.msra.mxu0 0.0
        %3971 = vmatpush.msra.mxu0 0.0
        %3972 = vmatpush.msra.mxu0 0.0
        %3973 = vmatpush.msra.mxu0 0.0
        %3974 = vmatpush.msra.mxu0 %v298
        %3975 = vmatpush.msra.mxu0 %v297
        %3976 = vmatmul.f32.gmra.mxu0 %v3955
        %v3977 = vpop.f32.mrf.mxu0
        %v3978 = vadd.f32 %v3949, %v3977
        %3979 = vmatmul.f32.gmra.mxu0 %v3958
        %v3980 = vpop.f32.mrf.mxu0
        %v3981 = vadd.f32 %v3952, %v3980
        %3982 = vdwg.mxu0
        %v3984 = vsel %vm416, %v3923, 0
        %v3987 = vsel %vm416, %v3924, 0
        %3989 = vmatpush.msra.mxu0 0.0
        %3990 = vmatpush.msra.mxu0 0.0
        %3991 = vmatpush.msra.mxu0 0.0
        %3992 = vmatpush.msra.mxu0 0.0
        %3993 = vmatpush.msra.mxu0 0.0
        %3994 = vmatpush.msra.mxu0 0.0
        %3995 = vmatpush.msra.mxu0 0.0
        %3996 = vmatpush.msra.mxu0 0.0
        %3997 = vmatpush.msra.mxu0 0.0
        %3998 = vmatpush.msra.mxu0 0.0
        %3999 = vmatpush.msra.mxu0 0.0
        %4000 = vmatpush.msra.mxu0 0.0
        %4001 = vmatpush.msra.mxu0 0.0
        %4002 = vmatpush.msra.mxu0 0.0
        %4003 = vmatpush.msra.mxu0 %v300
        %4004 = vmatpush.msra.mxu0 %v299
        %4005 = vmatmul.f32.gmra.mxu0 %v3984
        %v4006 = vpop.f32.mrf.mxu0
        %v4007 = vadd.f32 0.0, %v4006
        %4008 = vmatmul.f32.gmra.mxu0 %v3987
        %v4009 = vpop.f32.mrf.mxu0
        %v4010 = vadd.f32 0.0, %v4009
        %4011 = vdwg.mxu0
        %v4013 = vsel %vm416, %v3897, 0
        %v4016 = vsel %vm416, %v3898, 0
        %4018 = vmatpush.msra.mxu0 0.0
        %4019 = vmatpush.msra.mxu0 0.0
        %4020 = vmatpush.msra.mxu0 0.0
        %4021 = vmatpush.msra.mxu0 0.0
        %4022 = vmatpush.msra.mxu0 0.0
        %4023 = vmatpush.msra.mxu0 0.0
        %4024 = vmatpush.msra.mxu0 0.0
        %4025 = vmatpush.msra.mxu0 0.0
        %4026 = vmatpush.msra.mxu0 0.0
        %4027 = vmatpush.msra.mxu0 0.0
        %4028 = vmatpush.msra.mxu0 0.0
        %4029 = vmatpush.msra.mxu0 0.0
        %4030 = vmatpush.msra.mxu0 0.0
        %4031 = vmatpush.msra.mxu0 0.0
        %4032 = vmatpush.msra.mxu0 %v298
        %4033 = vmatpush.msra.mxu0 %v297
        %4034 = vmatmul.f32.gmra.mxu0 %v4013
        %v4035 = vpop.f32.mrf.mxu0
        %v4036 = vadd.f32 %v4007, %v4035
        %4037 = vmatmul.f32.gmra.mxu0 %v4016
        %v4038 = vpop.f32.mrf.mxu0
        %v4039 = vadd.f32 %v4010, %v4038
        %4040 = vdwg.mxu0
        %s4041 = scalar_lea.vmem %s292, 240 [#allocation9]
        %4042 = vst.msk [vmem:[%s4041] sm:$0xff] %vm533, %v3978
        %4043 = vst.msk [vmem:[%s4041 + $0x8] sm:$0xff] %vm533, %v3981
        %4046 = vrot.lane.b32.xlu0 %v4036, 32
        %v4047 = vpop.permute.xlu0 %4046
        %4048 = vrot.lane.b32.xlu0 %v4039, 32
        %v4049 = vpop.permute.xlu0 %4048
        %4052 = vst.msk [vmem:[%s4041] sm:$0xff] %vm544, %v4047
        %4053 = vst.msk [vmem:[%s4041 + $0x8] sm:$0xff] %vm544, %v4049
        %s4054 = scalar_lea.vmem %s264, 128 [#allocation8]
        %v4055 = vld [vmem:[%s4054] sm:$0xff]
        %v4056 = vld [vmem:[%s4054 + $0x8] sm:$0xff]
        %s4057 = scalar_lea.vmem %s264, 144 [#allocation8]
        %v4058 = vld [vmem:[%s4057] sm:$0xff]
        %v4059 = vld [vmem:[%s4057 + $0x8] sm:$0xff]
        %s4060 = scalar_lea.vmem %s264, 160 [#allocation8]
        %v4061 = vld [vmem:[%s4060] sm:$0xff]
        %v4062 = vld [vmem:[%s4060 + $0x8] sm:$0xff]
        %s4063 = scalar_lea.vmem %s264, 176 [#allocation8]
        %v4064 = vld [vmem:[%s4063] sm:$0xff]
        %v4065 = vld [vmem:[%s4063 + $0x8] sm:$0xff]
        %s4066 = sld [smem:[#allocation2]]
        %v4067 = vstv %s4066
        %v4068 = vmul.f32 %v4055, %v4067
        %v4069 = vmul.f32 %v4056, %v4067
        %s4070 = sld [smem:[#allocation2 + $0x1]]
        %v4071 = vstv %s4070
        %v4072 = vmul.f32 %v4058, %v4071
        %v4073 = vmul.f32 %v4059, %v4071
        %v4074 = vadd.f32 %v4068, %v4072
        %v4075 = vadd.f32 %v4069, %v4073
        %s4076 = sld [smem:[#allocation2 + $0x2]]
        %v4077 = vstv %s4076
        %v4078 = vmul.f32 %v4061, %v4077
        %v4079 = vmul.f32 %v4062, %v4077
        %v4080 = vadd.f32 %v4074, %v4078
        %v4081 = vadd.f32 %v4075, %v4079
        %s4082 = sld [smem:[#allocation2 + $0x3]]
        %v4083 = vstv %s4082
        %v4084 = vmul.f32 %v4064, %v4083
        %v4085 = vmul.f32 %v4065, %v4083
        %v4086 = vadd.f32 %v4080, %v4084
        %v4087 = vadd.f32 %v4081, %v4085
        %s4088 = sld [smem:[#allocation6]]
        %v4089 = vstv %s4088
        %v4090 = vadd.f32 %v4086, %v4089
        %v4091 = vadd.f32 %v4087, %v4089
        %s4092 = sld [smem:[#allocation2 + $0x400]]
        %v4093 = vstv %s4092
        %v4094 = vmul.f32 %v4055, %v4093
        %v4095 = vmul.f32 %v4056, %v4093
        %s4096 = sld [smem:[#allocation2 + $0x401]]
        %v4097 = vstv %s4096
        %v4098 = vmul.f32 %v4058, %v4097
        %v4099 = vmul.f32 %v4059, %v4097
        %v4100 = vadd.f32 %v4094, %v4098
        %v4101 = vadd.f32 %v4095, %v4099
        %s4102 = sld [smem:[#allocation2 + $0x402]]
        %v4103 = vstv %s4102
        %v4104 = vmul.f32 %v4061, %v4103
        %v4105 = vmul.f32 %v4062, %v4103
        %v4106 = vadd.f32 %v4100, %v4104
        %v4107 = vadd.f32 %v4101, %v4105
        %s4108 = sld [smem:[#allocation2 + $0x403]]
        %v4109 = vstv %s4108
        %v4110 = vmul.f32 %v4064, %v4109
        %v4111 = vmul.f32 %v4065, %v4109
        %v4112 = vadd.f32 %v4106, %v4110
        %v4113 = vadd.f32 %v4107, %v4111
        %s4114 = sld [smem:[#allocation6 + $0x8]]
        %v4115 = vstv %s4114
        %v4116 = vadd.f32 %v4112, %v4115
        %v4117 = vadd.f32 %v4113, %v4115
        %s4118 = sld [smem:[#allocation2 + $0x800]]
        %v4119 = vstv %s4118
        %v4120 = vmul.f32 %v4055, %v4119
        %v4121 = vmul.f32 %v4056, %v4119
        %s4122 = sld [smem:[#allocation2 + $0x801]]
        %v4123 = vstv %s4122
        %v4124 = vmul.f32 %v4058, %v4123
        %v4125 = vmul.f32 %v4059, %v4123
        %v4126 = vadd.f32 %v4120, %v4124
        %v4127 = vadd.f32 %v4121, %v4125
        %s4128 = sld [smem:[#allocation2 + $0x802]]
        %v4129 = vstv %s4128
        %v4130 = vmul.f32 %v4061, %v4129
        %v4131 = vmul.f32 %v4062, %v4129
        %v4132 = vadd.f32 %v4126, %v4130
        %v4133 = vadd.f32 %v4127, %v4131
        %s4134 = sld [smem:[#allocation2 + $0x803]]
        %v4135 = vstv %s4134
        %v4136 = vmul.f32 %v4064, %v4135
        %v4137 = vmul.f32 %v4065, %v4135
        %v4138 = vadd.f32 %v4132, %v4136
        %v4139 = vadd.f32 %v4133, %v4137
        %s4140 = sld [smem:[#allocation6 + $0x10]]
        %v4141 = vstv %s4140
        %v4142 = vadd.f32 %v4138, %v4141
        %v4143 = vadd.f32 %v4139, %v4141
        %s4144 = sld [smem:[#allocation2 + $0xc00]]
        %v4145 = vstv %s4144
        %v4146 = vmul.f32 %v4055, %v4145
        %v4147 = vmul.f32 %v4056, %v4145
        %s4148 = sld [smem:[#allocation2 + $0xc01]]
        %v4149 = vstv %s4148
        %v4150 = vmul.f32 %v4058, %v4149
        %v4151 = vmul.f32 %v4059, %v4149
        %v4152 = vadd.f32 %v4146, %v4150
        %v4153 = vadd.f32 %v4147, %v4151
        %s4154 = sld [smem:[#allocation2 + $0xc02]]
        %v4155 = vstv %s4154
        %v4156 = vmul.f32 %v4061, %v4155
        %v4157 = vmul.f32 %v4062, %v4155
        %v4158 = vadd.f32 %v4152, %v4156
        %v4159 = vadd.f32 %v4153, %v4157
        %s4160 = sld [smem:[#allocation2 + $0xc03]]
        %v4161 = vstv %s4160
        %v4162 = vmul.f32 %v4064, %v4161
        %v4163 = vmul.f32 %v4065, %v4161
        %v4164 = vadd.f32 %v4158, %v4162
        %v4165 = vadd.f32 %v4159, %v4163
        %s4166 = sld [smem:[#allocation6 + $0x18]]
        %v4167 = vstv %s4166
        %v4168 = vadd.f32 %v4164, %v4167
        %v4169 = vadd.f32 %v4165, %v4167
        %v4171 = vsel %vm416, %v4116, 0
        %v4174 = vsel %vm416, %v4117, 0
        %4176 = vmatpush.msra.mxu0 0.0
        %4177 = vmatpush.msra.mxu0 0.0
        %4178 = vmatpush.msra.mxu0 0.0
        %4179 = vmatpush.msra.mxu0 0.0
        %4180 = vmatpush.msra.mxu0 0.0
        %4181 = vmatpush.msra.mxu0 0.0
        %4182 = vmatpush.msra.mxu0 0.0
        %4183 = vmatpush.msra.mxu0 0.0
        %4184 = vmatpush.msra.mxu0 0.0
        %4185 = vmatpush.msra.mxu0 0.0
        %4186 = vmatpush.msra.mxu0 0.0
        %4187 = vmatpush.msra.mxu0 0.0
        %4188 = vmatpush.msra.mxu0 0.0
        %4189 = vmatpush.msra.mxu0 0.0
        %4190 = vmatpush.msra.mxu0 %v300
        %4191 = vmatpush.msra.mxu0 %v299
        %4192 = vmatmul.f32.gmra.mxu0 %v4171
        %v4193 = vpop.f32.mrf.mxu0
        %v4194 = vadd.f32 0.0, %v4193
        %4195 = vmatmul.f32.gmra.mxu0 %v4174
        %v4196 = vpop.f32.mrf.mxu0
        %v4197 = vadd.f32 0.0, %v4196
        %4198 = vdwg.mxu0
        %v4200 = vsel %vm416, %v4090, 0
        %v4203 = vsel %vm416, %v4091, 0
        %4205 = vmatpush.msra.mxu0 0.0
        %4206 = vmatpush.msra.mxu0 0.0
        %4207 = vmatpush.msra.mxu0 0.0
        %4208 = vmatpush.msra.mxu0 0.0
        %4209 = vmatpush.msra.mxu0 0.0
        %4210 = vmatpush.msra.mxu0 0.0
        %4211 = vmatpush.msra.mxu0 0.0
        %4212 = vmatpush.msra.mxu0 0.0
        %4213 = vmatpush.msra.mxu0 0.0
        %4214 = vmatpush.msra.mxu0 0.0
        %4215 = vmatpush.msra.mxu0 0.0
        %4216 = vmatpush.msra.mxu0 0.0
        %4217 = vmatpush.msra.mxu0 0.0
        %4218 = vmatpush.msra.mxu0 0.0
        %4219 = vmatpush.msra.mxu0 %v298
        %4220 = vmatpush.msra.mxu0 %v297
        %4221 = vmatmul.f32.gmra.mxu0 %v4200
        %v4222 = vpop.f32.mrf.mxu0
        %v4223 = vadd.f32 %v4194, %v4222
        %4224 = vmatmul.f32.gmra.mxu0 %v4203
        %v4225 = vpop.f32.mrf.mxu0
        %v4226 = vadd.f32 %v4197, %v4225
        %4227 = vdwg.mxu0
        %v4229 = vsel %vm416, %v4168, 0
        %v4232 = vsel %vm416, %v4169, 0
        %4234 = vmatpush.msra.mxu0 0.0
        %4235 = vmatpush.msra.mxu0 0.0
        %4236 = vmatpush.msra.mxu0 0.0
        %4237 = vmatpush.msra.mxu0 0.0
        %4238 = vmatpush.msra.mxu0 0.0
        %4239 = vmatpush.msra.mxu0 0.0
        %4240 = vmatpush.msra.mxu0 0.0
        %4241 = vmatpush.msra.mxu0 0.0
        %4242 = vmatpush.msra.mxu0 0.0
        %4243 = vmatpush.msra.mxu0 0.0
        %4244 = vmatpush.msra.mxu0 0.0
        %4245 = vmatpush.msra.mxu0 0.0
        %4246 = vmatpush.msra.mxu0 0.0
        %4247 = vmatpush.msra.mxu0 0.0
        %4248 = vmatpush.msra.mxu0 %v300
        %4249 = vmatpush.msra.mxu0 %v299
        %4250 = vmatmul.f32.gmra.mxu0 %v4229
        %v4251 = vpop.f32.mrf.mxu0
        %v4252 = vadd.f32 0.0, %v4251
        %4253 = vmatmul.f32.gmra.mxu0 %v4232
        %v4254 = vpop.f32.mrf.mxu0
        %v4255 = vadd.f32 0.0, %v4254
        %4256 = vdwg.mxu0
        %v4258 = vsel %vm416, %v4142, 0
        %v4261 = vsel %vm416, %v4143, 0
        %4263 = vmatpush.msra.mxu0 0.0
        %4264 = vmatpush.msra.mxu0 0.0
        %4265 = vmatpush.msra.mxu0 0.0
        %4266 = vmatpush.msra.mxu0 0.0
        %4267 = vmatpush.msra.mxu0 0.0
        %4268 = vmatpush.msra.mxu0 0.0
        %4269 = vmatpush.msra.mxu0 0.0
        %4270 = vmatpush.msra.mxu0 0.0
        %4271 = vmatpush.msra.mxu0 0.0
        %4272 = vmatpush.msra.mxu0 0.0
        %4273 = vmatpush.msra.mxu0 0.0
        %4274 = vmatpush.msra.mxu0 0.0
        %4275 = vmatpush.msra.mxu0 0.0
        %4276 = vmatpush.msra.mxu0 0.0
        %4277 = vmatpush.msra.mxu0 %v298
        %4278 = vmatpush.msra.mxu0 %v297
        %4279 = vmatmul.f32.gmra.mxu0 %v4258
        %v4280 = vpop.f32.mrf.mxu0
        %v4281 = vadd.f32 %v4252, %v4280
        %4282 = vmatmul.f32.gmra.mxu0 %v4261
        %v4283 = vpop.f32.mrf.mxu0
        %v4284 = vadd.f32 %v4255, %v4283
        %4285 = vdwg.mxu0
        %s4286 = scalar_lea.vmem %s292, 256 [#allocation9]
        %4287 = vst.msk [vmem:[%s4286] sm:$0xff] %vm533, %v4223
        %4288 = vst.msk [vmem:[%s4286 + $0x8] sm:$0xff] %vm533, %v4226
        %4291 = vrot.lane.b32.xlu0 %v4281, 32
        %v4292 = vpop.permute.xlu0 %4291
        %4293 = vrot.lane.b32.xlu0 %v4284, 32
        %v4294 = vpop.permute.xlu0 %4293
        %4297 = vst.msk [vmem:[%s4286] sm:$0xff] %vm544, %v4292
        %4298 = vst.msk [vmem:[%s4286 + $0x8] sm:$0xff] %vm544, %v4294
        %s4299 = sld [smem:[#allocation2 + $0x80]]
        %v4300 = vstv %s4299
        %v4301 = vmul.f32 %v4055, %v4300
        %v4302 = vmul.f32 %v4056, %v4300
        %s4303 = sld [smem:[#allocation2 + $0x81]]
        %v4304 = vstv %s4303
        %v4305 = vmul.f32 %v4058, %v4304
        %v4306 = vmul.f32 %v4059, %v4304
        %v4307 = vadd.f32 %v4301, %v4305
        %v4308 = vadd.f32 %v4302, %v4306
        %s4309 = sld [smem:[#allocation2 + $0x82]]
        %v4310 = vstv %s4309
        %v4311 = vmul.f32 %v4061, %v4310
        %v4312 = vmul.f32 %v4062, %v4310
        %v4313 = vadd.f32 %v4307, %v4311
        %v4314 = vadd.f32 %v4308, %v4312
        %s4315 = sld [smem:[#allocation2 + $0x83]]
        %v4316 = vstv %s4315
        %v4317 = vmul.f32 %v4064, %v4316
        %v4318 = vmul.f32 %v4065, %v4316
        %v4319 = vadd.f32 %v4313, %v4317
        %v4320 = vadd.f32 %v4314, %v4318
        %s4321 = sld [smem:[#allocation6 + $0x1]]
        %v4322 = vstv %s4321
        %v4323 = vadd.f32 %v4319, %v4322
        %v4324 = vadd.f32 %v4320, %v4322
        %s4325 = sld [smem:[#allocation2 + $0x480]]
        %v4326 = vstv %s4325
        %v4327 = vmul.f32 %v4055, %v4326
        %v4328 = vmul.f32 %v4056, %v4326
        %s4329 = sld [smem:[#allocation2 + $0x481]]
        %v4330 = vstv %s4329
        %v4331 = vmul.f32 %v4058, %v4330
        %v4332 = vmul.f32 %v4059, %v4330
        %v4333 = vadd.f32 %v4327, %v4331
        %v4334 = vadd.f32 %v4328, %v4332
        %s4335 = sld [smem:[#allocation2 + $0x482]]
        %v4336 = vstv %s4335
        %v4337 = vmul.f32 %v4061, %v4336
        %v4338 = vmul.f32 %v4062, %v4336
        %v4339 = vadd.f32 %v4333, %v4337
        %v4340 = vadd.f32 %v4334, %v4338
        %s4341 = sld [smem:[#allocation2 + $0x483]]
        %v4342 = vstv %s4341
        %v4343 = vmul.f32 %v4064, %v4342
        %v4344 = vmul.f32 %v4065, %v4342
        %v4345 = vadd.f32 %v4339, %v4343
        %v4346 = vadd.f32 %v4340, %v4344
        %s4347 = sld [smem:[#allocation6 + $0x9]]
        %v4348 = vstv %s4347
        %v4349 = vadd.f32 %v4345, %v4348
        %v4350 = vadd.f32 %v4346, %v4348
        %s4351 = sld [smem:[#allocation2 + $0x880]]
        %v4352 = vstv %s4351
        %v4353 = vmul.f32 %v4055, %v4352
        %v4354 = vmul.f32 %v4056, %v4352
        %s4355 = sld [smem:[#allocation2 + $0x881]]
        %v4356 = vstv %s4355
        %v4357 = vmul.f32 %v4058, %v4356
        %v4358 = vmul.f32 %v4059, %v4356
        %v4359 = vadd.f32 %v4353, %v4357
        %v4360 = vadd.f32 %v4354, %v4358
        %s4361 = sld [smem:[#allocation2 + $0x882]]
        %v4362 = vstv %s4361
        %v4363 = vmul.f32 %v4061, %v4362
        %v4364 = vmul.f32 %v4062, %v4362
        %v4365 = vadd.f32 %v4359, %v4363
        %v4366 = vadd.f32 %v4360, %v4364
        %s4367 = sld [smem:[#allocation2 + $0x883]]
        %v4368 = vstv %s4367
        %v4369 = vmul.f32 %v4064, %v4368
        %v4370 = vmul.f32 %v4065, %v4368
        %v4371 = vadd.f32 %v4365, %v4369
        %v4372 = vadd.f32 %v4366, %v4370
        %s4373 = sld [smem:[#allocation6 + $0x11]]
        %v4374 = vstv %s4373
        %v4375 = vadd.f32 %v4371, %v4374
        %v4376 = vadd.f32 %v4372, %v4374
        %s4377 = sld [smem:[#allocation2 + $0xc80]]
        %v4378 = vstv %s4377
        %v4379 = vmul.f32 %v4055, %v4378
        %v4380 = vmul.f32 %v4056, %v4378
        %s4381 = sld [smem:[#allocation2 + $0xc81]]
        %v4382 = vstv %s4381
        %v4383 = vmul.f32 %v4058, %v4382
        %v4384 = vmul.f32 %v4059, %v4382
        %v4385 = vadd.f32 %v4379, %v4383
        %v4386 = vadd.f32 %v4380, %v4384
        %s4387 = sld [smem:[#allocation2 + $0xc82]]
        %v4388 = vstv %s4387
        %v4389 = vmul.f32 %v4061, %v4388
        %v4390 = vmul.f32 %v4062, %v4388
        %v4391 = vadd.f32 %v4385, %v4389
        %v4392 = vadd.f32 %v4386, %v4390
        %s4393 = sld [smem:[#allocation2 + $0xc83]]
        %v4394 = vstv %s4393
        %v4395 = vmul.f32 %v4064, %v4394
        %v4396 = vmul.f32 %v4065, %v4394
        %v4397 = vadd.f32 %v4391, %v4395
        %v4398 = vadd.f32 %v4392, %v4396
        %s4399 = sld [smem:[#allocation6 + $0x19]]
        %v4400 = vstv %s4399
        %v4401 = vadd.f32 %v4397, %v4400
        %v4402 = vadd.f32 %v4398, %v4400
        %v4404 = vsel %vm416, %v4349, 0
        %v4407 = vsel %vm416, %v4350, 0
        %4409 = vmatpush.msra.mxu0 0.0
        %4410 = vmatpush.msra.mxu0 0.0
        %4411 = vmatpush.msra.mxu0 0.0
        %4412 = vmatpush.msra.mxu0 0.0
        %4413 = vmatpush.msra.mxu0 0.0
        %4414 = vmatpush.msra.mxu0 0.0
        %4415 = vmatpush.msra.mxu0 0.0
        %4416 = vmatpush.msra.mxu0 0.0
        %4417 = vmatpush.msra.mxu0 0.0
        %4418 = vmatpush.msra.mxu0 0.0
        %4419 = vmatpush.msra.mxu0 0.0
        %4420 = vmatpush.msra.mxu0 0.0
        %4421 = vmatpush.msra.mxu0 0.0
        %4422 = vmatpush.msra.mxu0 0.0
        %4423 = vmatpush.msra.mxu0 %v300
        %4424 = vmatpush.msra.mxu0 %v299
        %4425 = vmatmul.f32.gmra.mxu0 %v4404
        %v4426 = vpop.f32.mrf.mxu0
        %v4427 = vadd.f32 0.0, %v4426
        %4428 = vmatmul.f32.gmra.mxu0 %v4407
        %v4429 = vpop.f32.mrf.mxu0
        %v4430 = vadd.f32 0.0, %v4429
        %4431 = vdwg.mxu0
        %v4433 = vsel %vm416, %v4323, 0
        %v4436 = vsel %vm416, %v4324, 0
        %4438 = vmatpush.msra.mxu0 0.0
        %4439 = vmatpush.msra.mxu0 0.0
        %4440 = vmatpush.msra.mxu0 0.0
        %4441 = vmatpush.msra.mxu0 0.0
        %4442 = vmatpush.msra.mxu0 0.0
        %4443 = vmatpush.msra.mxu0 0.0
        %4444 = vmatpush.msra.mxu0 0.0
        %4445 = vmatpush.msra.mxu0 0.0
        %4446 = vmatpush.msra.mxu0 0.0
        %4447 = vmatpush.msra.mxu0 0.0
        %4448 = vmatpush.msra.mxu0 0.0
        %4449 = vmatpush.msra.mxu0 0.0
        %4450 = vmatpush.msra.mxu0 0.0
        %4451 = vmatpush.msra.mxu0 0.0
        %4452 = vmatpush.msra.mxu0 %v298
        %4453 = vmatpush.msra.mxu0 %v297
        %4454 = vmatmul.f32.gmra.mxu0 %v4433
        %v4455 = vpop.f32.mrf.mxu0
        %v4456 = vadd.f32 %v4427, %v4455
        %4457 = vmatmul.f32.gmra.mxu0 %v4436
        %v4458 = vpop.f32.mrf.mxu0
        %v4459 = vadd.f32 %v4430, %v4458
        %4460 = vdwg.mxu0
        %v4462 = vsel %vm416, %v4401, 0
        %v4465 = vsel %vm416, %v4402, 0
        %4467 = vmatpush.msra.mxu0 0.0
        %4468 = vmatpush.msra.mxu0 0.0
        %4469 = vmatpush.msra.mxu0 0.0
        %4470 = vmatpush.msra.mxu0 0.0
        %4471 = vmatpush.msra.mxu0 0.0
        %4472 = vmatpush.msra.mxu0 0.0
        %4473 = vmatpush.msra.mxu0 0.0
        %4474 = vmatpush.msra.mxu0 0.0
        %4475 = vmatpush.msra.mxu0 0.0
        %4476 = vmatpush.msra.mxu0 0.0
        %4477 = vmatpush.msra.mxu0 0.0
        %4478 = vmatpush.msra.mxu0 0.0
        %4479 = vmatpush.msra.mxu0 0.0
        %4480 = vmatpush.msra.mxu0 0.0
        %4481 = vmatpush.msra.mxu0 %v300
        %4482 = vmatpush.msra.mxu0 %v299
        %4483 = vmatmul.f32.gmra.mxu0 %v4462
        %v4484 = vpop.f32.mrf.mxu0
        %v4485 = vadd.f32 0.0, %v4484
        %4486 = vmatmul.f32.gmra.mxu0 %v4465
        %v4487 = vpop.f32.mrf.mxu0
        %v4488 = vadd.f32 0.0, %v4487
        %4489 = vdwg.mxu0
        %v4491 = vsel %vm416, %v4375, 0
        %v4494 = vsel %vm416, %v4376, 0
        %4496 = vmatpush.msra.mxu0 0.0
        %4497 = vmatpush.msra.mxu0 0.0
        %4498 = vmatpush.msra.mxu0 0.0
        %4499 = vmatpush.msra.mxu0 0.0
        %4500 = vmatpush.msra.mxu0 0.0
        %4501 = vmatpush.msra.mxu0 0.0
        %4502 = vmatpush.msra.mxu0 0.0
        %4503 = vmatpush.msra.mxu0 0.0
        %4504 = vmatpush.msra.mxu0 0.0
        %4505 = vmatpush.msra.mxu0 0.0
        %4506 = vmatpush.msra.mxu0 0.0
        %4507 = vmatpush.msra.mxu0 0.0
        %4508 = vmatpush.msra.mxu0 0.0
        %4509 = vmatpush.msra.mxu0 0.0
        %4510 = vmatpush.msra.mxu0 %v298
        %4511 = vmatpush.msra.mxu0 %v297
        %4512 = vmatmul.f32.gmra.mxu0 %v4491
        %v4513 = vpop.f32.mrf.mxu0
        %v4514 = vadd.f32 %v4485, %v4513
        %4515 = vmatmul.f32.gmra.mxu0 %v4494
        %v4516 = vpop.f32.mrf.mxu0
        %v4517 = vadd.f32 %v4488, %v4516
        %4518 = vdwg.mxu0
        %s4519 = scalar_lea.vmem %s292, 272 [#allocation9]
        %4520 = vst.msk [vmem:[%s4519] sm:$0xff] %vm533, %v4456
        %4521 = vst.msk [vmem:[%s4519 + $0x8] sm:$0xff] %vm533, %v4459
        %4524 = vrot.lane.b32.xlu0 %v4514, 32
        %v4525 = vpop.permute.xlu0 %4524
        %4526 = vrot.lane.b32.xlu0 %v4517, 32
        %v4527 = vpop.permute.xlu0 %4526
        %4530 = vst.msk [vmem:[%s4519] sm:$0xff] %vm544, %v4525
        %4531 = vst.msk [vmem:[%s4519 + $0x8] sm:$0xff] %vm544, %v4527
        %s4532 = sld [smem:[#allocation2 + $0x100]]
        %v4533 = vstv %s4532
        %v4534 = vmul.f32 %v4055, %v4533
        %v4535 = vmul.f32 %v4056, %v4533
        %s4536 = sld [smem:[#allocation2 + $0x101]]
        %v4537 = vstv %s4536
        %v4538 = vmul.f32 %v4058, %v4537
        %v4539 = vmul.f32 %v4059, %v4537
        %v4540 = vadd.f32 %v4534, %v4538
        %v4541 = vadd.f32 %v4535, %v4539
        %s4542 = sld [smem:[#allocation2 + $0x102]]
        %v4543 = vstv %s4542
        %v4544 = vmul.f32 %v4061, %v4543
        %v4545 = vmul.f32 %v4062, %v4543
        %v4546 = vadd.f32 %v4540, %v4544
        %v4547 = vadd.f32 %v4541, %v4545
        %s4548 = sld [smem:[#allocation2 + $0x103]]
        %v4549 = vstv %s4548
        %v4550 = vmul.f32 %v4064, %v4549
        %v4551 = vmul.f32 %v4065, %v4549
        %v4552 = vadd.f32 %v4546, %v4550
        %v4553 = vadd.f32 %v4547, %v4551
        %s4554 = sld [smem:[#allocation6 + $0x2]]
        %v4555 = vstv %s4554
        %v4556 = vadd.f32 %v4552, %v4555
        %v4557 = vadd.f32 %v4553, %v4555
        %s4558 = sld [smem:[#allocation2 + $0x500]]
        %v4559 = vstv %s4558
        %v4560 = vmul.f32 %v4055, %v4559
        %v4561 = vmul.f32 %v4056, %v4559
        %s4562 = sld [smem:[#allocation2 + $0x501]]
        %v4563 = vstv %s4562
        %v4564 = vmul.f32 %v4058, %v4563
        %v4565 = vmul.f32 %v4059, %v4563
        %v4566 = vadd.f32 %v4560, %v4564
        %v4567 = vadd.f32 %v4561, %v4565
        %s4568 = sld [smem:[#allocation2 + $0x502]]
        %v4569 = vstv %s4568
        %v4570 = vmul.f32 %v4061, %v4569
        %v4571 = vmul.f32 %v4062, %v4569
        %v4572 = vadd.f32 %v4566, %v4570
        %v4573 = vadd.f32 %v4567, %v4571
        %s4574 = sld [smem:[#allocation2 + $0x503]]
        %v4575 = vstv %s4574
        %v4576 = vmul.f32 %v4064, %v4575
        %v4577 = vmul.f32 %v4065, %v4575
        %v4578 = vadd.f32 %v4572, %v4576
        %v4579 = vadd.f32 %v4573, %v4577
        %s4580 = sld [smem:[#allocation6 + $0xa]]
        %v4581 = vstv %s4580
        %v4582 = vadd.f32 %v4578, %v4581
        %v4583 = vadd.f32 %v4579, %v4581
        %s4584 = sld [smem:[#allocation2 + $0x900]]
        %v4585 = vstv %s4584
        %v4586 = vmul.f32 %v4055, %v4585
        %v4587 = vmul.f32 %v4056, %v4585
        %s4588 = sld [smem:[#allocation2 + $0x901]]
        %v4589 = vstv %s4588
        %v4590 = vmul.f32 %v4058, %v4589
        %v4591 = vmul.f32 %v4059, %v4589
        %v4592 = vadd.f32 %v4586, %v4590
        %v4593 = vadd.f32 %v4587, %v4591
        %s4594 = sld [smem:[#allocation2 + $0x902]]
        %v4595 = vstv %s4594
        %v4596 = vmul.f32 %v4061, %v4595
        %v4597 = vmul.f32 %v4062, %v4595
        %v4598 = vadd.f32 %v4592, %v4596
        %v4599 = vadd.f32 %v4593, %v4597
        %s4600 = sld [smem:[#allocation2 + $0x903]]
        %v4601 = vstv %s4600
        %v4602 = vmul.f32 %v4064, %v4601
        %v4603 = vmul.f32 %v4065, %v4601
        %v4604 = vadd.f32 %v4598, %v4602
        %v4605 = vadd.f32 %v4599, %v4603
        %s4606 = sld [smem:[#allocation6 + $0x12]]
        %v4607 = vstv %s4606
        %v4608 = vadd.f32 %v4604, %v4607
        %v4609 = vadd.f32 %v4605, %v4607
        %s4610 = sld [smem:[#allocation2 + $0xd00]]
        %v4611 = vstv %s4610
        %v4612 = vmul.f32 %v4055, %v4611
        %v4613 = vmul.f32 %v4056, %v4611
        %s4614 = sld [smem:[#allocation2 + $0xd01]]
        %v4615 = vstv %s4614
        %v4616 = vmul.f32 %v4058, %v4615
        %v4617 = vmul.f32 %v4059, %v4615
        %v4618 = vadd.f32 %v4612, %v4616
        %v4619 = vadd.f32 %v4613, %v4617
        %s4620 = sld [smem:[#allocation2 + $0xd02]]
        %v4621 = vstv %s4620
        %v4622 = vmul.f32 %v4061, %v4621
        %v4623 = vmul.f32 %v4062, %v4621
        %v4624 = vadd.f32 %v4618, %v4622
        %v4625 = vadd.f32 %v4619, %v4623
        %s4626 = sld [smem:[#allocation2 + $0xd03]]
        %v4627 = vstv %s4626
        %v4628 = vmul.f32 %v4064, %v4627
        %v4629 = vmul.f32 %v4065, %v4627
        %v4630 = vadd.f32 %v4624, %v4628
        %v4631 = vadd.f32 %v4625, %v4629
        %s4632 = sld [smem:[#allocation6 + $0x1a]]
        %v4633 = vstv %s4632
        %v4634 = vadd.f32 %v4630, %v4633
        %v4635 = vadd.f32 %v4631, %v4633
        %v4637 = vsel %vm416, %v4582, 0
        %v4640 = vsel %vm416, %v4583, 0
        %4642 = vmatpush.msra.mxu0 0.0
        %4643 = vmatpush.msra.mxu0 0.0
        %4644 = vmatpush.msra.mxu0 0.0
        %4645 = vmatpush.msra.mxu0 0.0
        %4646 = vmatpush.msra.mxu0 0.0
        %4647 = vmatpush.msra.mxu0 0.0
        %4648 = vmatpush.msra.mxu0 0.0
        %4649 = vmatpush.msra.mxu0 0.0
        %4650 = vmatpush.msra.mxu0 0.0
        %4651 = vmatpush.msra.mxu0 0.0
        %4652 = vmatpush.msra.mxu0 0.0
        %4653 = vmatpush.msra.mxu0 0.0
        %4654 = vmatpush.msra.mxu0 0.0
        %4655 = vmatpush.msra.mxu0 0.0
        %4656 = vmatpush.msra.mxu0 %v300
        %4657 = vmatpush.msra.mxu0 %v299
        %4658 = vmatmul.f32.gmra.mxu0 %v4637
        %v4659 = vpop.f32.mrf.mxu0
        %v4660 = vadd.f32 0.0, %v4659
        %4661 = vmatmul.f32.gmra.mxu0 %v4640
        %v4662 = vpop.f32.mrf.mxu0
        %v4663 = vadd.f32 0.0, %v4662
        %4664 = vdwg.mxu0
        %v4666 = vsel %vm416, %v4556, 0
        %v4669 = vsel %vm416, %v4557, 0
        %4671 = vmatpush.msra.mxu0 0.0
        %4672 = vmatpush.msra.mxu0 0.0
        %4673 = vmatpush.msra.mxu0 0.0
        %4674 = vmatpush.msra.mxu0 0.0
        %4675 = vmatpush.msra.mxu0 0.0
        %4676 = vmatpush.msra.mxu0 0.0
        %4677 = vmatpush.msra.mxu0 0.0
        %4678 = vmatpush.msra.mxu0 0.0
        %4679 = vmatpush.msra.mxu0 0.0
        %4680 = vmatpush.msra.mxu0 0.0
        %4681 = vmatpush.msra.mxu0 0.0
        %4682 = vmatpush.msra.mxu0 0.0
        %4683 = vmatpush.msra.mxu0 0.0
        %4684 = vmatpush.msra.mxu0 0.0
        %4685 = vmatpush.msra.mxu0 %v298
        %4686 = vmatpush.msra.mxu0 %v297
        %4687 = vmatmul.f32.gmra.mxu0 %v4666
        %v4688 = vpop.f32.mrf.mxu0
        %v4689 = vadd.f32 %v4660, %v4688
        %4690 = vmatmul.f32.gmra.mxu0 %v4669
        %v4691 = vpop.f32.mrf.mxu0
        %v4692 = vadd.f32 %v4663, %v4691
        %4693 = vdwg.mxu0
        %v4695 = vsel %vm416, %v4634, 0
        %v4698 = vsel %vm416, %v4635, 0
        %4700 = vmatpush.msra.mxu0 0.0
        %4701 = vmatpush.msra.mxu0 0.0
        %4702 = vmatpush.msra.mxu0 0.0
        %4703 = vmatpush.msra.mxu0 0.0
        %4704 = vmatpush.msra.mxu0 0.0
        %4705 = vmatpush.msra.mxu0 0.0
        %4706 = vmatpush.msra.mxu0 0.0
        %4707 = vmatpush.msra.mxu0 0.0
        %4708 = vmatpush.msra.mxu0 0.0
        %4709 = vmatpush.msra.mxu0 0.0
        %4710 = vmatpush.msra.mxu0 0.0
        %4711 = vmatpush.msra.mxu0 0.0
        %4712 = vmatpush.msra.mxu0 0.0
        %4713 = vmatpush.msra.mxu0 0.0
        %4714 = vmatpush.msra.mxu0 %v300
        %4715 = vmatpush.msra.mxu0 %v299
        %4716 = vmatmul.f32.gmra.mxu0 %v4695
        %v4717 = vpop.f32.mrf.mxu0
        %v4718 = vadd.f32 0.0, %v4717
        %4719 = vmatmul.f32.gmra.mxu0 %v4698
        %v4720 = vpop.f32.mrf.mxu0
        %v4721 = vadd.f32 0.0, %v4720
        %4722 = vdwg.mxu0
        %v4724 = vsel %vm416, %v4608, 0
        %v4727 = vsel %vm416, %v4609, 0
        %4729 = vmatpush.msra.mxu0 0.0
        %4730 = vmatpush.msra.mxu0 0.0
        %4731 = vmatpush.msra.mxu0 0.0
        %4732 = vmatpush.msra.mxu0 0.0
        %4733 = vmatpush.msra.mxu0 0.0
        %4734 = vmatpush.msra.mxu0 0.0
        %4735 = vmatpush.msra.mxu0 0.0
        %4736 = vmatpush.msra.mxu0 0.0
        %4737 = vmatpush.msra.mxu0 0.0
        %4738 = vmatpush.msra.mxu0 0.0
        %4739 = vmatpush.msra.mxu0 0.0
        %4740 = vmatpush.msra.mxu0 0.0
        %4741 = vmatpush.msra.mxu0 0.0
        %4742 = vmatpush.msra.mxu0 0.0
        %4743 = vmatpush.msra.mxu0 %v298
        %4744 = vmatpush.msra.mxu0 %v297
        %4745 = vmatmul.f32.gmra.mxu0 %v4724
        %v4746 = vpop.f32.mrf.mxu0
        %v4747 = vadd.f32 %v4718, %v4746
        %4748 = vmatmul.f32.gmra.mxu0 %v4727
        %v4749 = vpop.f32.mrf.mxu0
        %v4750 = vadd.f32 %v4721, %v4749
        %4751 = vdwg.mxu0
        %s4752 = scalar_lea.vmem %s292, 288 [#allocation9]
        %4753 = vst.msk [vmem:[%s4752] sm:$0xff] %vm533, %v4689
        %4754 = vst.msk [vmem:[%s4752 + $0x8] sm:$0xff] %vm533, %v4692
        %4757 = vrot.lane.b32.xlu0 %v4747, 32
        %v4758 = vpop.permute.xlu0 %4757
        %4759 = vrot.lane.b32.xlu0 %v4750, 32
        %v4760 = vpop.permute.xlu0 %4759
        %4763 = vst.msk [vmem:[%s4752] sm:$0xff] %vm544, %v4758
        %4764 = vst.msk [vmem:[%s4752 + $0x8] sm:$0xff] %vm544, %v4760
        %s4765 = sld [smem:[#allocation2 + $0x180]]
        %v4766 = vstv %s4765
        %v4767 = vmul.f32 %v4055, %v4766
        %v4768 = vmul.f32 %v4056, %v4766
        %s4769 = sld [smem:[#allocation2 + $0x181]]
        %v4770 = vstv %s4769
        %v4771 = vmul.f32 %v4058, %v4770
        %v4772 = vmul.f32 %v4059, %v4770
        %v4773 = vadd.f32 %v4767, %v4771
        %v4774 = vadd.f32 %v4768, %v4772
        %s4775 = sld [smem:[#allocation2 + $0x182]]
        %v4776 = vstv %s4775
        %v4777 = vmul.f32 %v4061, %v4776
        %v4778 = vmul.f32 %v4062, %v4776
        %v4779 = vadd.f32 %v4773, %v4777
        %v4780 = vadd.f32 %v4774, %v4778
        %s4781 = sld [smem:[#allocation2 + $0x183]]
        %v4782 = vstv %s4781
        %v4783 = vmul.f32 %v4064, %v4782
        %v4784 = vmul.f32 %v4065, %v4782
        %v4785 = vadd.f32 %v4779, %v4783
        %v4786 = vadd.f32 %v4780, %v4784
        %s4787 = sld [smem:[#allocation6 + $0x3]]
        %v4788 = vstv %s4787
        %v4789 = vadd.f32 %v4785, %v4788
        %v4790 = vadd.f32 %v4786, %v4788
        %s4791 = sld [smem:[#allocation2 + $0x580]]
        %v4792 = vstv %s4791
        %v4793 = vmul.f32 %v4055, %v4792
        %v4794 = vmul.f32 %v4056, %v4792
        %s4795 = sld [smem:[#allocation2 + $0x581]]
        %v4796 = vstv %s4795
        %v4797 = vmul.f32 %v4058, %v4796
        %v4798 = vmul.f32 %v4059, %v4796
        %v4799 = vadd.f32 %v4793, %v4797
        %v4800 = vadd.f32 %v4794, %v4798
        %s4801 = sld [smem:[#allocation2 + $0x582]]
        %v4802 = vstv %s4801
        %v4803 = vmul.f32 %v4061, %v4802
        %v4804 = vmul.f32 %v4062, %v4802
        %v4805 = vadd.f32 %v4799, %v4803
        %v4806 = vadd.f32 %v4800, %v4804
        %s4807 = sld [smem:[#allocation2 + $0x583]]
        %v4808 = vstv %s4807
        %v4809 = vmul.f32 %v4064, %v4808
        %v4810 = vmul.f32 %v4065, %v4808
        %v4811 = vadd.f32 %v4805, %v4809
        %v4812 = vadd.f32 %v4806, %v4810
        %s4813 = sld [smem:[#allocation6 + $0xb]]
        %v4814 = vstv %s4813
        %v4815 = vadd.f32 %v4811, %v4814
        %v4816 = vadd.f32 %v4812, %v4814
        %s4817 = sld [smem:[#allocation2 + $0x980]]
        %v4818 = vstv %s4817
        %v4819 = vmul.f32 %v4055, %v4818
        %v4820 = vmul.f32 %v4056, %v4818
        %s4821 = sld [smem:[#allocation2 + $0x981]]
        %v4822 = vstv %s4821
        %v4823 = vmul.f32 %v4058, %v4822
        %v4824 = vmul.f32 %v4059, %v4822
        %v4825 = vadd.f32 %v4819, %v4823
        %v4826 = vadd.f32 %v4820, %v4824
        %s4827 = sld [smem:[#allocation2 + $0x982]]
        %v4828 = vstv %s4827
        %v4829 = vmul.f32 %v4061, %v4828
        %v4830 = vmul.f32 %v4062, %v4828
        %v4831 = vadd.f32 %v4825, %v4829
        %v4832 = vadd.f32 %v4826, %v4830
        %s4833 = sld [smem:[#allocation2 + $0x983]]
        %v4834 = vstv %s4833
        %v4835 = vmul.f32 %v4064, %v4834
        %v4836 = vmul.f32 %v4065, %v4834
        %v4837 = vadd.f32 %v4831, %v4835
        %v4838 = vadd.f32 %v4832, %v4836
        %s4839 = sld [smem:[#allocation6 + $0x13]]
        %v4840 = vstv %s4839
        %v4841 = vadd.f32 %v4837, %v4840
        %v4842 = vadd.f32 %v4838, %v4840
        %s4843 = sld [smem:[#allocation2 + $0xd80]]
        %v4844 = vstv %s4843
        %v4845 = vmul.f32 %v4055, %v4844
        %v4846 = vmul.f32 %v4056, %v4844
        %s4847 = sld [smem:[#allocation2 + $0xd81]]
        %v4848 = vstv %s4847
        %v4849 = vmul.f32 %v4058, %v4848
        %v4850 = vmul.f32 %v4059, %v4848
        %v4851 = vadd.f32 %v4845, %v4849
        %v4852 = vadd.f32 %v4846, %v4850
        %s4853 = sld [smem:[#allocation2 + $0xd82]]
        %v4854 = vstv %s4853
        %v4855 = vmul.f32 %v4061, %v4854
        %v4856 = vmul.f32 %v4062, %v4854
        %v4857 = vadd.f32 %v4851, %v4855
        %v4858 = vadd.f32 %v4852, %v4856
        %s4859 = sld [smem:[#allocation2 + $0xd83]]
        %v4860 = vstv %s4859
        %v4861 = vmul.f32 %v4064, %v4860
        %v4862 = vmul.f32 %v4065, %v4860
        %v4863 = vadd.f32 %v4857, %v4861
        %v4864 = vadd.f32 %v4858, %v4862
        %s4865 = sld [smem:[#allocation6 + $0x1b]]
        %v4866 = vstv %s4865
        %v4867 = vadd.f32 %v4863, %v4866
        %v4868 = vadd.f32 %v4864, %v4866
        %v4870 = vsel %vm416, %v4815, 0
        %v4873 = vsel %vm416, %v4816, 0
        %4875 = vmatpush.msra.mxu0 0.0
        %4876 = vmatpush.msra.mxu0 0.0
        %4877 = vmatpush.msra.mxu0 0.0
        %4878 = vmatpush.msra.mxu0 0.0
        %4879 = vmatpush.msra.mxu0 0.0
        %4880 = vmatpush.msra.mxu0 0.0
        %4881 = vmatpush.msra.mxu0 0.0
        %4882 = vmatpush.msra.mxu0 0.0
        %4883 = vmatpush.msra.mxu0 0.0
        %4884 = vmatpush.msra.mxu0 0.0
        %4885 = vmatpush.msra.mxu0 0.0
        %4886 = vmatpush.msra.mxu0 0.0
        %4887 = vmatpush.msra.mxu0 0.0
        %4888 = vmatpush.msra.mxu0 0.0
        %4889 = vmatpush.msra.mxu0 %v300
        %4890 = vmatpush.msra.mxu0 %v299
        %4891 = vmatmul.f32.gmra.mxu0 %v4870
        %v4892 = vpop.f32.mrf.mxu0
        %v4893 = vadd.f32 0.0, %v4892
        %4894 = vmatmul.f32.gmra.mxu0 %v4873
        %v4895 = vpop.f32.mrf.mxu0
        %v4896 = vadd.f32 0.0, %v4895
        %4897 = vdwg.mxu0
        %v4899 = vsel %vm416, %v4789, 0
        %v4902 = vsel %vm416, %v4790, 0
        %4904 = vmatpush.msra.mxu0 0.0
        %4905 = vmatpush.msra.mxu0 0.0
        %4906 = vmatpush.msra.mxu0 0.0
        %4907 = vmatpush.msra.mxu0 0.0
        %4908 = vmatpush.msra.mxu0 0.0
        %4909 = vmatpush.msra.mxu0 0.0
        %4910 = vmatpush.msra.mxu0 0.0
        %4911 = vmatpush.msra.mxu0 0.0
        %4912 = vmatpush.msra.mxu0 0.0
        %4913 = vmatpush.msra.mxu0 0.0
        %4914 = vmatpush.msra.mxu0 0.0
        %4915 = vmatpush.msra.mxu0 0.0
        %4916 = vmatpush.msra.mxu0 0.0
        %4917 = vmatpush.msra.mxu0 0.0
        %4918 = vmatpush.msra.mxu0 %v298
        %4919 = vmatpush.msra.mxu0 %v297
        %4920 = vmatmul.f32.gmra.mxu0 %v4899
        %v4921 = vpop.f32.mrf.mxu0
        %v4922 = vadd.f32 %v4893, %v4921
        %4923 = vmatmul.f32.gmra.mxu0 %v4902
        %v4924 = vpop.f32.mrf.mxu0
        %v4925 = vadd.f32 %v4896, %v4924
        %4926 = vdwg.mxu0
        %v4928 = vsel %vm416, %v4867, 0
        %v4931 = vsel %vm416, %v4868, 0
        %4933 = vmatpush.msra.mxu0 0.0
        %4934 = vmatpush.msra.mxu0 0.0
        %4935 = vmatpush.msra.mxu0 0.0
        %4936 = vmatpush.msra.mxu0 0.0
        %4937 = vmatpush.msra.mxu0 0.0
        %4938 = vmatpush.msra.mxu0 0.0
        %4939 = vmatpush.msra.mxu0 0.0
        %4940 = vmatpush.msra.mxu0 0.0
        %4941 = vmatpush.msra.mxu0 0.0
        %4942 = vmatpush.msra.mxu0 0.0
        %4943 = vmatpush.msra.mxu0 0.0
        %4944 = vmatpush.msra.mxu0 0.0
        %4945 = vmatpush.msra.mxu0 0.0
        %4946 = vmatpush.msra.mxu0 0.0
        %4947 = vmatpush.msra.mxu0 %v300
        %4948 = vmatpush.msra.mxu0 %v299
        %4949 = vmatmul.f32.gmra.mxu0 %v4928
        %v4950 = vpop.f32.mrf.mxu0
        %v4951 = vadd.f32 0.0, %v4950
        %4952 = vmatmul.f32.gmra.mxu0 %v4931
        %v4953 = vpop.f32.mrf.mxu0
        %v4954 = vadd.f32 0.0, %v4953
        %4955 = vdwg.mxu0
        %v4957 = vsel %vm416, %v4841, 0
        %v4960 = vsel %vm416, %v4842, 0
        %4962 = vmatpush.msra.mxu0 0.0
        %4963 = vmatpush.msra.mxu0 0.0
        %4964 = vmatpush.msra.mxu0 0.0
        %4965 = vmatpush.msra.mxu0 0.0
        %4966 = vmatpush.msra.mxu0 0.0
        %4967 = vmatpush.msra.mxu0 0.0
        %4968 = vmatpush.msra.mxu0 0.0
        %4969 = vmatpush.msra.mxu0 0.0
        %4970 = vmatpush.msra.mxu0 0.0
        %4971 = vmatpush.msra.mxu0 0.0
        %4972 = vmatpush.msra.mxu0 0.0
        %4973 = vmatpush.msra.mxu0 0.0
        %4974 = vmatpush.msra.mxu0 0.0
        %4975 = vmatpush.msra.mxu0 0.0
        %4976 = vmatpush.msra.mxu0 %v298
        %4977 = vmatpush.msra.mxu0 %v297
        %4978 = vmatmul.f32.gmra.mxu0 %v4957
        %v4979 = vpop.f32.mrf.mxu0
        %v4980 = vadd.f32 %v4951, %v4979
        %4981 = vmatmul.f32.gmra.mxu0 %v4960
        %v4982 = vpop.f32.mrf.mxu0
        %v4983 = vadd.f32 %v4954, %v4982
        %4984 = vdwg.mxu0
        %s4985 = scalar_lea.vmem %s292, 304 [#allocation9]
        %4986 = vst.msk [vmem:[%s4985] sm:$0xff] %vm533, %v4922
        %4987 = vst.msk [vmem:[%s4985 + $0x8] sm:$0xff] %vm533, %v4925
        %4990 = vrot.lane.b32.xlu0 %v4980, 32
        %v4991 = vpop.permute.xlu0 %4990
        %4992 = vrot.lane.b32.xlu0 %v4983, 32
        %v4993 = vpop.permute.xlu0 %4992
        %4996 = vst.msk [vmem:[%s4985] sm:$0xff] %vm544, %v4991
        %4997 = vst.msk [vmem:[%s4985 + $0x8] sm:$0xff] %vm544, %v4993
        %s4998 = sld [smem:[#allocation2 + $0x200]]
        %v4999 = vstv %s4998
        %v5000 = vmul.f32 %v4055, %v4999
        %v5001 = vmul.f32 %v4056, %v4999
        %s5002 = sld [smem:[#allocation2 + $0x201]]
        %v5003 = vstv %s5002
        %v5004 = vmul.f32 %v4058, %v5003
        %v5005 = vmul.f32 %v4059, %v5003
        %v5006 = vadd.f32 %v5000, %v5004
        %v5007 = vadd.f32 %v5001, %v5005
        %s5008 = sld [smem:[#allocation2 + $0x202]]
        %v5009 = vstv %s5008
        %v5010 = vmul.f32 %v4061, %v5009
        %v5011 = vmul.f32 %v4062, %v5009
        %v5012 = vadd.f32 %v5006, %v5010
        %v5013 = vadd.f32 %v5007, %v5011
        %s5014 = sld [smem:[#allocation2 + $0x203]]
        %v5015 = vstv %s5014
        %v5016 = vmul.f32 %v4064, %v5015
        %v5017 = vmul.f32 %v4065, %v5015
        %v5018 = vadd.f32 %v5012, %v5016
        %v5019 = vadd.f32 %v5013, %v5017
        %s5020 = sld [smem:[#allocation6 + $0x4]]
        %v5021 = vstv %s5020
        %v5022 = vadd.f32 %v5018, %v5021
        %v5023 = vadd.f32 %v5019, %v5021
        %s5024 = sld [smem:[#allocation2 + $0x600]]
        %v5025 = vstv %s5024
        %v5026 = vmul.f32 %v4055, %v5025
        %v5027 = vmul.f32 %v4056, %v5025
        %s5028 = sld [smem:[#allocation2 + $0x601]]
        %v5029 = vstv %s5028
        %v5030 = vmul.f32 %v4058, %v5029
        %v5031 = vmul.f32 %v4059, %v5029
        %v5032 = vadd.f32 %v5026, %v5030
        %v5033 = vadd.f32 %v5027, %v5031
        %s5034 = sld [smem:[#allocation2 + $0x602]]
        %v5035 = vstv %s5034
        %v5036 = vmul.f32 %v4061, %v5035
        %v5037 = vmul.f32 %v4062, %v5035
        %v5038 = vadd.f32 %v5032, %v5036
        %v5039 = vadd.f32 %v5033, %v5037
        %s5040 = sld [smem:[#allocation2 + $0x603]]
        %v5041 = vstv %s5040
        %v5042 = vmul.f32 %v4064, %v5041
        %v5043 = vmul.f32 %v4065, %v5041
        %v5044 = vadd.f32 %v5038, %v5042
        %v5045 = vadd.f32 %v5039, %v5043
        %s5046 = sld [smem:[#allocation6 + $0xc]]
        %v5047 = vstv %s5046
        %v5048 = vadd.f32 %v5044, %v5047
        %v5049 = vadd.f32 %v5045, %v5047
        %s5050 = sld [smem:[#allocation2 + $0xa00]]
        %v5051 = vstv %s5050
        %v5052 = vmul.f32 %v4055, %v5051
        %v5053 = vmul.f32 %v4056, %v5051
        %s5054 = sld [smem:[#allocation2 + $0xa01]]
        %v5055 = vstv %s5054
        %v5056 = vmul.f32 %v4058, %v5055
        %v5057 = vmul.f32 %v4059, %v5055
        %v5058 = vadd.f32 %v5052, %v5056
        %v5059 = vadd.f32 %v5053, %v5057
        %s5060 = sld [smem:[#allocation2 + $0xa02]]
        %v5061 = vstv %s5060
        %v5062 = vmul.f32 %v4061, %v5061
        %v5063 = vmul.f32 %v4062, %v5061
        %v5064 = vadd.f32 %v5058, %v5062
        %v5065 = vadd.f32 %v5059, %v5063
        %s5066 = sld [smem:[#allocation2 + $0xa03]]
        %v5067 = vstv %s5066
        %v5068 = vmul.f32 %v4064, %v5067
        %v5069 = vmul.f32 %v4065, %v5067
        %v5070 = vadd.f32 %v5064, %v5068
        %v5071 = vadd.f32 %v5065, %v5069
        %s5072 = sld [smem:[#allocation6 + $0x14]]
        %v5073 = vstv %s5072
        %v5074 = vadd.f32 %v5070, %v5073
        %v5075 = vadd.f32 %v5071, %v5073
        %s5076 = sld [smem:[#allocation2 + $0xe00]]
        %v5077 = vstv %s5076
        %v5078 = vmul.f32 %v4055, %v5077
        %v5079 = vmul.f32 %v4056, %v5077
        %s5080 = sld [smem:[#allocation2 + $0xe01]]
        %v5081 = vstv %s5080
        %v5082 = vmul.f32 %v4058, %v5081
        %v5083 = vmul.f32 %v4059, %v5081
        %v5084 = vadd.f32 %v5078, %v5082
        %v5085 = vadd.f32 %v5079, %v5083
        %s5086 = sld [smem:[#allocation2 + $0xe02]]
        %v5087 = vstv %s5086
        %v5088 = vmul.f32 %v4061, %v5087
        %v5089 = vmul.f32 %v4062, %v5087
        %v5090 = vadd.f32 %v5084, %v5088
        %v5091 = vadd.f32 %v5085, %v5089
        %s5092 = sld [smem:[#allocation2 + $0xe03]]
        %v5093 = vstv %s5092
        %v5094 = vmul.f32 %v4064, %v5093
        %v5095 = vmul.f32 %v4065, %v5093
        %v5096 = vadd.f32 %v5090, %v5094
        %v5097 = vadd.f32 %v5091, %v5095
        %s5098 = sld [smem:[#allocation6 + $0x1c]]
        %v5099 = vstv %s5098
        %v5100 = vadd.f32 %v5096, %v5099
        %v5101 = vadd.f32 %v5097, %v5099
        %v5103 = vsel %vm416, %v5048, 0
        %v5106 = vsel %vm416, %v5049, 0
        %5108 = vmatpush.msra.mxu0 0.0
        %5109 = vmatpush.msra.mxu0 0.0
        %5110 = vmatpush.msra.mxu0 0.0
        %5111 = vmatpush.msra.mxu0 0.0
        %5112 = vmatpush.msra.mxu0 0.0
        %5113 = vmatpush.msra.mxu0 0.0
        %5114 = vmatpush.msra.mxu0 0.0
        %5115 = vmatpush.msra.mxu0 0.0
        %5116 = vmatpush.msra.mxu0 0.0
        %5117 = vmatpush.msra.mxu0 0.0
        %5118 = vmatpush.msra.mxu0 0.0
        %5119 = vmatpush.msra.mxu0 0.0
        %5120 = vmatpush.msra.mxu0 0.0
        %5121 = vmatpush.msra.mxu0 0.0
        %5122 = vmatpush.msra.mxu0 %v300
        %5123 = vmatpush.msra.mxu0 %v299
        %5124 = vmatmul.f32.gmra.mxu0 %v5103
        %v5125 = vpop.f32.mrf.mxu0
        %v5126 = vadd.f32 0.0, %v5125
        %5127 = vmatmul.f32.gmra.mxu0 %v5106
        %v5128 = vpop.f32.mrf.mxu0
        %v5129 = vadd.f32 0.0, %v5128
        %5130 = vdwg.mxu0
        %v5132 = vsel %vm416, %v5022, 0
        %v5135 = vsel %vm416, %v5023, 0
        %5137 = vmatpush.msra.mxu0 0.0
        %5138 = vmatpush.msra.mxu0 0.0
        %5139 = vmatpush.msra.mxu0 0.0
        %5140 = vmatpush.msra.mxu0 0.0
        %5141 = vmatpush.msra.mxu0 0.0
        %5142 = vmatpush.msra.mxu0 0.0
        %5143 = vmatpush.msra.mxu0 0.0
        %5144 = vmatpush.msra.mxu0 0.0
        %5145 = vmatpush.msra.mxu0 0.0
        %5146 = vmatpush.msra.mxu0 0.0
        %5147 = vmatpush.msra.mxu0 0.0
        %5148 = vmatpush.msra.mxu0 0.0
        %5149 = vmatpush.msra.mxu0 0.0
        %5150 = vmatpush.msra.mxu0 0.0
        %5151 = vmatpush.msra.mxu0 %v298
        %5152 = vmatpush.msra.mxu0 %v297
        %5153 = vmatmul.f32.gmra.mxu0 %v5132
        %v5154 = vpop.f32.mrf.mxu0
        %v5155 = vadd.f32 %v5126, %v5154
        %5156 = vmatmul.f32.gmra.mxu0 %v5135
        %v5157 = vpop.f32.mrf.mxu0
        %v5158 = vadd.f32 %v5129, %v5157
        %5159 = vdwg.mxu0
        %v5161 = vsel %vm416, %v5100, 0
        %v5164 = vsel %vm416, %v5101, 0
        %5166 = vmatpush.msra.mxu0 0.0
        %5167 = vmatpush.msra.mxu0 0.0
        %5168 = vmatpush.msra.mxu0 0.0
        %5169 = vmatpush.msra.mxu0 0.0
        %5170 = vmatpush.msra.mxu0 0.0
        %5171 = vmatpush.msra.mxu0 0.0
        %5172 = vmatpush.msra.mxu0 0.0
        %5173 = vmatpush.msra.mxu0 0.0
        %5174 = vmatpush.msra.mxu0 0.0
        %5175 = vmatpush.msra.mxu0 0.0
        %5176 = vmatpush.msra.mxu0 0.0
        %5177 = vmatpush.msra.mxu0 0.0
        %5178 = vmatpush.msra.mxu0 0.0
        %5179 = vmatpush.msra.mxu0 0.0
        %5180 = vmatpush.msra.mxu0 %v300
        %5181 = vmatpush.msra.mxu0 %v299
        %5182 = vmatmul.f32.gmra.mxu0 %v5161
        %v5183 = vpop.f32.mrf.mxu0
        %v5184 = vadd.f32 0.0, %v5183
        %5185 = vmatmul.f32.gmra.mxu0 %v5164
        %v5186 = vpop.f32.mrf.mxu0
        %v5187 = vadd.f32 0.0, %v5186
        %5188 = vdwg.mxu0
        %v5190 = vsel %vm416, %v5074, 0
        %v5193 = vsel %vm416, %v5075, 0
        %5195 = vmatpush.msra.mxu0 0.0
        %5196 = vmatpush.msra.mxu0 0.0
        %5197 = vmatpush.msra.mxu0 0.0
        %5198 = vmatpush.msra.mxu0 0.0
        %5199 = vmatpush.msra.mxu0 0.0
        %5200 = vmatpush.msra.mxu0 0.0
        %5201 = vmatpush.msra.mxu0 0.0
        %5202 = vmatpush.msra.mxu0 0.0
        %5203 = vmatpush.msra.mxu0 0.0
        %5204 = vmatpush.msra.mxu0 0.0
        %5205 = vmatpush.msra.mxu0 0.0
        %5206 = vmatpush.msra.mxu0 0.0
        %5207 = vmatpush.msra.mxu0 0.0
        %5208 = vmatpush.msra.mxu0 0.0
        %5209 = vmatpush.msra.mxu0 %v298
        %5210 = vmatpush.msra.mxu0 %v297
        %5211 = vmatmul.f32.gmra.mxu0 %v5190
        %v5212 = vpop.f32.mrf.mxu0
        %v5213 = vadd.f32 %v5184, %v5212
        %5214 = vmatmul.f32.gmra.mxu0 %v5193
        %v5215 = vpop.f32.mrf.mxu0
        %v5216 = vadd.f32 %v5187, %v5215
        %5217 = vdwg.mxu0
        %s5218 = scalar_lea.vmem %s292, 320 [#allocation9]
        %5219 = vst.msk [vmem:[%s5218] sm:$0xff] %vm533, %v5155
        %5220 = vst.msk [vmem:[%s5218 + $0x8] sm:$0xff] %vm533, %v5158
        %5223 = vrot.lane.b32.xlu0 %v5213, 32
        %v5224 = vpop.permute.xlu0 %5223
        %5225 = vrot.lane.b32.xlu0 %v5216, 32
        %v5226 = vpop.permute.xlu0 %5225
        %5229 = vst.msk [vmem:[%s5218] sm:$0xff] %vm544, %v5224
        %5230 = vst.msk [vmem:[%s5218 + $0x8] sm:$0xff] %vm544, %v5226
        %s5231 = sld [smem:[#allocation2 + $0x280]]
        %v5232 = vstv %s5231
        %v5233 = vmul.f32 %v4055, %v5232
        %v5234 = vmul.f32 %v4056, %v5232
        %s5235 = sld [smem:[#allocation2 + $0x281]]
        %v5236 = vstv %s5235
        %v5237 = vmul.f32 %v4058, %v5236
        %v5238 = vmul.f32 %v4059, %v5236
        %v5239 = vadd.f32 %v5233, %v5237
        %v5240 = vadd.f32 %v5234, %v5238
        %s5241 = sld [smem:[#allocation2 + $0x282]]
        %v5242 = vstv %s5241
        %v5243 = vmul.f32 %v4061, %v5242
        %v5244 = vmul.f32 %v4062, %v5242
        %v5245 = vadd.f32 %v5239, %v5243
        %v5246 = vadd.f32 %v5240, %v5244
        %s5247 = sld [smem:[#allocation2 + $0x283]]
        %v5248 = vstv %s5247
        %v5249 = vmul.f32 %v4064, %v5248
        %v5250 = vmul.f32 %v4065, %v5248
        %v5251 = vadd.f32 %v5245, %v5249
        %v5252 = vadd.f32 %v5246, %v5250
        %s5253 = sld [smem:[#allocation6 + $0x5]]
        %v5254 = vstv %s5253
        %v5255 = vadd.f32 %v5251, %v5254
        %v5256 = vadd.f32 %v5252, %v5254
        %s5257 = sld [smem:[#allocation2 + $0x680]]
        %v5258 = vstv %s5257
        %v5259 = vmul.f32 %v4055, %v5258
        %v5260 = vmul.f32 %v4056, %v5258
        %s5261 = sld [smem:[#allocation2 + $0x681]]
        %v5262 = vstv %s5261
        %v5263 = vmul.f32 %v4058, %v5262
        %v5264 = vmul.f32 %v4059, %v5262
        %v5265 = vadd.f32 %v5259, %v5263
        %v5266 = vadd.f32 %v5260, %v5264
        %s5267 = sld [smem:[#allocation2 + $0x682]]
        %v5268 = vstv %s5267
        %v5269 = vmul.f32 %v4061, %v5268
        %v5270 = vmul.f32 %v4062, %v5268
        %v5271 = vadd.f32 %v5265, %v5269
        %v5272 = vadd.f32 %v5266, %v5270
        %s5273 = sld [smem:[#allocation2 + $0x683]]
        %v5274 = vstv %s5273
        %v5275 = vmul.f32 %v4064, %v5274
        %v5276 = vmul.f32 %v4065, %v5274
        %v5277 = vadd.f32 %v5271, %v5275
        %v5278 = vadd.f32 %v5272, %v5276
        %s5279 = sld [smem:[#allocation6 + $0xd]]
        %v5280 = vstv %s5279
        %v5281 = vadd.f32 %v5277, %v5280
        %v5282 = vadd.f32 %v5278, %v5280
        %s5283 = sld [smem:[#allocation2 + $0xa80]]
        %v5284 = vstv %s5283
        %v5285 = vmul.f32 %v4055, %v5284
        %v5286 = vmul.f32 %v4056, %v5284
        %s5287 = sld [smem:[#allocation2 + $0xa81]]
        %v5288 = vstv %s5287
        %v5289 = vmul.f32 %v4058, %v5288
        %v5290 = vmul.f32 %v4059, %v5288
        %v5291 = vadd.f32 %v5285, %v5289
        %v5292 = vadd.f32 %v5286, %v5290
        %s5293 = sld [smem:[#allocation2 + $0xa82]]
        %v5294 = vstv %s5293
        %v5295 = vmul.f32 %v4061, %v5294
        %v5296 = vmul.f32 %v4062, %v5294
        %v5297 = vadd.f32 %v5291, %v5295
        %v5298 = vadd.f32 %v5292, %v5296
        %s5299 = sld [smem:[#allocation2 + $0xa83]]
        %v5300 = vstv %s5299
        %v5301 = vmul.f32 %v4064, %v5300
        %v5302 = vmul.f32 %v4065, %v5300
        %v5303 = vadd.f32 %v5297, %v5301
        %v5304 = vadd.f32 %v5298, %v5302
        %s5305 = sld [smem:[#allocation6 + $0x15]]
        %v5306 = vstv %s5305
        %v5307 = vadd.f32 %v5303, %v5306
        %v5308 = vadd.f32 %v5304, %v5306
        %s5309 = sld [smem:[#allocation2 + $0xe80]]
        %v5310 = vstv %s5309
        %v5311 = vmul.f32 %v4055, %v5310
        %v5312 = vmul.f32 %v4056, %v5310
        %s5313 = sld [smem:[#allocation2 + $0xe81]]
        %v5314 = vstv %s5313
        %v5315 = vmul.f32 %v4058, %v5314
        %v5316 = vmul.f32 %v4059, %v5314
        %v5317 = vadd.f32 %v5311, %v5315
        %v5318 = vadd.f32 %v5312, %v5316
        %s5319 = sld [smem:[#allocation2 + $0xe82]]
        %v5320 = vstv %s5319
        %v5321 = vmul.f32 %v4061, %v5320
        %v5322 = vmul.f32 %v4062, %v5320
        %v5323 = vadd.f32 %v5317, %v5321
        %v5324 = vadd.f32 %v5318, %v5322
        %s5325 = sld [smem:[#allocation2 + $0xe83]]
        %v5326 = vstv %s5325
        %v5327 = vmul.f32 %v4064, %v5326
        %v5328 = vmul.f32 %v4065, %v5326
        %v5329 = vadd.f32 %v5323, %v5327
        %v5330 = vadd.f32 %v5324, %v5328
        %s5331 = sld [smem:[#allocation6 + $0x1d]]
        %v5332 = vstv %s5331
        %v5333 = vadd.f32 %v5329, %v5332
        %v5334 = vadd.f32 %v5330, %v5332
        %v5336 = vsel %vm416, %v5281, 0
        %v5339 = vsel %vm416, %v5282, 0
        %5341 = vmatpush.msra.mxu0 0.0
        %5342 = vmatpush.msra.mxu0 0.0
        %5343 = vmatpush.msra.mxu0 0.0
        %5344 = vmatpush.msra.mxu0 0.0
        %5345 = vmatpush.msra.mxu0 0.0
        %5346 = vmatpush.msra.mxu0 0.0
        %5347 = vmatpush.msra.mxu0 0.0
        %5348 = vmatpush.msra.mxu0 0.0
        %5349 = vmatpush.msra.mxu0 0.0
        %5350 = vmatpush.msra.mxu0 0.0
        %5351 = vmatpush.msra.mxu0 0.0
        %5352 = vmatpush.msra.mxu0 0.0
        %5353 = vmatpush.msra.mxu0 0.0
        %5354 = vmatpush.msra.mxu0 0.0
        %5355 = vmatpush.msra.mxu0 %v300
        %5356 = vmatpush.msra.mxu0 %v299
        %5357 = vmatmul.f32.gmra.mxu0 %v5336
        %v5358 = vpop.f32.mrf.mxu0
        %v5359 = vadd.f32 0.0, %v5358
        %5360 = vmatmul.f32.gmra.mxu0 %v5339
        %v5361 = vpop.f32.mrf.mxu0
        %v5362 = vadd.f32 0.0, %v5361
        %5363 = vdwg.mxu0
        %v5365 = vsel %vm416, %v5255, 0
        %v5368 = vsel %vm416, %v5256, 0
        %5370 = vmatpush.msra.mxu0 0.0
        %5371 = vmatpush.msra.mxu0 0.0
        %5372 = vmatpush.msra.mxu0 0.0
        %5373 = vmatpush.msra.mxu0 0.0
        %5374 = vmatpush.msra.mxu0 0.0
        %5375 = vmatpush.msra.mxu0 0.0
        %5376 = vmatpush.msra.mxu0 0.0
        %5377 = vmatpush.msra.mxu0 0.0
        %5378 = vmatpush.msra.mxu0 0.0
        %5379 = vmatpush.msra.mxu0 0.0
        %5380 = vmatpush.msra.mxu0 0.0
        %5381 = vmatpush.msra.mxu0 0.0
        %5382 = vmatpush.msra.mxu0 0.0
        %5383 = vmatpush.msra.mxu0 0.0
        %5384 = vmatpush.msra.mxu0 %v298
        %5385 = vmatpush.msra.mxu0 %v297
        %5386 = vmatmul.f32.gmra.mxu0 %v5365
        %v5387 = vpop.f32.mrf.mxu0
        %v5388 = vadd.f32 %v5359, %v5387
        %5389 = vmatmul.f32.gmra.mxu0 %v5368
        %v5390 = vpop.f32.mrf.mxu0
        %v5391 = vadd.f32 %v5362, %v5390
        %5392 = vdwg.mxu0
        %v5394 = vsel %vm416, %v5333, 0
        %v5397 = vsel %vm416, %v5334, 0
        %5399 = vmatpush.msra.mxu0 0.0
        %5400 = vmatpush.msra.mxu0 0.0
        %5401 = vmatpush.msra.mxu0 0.0
        %5402 = vmatpush.msra.mxu0 0.0
        %5403 = vmatpush.msra.mxu0 0.0
        %5404 = vmatpush.msra.mxu0 0.0
        %5405 = vmatpush.msra.mxu0 0.0
        %5406 = vmatpush.msra.mxu0 0.0
        %5407 = vmatpush.msra.mxu0 0.0
        %5408 = vmatpush.msra.mxu0 0.0
        %5409 = vmatpush.msra.mxu0 0.0
        %5410 = vmatpush.msra.mxu0 0.0
        %5411 = vmatpush.msra.mxu0 0.0
        %5412 = vmatpush.msra.mxu0 0.0
        %5413 = vmatpush.msra.mxu0 %v300
        %5414 = vmatpush.msra.mxu0 %v299
        %5415 = vmatmul.f32.gmra.mxu0 %v5394
        %v5416 = vpop.f32.mrf.mxu0
        %v5417 = vadd.f32 0.0, %v5416
        %5418 = vmatmul.f32.gmra.mxu0 %v5397
        %v5419 = vpop.f32.mrf.mxu0
        %v5420 = vadd.f32 0.0, %v5419
        %5421 = vdwg.mxu0
        %v5423 = vsel %vm416, %v5307, 0
        %v5426 = vsel %vm416, %v5308, 0
        %5428 = vmatpush.msra.mxu0 0.0
        %5429 = vmatpush.msra.mxu0 0.0
        %5430 = vmatpush.msra.mxu0 0.0
        %5431 = vmatpush.msra.mxu0 0.0
        %5432 = vmatpush.msra.mxu0 0.0
        %5433 = vmatpush.msra.mxu0 0.0
        %5434 = vmatpush.msra.mxu0 0.0
        %5435 = vmatpush.msra.mxu0 0.0
        %5436 = vmatpush.msra.mxu0 0.0
        %5437 = vmatpush.msra.mxu0 0.0
        %5438 = vmatpush.msra.mxu0 0.0
        %5439 = vmatpush.msra.mxu0 0.0
        %5440 = vmatpush.msra.mxu0 0.0
        %5441 = vmatpush.msra.mxu0 0.0
        %5442 = vmatpush.msra.mxu0 %v298
        %5443 = vmatpush.msra.mxu0 %v297
        %5444 = vmatmul.f32.gmra.mxu0 %v5423
        %v5445 = vpop.f32.mrf.mxu0
        %v5446 = vadd.f32 %v5417, %v5445
        %5447 = vmatmul.f32.gmra.mxu0 %v5426
        %v5448 = vpop.f32.mrf.mxu0
        %v5449 = vadd.f32 %v5420, %v5448
        %5450 = vdwg.mxu0
        %s5451 = scalar_lea.vmem %s292, 336 [#allocation9]
        %5452 = vst.msk [vmem:[%s5451] sm:$0xff] %vm533, %v5388
        %5453 = vst.msk [vmem:[%s5451 + $0x8] sm:$0xff] %vm533, %v5391
        %5456 = vrot.lane.b32.xlu0 %v5446, 32
        %v5457 = vpop.permute.xlu0 %5456
        %5458 = vrot.lane.b32.xlu0 %v5449, 32
        %v5459 = vpop.permute.xlu0 %5458
        %5462 = vst.msk [vmem:[%s5451] sm:$0xff] %vm544, %v5457
        %5463 = vst.msk [vmem:[%s5451 + $0x8] sm:$0xff] %vm544, %v5459
        %s5464 = sld [smem:[#allocation2 + $0x300]]
        %v5465 = vstv %s5464
        %v5466 = vmul.f32 %v4055, %v5465
        %v5467 = vmul.f32 %v4056, %v5465
        %s5468 = sld [smem:[#allocation2 + $0x301]]
        %v5469 = vstv %s5468
        %v5470 = vmul.f32 %v4058, %v5469
        %v5471 = vmul.f32 %v4059, %v5469
        %v5472 = vadd.f32 %v5466, %v5470
        %v5473 = vadd.f32 %v5467, %v5471
        %s5474 = sld [smem:[#allocation2 + $0x302]]
        %v5475 = vstv %s5474
        %v5476 = vmul.f32 %v4061, %v5475
        %v5477 = vmul.f32 %v4062, %v5475
        %v5478 = vadd.f32 %v5472, %v5476
        %v5479 = vadd.f32 %v5473, %v5477
        %s5480 = sld [smem:[#allocation2 + $0x303]]
        %v5481 = vstv %s5480
        %v5482 = vmul.f32 %v4064, %v5481
        %v5483 = vmul.f32 %v4065, %v5481
        %v5484 = vadd.f32 %v5478, %v5482
        %v5485 = vadd.f32 %v5479, %v5483
        %s5486 = sld [smem:[#allocation6 + $0x6]]
        %v5487 = vstv %s5486
        %v5488 = vadd.f32 %v5484, %v5487
        %v5489 = vadd.f32 %v5485, %v5487
        %s5490 = sld [smem:[#allocation2 + $0x700]]
        %v5491 = vstv %s5490
        %v5492 = vmul.f32 %v4055, %v5491
        %v5493 = vmul.f32 %v4056, %v5491
        %s5494 = sld [smem:[#allocation2 + $0x701]]
        %v5495 = vstv %s5494
        %v5496 = vmul.f32 %v4058, %v5495
        %v5497 = vmul.f32 %v4059, %v5495
        %v5498 = vadd.f32 %v5492, %v5496
        %v5499 = vadd.f32 %v5493, %v5497
        %s5500 = sld [smem:[#allocation2 + $0x702]]
        %v5501 = vstv %s5500
        %v5502 = vmul.f32 %v4061, %v5501
        %v5503 = vmul.f32 %v4062, %v5501
        %v5504 = vadd.f32 %v5498, %v5502
        %v5505 = vadd.f32 %v5499, %v5503
        %s5506 = sld [smem:[#allocation2 + $0x703]]
        %v5507 = vstv %s5506
        %v5508 = vmul.f32 %v4064, %v5507
        %v5509 = vmul.f32 %v4065, %v5507
        %v5510 = vadd.f32 %v5504, %v5508
        %v5511 = vadd.f32 %v5505, %v5509
        %s5512 = sld [smem:[#allocation6 + $0xe]]
        %v5513 = vstv %s5512
        %v5514 = vadd.f32 %v5510, %v5513
        %v5515 = vadd.f32 %v5511, %v5513
        %s5516 = sld [smem:[#allocation2 + $0xb00]]
        %v5517 = vstv %s5516
        %v5518 = vmul.f32 %v4055, %v5517
        %v5519 = vmul.f32 %v4056, %v5517
        %s5520 = sld [smem:[#allocation2 + $0xb01]]
        %v5521 = vstv %s5520
        %v5522 = vmul.f32 %v4058, %v5521
        %v5523 = vmul.f32 %v4059, %v5521
        %v5524 = vadd.f32 %v5518, %v5522
        %v5525 = vadd.f32 %v5519, %v5523
        %s5526 = sld [smem:[#allocation2 + $0xb02]]
        %v5527 = vstv %s5526
        %v5528 = vmul.f32 %v4061, %v5527
        %v5529 = vmul.f32 %v4062, %v5527
        %v5530 = vadd.f32 %v5524, %v5528
        %v5531 = vadd.f32 %v5525, %v5529
        %s5532 = sld [smem:[#allocation2 + $0xb03]]
        %v5533 = vstv %s5532
        %v5534 = vmul.f32 %v4064, %v5533
        %v5535 = vmul.f32 %v4065, %v5533
        %v5536 = vadd.f32 %v5530, %v5534
        %v5537 = vadd.f32 %v5531, %v5535
        %s5538 = sld [smem:[#allocation6 + $0x16]]
        %v5539 = vstv %s5538
        %v5540 = vadd.f32 %v5536, %v5539
        %v5541 = vadd.f32 %v5537, %v5539
        %s5542 = sld [smem:[#allocation2 + $0xf00]]
        %v5543 = vstv %s5542
        %v5544 = vmul.f32 %v4055, %v5543
        %v5545 = vmul.f32 %v4056, %v5543
        %s5546 = sld [smem:[#allocation2 + $0xf01]]
        %v5547 = vstv %s5546
        %v5548 = vmul.f32 %v4058, %v5547
        %v5549 = vmul.f32 %v4059, %v5547
        %v5550 = vadd.f32 %v5544, %v5548
        %v5551 = vadd.f32 %v5545, %v5549
        %s5552 = sld [smem:[#allocation2 + $0xf02]]
        %v5553 = vstv %s5552
        %v5554 = vmul.f32 %v4061, %v5553
        %v5555 = vmul.f32 %v4062, %v5553
        %v5556 = vadd.f32 %v5550, %v5554
        %v5557 = vadd.f32 %v5551, %v5555
        %s5558 = sld [smem:[#allocation2 + $0xf03]]
        %v5559 = vstv %s5558
        %v5560 = vmul.f32 %v4064, %v5559
        %v5561 = vmul.f32 %v4065, %v5559
        %v5562 = vadd.f32 %v5556, %v5560
        %v5563 = vadd.f32 %v5557, %v5561
        %s5564 = sld [smem:[#allocation6 + $0x1e]]
        %v5565 = vstv %s5564
        %v5566 = vadd.f32 %v5562, %v5565
        %v5567 = vadd.f32 %v5563, %v5565
        %v5569 = vsel %vm416, %v5514, 0
        %v5572 = vsel %vm416, %v5515, 0
        %5574 = vmatpush.msra.mxu0 0.0
        %5575 = vmatpush.msra.mxu0 0.0
        %5576 = vmatpush.msra.mxu0 0.0
        %5577 = vmatpush.msra.mxu0 0.0
        %5578 = vmatpush.msra.mxu0 0.0
        %5579 = vmatpush.msra.mxu0 0.0
        %5580 = vmatpush.msra.mxu0 0.0
        %5581 = vmatpush.msra.mxu0 0.0
        %5582 = vmatpush.msra.mxu0 0.0
        %5583 = vmatpush.msra.mxu0 0.0
        %5584 = vmatpush.msra.mxu0 0.0
        %5585 = vmatpush.msra.mxu0 0.0
        %5586 = vmatpush.msra.mxu0 0.0
        %5587 = vmatpush.msra.mxu0 0.0
        %5588 = vmatpush.msra.mxu0 %v300
        %5589 = vmatpush.msra.mxu0 %v299
        %5590 = vmatmul.f32.gmra.mxu0 %v5569
        %v5591 = vpop.f32.mrf.mxu0
        %v5592 = vadd.f32 0.0, %v5591
        %5593 = vmatmul.f32.gmra.mxu0 %v5572
        %v5594 = vpop.f32.mrf.mxu0
        %v5595 = vadd.f32 0.0, %v5594
        %5596 = vdwg.mxu0
        %v5598 = vsel %vm416, %v5488, 0
        %v5601 = vsel %vm416, %v5489, 0
        %5603 = vmatpush.msra.mxu0 0.0
        %5604 = vmatpush.msra.mxu0 0.0
        %5605 = vmatpush.msra.mxu0 0.0
        %5606 = vmatpush.msra.mxu0 0.0
        %5607 = vmatpush.msra.mxu0 0.0
        %5608 = vmatpush.msra.mxu0 0.0
        %5609 = vmatpush.msra.mxu0 0.0
        %5610 = vmatpush.msra.mxu0 0.0
        %5611 = vmatpush.msra.mxu0 0.0
        %5612 = vmatpush.msra.mxu0 0.0
        %5613 = vmatpush.msra.mxu0 0.0
        %5614 = vmatpush.msra.mxu0 0.0
        %5615 = vmatpush.msra.mxu0 0.0
        %5616 = vmatpush.msra.mxu0 0.0
        %5617 = vmatpush.msra.mxu0 %v298
        %5618 = vmatpush.msra.mxu0 %v297
        %5619 = vmatmul.f32.gmra.mxu0 %v5598
        %v5620 = vpop.f32.mrf.mxu0
        %v5621 = vadd.f32 %v5592, %v5620
        %5622 = vmatmul.f32.gmra.mxu0 %v5601
        %v5623 = vpop.f32.mrf.mxu0
        %v5624 = vadd.f32 %v5595, %v5623
        %5625 = vdwg.mxu0
        %v5627 = vsel %vm416, %v5566, 0
        %v5630 = vsel %vm416, %v5567, 0
        %5632 = vmatpush.msra.mxu0 0.0
        %5633 = vmatpush.msra.mxu0 0.0
        %5634 = vmatpush.msra.mxu0 0.0
        %5635 = vmatpush.msra.mxu0 0.0
        %5636 = vmatpush.msra.mxu0 0.0
        %5637 = vmatpush.msra.mxu0 0.0
        %5638 = vmatpush.msra.mxu0 0.0
        %5639 = vmatpush.msra.mxu0 0.0
        %5640 = vmatpush.msra.mxu0 0.0
        %5641 = vmatpush.msra.mxu0 0.0
        %5642 = vmatpush.msra.mxu0 0.0
        %5643 = vmatpush.msra.mxu0 0.0
        %5644 = vmatpush.msra.mxu0 0.0
        %5645 = vmatpush.msra.mxu0 0.0
        %5646 = vmatpush.msra.mxu0 %v300
        %5647 = vmatpush.msra.mxu0 %v299
        %5648 = vmatmul.f32.gmra.mxu0 %v5627
        %v5649 = vpop.f32.mrf.mxu0
        %v5650 = vadd.f32 0.0, %v5649
        %5651 = vmatmul.f32.gmra.mxu0 %v5630
        %v5652 = vpop.f32.mrf.mxu0
        %v5653 = vadd.f32 0.0, %v5652
        %5654 = vdwg.mxu0
        %v5656 = vsel %vm416, %v5540, 0
        %v5659 = vsel %vm416, %v5541, 0
        %5661 = vmatpush.msra.mxu0 0.0
        %5662 = vmatpush.msra.mxu0 0.0
        %5663 = vmatpush.msra.mxu0 0.0
        %5664 = vmatpush.msra.mxu0 0.0
        %5665 = vmatpush.msra.mxu0 0.0
        %5666 = vmatpush.msra.mxu0 0.0
        %5667 = vmatpush.msra.mxu0 0.0
        %5668 = vmatpush.msra.mxu0 0.0
        %5669 = vmatpush.msra.mxu0 0.0
        %5670 = vmatpush.msra.mxu0 0.0
        %5671 = vmatpush.msra.mxu0 0.0
        %5672 = vmatpush.msra.mxu0 0.0
        %5673 = vmatpush.msra.mxu0 0.0
        %5674 = vmatpush.msra.mxu0 0.0
        %5675 = vmatpush.msra.mxu0 %v298
        %5676 = vmatpush.msra.mxu0 %v297
        %5677 = vmatmul.f32.gmra.mxu0 %v5656
        %v5678 = vpop.f32.mrf.mxu0
        %v5679 = vadd.f32 %v5650, %v5678
        %5680 = vmatmul.f32.gmra.mxu0 %v5659
        %v5681 = vpop.f32.mrf.mxu0
        %v5682 = vadd.f32 %v5653, %v5681
        %5683 = vdwg.mxu0
        %s5684 = scalar_lea.vmem %s292, 352 [#allocation9]
        %5685 = vst.msk [vmem:[%s5684] sm:$0xff] %vm533, %v5621
        %5686 = vst.msk [vmem:[%s5684 + $0x8] sm:$0xff] %vm533, %v5624
        %5689 = vrot.lane.b32.xlu0 %v5679, 32
        %v5690 = vpop.permute.xlu0 %5689
        %5691 = vrot.lane.b32.xlu0 %v5682, 32
        %v5692 = vpop.permute.xlu0 %5691
        %5695 = vst.msk [vmem:[%s5684] sm:$0xff] %vm544, %v5690
        %5696 = vst.msk [vmem:[%s5684 + $0x8] sm:$0xff] %vm544, %v5692
        %s5697 = sld [smem:[#allocation2 + $0x380]]
        %v5698 = vstv %s5697
        %v5699 = vmul.f32 %v4055, %v5698
        %v5700 = vmul.f32 %v4056, %v5698
        %s5701 = sld [smem:[#allocation2 + $0x381]]
        %v5702 = vstv %s5701
        %v5703 = vmul.f32 %v4058, %v5702
        %v5704 = vmul.f32 %v4059, %v5702
        %v5705 = vadd.f32 %v5699, %v5703
        %v5706 = vadd.f32 %v5700, %v5704
        %s5707 = sld [smem:[#allocation2 + $0x382]]
        %v5708 = vstv %s5707
        %v5709 = vmul.f32 %v4061, %v5708
        %v5710 = vmul.f32 %v4062, %v5708
        %v5711 = vadd.f32 %v5705, %v5709
        %v5712 = vadd.f32 %v5706, %v5710
        %s5713 = sld [smem:[#allocation2 + $0x383]]
        %v5714 = vstv %s5713
        %v5715 = vmul.f32 %v4064, %v5714
        %v5716 = vmul.f32 %v4065, %v5714
        %v5717 = vadd.f32 %v5711, %v5715
        %v5718 = vadd.f32 %v5712, %v5716
        %s5719 = sld [smem:[#allocation6 + $0x7]]
        %v5720 = vstv %s5719
        %v5721 = vadd.f32 %v5717, %v5720
        %v5722 = vadd.f32 %v5718, %v5720
        %s5723 = sld [smem:[#allocation2 + $0x780]]
        %v5724 = vstv %s5723
        %v5725 = vmul.f32 %v4055, %v5724
        %v5726 = vmul.f32 %v4056, %v5724
        %s5727 = sld [smem:[#allocation2 + $0x781]]
        %v5728 = vstv %s5727
        %v5729 = vmul.f32 %v4058, %v5728
        %v5730 = vmul.f32 %v4059, %v5728
        %v5731 = vadd.f32 %v5725, %v5729
        %v5732 = vadd.f32 %v5726, %v5730
        %s5733 = sld [smem:[#allocation2 + $0x782]]
        %v5734 = vstv %s5733
        %v5735 = vmul.f32 %v4061, %v5734
        %v5736 = vmul.f32 %v4062, %v5734
        %v5737 = vadd.f32 %v5731, %v5735
        %v5738 = vadd.f32 %v5732, %v5736
        %s5739 = sld [smem:[#allocation2 + $0x783]]
        %v5740 = vstv %s5739
        %v5741 = vmul.f32 %v4064, %v5740
        %v5742 = vmul.f32 %v4065, %v5740
        %v5743 = vadd.f32 %v5737, %v5741
        %v5744 = vadd.f32 %v5738, %v5742
        %s5745 = sld [smem:[#allocation6 + $0xf]]
        %v5746 = vstv %s5745
        %v5747 = vadd.f32 %v5743, %v5746
        %v5748 = vadd.f32 %v5744, %v5746
        %s5749 = sld [smem:[#allocation2 + $0xb80]]
        %v5750 = vstv %s5749
        %v5751 = vmul.f32 %v4055, %v5750
        %v5752 = vmul.f32 %v4056, %v5750
        %s5753 = sld [smem:[#allocation2 + $0xb81]]
        %v5754 = vstv %s5753
        %v5755 = vmul.f32 %v4058, %v5754
        %v5756 = vmul.f32 %v4059, %v5754
        %v5757 = vadd.f32 %v5751, %v5755
        %v5758 = vadd.f32 %v5752, %v5756
        %s5759 = sld [smem:[#allocation2 + $0xb82]]
        %v5760 = vstv %s5759
        %v5761 = vmul.f32 %v4061, %v5760
        %v5762 = vmul.f32 %v4062, %v5760
        %v5763 = vadd.f32 %v5757, %v5761
        %v5764 = vadd.f32 %v5758, %v5762
        %s5765 = sld [smem:[#allocation2 + $0xb83]]
        %v5766 = vstv %s5765
        %v5767 = vmul.f32 %v4064, %v5766
        %v5768 = vmul.f32 %v4065, %v5766
        %v5769 = vadd.f32 %v5763, %v5767
        %v5770 = vadd.f32 %v5764, %v5768
        %s5771 = sld [smem:[#allocation6 + $0x17]]
        %v5772 = vstv %s5771
        %v5773 = vadd.f32 %v5769, %v5772
        %v5774 = vadd.f32 %v5770, %v5772
        %s5775 = sld [smem:[#allocation2 + $0xf80]]
        %v5776 = vstv %s5775
        %v5777 = vmul.f32 %v4055, %v5776
        %v5778 = vmul.f32 %v4056, %v5776
        %s5779 = sld [smem:[#allocation2 + $0xf81]]
        %v5780 = vstv %s5779
        %v5781 = vmul.f32 %v4058, %v5780
        %v5782 = vmul.f32 %v4059, %v5780
        %v5783 = vadd.f32 %v5777, %v5781
        %v5784 = vadd.f32 %v5778, %v5782
        %s5785 = sld [smem:[#allocation2 + $0xf82]]
        %v5786 = vstv %s5785
        %v5787 = vmul.f32 %v4061, %v5786
        %v5788 = vmul.f32 %v4062, %v5786
        %v5789 = vadd.f32 %v5783, %v5787
        %v5790 = vadd.f32 %v5784, %v5788
        %s5791 = sld [smem:[#allocation2 + $0xf83]]
        %v5792 = vstv %s5791
        %v5793 = vmul.f32 %v4064, %v5792
        %v5794 = vmul.f32 %v4065, %v5792
        %v5795 = vadd.f32 %v5789, %v5793
        %v5796 = vadd.f32 %v5790, %v5794
        %s5797 = sld [smem:[#allocation6 + $0x1f]]
        %v5798 = vstv %s5797
        %v5799 = vadd.f32 %v5795, %v5798
        %v5800 = vadd.f32 %v5796, %v5798
        %v5802 = vsel %vm416, %v5747, 0
        %v5805 = vsel %vm416, %v5748, 0
        %5807 = vmatpush.msra.mxu0 0.0
        %5808 = vmatpush.msra.mxu0 0.0
        %5809 = vmatpush.msra.mxu0 0.0
        %5810 = vmatpush.msra.mxu0 0.0
        %5811 = vmatpush.msra.mxu0 0.0
        %5812 = vmatpush.msra.mxu0 0.0
        %5813 = vmatpush.msra.mxu0 0.0
        %5814 = vmatpush.msra.mxu0 0.0
        %5815 = vmatpush.msra.mxu0 0.0
        %5816 = vmatpush.msra.mxu0 0.0
        %5817 = vmatpush.msra.mxu0 0.0
        %5818 = vmatpush.msra.mxu0 0.0
        %5819 = vmatpush.msra.mxu0 0.0
        %5820 = vmatpush.msra.mxu0 0.0
        %5821 = vmatpush.msra.mxu0 %v300
        %5822 = vmatpush.msra.mxu0 %v299
        %5823 = vmatmul.f32.gmra.mxu0 %v5802
        %v5824 = vpop.f32.mrf.mxu0
        %v5825 = vadd.f32 0.0, %v5824
        %5826 = vmatmul.f32.gmra.mxu0 %v5805
        %v5827 = vpop.f32.mrf.mxu0
        %v5828 = vadd.f32 0.0, %v5827
        %5829 = vdwg.mxu0
        %v5831 = vsel %vm416, %v5721, 0
        %v5834 = vsel %vm416, %v5722, 0
        %5836 = vmatpush.msra.mxu0 0.0
        %5837 = vmatpush.msra.mxu0 0.0
        %5838 = vmatpush.msra.mxu0 0.0
        %5839 = vmatpush.msra.mxu0 0.0
        %5840 = vmatpush.msra.mxu0 0.0
        %5841 = vmatpush.msra.mxu0 0.0
        %5842 = vmatpush.msra.mxu0 0.0
        %5843 = vmatpush.msra.mxu0 0.0
        %5844 = vmatpush.msra.mxu0 0.0
        %5845 = vmatpush.msra.mxu0 0.0
        %5846 = vmatpush.msra.mxu0 0.0
        %5847 = vmatpush.msra.mxu0 0.0
        %5848 = vmatpush.msra.mxu0 0.0
        %5849 = vmatpush.msra.mxu0 0.0
        %5850 = vmatpush.msra.mxu0 %v298
        %5851 = vmatpush.msra.mxu0 %v297
        %5852 = vmatmul.f32.gmra.mxu0 %v5831
        %v5853 = vpop.f32.mrf.mxu0
        %v5854 = vadd.f32 %v5825, %v5853
        %5855 = vmatmul.f32.gmra.mxu0 %v5834
        %v5856 = vpop.f32.mrf.mxu0
        %v5857 = vadd.f32 %v5828, %v5856
        %5858 = vdwg.mxu0
        %v5860 = vsel %vm416, %v5799, 0
        %v5863 = vsel %vm416, %v5800, 0
        %5865 = vmatpush.msra.mxu0 0.0
        %5866 = vmatpush.msra.mxu0 0.0
        %5867 = vmatpush.msra.mxu0 0.0
        %5868 = vmatpush.msra.mxu0 0.0
        %5869 = vmatpush.msra.mxu0 0.0
        %5870 = vmatpush.msra.mxu0 0.0
        %5871 = vmatpush.msra.mxu0 0.0
        %5872 = vmatpush.msra.mxu0 0.0
        %5873 = vmatpush.msra.mxu0 0.0
        %5874 = vmatpush.msra.mxu0 0.0
        %5875 = vmatpush.msra.mxu0 0.0
        %5876 = vmatpush.msra.mxu0 0.0
        %5877 = vmatpush.msra.mxu0 0.0
        %5878 = vmatpush.msra.mxu0 0.0
        %5879 = vmatpush.msra.mxu0 %v300
        %5880 = vmatpush.msra.mxu0 %v299
        %5881 = vmatmul.f32.gmra.mxu0 %v5860
        %v5882 = vpop.f32.mrf.mxu0
        %v5883 = vadd.f32 0.0, %v5882
        %5884 = vmatmul.f32.gmra.mxu0 %v5863
        %v5885 = vpop.f32.mrf.mxu0
        %v5886 = vadd.f32 0.0, %v5885
        %5887 = vdwg.mxu0
        %v5889 = vsel %vm416, %v5773, 0
        %v5892 = vsel %vm416, %v5774, 0
        %5894 = vmatpush.msra.mxu0 0.0
        %5895 = vmatpush.msra.mxu0 0.0
        %5896 = vmatpush.msra.mxu0 0.0
        %5897 = vmatpush.msra.mxu0 0.0
        %5898 = vmatpush.msra.mxu0 0.0
        %5899 = vmatpush.msra.mxu0 0.0
        %5900 = vmatpush.msra.mxu0 0.0
        %5901 = vmatpush.msra.mxu0 0.0
        %5902 = vmatpush.msra.mxu0 0.0
        %5903 = vmatpush.msra.mxu0 0.0
        %5904 = vmatpush.msra.mxu0 0.0
        %5905 = vmatpush.msra.mxu0 0.0
        %5906 = vmatpush.msra.mxu0 0.0
        %5907 = vmatpush.msra.mxu0 0.0
        %5908 = vmatpush.msra.mxu0 %v298
        %5909 = vmatpush.msra.mxu0 %v297
        %5910 = vmatmul.f32.gmra.mxu0 %v5889
        %v5911 = vpop.f32.mrf.mxu0
        %v5912 = vadd.f32 %v5883, %v5911
        %5913 = vmatmul.f32.gmra.mxu0 %v5892
        %v5914 = vpop.f32.mrf.mxu0
        %v5915 = vadd.f32 %v5886, %v5914
        %5916 = vdwg.mxu0
        %s5917 = scalar_lea.vmem %s292, 368 [#allocation9]
        %5918 = vst.msk [vmem:[%s5917] sm:$0xff] %vm533, %v5854
        %5919 = vst.msk [vmem:[%s5917 + $0x8] sm:$0xff] %vm533, %v5857
        %5922 = vrot.lane.b32.xlu0 %v5912, 32
        %v5923 = vpop.permute.xlu0 %5922
        %5924 = vrot.lane.b32.xlu0 %v5915, 32
        %v5925 = vpop.permute.xlu0 %5924
        %5928 = vst.msk [vmem:[%s5917] sm:$0xff] %vm544, %v5923
        %5929 = vst.msk [vmem:[%s5917 + $0x8] sm:$0xff] %vm544, %v5925
        %s5930 = sand.u32 %s158, 1
        %s5931 = scalar_lea.sflag [#allocation4], %s5930
        %s5932 = sand.u32 %s158, 1
        %s5933 = smul.addr %s5932, 384
        %s5934 = scalar_lea.vmem [#allocation9], %s5933
        // Predicated region
        $region53: #{tpu_custom_call.1} parent=39 // pred_check
          %p5935 = pneg %p168
        $region54: #{tpu_custom_call.1} parent=39 // pred_check_branch
          %5937 = sbr.rel (%p5935) target = $region56
        $region55: #{tpu_custom_call.1} parent=39 // pred_region
          %s5938 = smul.u32 3, %s28
          %s5939 = smul.u32 2, %s29
          %5941 = vsyncadd %s5931, 0
          %s5942 = smul.addr %s5938, 16
          %s5943 = sadd.s32 %s5939, %s5942
          %s5944 = smul.addr %s5943, 8
          %s5945 = scalar_lea.hbm %s5, %s5944
          %s5946 = sshll.u32 %s5934, 4
          %s5947 = int_to_ptr.vmem [resolvable:$true] %s5946
          %s5948 = sshll.u32 %s5945, 4
          %s5949 = int_to_ptr.hbm [resolvable:$true] %s5948
          %5954 = dma.vmem_to_hbm [thread:$0]  %s5947, 6144, %s5949, %s5931, 128, 128, 8
        $region56: #{tpu_custom_call.1} parent=39 // pred_fallthru
          _
      $region40: #{tpu_custom_call.1} parent=5 // pred_fallthru
        _
      %p5955 = scmp.le.s32.totalorder 2, %s19
      // Predicated region
      $region57: #{tpu_custom_call.1} parent=5 // pred_check
        %p5956 = pneg %p5955
      $region58: #{tpu_custom_call.1} parent=5 // pred_check_branch
        %5958 = sbr.rel (%p5956) target = $region60
      $region59: #{tpu_custom_call.1} parent=5 // pred_region
        %s5959 = ssub.s32 %s19, 2
        // Predicated region
        $region61: #{tpu_custom_call.1} parent=59 // pred_check
          %p5960 = pneg %p174
        $region62: #{tpu_custom_call.1} parent=59 // pred_check_branch
          %5962 = sbr.rel (%p5960) target = $region64
        $region63: #{tpu_custom_call.1} parent=59 // pred_region
          %s5963 = sand.u32 %s159, 1
          %s5964 = scalar_lea.sflag [#allocation4], %s5963
          %s5965 = sand.u32 %s159, 1
          %s5966 = smul.addr %s5965, 384
          %s5967 = scalar_lea.vmem [#allocation9], %s5966
          %5969 = dma.done %s5964, 6144
        $region64: #{tpu_custom_call.1} parent=59 // pred_fallthru
          _
      $region60: #{tpu_custom_call.1} parent=5 // pred_fallthru
        _
    $region6: #{tpu_custom_call.1} parent=1 // loop_footer
      %s23 = sadd.s32 1, %s19
    $region7: #{tpu_custom_call.1} parent=1 // loop_footer_branch
      %18 = sbr.rel target = $region3
    $region8: #{tpu_custom_call.1} parent=1 // loop_exit
      _
    %5970 = vsyncpa [#allocation3], 1
    %s5971 = scalar_lea.sflag [#allocation3], 1
    %5972 = vsyncpa %s5971, 1
    %5973 = vsyncpa [#allocation4], 1
    %s5974 = scalar_lea.sflag [#allocation4], 1
    %5975 = vsyncpa %s5974, 1
    %5976 = vsyncpa [#allocation5], 1
    %s5977 = scalar_lea.sflag [#allocation5], 1
    %5978 = vsyncpa %s5977, 1
    %5979 = vsyncpa [#allocation7], 1

</llo_original>
